<compile_context>
chip_gen: v6e
topology: v6e:2x2x1
jax: 0.10.0
libtpu: 0.0.40
codegen_flags: <defaults>
</compile_context>

<pallas_src>
import functools

import numpy as np
import jax
import jax.numpy as jnp
from jax import lax
from jax.experimental import pallas as pl
from jax.experimental.pallas import tpu as pltpu

C_MID = 256  # fixed by the PoseDecoder architecture (squeeze/pose_0/pose_1 width)


def _pose_decoder_kernel(B, H, W,
                         x_ref, myt_ref, myb_ref, mxl_ref, mxr_ref,
                         wsq_ref, bsq_ref,
                         w0_ref, b0_ref, w1_ref, b1_ref,
                         w2_ref, b2_ref,
                         out_ref):
    M = B * H * W

    # ---- squeeze: 1x1 conv + ReLU  ((M, Cin) @ (Cin, 256)) -------------------
    h = jnp.dot(x_ref[...], wsq_ref[...], preferred_element_type=jnp.float32)
    h = jnp.maximum(h + bsq_ref[...], 0.0)                  # (M, 256) f32

    # Precomputed f32 border masks (1 inside the image for the given tap
    # direction, 0 where the 3x3 tap would cross the image border / wrap).
    myt, myb = myt_ref[...], myb_ref[...]                   # dy = -1 / +1 valid
    mxl, mxr = mxl_ref[...], mxr_ref[...]                   # dx = -1 / +1 valid
    tap_mask = []
    for ky in range(3):
        for kx in range(3):
            dy, dx = ky - 1, kx - 1
            m = None
            if dy == -1:
                m = myt
            elif dy == 1:
                m = myb
            if dx == -1:
                m = mxl if m is None else m * mxl
            elif dx == 1:
                m = mxr if m is None else m * mxr
            tap_mask.append(m)                              # None for center tap

    # ---- 3x3 conv, stride 1, pad 1, as 9 rolled+masked matmuls --------------
    def conv3x3(h_f32, w_ref, b_ref):
        acc = None
        for ky in range(3):
            for kx in range(3):
                dy, dx = ky - 1, kx - 1
                s = dy * W + dx                 # flattened (b,y,x) row offset
                if s == 0:
                    t = h_f32
                else:
                    # want t[m] = h[m + s]; pltpu.roll follows jnp.roll
                    # semantics, so use a non-negative shift of (-s) mod M.
                    t = pltpu.roll(h_f32, (-s) % M, 0)
                m = tap_mask[ky * 3 + kx]
                if m is not None:
                    t = t * m                   # zero out-of-image / wrapped rows
                d = jnp.dot(t.astype(jnp.bfloat16), w_ref[ky, kx],
                            preferred_element_type=jnp.float32)
                acc = d if acc is None else acc + d
        return acc + b_ref[...]                 # bias added once, at the end

    h = jnp.maximum(conv3x3(h, w0_ref, b0_ref), 0.0)        # pose_0 + ReLU
    h = jnp.maximum(conv3x3(h, w1_ref, b1_ref), 0.0)        # pose_1 + ReLU

    # ---- pose_2 (1x1, linear) fused after the spatial mean ------------------
    hm = jnp.concatenate(
        [jnp.mean(h[b * H * W:(b + 1) * H * W, :], axis=0, keepdims=True)
         for b in range(B)],
        axis=0)                                             # (B, 256) f32
    out = jnp.dot(hm.astype(jnp.bfloat16), w2_ref[...],
                  preferred_element_type=jnp.float32) + b2_ref[...]
    out_ref[...] = (out * 0.01).astype(out_ref.dtype)


def pose_decoder_forward(input_features, params, num_frames_to_predict_for):
    """Mirrors PoseDecoder.forward (stride=1, single input feature)."""
    # As in the PyTorch module, channel dims only line up for one input feature.
    assert len(input_features) == 1
    x_nchw = input_features[0][-1]                          # (B, Cin, H, W)
    x = jnp.transpose(x_nchw, (0, 2, 3, 1))                 # NCHW -> NHWC
    B, H, W, Cin = x.shape
    M = B * H * W
    nf6 = 6 * num_frames_to_predict_for

    wsq, bsq, w0, b0, w1, b1, w2, b2 = params

    # bf16 matmul operands (accumulation stays f32 in-kernel); fold batch into M.
    to_bf16 = lambda a: a.astype(jnp.bfloat16)
    x2 = to_bf16(x).reshape(M, Cin)
    wsq_b, w0_b, w1_b, w2_b = map(to_bf16, (wsq, w0, w1, w2))
    bsq2, b02, b12, b22 = (b.astype(jnp.float32).reshape(1, -1)
                           for b in (bsq, b0, b1, b2))

    # Per-row (flattened b, y, x) border masks for the 3x3 taps, built on host.
    yy = np.tile(np.repeat(np.arange(H), W), B)             # (M,)
    xx = np.tile(np.arange(W), B * H)                       # (M,)

    def fmask(cond):
        return jnp.asarray(cond.astype(np.float32).reshape(M, 1))

    m_yt = fmask(yy >= 1)          # row above exists   (dy = -1)
    m_yb = fmask(yy <= H - 2)      # row below exists   (dy = +1)
    m_xl = fmask(xx >= 1)          # col to the left    (dx = -1)
    m_xr = fmask(xx <= W - 2)      # col to the right   (dx = +1)

    kernel = functools.partial(_pose_decoder_kernel, B, H, W)

    # No grid: single invocation, whole arrays staged into VMEM once.
    out = pl.pallas_call(
        kernel,
        out_shape=jax.ShapeDtypeStruct((B, nf6), jnp.float32),
    )(x2, m_yt, m_yb, m_xl, m_xr,
      wsq_b, bsq2, w0_b, b02, w1_b, b12, w2_b, b22)

    return out.reshape(-1, num_frames_to_predict_for, 6)


def pose_decoder_ref(input_features, params, num_frames_to_predict_for):
    """Pure-JAX reference (lax conv) with the same bf16-operand/f32-accumulate
    precision policy as the kernel."""
    x = jnp.transpose(input_features[0][-1], (0, 2, 3, 1))
    wsq, bsq, w0, b0, w1, b1, w2, b2 = params
    dn = ('NHWC', 'HWIO', 'NHWC')

    def conv(t, w, pad):
        return lax.conv_general_dilated(
            t.astype(jnp.bfloat16), w.astype(jnp.bfloat16), (1, 1), pad,
            dimension_numbers=dn, preferred_element_type=jnp.float32)

    h = jax.nn.relu(conv(x, wsq.reshape(1, 1, *wsq.shape), 'VALID') + bsq)
    h = jax.nn.relu(conv(h, w0, ((1, 1), (1, 1))) + b0)
    h = jax.nn.relu(conv(h, w1, ((1, 1), (1, 1))) + b1)
    out = conv(h, w2.reshape(1, 1, *w2.shape), 'VALID') + b2
    out = jnp.mean(out, axis=(1, 2)) * 0.01
    return out.reshape(-1, num_frames_to_predict_for, 6)


if __name__ == "__main__":
    num_ch_enc = np.array([16, 32, 64, 128, 64])   # only the last entry is used
    num_frames_to_predict_for = 2
    B, H, W = 2, 8, 8
    Cin = int(num_ch_enc[-1])

    key = jax.random.PRNGKey(0)
    keys = jax.random.split(key, 9)

    def winit(k, shape, fan_in):
        return jax.random.normal(k, shape, jnp.float32) / np.sqrt(fan_in)

    wsq = winit(keys[0], (Cin, C_MID), Cin)                       # squeeze 1x1
    bsq = jax.random.normal(keys[1], (C_MID,), jnp.float32) * 0.01
    w0 = winit(keys[2], (3, 3, C_MID, C_MID), 9 * C_MID)          # pose_0 3x3 (HWIO)
    b0 = jax.random.normal(keys[3], (C_MID,), jnp.float32) * 0.01
    w1 = winit(keys[4], (3, 3, C_MID, C_MID), 9 * C_MID)          # pose_1 3x3 (HWIO)
    b1 = jax.random.normal(keys[5], (C_MID,), jnp.float32) * 0.01
    w2 = winit(keys[6], (C_MID, 6 * num_frames_to_predict_for), C_MID)  # pose_2 1x1
    b2 = jax.random.normal(keys[7], (6 * num_frames_to_predict_for,), jnp.float32) * 0.01
    params = (wsq, bsq, w0, b0, w1, b1, w2, b2)

    x_nchw = jax.random.normal(keys[8], (B, Cin, H, W), jnp.float32)
    input_features = [[x_nchw]]   # list of feature pyramids; only last level used

    pose = jax.block_until_ready(
        pose_decoder_forward(input_features, params, num_frames_to_predict_for))
    pose_ref = jax.block_until_ready(
        pose_decoder_ref(input_features, params, num_frames_to_predict_for))

    assert pose.shape == (B, num_frames_to_predict_for, 6)
    # Both kernel and reference use bf16 matmul operands with f32 accumulation;
    # remaining differences are accumulation order and mean<->pose_2 commutation.
    np.testing.assert_allclose(np.asarray(pose), np.asarray(pose_ref),
                               rtol=2e-2, atol=5e-5)
    print("KERNEL_OK")
</pallas_src>

<mosaic_0001>
module attributes {stable_mosaic.version = 11 : i64} {
  func.func @_pose_decoder_kernel(%arg0: memref<128x64xbf16, #tpu.memory_space<vmem>>, %arg1: memref<128x1xf32, #tpu.memory_space<vmem>>, %arg2: memref<128x1xf32, #tpu.memory_space<vmem>>, %arg3: memref<128x1xf32, #tpu.memory_space<vmem>>, %arg4: memref<128x1xf32, #tpu.memory_space<vmem>>, %arg5: memref<64x256xbf16, #tpu.memory_space<vmem>>, %arg6: memref<1x256xf32, #tpu.memory_space<vmem>>, %arg7: memref<3x3x256x256xbf16, #tpu.memory_space<vmem>>, %arg8: memref<1x256xf32, #tpu.memory_space<vmem>>, %arg9: memref<3x3x256x256xbf16, #tpu.memory_space<vmem>>, %arg10: memref<1x256xf32, #tpu.memory_space<vmem>>, %arg11: memref<256x12xbf16, #tpu.memory_space<vmem>>, %arg12: memref<1x12xf32, #tpu.memory_space<vmem>>, %arg13: memref<2x12xf32, #tpu.memory_space<vmem>>) attributes {dimension_semantics = [], scalar_prefetch = 0 : i64, scratch_operands = 0 : i64, tpu.core_type = #tpu.core_type<tc>} {
    %c0 = arith.constant 0 : index
    %c0_0 = arith.constant 0 : index
    %0 = vector.load %arg0[%c0, %c0_0] : memref<128x64xbf16, #tpu.memory_space<vmem>>, vector<128x64xbf16>
    %c0_1 = arith.constant 0 : index
    %c0_2 = arith.constant 0 : index
    %1 = vector.load %arg5[%c0_1, %c0_2] : memref<64x256xbf16, #tpu.memory_space<vmem>>, vector<64x256xbf16>
    %cst = arith.constant dense<0.000000e+00> : vector<128x256xf32>
    %2 = tpu.matmul %0, %1, %cst {dimension_numbers = #tpu.dot_dimension_numbers<[1], [0], [0], [1], [0, 0, 1, 1], [], []>} : vector<128x64xbf16>, vector<64x256xbf16>, vector<128x256xf32> -> vector<128x256xf32>
    %c0_3 = arith.constant 0 : index
    %c0_4 = arith.constant 0 : index
    %3 = vector.load %arg6[%c0_3, %c0_4] : memref<1x256xf32, #tpu.memory_space<vmem>>, vector<1x256xf32>
    %4 = vector.broadcast %3 : vector<1x256xf32> to vector<128x256xf32>
    %5 = arith.addf %2, %4 : vector<128x256xf32>
    %cst_5 = arith.constant 0.000000e+00 : f32
    %6 = vector.broadcast %cst_5 : f32 to vector<128x256xf32>
    %7 = arith.maximumf %5, %6 : vector<128x256xf32>
    %c0_6 = arith.constant 0 : index
    %c0_7 = arith.constant 0 : index
    %8 = vector.load %arg1[%c0_6, %c0_7] : memref<128x1xf32, #tpu.memory_space<vmem>>, vector<128x1xf32>
    %c0_8 = arith.constant 0 : index
    %c0_9 = arith.constant 0 : index
    %9 = vector.load %arg2[%c0_8, %c0_9] : memref<128x1xf32, #tpu.memory_space<vmem>>, vector<128x1xf32>
    %c0_10 = arith.constant 0 : index
    %c0_11 = arith.constant 0 : index
    %10 = vector.load %arg3[%c0_10, %c0_11] : memref<128x1xf32, #tpu.memory_space<vmem>>, vector<128x1xf32>
    %c0_12 = arith.constant 0 : index
    %c0_13 = arith.constant 0 : index
    %11 = vector.load %arg4[%c0_12, %c0_13] : memref<128x1xf32, #tpu.memory_space<vmem>>, vector<128x1xf32>
    %12 = arith.mulf %8, %10 : vector<128x1xf32>
    %13 = arith.mulf %8, %11 : vector<128x1xf32>
    %14 = arith.mulf %9, %10 : vector<128x1xf32>
    %15 = arith.mulf %9, %11 : vector<128x1xf32>
    %c9_i32 = arith.constant 9 : i32
    %16 = tpu.dynamic_rotate %7 by %c9_i32 dim 0 : vector<128x256xf32>, i32 -> vector<128x256xf32>
    %17 = vector.broadcast %12 : vector<128x1xf32> to vector<128x256xf32>
    %18 = arith.mulf %16, %17 : vector<128x256xf32>
    %19 = arith.truncf %18 : vector<128x256xf32> to vector<128x256xbf16>
    %c0_14 = arith.constant 0 : index
    %c0_15 = arith.constant 0 : index
    %c0_16 = arith.constant 0 : index
    %c0_17 = arith.constant 0 : index
    %20 = vector.load %arg7[%c0_14, %c0_15, %c0_16, %c0_17] : memref<3x3x256x256xbf16, #tpu.memory_space<vmem>>, vector<1x1x256x256xbf16>
    %21 = vector.shape_cast %20 : vector<1x1x256x256xbf16> to vector<256x256xbf16>
    %cst_18 = arith.constant dense<0.000000e+00> : vector<128x256xf32>
    %22 = tpu.matmul %19, %21, %cst_18 {dimension_numbers = #tpu.dot_dimension_numbers<[1], [0], [0], [1], [0, 0, 1, 1], [], []>} : vector<128x256xbf16>, vector<256x256xbf16>, vector<128x256xf32> -> vector<128x256xf32>
    %c8_i32 = arith.constant 8 : i32
    %23 = tpu.dynamic_rotate %7 by %c8_i32 dim 0 : vector<128x256xf32>, i32 -> vector<128x256xf32>
    %24 = vector.broadcast %8 : vector<128x1xf32> to vector<128x256xf32>
    %25 = arith.mulf %23, %24 : vector<128x256xf32>
    %26 = arith.truncf %25 : vector<128x256xf32> to vector<128x256xbf16>
    %c0_19 = arith.constant 0 : index
    %c1 = arith.constant 1 : index
    %c0_20 = arith.constant 0 : index
    %c0_21 = arith.constant 0 : index
    %27 = vector.load %arg7[%c0_19, %c1, %c0_20, %c0_21] : memref<3x3x256x256xbf16, #tpu.memory_space<vmem>>, vector<1x1x256x256xbf16>
    %28 = vector.shape_cast %27 : vector<1x1x256x256xbf16> to vector<256x256xbf16>
    %cst_22 = arith.constant dense<0.000000e+00> : vector<128x256xf32>
    %29 = tpu.matmul %26, %28, %cst_22 {dimension_numbers = #tpu.dot_dimension_numbers<[1], [0], [0], [1], [0, 0, 1, 1], [], []>} : vector<128x256xbf16>, vector<256x256xbf16>, vector<128x256xf32> -> vector<128x256xf32>
    %30 = arith.addf %22, %29 : vector<128x256xf32>
    %c7_i32 = arith.constant 7 : i32
    %31 = tpu.dynamic_rotate %7 by %c7_i32 dim 0 : vector<128x256xf32>, i32 -> vector<128x256xf32>
    %32 = vector.broadcast %13 : vector<128x1xf32> to vector<128x256xf32>
    %33 = arith.mulf %31, %32 : vector<128x256xf32>
    %34 = arith.truncf %33 : vector<128x256xf32> to vector<128x256xbf16>
    %c0_23 = arith.constant 0 : index
    %c2 = arith.constant 2 : index
    %c0_24 = arith.constant 0 : index
    %c0_25 = arith.constant 0 : index
    %35 = vector.load %arg7[%c0_23, %c2, %c0_24, %c0_25] : memref<3x3x256x256xbf16, #tpu.memory_space<vmem>>, vector<1x1x256x256xbf16>
    %36 = vector.shape_cast %35 : vector<1x1x256x256xbf16> to vector<256x256xbf16>
    %cst_26 = arith.constant dense<0.000000e+00> : vector<128x256xf32>
    %37 = tpu.matmul %34, %36, %cst_26 {dimension_numbers = #tpu.dot_dimension_numbers<[1], [0], [0], [1], [0, 0, 1, 1], [], []>} : vector<128x256xbf16>, vector<256x256xbf16>, vector<128x256xf32> -> vector<128x256xf32>
    %38 = arith.addf %30, %37 : vector<128x256xf32>
    %c1_i32 = arith.constant 1 : i32
    %39 = tpu.dynamic_rotate %7 by %c1_i32 dim 0 : vector<128x256xf32>, i32 -> vector<128x256xf32>
    %40 = vector.broadcast %10 : vector<128x1xf32> to vector<128x256xf32>
    %41 = arith.mulf %39, %40 : vector<128x256xf32>
    %42 = arith.truncf %41 : vector<128x256xf32> to vector<128x256xbf16>
    %c1_27 = arith.constant 1 : index
    %c0_28 = arith.constant 0 : index
    %c0_29 = arith.constant 0 : index
    %c0_30 = arith.constant 0 : index
    %43 = vector.load %arg7[%c1_27, %c0_28, %c0_29, %c0_30] : memref<3x3x256x256xbf16, #tpu.memory_space<vmem>>, vector<1x1x256x256xbf16>
    %44 = vector.shape_cast %43 : vector<1x1x256x256xbf16> to vector<256x256xbf16>
    %cst_31 = arith.constant dense<0.000000e+00> : vector<128x256xf32>
    %45 = tpu.matmul %42, %44, %cst_31 {dimension_numbers = #tpu.dot_dimension_numbers<[1], [0], [0], [1], [0, 0, 1, 1], [], []>} : vector<128x256xbf16>, vector<256x256xbf16>, vector<128x256xf32> -> vector<128x256xf32>
    %46 = arith.addf %38, %45 : vector<128x256xf32>
    %47 = arith.truncf %7 : vector<128x256xf32> to vector<128x256xbf16>
    %c1_32 = arith.constant 1 : index
    %c1_33 = arith.constant 1 : index
    %c0_34 = arith.constant 0 : index
    %c0_35 = arith.constant 0 : index
    %48 = vector.load %arg7[%c1_32, %c1_33, %c0_34, %c0_35] : memref<3x3x256x256xbf16, #tpu.memory_space<vmem>>, vector<1x1x256x256xbf16>
    %49 = vector.shape_cast %48 : vector<1x1x256x256xbf16> to vector<256x256xbf16>
    %cst_36 = arith.constant dense<0.000000e+00> : vector<128x256xf32>
    %50 = tpu.matmul %47, %49, %cst_36 {dimension_numbers = #tpu.dot_dimension_numbers<[1], [0], [0], [1], [0, 0, 1, 1], [], []>} : vector<128x256xbf16>, vector<256x256xbf16>, vector<128x256xf32> -> vector<128x256xf32>
    %51 = arith.addf %46, %50 : vector<128x256xf32>
    %c127_i32 = arith.constant 127 : i32
    %52 = tpu.dynamic_rotate %7 by %c127_i32 dim 0 : vector<128x256xf32>, i32 -> vector<128x256xf32>
    %53 = vector.broadcast %11 : vector<128x1xf32> to vector<128x256xf32>
    %54 = arith.mulf %52, %53 : vector<128x256xf32>
    %55 = arith.truncf %54 : vector<128x256xf32> to vector<128x256xbf16>
    %c1_37 = arith.constant 1 : index
    %c2_38 = arith.constant 2 : index
    %c0_39 = arith.constant 0 : index
    %c0_40 = arith.constant 0 : index
    %56 = vector.load %arg7[%c1_37, %c2_38, %c0_39, %c0_40] : memref<3x3x256x256xbf16, #tpu.memory_space<vmem>>, vector<1x1x256x256xbf16>
    %57 = vector.shape_cast %56 : vector<1x1x256x256xbf16> to vector<256x256xbf16>
    %cst_41 = arith.constant dense<0.000000e+00> : vector<128x256xf32>
    %58 = tpu.matmul %55, %57, %cst_41 {dimension_numbers = #tpu.dot_dimension_numbers<[1], [0], [0], [1], [0, 0, 1, 1], [], []>} : vector<128x256xbf16>, vector<256x256xbf16>, vector<128x256xf32> -> vector<128x256xf32>
    %59 = arith.addf %51, %58 : vector<128x256xf32>
    %c121_i32 = arith.constant 121 : i32
    %60 = tpu.dynamic_rotate %7 by %c121_i32 dim 0 : vector<128x256xf32>, i32 -> vector<128x256xf32>
    %61 = vector.broadcast %14 : vector<128x1xf32> to vector<128x256xf32>
    %62 = arith.mulf %60, %61 : vector<128x256xf32>
    %63 = arith.truncf %62 : vector<128x256xf32> to vector<128x256xbf16>
    %c2_42 = arith.constant 2 : index
    %c0_43 = arith.constant 0 : index
    %c0_44 = arith.constant 0 : index
    %c0_45 = arith.constant 0 : index
    %64 = vector.load %arg7[%c2_42, %c0_43, %c0_44, %c0_45] : memref<3x3x256x256xbf16, #tpu.memory_space<vmem>>, vector<1x1x256x256xbf16>
    %65 = vector.shape_cast %64 : vector<1x1x256x256xbf16> to vector<256x256xbf16>
    %cst_46 = arith.constant dense<0.000000e+00> : vector<128x256xf32>
    %66 = tpu.matmul %63, %65, %cst_46 {dimension_numbers = #tpu.dot_dimension_numbers<[1], [0], [0], [1], [0, 0, 1, 1], [], []>} : vector<128x256xbf16>, vector<256x256xbf16>, vector<128x256xf32> -> vector<128x256xf32>
    %67 = arith.addf %59, %66 : vector<128x256xf32>
    %c120_i32 = arith.constant 120 : i32
    %68 = tpu.dynamic_rotate %7 by %c120_i32 dim 0 : vector<128x256xf32>, i32 -> vector<128x256xf32>
    %69 = vector.broadcast %9 : vector<128x1xf32> to vector<128x256xf32>
    %70 = arith.mulf %68, %69 : vector<128x256xf32>
    %71 = arith.truncf %70 : vector<128x256xf32> to vector<128x256xbf16>
    %c2_47 = arith.constant 2 : index
    %c1_48 = arith.constant 1 : index
    %c0_49 = arith.constant 0 : index
    %c0_50 = arith.constant 0 : index
    %72 = vector.load %arg7[%c2_47, %c1_48, %c0_49, %c0_50] : memref<3x3x256x256xbf16, #tpu.memory_space<vmem>>, vector<1x1x256x256xbf16>
    %73 = vector.shape_cast %72 : vector<1x1x256x256xbf16> to vector<256x256xbf16>
    %cst_51 = arith.constant dense<0.000000e+00> : vector<128x256xf32>
    %74 = tpu.matmul %71, %73, %cst_51 {dimension_numbers = #tpu.dot_dimension_numbers<[1], [0], [0], [1], [0, 0, 1, 1], [], []>} : vector<128x256xbf16>, vector<256x256xbf16>, vector<128x256xf32> -> vector<128x256xf32>
    %75 = arith.addf %67, %74 : vector<128x256xf32>
    %c119_i32 = arith.constant 119 : i32
    %76 = tpu.dynamic_rotate %7 by %c119_i32 dim 0 : vector<128x256xf32>, i32 -> vector<128x256xf32>
    %77 = vector.broadcast %15 : vector<128x1xf32> to vector<128x256xf32>
    %78 = arith.mulf %76, %77 : vector<128x256xf32>
    %79 = arith.truncf %78 : vector<128x256xf32> to vector<128x256xbf16>
    %c2_52 = arith.constant 2 : index
    %c2_53 = arith.constant 2 : index
    %c0_54 = arith.constant 0 : index
    %c0_55 = arith.constant 0 : index
    %80 = vector.load %arg7[%c2_52, %c2_53, %c0_54, %c0_55] : memref<3x3x256x256xbf16, #tpu.memory_space<vmem>>, vector<1x1x256x256xbf16>
    %81 = vector.shape_cast %80 : vector<1x1x256x256xbf16> to vector<256x256xbf16>
    %cst_56 = arith.constant dense<0.000000e+00> : vector<128x256xf32>
    %82 = tpu.matmul %79, %81, %cst_56 {dimension_numbers = #tpu.dot_dimension_numbers<[1], [0], [0], [1], [0, 0, 1, 1], [], []>} : vector<128x256xbf16>, vector<256x256xbf16>, vector<128x256xf32> -> vector<128x256xf32>
    %83 = arith.addf %75, %82 : vector<128x256xf32>
    %c0_57 = arith.constant 0 : index
    %c0_58 = arith.constant 0 : index
    %84 = vector.load %arg8[%c0_57, %c0_58] : memref<1x256xf32, #tpu.memory_space<vmem>>, vector<1x256xf32>
    %85 = vector.broadcast %84 : vector<1x256xf32> to vector<128x256xf32>
    %86 = arith.addf %83, %85 : vector<128x256xf32>
    %cst_59 = arith.constant 0.000000e+00 : f32
    %87 = vector.broadcast %cst_59 : f32 to vector<128x256xf32>
    %88 = arith.maximumf %86, %87 : vector<128x256xf32>
    %c9_i32_60 = arith.constant 9 : i32
    %89 = tpu.dynamic_rotate %88 by %c9_i32_60 dim 0 : vector<128x256xf32>, i32 -> vector<128x256xf32>
    %90 = vector.broadcast %12 : vector<128x1xf32> to vector<128x256xf32>
    %91 = arith.mulf %89, %90 : vector<128x256xf32>
    %92 = arith.truncf %91 : vector<128x256xf32> to vector<128x256xbf16>
    %c0_61 = arith.constant 0 : index
    %c0_62 = arith.constant 0 : index
    %c0_63 = arith.constant 0 : index
    %c0_64 = arith.constant 0 : index
    %93 = vector.load %arg9[%c0_61, %c0_62, %c0_63, %c0_64] : memref<3x3x256x256xbf16, #tpu.memory_space<vmem>>, vector<1x1x256x256xbf16>
    %94 = vector.shape_cast %93 : vector<1x1x256x256xbf16> to vector<256x256xbf16>
    %cst_65 = arith.constant dense<0.000000e+00> : vector<128x256xf32>
    %95 = tpu.matmul %92, %94, %cst_65 {dimension_numbers = #tpu.dot_dimension_numbers<[1], [0], [0], [1], [0, 0, 1, 1], [], []>} : vector<128x256xbf16>, vector<256x256xbf16>, vector<128x256xf32> -> vector<128x256xf32>
    %c8_i32_66 = arith.constant 8 : i32
    %96 = tpu.dynamic_rotate %88 by %c8_i32_66 dim 0 : vector<128x256xf32>, i32 -> vector<128x256xf32>
    %97 = vector.broadcast %8 : vector<128x1xf32> to vector<128x256xf32>
    %98 = arith.mulf %96, %97 : vector<128x256xf32>
    %99 = arith.truncf %98 : vector<128x256xf32> to vector<128x256xbf16>
    %c0_67 = arith.constant 0 : index
    %c1_68 = arith.constant 1 : index
    %c0_69 = arith.constant 0 : index
    %c0_70 = arith.constant 0 : index
    %100 = vector.load %arg9[%c0_67, %c1_68, %c0_69, %c0_70] : memref<3x3x256x256xbf16, #tpu.memory_space<vmem>>, vector<1x1x256x256xbf16>
    %101 = vector.shape_cast %100 : vector<1x1x256x256xbf16> to vector<256x256xbf16>
    %cst_71 = arith.constant dense<0.000000e+00> : vector<128x256xf32>
    %102 = tpu.matmul %99, %101, %cst_71 {dimension_numbers = #tpu.dot_dimension_numbers<[1], [0], [0], [1], [0, 0, 1, 1], [], []>} : vector<128x256xbf16>, vector<256x256xbf16>, vector<128x256xf32> -> vector<128x256xf32>
    %103 = arith.addf %95, %102 : vector<128x256xf32>
    %c7_i32_72 = arith.constant 7 : i32
    %104 = tpu.dynamic_rotate %88 by %c7_i32_72 dim 0 : vector<128x256xf32>, i32 -> vector<128x256xf32>
    %105 = vector.broadcast %13 : vector<128x1xf32> to vector<128x256xf32>
    %106 = arith.mulf %104, %105 : vector<128x256xf32>
    %107 = arith.truncf %106 : vector<128x256xf32> to vector<128x256xbf16>
    %c0_73 = arith.constant 0 : index
    %c2_74 = arith.constant 2 : index
    %c0_75 = arith.constant 0 : index
    %c0_76 = arith.constant 0 : index
    %108 = vector.load %arg9[%c0_73, %c2_74, %c0_75, %c0_76] : memref<3x3x256x256xbf16, #tpu.memory_space<vmem>>, vector<1x1x256x256xbf16>
    %109 = vector.shape_cast %108 : vector<1x1x256x256xbf16> to vector<256x256xbf16>
    %cst_77 = arith.constant dense<0.000000e+00> : vector<128x256xf32>
    %110 = tpu.matmul %107, %109, %cst_77 {dimension_numbers = #tpu.dot_dimension_numbers<[1], [0], [0], [1], [0, 0, 1, 1], [], []>} : vector<128x256xbf16>, vector<256x256xbf16>, vector<128x256xf32> -> vector<128x256xf32>
    %111 = arith.addf %103, %110 : vector<128x256xf32>
    %c1_i32_78 = arith.constant 1 : i32
    %112 = tpu.dynamic_rotate %88 by %c1_i32_78 dim 0 : vector<128x256xf32>, i32 -> vector<128x256xf32>
    %113 = vector.broadcast %10 : vector<128x1xf32> to vector<128x256xf32>
    %114 = arith.mulf %112, %113 : vector<128x256xf32>
    %115 = arith.truncf %114 : vector<128x256xf32> to vector<128x256xbf16>
    %c1_79 = arith.constant 1 : index
    %c0_80 = arith.constant 0 : index
    %c0_81 = arith.constant 0 : index
    %c0_82 = arith.constant 0 : index
    %116 = vector.load %arg9[%c1_79, %c0_80, %c0_81, %c0_82] : memref<3x3x256x256xbf16, #tpu.memory_space<vmem>>, vector<1x1x256x256xbf16>
    %117 = vector.shape_cast %116 : vector<1x1x256x256xbf16> to vector<256x256xbf16>
    %cst_83 = arith.constant dense<0.000000e+00> : vector<128x256xf32>
    %118 = tpu.matmul %115, %117, %cst_83 {dimension_numbers = #tpu.dot_dimension_numbers<[1], [0], [0], [1], [0, 0, 1, 1], [], []>} : vector<128x256xbf16>, vector<256x256xbf16>, vector<128x256xf32> -> vector<128x256xf32>
    %119 = arith.addf %111, %118 : vector<128x256xf32>
    %120 = arith.truncf %88 : vector<128x256xf32> to vector<128x256xbf16>
    %c1_84 = arith.constant 1 : index
    %c1_85 = arith.constant 1 : index
    %c0_86 = arith.constant 0 : index
    %c0_87 = arith.constant 0 : index
    %121 = vector.load %arg9[%c1_84, %c1_85, %c0_86, %c0_87] : memref<3x3x256x256xbf16, #tpu.memory_space<vmem>>, vector<1x1x256x256xbf16>
    %122 = vector.shape_cast %121 : vector<1x1x256x256xbf16> to vector<256x256xbf16>
    %cst_88 = arith.constant dense<0.000000e+00> : vector<128x256xf32>
    %123 = tpu.matmul %120, %122, %cst_88 {dimension_numbers = #tpu.dot_dimension_numbers<[1], [0], [0], [1], [0, 0, 1, 1], [], []>} : vector<128x256xbf16>, vector<256x256xbf16>, vector<128x256xf32> -> vector<128x256xf32>
    %124 = arith.addf %119, %123 : vector<128x256xf32>
    %c127_i32_89 = arith.constant 127 : i32
    %125 = tpu.dynamic_rotate %88 by %c127_i32_89 dim 0 : vector<128x256xf32>, i32 -> vector<128x256xf32>
    %126 = vector.broadcast %11 : vector<128x1xf32> to vector<128x256xf32>
    %127 = arith.mulf %125, %126 : vector<128x256xf32>
    %128 = arith.truncf %127 : vector<128x256xf32> to vector<128x256xbf16>
    %c1_90 = arith.constant 1 : index
    %c2_91 = arith.constant 2 : index
    %c0_92 = arith.constant 0 : index
    %c0_93 = arith.constant 0 : index
    %129 = vector.load %arg9[%c1_90, %c2_91, %c0_92, %c0_93] : memref<3x3x256x256xbf16, #tpu.memory_space<vmem>>, vector<1x1x256x256xbf16>
    %130 = vector.shape_cast %129 : vector<1x1x256x256xbf16> to vector<256x256xbf16>
    %cst_94 = arith.constant dense<0.000000e+00> : vector<128x256xf32>
    %131 = tpu.matmul %128, %130, %cst_94 {dimension_numbers = #tpu.dot_dimension_numbers<[1], [0], [0], [1], [0, 0, 1, 1], [], []>} : vector<128x256xbf16>, vector<256x256xbf16>, vector<128x256xf32> -> vector<128x256xf32>
    %132 = arith.addf %124, %131 : vector<128x256xf32>
    %c121_i32_95 = arith.constant 121 : i32
    %133 = tpu.dynamic_rotate %88 by %c121_i32_95 dim 0 : vector<128x256xf32>, i32 -> vector<128x256xf32>
    %134 = vector.broadcast %14 : vector<128x1xf32> to vector<128x256xf32>
    %135 = arith.mulf %133, %134 : vector<128x256xf32>
    %136 = arith.truncf %135 : vector<128x256xf32> to vector<128x256xbf16>
    %c2_96 = arith.constant 2 : index
    %c0_97 = arith.constant 0 : index
    %c0_98 = arith.constant 0 : index
    %c0_99 = arith.constant 0 : index
    %137 = vector.load %arg9[%c2_96, %c0_97, %c0_98, %c0_99] : memref<3x3x256x256xbf16, #tpu.memory_space<vmem>>, vector<1x1x256x256xbf16>
    %138 = vector.shape_cast %137 : vector<1x1x256x256xbf16> to vector<256x256xbf16>
    %cst_100 = arith.constant dense<0.000000e+00> : vector<128x256xf32>
    %139 = tpu.matmul %136, %138, %cst_100 {dimension_numbers = #tpu.dot_dimension_numbers<[1], [0], [0], [1], [0, 0, 1, 1], [], []>} : vector<128x256xbf16>, vector<256x256xbf16>, vector<128x256xf32> -> vector<128x256xf32>
    %140 = arith.addf %132, %139 : vector<128x256xf32>
    %c120_i32_101 = arith.constant 120 : i32
    %141 = tpu.dynamic_rotate %88 by %c120_i32_101 dim 0 : vector<128x256xf32>, i32 -> vector<128x256xf32>
    %142 = vector.broadcast %9 : vector<128x1xf32> to vector<128x256xf32>
    %143 = arith.mulf %141, %142 : vector<128x256xf32>
    %144 = arith.truncf %143 : vector<128x256xf32> to vector<128x256xbf16>
    %c2_102 = arith.constant 2 : index
    %c1_103 = arith.constant 1 : index
    %c0_104 = arith.constant 0 : index
    %c0_105 = arith.constant 0 : index
    %145 = vector.load %arg9[%c2_102, %c1_103, %c0_104, %c0_105] : memref<3x3x256x256xbf16, #tpu.memory_space<vmem>>, vector<1x1x256x256xbf16>
    %146 = vector.shape_cast %145 : vector<1x1x256x256xbf16> to vector<256x256xbf16>
    %cst_106 = arith.constant dense<0.000000e+00> : vector<128x256xf32>
    %147 = tpu.matmul %144, %146, %cst_106 {dimension_numbers = #tpu.dot_dimension_numbers<[1], [0], [0], [1], [0, 0, 1, 1], [], []>} : vector<128x256xbf16>, vector<256x256xbf16>, vector<128x256xf32> -> vector<128x256xf32>
    %148 = arith.addf %140, %147 : vector<128x256xf32>
    %c119_i32_107 = arith.constant 119 : i32
    %149 = tpu.dynamic_rotate %88 by %c119_i32_107 dim 0 : vector<128x256xf32>, i32 -> vector<128x256xf32>
    %150 = vector.broadcast %15 : vector<128x1xf32> to vector<128x256xf32>
    %151 = arith.mulf %149, %150 : vector<128x256xf32>
    %152 = arith.truncf %151 : vector<128x256xf32> to vector<128x256xbf16>
    %c2_108 = arith.constant 2 : index
    %c2_109 = arith.constant 2 : index
    %c0_110 = arith.constant 0 : index
    %c0_111 = arith.constant 0 : index
    %153 = vector.load %arg9[%c2_108, %c2_109, %c0_110, %c0_111] : memref<3x3x256x256xbf16, #tpu.memory_space<vmem>>, vector<1x1x256x256xbf16>
    %154 = vector.shape_cast %153 : vector<1x1x256x256xbf16> to vector<256x256xbf16>
    %cst_112 = arith.constant dense<0.000000e+00> : vector<128x256xf32>
    %155 = tpu.matmul %152, %154, %cst_112 {dimension_numbers = #tpu.dot_dimension_numbers<[1], [0], [0], [1], [0, 0, 1, 1], [], []>} : vector<128x256xbf16>, vector<256x256xbf16>, vector<128x256xf32> -> vector<128x256xf32>
    %156 = arith.addf %148, %155 : vector<128x256xf32>
    %c0_113 = arith.constant 0 : index
    %c0_114 = arith.constant 0 : index
    %157 = vector.load %arg10[%c0_113, %c0_114] : memref<1x256xf32, #tpu.memory_space<vmem>>, vector<1x256xf32>
    %158 = vector.broadcast %157 : vector<1x256xf32> to vector<128x256xf32>
    %159 = arith.addf %156, %158 : vector<128x256xf32>
    %cst_115 = arith.constant 0.000000e+00 : f32
    %160 = vector.broadcast %cst_115 : f32 to vector<128x256xf32>
    %161 = arith.maximumf %159, %160 : vector<128x256xf32>
    %162 = vector.extract_strided_slice %161 {offsets = [0, 0], sizes = [64, 256], strides = [1, 1]} : vector<128x256xf32> to vector<64x256xf32>
    %cst_116 = arith.constant dense<0.000000e+00> : vector<256xf32>
    %163 = vector.multi_reduction <add>, %162, %cst_116 [0] : vector<64x256xf32> to vector<256xf32>
    %164 = vector.shape_cast %163 : vector<256xf32> to vector<1x256xf32>
    %cst_117 = arith.constant 6.400000e+01 : f32
    %165 = vector.broadcast %cst_117 : f32 to vector<1x256xf32>
    %166 = arith.divf %164, %165 : vector<1x256xf32>
    %167 = vector.extract_strided_slice %161 {offsets = [64, 0], sizes = [64, 256], strides = [1, 1]} : vector<128x256xf32> to vector<64x256xf32>
    %cst_118 = arith.constant dense<0.000000e+00> : vector<256xf32>
    %168 = vector.multi_reduction <add>, %167, %cst_118 [0] : vector<64x256xf32> to vector<256xf32>
    %169 = vector.shape_cast %168 : vector<256xf32> to vector<1x256xf32>
    %cst_119 = arith.constant 6.400000e+01 : f32
    %170 = vector.broadcast %cst_119 : f32 to vector<1x256xf32>
    %171 = arith.divf %169, %170 : vector<1x256xf32>
    %172 = tpu.concatenate %166, %171 in 0 : vector<1x256xf32>, vector<1x256xf32> -> vector<2x256xf32>
    %173 = arith.truncf %172 : vector<2x256xf32> to vector<2x256xbf16>
    %c0_120 = arith.constant 0 : index
    %c0_121 = arith.constant 0 : index
    %174 = vector.load %arg11[%c0_120, %c0_121] : memref<256x12xbf16, #tpu.memory_space<vmem>>, vector<256x12xbf16>
    %cst_122 = arith.constant dense<0.000000e+00> : vector<2x12xf32>
    %175 = tpu.matmul %173, %174, %cst_122 {dimension_numbers = #tpu.dot_dimension_numbers<[1], [0], [0], [1], [0, 0, 1, 1], [], []>} : vector<2x256xbf16>, vector<256x12xbf16>, vector<2x12xf32> -> vector<2x12xf32>
    %c0_123 = arith.constant 0 : index
    %c0_124 = arith.constant 0 : index
    %176 = vector.load %arg12[%c0_123, %c0_124] : memref<1x12xf32, #tpu.memory_space<vmem>>, vector<1x12xf32>
    %177 = vector.broadcast %176 : vector<1x12xf32> to vector<2x12xf32>
    %178 = arith.addf %175, %177 : vector<2x12xf32>
    %cst_125 = arith.constant 0.00999999977 : f32
    %179 = vector.broadcast %cst_125 : f32 to vector<2x12xf32>
    %180 = arith.mulf %178, %179 : vector<2x12xf32>
    %c0_126 = arith.constant 0 : index
    %c0_127 = arith.constant 0 : index
    %181 = vector.load %arg13[%c0_126, %c0_127] : memref<2x12xf32, #tpu.memory_space<vmem>>, vector<2x12xf32>
    tpu.vector_store %arg13[%c0_126, %c0_127], %180 {strides = array<i32>} : memref<2x12xf32, #tpu.memory_space<vmem>>, vector<2x12xf32>,
    return
  }
}

</mosaic_0001>

<llo_original>
// kernel: tpu_custom_call.1
$region0: #{tpu_custom_call.1}
  #allocation0 [shape = 'u32[]', space=smem, size = 0x4, offset = 0x4, fixed_abs, tag = 'smem constant byte address 0x4 - core index']
  #allocation1 [shape = 'u32[144,128]{1,0:T(1,128)}', space=vmem, size = 0x12000, scoped, tag = 'internal scratch']
  %s0 = inlined_call_operand.vmem [shape: bf16[128,64], index: 0, kind: input, shape index: {}]
  %s1 = inlined_call_operand.vmem [shape: f32[128,1], index: 1, kind: input, shape index: {}]
  %s2 = inlined_call_operand.vmem [shape: f32[128,1], index: 2, kind: input, shape index: {}]
  %s3 = inlined_call_operand.vmem [shape: f32[128,1], index: 3, kind: input, shape index: {}]
  %s4 = inlined_call_operand.vmem [shape: f32[128,1], index: 4, kind: input, shape index: {}]
  %s5 = inlined_call_operand.hbm [shape: bf16[64,256], index: 5, kind: input, shape index: {}]
  %s6 = inlined_call_operand.hbm [shape: f32[1,256], index: 6, kind: input, shape index: {}]
  %s7 = inlined_call_operand.hbm [shape: bf16[3,3,256,256], index: 7, kind: input, shape index: {}]
  %s8 = inlined_call_operand.hbm [shape: f32[1,256], index: 8, kind: input, shape index: {}]
  %s9 = inlined_call_operand.hbm [shape: bf16[3,3,256,256], index: 9, kind: input, shape index: {}]
  %s10 = inlined_call_operand.hbm [shape: f32[1,256], index: 10, kind: input, shape index: {}]
  %s11 = inlined_call_operand.vmem [shape: bf16[256,12], index: 11, kind: input, shape index: {}]
  %s12 = inlined_call_operand.hbm [shape: f32[1,12], index: 12, kind: input, shape index: {}]
  %s13 = inlined_call_operand.hbm [shape: f32[2,12], index: 13, kind: output, shape index: {}]
  %s14 = sld [smem:[#allocation0]]
  $region90: #{tpu_custom_call.1} parent=0
    _
  %s16 = ssub.s32 1, %s14
  %s17 = scalar_select 0, %s16, %s14
  $region1: #{tpu_custom_call.1} parent=0
    #allocation2 [shape = 'u8[32768]{0}', space=vmem, size = 0x8000, scoped, tag = 'input window, operand 5, single buffered']
    #allocation3 [shape = 's32[1]{0}', space=sflag, size = 0x4, scoped, tag = 'scoped memory for tpu_custom_call.1']
    #allocation4 [shape = 's32[1]{0}', space=sflag, size = 0x4, scoped, tag = 'scoped memory for tpu_custom_call.1']
    #allocation5 [shape = 'u8[1024]{0}', space=vmem, size = 0x400, scoped, tag = 'input window, operand 6, single buffered']
    #allocation6 [shape = 's32[1]{0}', space=sflag, size = 0x4, scoped, tag = 'scoped memory for tpu_custom_call.1']
    #allocation7 [shape = 'u8[1179648]{0}', space=vmem, size = 0x120000, scoped, tag = 'input window, operand 7, single buffered']
    #allocation8 [shape = 'u8[1024]{0}', space=vmem, size = 0x400, scoped, tag = 'input window, operand 8, single buffered']
    #allocation9 [shape = 's32[1]{0}', space=sflag, size = 0x4, scoped, tag = 'scoped memory for tpu_custom_call.1']
    #allocation10 [shape = 'u8[1179648]{0}', space=vmem, size = 0x120000, scoped, tag = 'input window, operand 9, single buffered']
    #allocation11 [shape = 'u8[1024]{0}', space=vmem, size = 0x400, scoped, tag = 'input window, operand 10, single buffered']
    #allocation12 [shape = 's32[1]{0}', space=sflag, size = 0x4, scoped, tag = 'scoped memory for tpu_custom_call.1']
    #allocation13 [shape = 'u8[512]{0}', space=vmem, size = 0x400, scoped, tag = 'input window, operand 12, single buffered']
    #allocation14 [shape = 'u8[1024]{0}', space=vmem, size = 0x400, scoped, tag = 'output window, operand 0, single buffered']
    %18 = vsyncpa [#allocation3], 0
    %19 = vsyncpa [#allocation6], 0
    %20 = vsyncpa [#allocation9], 0
    %21 = vsyncpa [#allocation12], 0
    %22 = vsyncpa [#allocation4], 0
    // Predicated region
    $region2: #{tpu_custom_call.1} parent=1 // pred_check
      _
    $region3: #{tpu_custom_call.1} parent=1 // pred_check_branch
      %24 = sbr.rel (0) target = $region5
    $region4: #{tpu_custom_call.1} parent=1 // pred_region
      _
    $region5: #{tpu_custom_call.1} parent=1 // pred_fallthru
      _
    // Predicated region
    $region6: #{tpu_custom_call.1} parent=1 // pred_check
      _
    $region7: #{tpu_custom_call.1} parent=1 // pred_check_branch
      %26 = sbr.rel (0) target = $region9
    $region8: #{tpu_custom_call.1} parent=1 // pred_region
      _
    $region9: #{tpu_custom_call.1} parent=1 // pred_fallthru
      _
    // Predicated region
    $region10: #{tpu_custom_call.1} parent=1 // pred_check
      _
    $region11: #{tpu_custom_call.1} parent=1 // pred_check_branch
      %28 = sbr.rel (0) target = $region13
    $region12: #{tpu_custom_call.1} parent=1 // pred_region
      _
    $region13: #{tpu_custom_call.1} parent=1 // pred_fallthru
      _
    // Predicated region
    $region14: #{tpu_custom_call.1} parent=1 // pred_check
      _
    $region15: #{tpu_custom_call.1} parent=1 // pred_check_branch
      %30 = sbr.rel (0) target = $region17
    $region16: #{tpu_custom_call.1} parent=1 // pred_region
      _
    $region17: #{tpu_custom_call.1} parent=1 // pred_fallthru
      _
    // Predicated region
    $region18: #{tpu_custom_call.1} parent=1 // pred_check
      _
    $region19: #{tpu_custom_call.1} parent=1 // pred_check_branch
      %32 = sbr.rel (0) target = $region21
    $region20: #{tpu_custom_call.1} parent=1 // pred_region
      _
    $region21: #{tpu_custom_call.1} parent=1 // pred_fallthru
      _
    // Predicated region
    $region22: #{tpu_custom_call.1} parent=1 // pred_check
      _
    $region23: #{tpu_custom_call.1} parent=1 // pred_check_branch
      %34 = sbr.rel (0) target = $region25
    $region24: #{tpu_custom_call.1} parent=1 // pred_region
      %s36 = ssub.s32 1024, 1024
      %37 = vsyncadd [#allocation3], %s36
      %s38 = sshll.u32 [#allocation2], 4
      %s39 = int_to_ptr.vmem [resolvable:$true] %s38
      %44 = dma.hbm_to_vmem [thread:$0]  %s5, 1024, %s39, [#allocation3], 128, 128, 8
    $region25: #{tpu_custom_call.1} parent=1 // pred_fallthru
      _
    // Predicated region
    $region26: #{tpu_custom_call.1} parent=1 // pred_check
      _
    $region27: #{tpu_custom_call.1} parent=1 // pred_check_branch
      %46 = sbr.rel (0) target = $region29
    $region28: #{tpu_custom_call.1} parent=1 // pred_region
      %s48 = ssub.s32 32, 32
      %49 = vsyncadd [#allocation6], %s48
      %s51 = sshll.u32 [#allocation5], 4
      %s52 = int_to_ptr.vmem [resolvable:$true] %s51
      %54 = dma.hbm_to_vmem [thread:$0]  %s6, 32, %s52, [#allocation6]
    $region29: #{tpu_custom_call.1} parent=1 // pred_fallthru
      _
    // Predicated region
    $region30: #{tpu_custom_call.1} parent=1 // pred_check
      _
    $region31: #{tpu_custom_call.1} parent=1 // pred_check_branch
      %56 = sbr.rel (0) target = $region33
    $region32: #{tpu_custom_call.1} parent=1 // pred_region
      %s58 = ssub.s32 36864, 36864
      %59 = vsyncadd [#allocation6], %s58
      %s60 = sshll.u32 [#allocation7], 4
      %s61 = int_to_ptr.vmem [resolvable:$true] %s60
      %66 = dma.hbm_to_vmem [thread:$0]  %s7, 36864, %s61, [#allocation6], 128, 128, 8
    $region33: #{tpu_custom_call.1} parent=1 // pred_fallthru
      _
    // Predicated region
    $region34: #{tpu_custom_call.1} parent=1 // pred_check
      _
    $region35: #{tpu_custom_call.1} parent=1 // pred_check_branch
      %68 = sbr.rel (0) target = $region37
    $region36: #{tpu_custom_call.1} parent=1 // pred_region
      %s70 = ssub.s32 32, 32
      %71 = vsyncadd [#allocation9], %s70
      %s73 = sshll.u32 [#allocation8], 4
      %s74 = int_to_ptr.vmem [resolvable:$true] %s73
      %76 = dma.hbm_to_vmem [thread:$0]  %s8, 32, %s74, [#allocation9]
    $region37: #{tpu_custom_call.1} parent=1 // pred_fallthru
      _
    // Predicated region
    $region38: #{tpu_custom_call.1} parent=1 // pred_check
      _
    $region39: #{tpu_custom_call.1} parent=1 // pred_check_branch
      %78 = sbr.rel (0) target = $region41
    $region40: #{tpu_custom_call.1} parent=1 // pred_region
      %s80 = ssub.s32 36864, 36864
      %81 = vsyncadd [#allocation9], %s80
      %s82 = sshll.u32 [#allocation10], 4
      %s83 = int_to_ptr.vmem [resolvable:$true] %s82
      %88 = dma.hbm_to_vmem [thread:$0]  %s9, 36864, %s83, [#allocation9], 128, 128, 8
    $region41: #{tpu_custom_call.1} parent=1 // pred_fallthru
      _
    // Predicated region
    $region42: #{tpu_custom_call.1} parent=1 // pred_check
      _
    $region43: #{tpu_custom_call.1} parent=1 // pred_check_branch
      %90 = sbr.rel (0) target = $region45
    $region44: #{tpu_custom_call.1} parent=1 // pred_region
      %s92 = ssub.s32 32, 32
      %93 = vsyncadd [#allocation12], %s92
      %s95 = sshll.u32 [#allocation11], 4
      %s96 = int_to_ptr.vmem [resolvable:$true] %s95
      %98 = dma.hbm_to_vmem [thread:$0]  %s10, 32, %s96, [#allocation12]
    $region45: #{tpu_custom_call.1} parent=1 // pred_fallthru
      _
    // Predicated region
    $region46: #{tpu_custom_call.1} parent=1 // pred_check
      _
    $region47: #{tpu_custom_call.1} parent=1 // pred_check_branch
      %100 = sbr.rel (0) target = $region49
    $region48: #{tpu_custom_call.1} parent=1 // pred_region
      _
    $region49: #{tpu_custom_call.1} parent=1 // pred_fallthru
      _
    // Predicated region
    $region50: #{tpu_custom_call.1} parent=1 // pred_check
      _
    $region51: #{tpu_custom_call.1} parent=1 // pred_check_branch
      %102 = sbr.rel (0) target = $region53
    $region52: #{tpu_custom_call.1} parent=1 // pred_region
      %s104 = ssub.s32 16, 16
      %105 = vsyncadd [#allocation12], %s104
      %s107 = sshll.u32 [#allocation13], 4
      %s108 = int_to_ptr.vmem [resolvable:$true] %s107
      %110 = dma.hbm_to_vmem [thread:$0]  %s12, 16, %s108, [#allocation12]
    $region53: #{tpu_custom_call.1} parent=1 // pred_fallthru
      _
    // Predicated region
    $region54: #{tpu_custom_call.1} parent=1 // pred_check
      _
    $region55: #{tpu_custom_call.1} parent=1 // pred_check_branch
      %112 = sbr.rel (0) target = $region57
    $region56: #{tpu_custom_call.1} parent=1 // pred_region
      %113 = dma.done [#allocation3], 1024
    $region57: #{tpu_custom_call.1} parent=1 // pred_fallthru
      _
    // Predicated region
    $region58: #{tpu_custom_call.1} parent=1 // pred_check
      _
    $region59: #{tpu_custom_call.1} parent=1 // pred_check_branch
      %115 = sbr.rel (0) target = $region61
    $region60: #{tpu_custom_call.1} parent=1 // pred_region
      %116 = dma.done [#allocation6], 32
    $region61: #{tpu_custom_call.1} parent=1 // pred_fallthru
      _
    // Predicated region
    $region62: #{tpu_custom_call.1} parent=1 // pred_check
      _
    $region63: #{tpu_custom_call.1} parent=1 // pred_check_branch
      %118 = sbr.rel (0) target = $region65
    $region64: #{tpu_custom_call.1} parent=1 // pred_region
      %119 = dma.done [#allocation6], 36864
    $region65: #{tpu_custom_call.1} parent=1 // pred_fallthru
      _
    // Predicated region
    $region66: #{tpu_custom_call.1} parent=1 // pred_check
      _
    $region67: #{tpu_custom_call.1} parent=1 // pred_check_branch
      %121 = sbr.rel (0) target = $region69
    $region68: #{tpu_custom_call.1} parent=1 // pred_region
      %122 = dma.done [#allocation9], 32
    $region69: #{tpu_custom_call.1} parent=1 // pred_fallthru
      _
    // Predicated region
    $region70: #{tpu_custom_call.1} parent=1 // pred_check
      _
    $region71: #{tpu_custom_call.1} parent=1 // pred_check_branch
      %124 = sbr.rel (0) target = $region73
    $region72: #{tpu_custom_call.1} parent=1 // pred_region
      %125 = dma.done [#allocation9], 36864
    $region73: #{tpu_custom_call.1} parent=1 // pred_fallthru
      _
    // Predicated region
    $region74: #{tpu_custom_call.1} parent=1 // pred_check
      _
    $region75: #{tpu_custom_call.1} parent=1 // pred_check_branch
      %127 = sbr.rel (0) target = $region77
    $region76: #{tpu_custom_call.1} parent=1 // pred_region
      %128 = dma.done [#allocation12], 32
    $region77: #{tpu_custom_call.1} parent=1 // pred_fallthru
      _
    // Predicated region
    $region78: #{tpu_custom_call.1} parent=1 // pred_check
      _
    $region79: #{tpu_custom_call.1} parent=1 // pred_check_branch
      %130 = sbr.rel (0) target = $region81
    $region80: #{tpu_custom_call.1} parent=1 // pred_region
      %131 = dma.done [#allocation12], 16
    $region81: #{tpu_custom_call.1} parent=1 // pred_fallthru
      _
    %v133 = vld [vmem:[%s0] sm:$0xf]
    %v134 = vld [vmem:[%s0 + $0x4] sm:$0xf]
    %v135 = vld [vmem:[%s0 + $0x8] sm:$0xf]
    %v136 = vld [vmem:[%s0 + $0xc] sm:$0xf]
    %v137 = vld [vmem:[%s0 + $0x10] sm:$0xf]
    %v138 = vld [vmem:[%s0 + $0x14] sm:$0xf]
    %v139 = vld [vmem:[%s0 + $0x18] sm:$0xf]
    %v140 = vld [vmem:[%s0 + $0x1c] sm:$0xf]
    %v141 = vld [vmem:[%s0 + $0x20] sm:$0xf]
    %v142 = vld [vmem:[%s0 + $0x24] sm:$0xf]
    %v143 = vld [vmem:[%s0 + $0x28] sm:$0xf]
    %v144 = vld [vmem:[%s0 + $0x2c] sm:$0xf]
    %v145 = vld [vmem:[%s0 + $0x30] sm:$0xf]
    %v146 = vld [vmem:[%s0 + $0x34] sm:$0xf]
    %v147 = vld [vmem:[%s0 + $0x38] sm:$0xf]
    %v148 = vld [vmem:[%s0 + $0x3c] sm:$0xf]
    %v149 = vld [vmem:[#allocation2] sm:$0xff]
    %v150 = vld [vmem:[#allocation2 + $0x8] sm:$0xff]
    %v151 = vld [vmem:[#allocation2 + $0x10] sm:$0xff]
    %v152 = vld [vmem:[#allocation2 + $0x18] sm:$0xff]
    %v153 = vld [vmem:[#allocation2 + $0x20] sm:$0xff]
    %v154 = vld [vmem:[#allocation2 + $0x28] sm:$0xff]
    %v155 = vld [vmem:[#allocation2 + $0x30] sm:$0xff]
    %v156 = vld [vmem:[#allocation2 + $0x38] sm:$0xff]
    %v157 = vld [vmem:[#allocation5] sm:$0x3]
    %v159 = vlaneseq
    %v160 = vshrl.u32 %v159, 7
    %v161 = vsub.s32 0, %v160
    %v162 = vrot.slane %v157, %v161
    %v163 = vlaneseq
    %v164 = vshrl.u32 %v163, 7
    %v165 = vsub.s32 1, %v164
    %v166 = vrot.slane %v157, %v165
    %v185 = vunpack.c.l.b16 %v133
    %v186 = vunpack.c.l.b16 %v134
    %v187 = vunpack.c.l.b16 %v135
    %v188 = vunpack.c.l.b16 %v136
    %v189 = vunpack.c.l.b16 %v137
    %v190 = vunpack.c.l.b16 %v138
    %v191 = vunpack.c.l.b16 %v139
    %v192 = vunpack.c.l.b16 %v140
    %v193 = vunpack.c.l.b16 %v141
    %v194 = vunpack.c.l.b16 %v142
    %v195 = vunpack.c.l.b16 %v143
    %v196 = vunpack.c.l.b16 %v144
    %v197 = vunpack.c.l.b16 %v145
    %v198 = vunpack.c.l.b16 %v146
    %v199 = vunpack.c.l.b16 %v147
    %v200 = vunpack.c.l.b16 %v148
    %v201 = vpack.c.b16 %v186, %v185
    %v202 = vpack.c.b16 %v188, %v187
    %v203 = vpack.c.b16 %v190, %v189
    %v204 = vpack.c.b16 %v192, %v191
    %v205 = vpack.c.b16 %v194, %v193
    %v206 = vpack.c.b16 %v196, %v195
    %v207 = vpack.c.b16 %v198, %v197
    %v208 = vpack.c.b16 %v200, %v199
    %v217 = vunpack.c.l.b16 %v149
    %v218 = vunpack.c.h.b16 %v149
    %v219 = vunpack.c.l.b16 %v150
    %v220 = vunpack.c.h.b16 %v150
    %v221 = vunpack.c.l.b16 %v151
    %v222 = vunpack.c.h.b16 %v151
    %v223 = vunpack.c.l.b16 %v152
    %v224 = vunpack.c.h.b16 %v152
    %v225 = vunpack.c.l.b16 %v153
    %v226 = vunpack.c.h.b16 %v153
    %v227 = vunpack.c.l.b16 %v154
    %v228 = vunpack.c.h.b16 %v154
    %v229 = vunpack.c.l.b16 %v155
    %v230 = vunpack.c.h.b16 %v155
    %v231 = vunpack.c.l.b16 %v156
    %v232 = vunpack.c.h.b16 %v156
    %v233 = vpack.c.b16 %v219, %v217
    %v234 = vpack.c.b16 %v220, %v218
    %v235 = vpack.c.b16 %v223, %v221
    %v236 = vpack.c.b16 %v224, %v222
    %v237 = vpack.c.b16 %v227, %v225
    %v238 = vpack.c.b16 %v228, %v226
    %v239 = vpack.c.b16 %v231, %v229
    %v240 = vpack.c.b16 %v232, %v230
    %vm249 = vcmask 523264
    %v251 = vsel %vm249, %v201, 0
    %v254 = vsel %vm249, %v202, 0
    %v257 = vsel %vm249, %v203, 0
    %v260 = vsel %vm249, %v204, 0
    %v263 = vsel %vm249, %v205, 0
    %v266 = vsel %vm249, %v206, 0
    %v269 = vsel %vm249, %v207, 0
    %v272 = vsel %vm249, %v208, 0
    %274 = vmatprep.subr.bf16.mxu0 0
    %275 = vmatpush1.bf16.msra.mxu0 0
    %276 = vmatprep.subr.bf16.mxu0 0
    %277 = vmatpush1.bf16.msra.mxu0 0
    %278 = vmatprep.subr.bf16.mxu0 0
    %279 = vmatpush1.bf16.msra.mxu0 0
    %280 = vmatprep.subr.bf16.mxu0 0
    %281 = vmatpush1.bf16.msra.mxu0 0
    %282 = vmatprep.subr.bf16.mxu0 %v240
    %283 = vmatpush1.bf16.msra.mxu0 %v239
    %284 = vmatprep.subr.bf16.mxu0 %v238
    %285 = vmatpush1.bf16.msra.mxu0 %v237
    %286 = vmatprep.subr.bf16.mxu0 %v236
    %287 = vmatpush1.bf16.msra.mxu0 %v235
    %288 = vmatprep.subr.bf16.mxu0 %v234
    %289 = vmatpush1.bf16.msra.mxu0 %v233
    %290 = vmatprep.subr.bf16.mxu0 0
    %291 = vmatpush2.bf16.msra.mxu0 0
    %292 = vmatprep.subr.bf16.mxu0 0
    %293 = vmatpush2.bf16.msra.mxu0 0
    %294 = vmatprep.subr.bf16.mxu0 0
    %295 = vmatpush2.bf16.msra.mxu0 0
    %296 = vmatprep.subr.bf16.mxu0 0
    %297 = vmatpush2.bf16.msra.mxu0 0
    %298 = vmatprep.subr.bf16.mxu0 0
    %299 = vmatpush2.bf16.msra.mxu0 0
    %300 = vmatprep.subr.bf16.mxu0 0
    %301 = vmatpush2.bf16.msra.mxu0 0
    %302 = vmatprep.subr.bf16.mxu0 0
    %303 = vmatpush2.bf16.msra.mxu0 0
    %304 = vmatprep.subr.bf16.mxu0 0
    %305 = vmatpush2.bf16.msra.mxu0 0
    %306 = vmatprep.mubr.bf16.mxu0 0
    %307 = vmatmul.mubr.bf16.gmra.mxu0 %v251
    %v308 = vpop.f32.mrf.mxu0
    %v309 = vadd.f32 %v162, %v308
    %v310 = vpop.f32.mrf.mxu0
    %v311 = vadd.f32 %v166, %v310
    %v312 = vpop.f32.mrf.mxu0
    %v313 = vadd.f32 %v162, %v312
    %v314 = vpop.f32.mrf.mxu0
    %v315 = vadd.f32 %v166, %v314
    %316 = vmatprep.mubr.bf16.mxu0 0
    %317 = vmatmul.mubr.bf16.gmra.mxu0 %v254
    %v318 = vpop.f32.mrf.mxu0
    %v319 = vadd.f32 %v162, %v318
    %v320 = vpop.f32.mrf.mxu0
    %v321 = vadd.f32 %v166, %v320
    %v322 = vpop.f32.mrf.mxu0
    %v323 = vadd.f32 %v162, %v322
    %v324 = vpop.f32.mrf.mxu0
    %v325 = vadd.f32 %v166, %v324
    %326 = vmatprep.mubr.bf16.mxu0 0
    %327 = vmatmul.mubr.bf16.gmra.mxu0 %v257
    %v328 = vpop.f32.mrf.mxu0
    %v329 = vadd.f32 %v162, %v328
    %v330 = vpop.f32.mrf.mxu0
    %v331 = vadd.f32 %v166, %v330
    %v332 = vpop.f32.mrf.mxu0
    %v333 = vadd.f32 %v162, %v332
    %v334 = vpop.f32.mrf.mxu0
    %v335 = vadd.f32 %v166, %v334
    %336 = vmatprep.mubr.bf16.mxu0 0
    %337 = vmatmul.mubr.bf16.gmra.mxu0 %v260
    %v338 = vpop.f32.mrf.mxu0
    %v339 = vadd.f32 %v162, %v338
    %v340 = vpop.f32.mrf.mxu0
    %v341 = vadd.f32 %v166, %v340
    %v342 = vpop.f32.mrf.mxu0
    %v343 = vadd.f32 %v162, %v342
    %v344 = vpop.f32.mrf.mxu0
    %v345 = vadd.f32 %v166, %v344
    %346 = vmatprep.mubr.bf16.mxu0 0
    %347 = vmatmul.mubr.bf16.gmra.mxu0 %v263
    %v348 = vpop.f32.mrf.mxu0
    %v349 = vadd.f32 %v162, %v348
    %v350 = vpop.f32.mrf.mxu0
    %v351 = vadd.f32 %v166, %v350
    %v352 = vpop.f32.mrf.mxu0
    %v353 = vadd.f32 %v162, %v352
    %v354 = vpop.f32.mrf.mxu0
    %v355 = vadd.f32 %v166, %v354
    %356 = vmatprep.mubr.bf16.mxu0 0
    %357 = vmatmul.mubr.bf16.gmra.mxu0 %v266
    %v358 = vpop.f32.mrf.mxu0
    %v359 = vadd.f32 %v162, %v358
    %v360 = vpop.f32.mrf.mxu0
    %v361 = vadd.f32 %v166, %v360
    %v362 = vpop.f32.mrf.mxu0
    %v363 = vadd.f32 %v162, %v362
    %v364 = vpop.f32.mrf.mxu0
    %v365 = vadd.f32 %v166, %v364
    %366 = vmatprep.mubr.bf16.mxu0 0
    %367 = vmatmul.mubr.bf16.gmra.mxu0 %v269
    %v368 = vpop.f32.mrf.mxu0
    %v369 = vadd.f32 %v162, %v368
    %v370 = vpop.f32.mrf.mxu0
    %v371 = vadd.f32 %v166, %v370
    %v372 = vpop.f32.mrf.mxu0
    %v373 = vadd.f32 %v162, %v372
    %v374 = vpop.f32.mrf.mxu0
    %v375 = vadd.f32 %v166, %v374
    %376 = vmatprep.mubr.bf16.mxu0 0
    %377 = vmatmul.mubr.bf16.gmra.mxu0 %v272
    %v378 = vpop.f32.mrf.mxu0
    %v379 = vadd.f32 %v162, %v378
    %v380 = vpop.f32.mrf.mxu0
    %v381 = vadd.f32 %v166, %v380
    %v382 = vpop.f32.mrf.mxu0
    %v383 = vadd.f32 %v162, %v382
    %v384 = vpop.f32.mrf.mxu0
    %v385 = vadd.f32 %v166, %v384
    %386 = vdwg.mxu0
    %v387 = vmax.f32 %v309, 0.0
    %v388 = vmax.f32 %v311, 0.0
    %v389 = vmax.f32 %v313, 0.0
    %v390 = vmax.f32 %v315, 0.0
    %v391 = vmax.f32 %v319, 0.0
    %v392 = vmax.f32 %v321, 0.0
    %v393 = vmax.f32 %v323, 0.0
    %v394 = vmax.f32 %v325, 0.0
    %v395 = vmax.f32 %v329, 0.0
    %v396 = vmax.f32 %v331, 0.0
    %v397 = vmax.f32 %v333, 0.0
    %v398 = vmax.f32 %v335, 0.0
    %v399 = vmax.f32 %v339, 0.0
    %v400 = vmax.f32 %v341, 0.0
    %v401 = vmax.f32 %v343, 0.0
    %v402 = vmax.f32 %v345, 0.0
    %v403 = vmax.f32 %v349, 0.0
    %v404 = vmax.f32 %v351, 0.0
    %v405 = vmax.f32 %v353, 0.0
    %v406 = vmax.f32 %v355, 0.0
    %v407 = vmax.f32 %v359, 0.0
    %v408 = vmax.f32 %v361, 0.0
    %v409 = vmax.f32 %v363, 0.0
    %v410 = vmax.f32 %v365, 0.0
    %v411 = vmax.f32 %v369, 0.0
    %v412 = vmax.f32 %v371, 0.0
    %v413 = vmax.f32 %v373, 0.0
    %v414 = vmax.f32 %v375, 0.0
    %v415 = vmax.f32 %v379, 0.0
    %v416 = vmax.f32 %v381, 0.0
    %v417 = vmax.f32 %v383, 0.0
    %v418 = vmax.f32 %v385, 0.0
    %v419 = vld [vmem:[%s1] sm:$0xff]
    %v420 = vld [vmem:[%s1 + $0x8] sm:$0xff]
    %v421 = vld [vmem:[%s1 + $0x10] sm:$0xff]
    %v422 = vld [vmem:[%s1 + $0x18] sm:$0xff]
    %v423 = vld [vmem:[%s1 + $0x20] sm:$0xff]
    %v424 = vld [vmem:[%s1 + $0x28] sm:$0xff]
    %v425 = vld [vmem:[%s1 + $0x30] sm:$0xff]
    %v426 = vld [vmem:[%s1 + $0x38] sm:$0xff]
    %v427 = vld [vmem:[%s1 + $0x40] sm:$0xff]
    %v428 = vld [vmem:[%s1 + $0x48] sm:$0xff]
    %v429 = vld [vmem:[%s1 + $0x50] sm:$0xff]
    %v430 = vld [vmem:[%s1 + $0x58] sm:$0xff]
    %v431 = vld [vmem:[%s1 + $0x60] sm:$0xff]
    %v432 = vld [vmem:[%s1 + $0x68] sm:$0xff]
    %v433 = vld [vmem:[%s1 + $0x70] sm:$0xff]
    %v434 = vld [vmem:[%s1 + $0x78] sm:$0xff]
    %v435 = vld [vmem:[%s2] sm:$0xff]
    %v436 = vld [vmem:[%s2 + $0x8] sm:$0xff]
    %v437 = vld [vmem:[%s2 + $0x10] sm:$0xff]
    %v438 = vld [vmem:[%s2 + $0x18] sm:$0xff]
    %v439 = vld [vmem:[%s2 + $0x20] sm:$0xff]
    %v440 = vld [vmem:[%s2 + $0x28] sm:$0xff]
    %v441 = vld [vmem:[%s2 + $0x30] sm:$0xff]
    %v442 = vld [vmem:[%s2 + $0x38] sm:$0xff]
    %v443 = vld [vmem:[%s2 + $0x40] sm:$0xff]
    %v444 = vld [vmem:[%s2 + $0x48] sm:$0xff]
    %v445 = vld [vmem:[%s2 + $0x50] sm:$0xff]
    %v446 = vld [vmem:[%s2 + $0x58] sm:$0xff]
    %v447 = vld [vmem:[%s2 + $0x60] sm:$0xff]
    %v448 = vld [vmem:[%s2 + $0x68] sm:$0xff]
    %v449 = vld [vmem:[%s2 + $0x70] sm:$0xff]
    %v450 = vld [vmem:[%s2 + $0x78] sm:$0xff]
    %v451 = vld [vmem:[%s3] sm:$0xff]
    %v452 = vld [vmem:[%s3 + $0x8] sm:$0xff]
    %v453 = vld [vmem:[%s3 + $0x10] sm:$0xff]
    %v454 = vld [vmem:[%s3 + $0x18] sm:$0xff]
    %v455 = vld [vmem:[%s3 + $0x20] sm:$0xff]
    %v456 = vld [vmem:[%s3 + $0x28] sm:$0xff]
    %v457 = vld [vmem:[%s3 + $0x30] sm:$0xff]
    %v458 = vld [vmem:[%s3 + $0x38] sm:$0xff]
    %v459 = vld [vmem:[%s3 + $0x40] sm:$0xff]
    %v460 = vld [vmem:[%s3 + $0x48] sm:$0xff]
    %v461 = vld [vmem:[%s3 + $0x50] sm:$0xff]
    %v462 = vld [vmem:[%s3 + $0x58] sm:$0xff]
    %v463 = vld [vmem:[%s3 + $0x60] sm:$0xff]
    %v464 = vld [vmem:[%s3 + $0x68] sm:$0xff]
    %v465 = vld [vmem:[%s3 + $0x70] sm:$0xff]
    %v466 = vld [vmem:[%s3 + $0x78] sm:$0xff]
    %v467 = vld [vmem:[%s4] sm:$0xff]
    %v468 = vld [vmem:[%s4 + $0x8] sm:$0xff]
    %v469 = vld [vmem:[%s4 + $0x10] sm:$0xff]
    %v470 = vld [vmem:[%s4 + $0x18] sm:$0xff]
    %v471 = vld [vmem:[%s4 + $0x20] sm:$0xff]
    %v472 = vld [vmem:[%s4 + $0x28] sm:$0xff]
    %v473 = vld [vmem:[%s4 + $0x30] sm:$0xff]
    %v474 = vld [vmem:[%s4 + $0x38] sm:$0xff]
    %v475 = vld [vmem:[%s4 + $0x40] sm:$0xff]
    %v476 = vld [vmem:[%s4 + $0x48] sm:$0xff]
    %v477 = vld [vmem:[%s4 + $0x50] sm:$0xff]
    %v478 = vld [vmem:[%s4 + $0x58] sm:$0xff]
    %v479 = vld [vmem:[%s4 + $0x60] sm:$0xff]
    %v480 = vld [vmem:[%s4 + $0x68] sm:$0xff]
    %v481 = vld [vmem:[%s4 + $0x70] sm:$0xff]
    %v482 = vld [vmem:[%s4 + $0x78] sm:$0xff]
    %v483 = vmul.f32 %v419, %v451
    %v484 = vmul.f32 %v420, %v452
    %v485 = vmul.f32 %v421, %v453
    %v486 = vmul.f32 %v422, %v454
    %v487 = vmul.f32 %v423, %v455
    %v488 = vmul.f32 %v424, %v456
    %v489 = vmul.f32 %v425, %v457
    %v490 = vmul.f32 %v426, %v458
    %v491 = vmul.f32 %v427, %v459
    %v492 = vmul.f32 %v428, %v460
    %v493 = vmul.f32 %v429, %v461
    %v494 = vmul.f32 %v430, %v462
    %v495 = vmul.f32 %v431, %v463
    %v496 = vmul.f32 %v432, %v464
    %v497 = vmul.f32 %v433, %v465
    %v498 = vmul.f32 %v434, %v466
    %v499 = vmul.f32 %v419, %v467
    %v500 = vmul.f32 %v420, %v468
    %v501 = vmul.f32 %v421, %v469
    %v502 = vmul.f32 %v422, %v470
    %v503 = vmul.f32 %v423, %v471
    %v504 = vmul.f32 %v424, %v472
    %v505 = vmul.f32 %v425, %v473
    %v506 = vmul.f32 %v426, %v474
    %v507 = vmul.f32 %v427, %v475
    %v508 = vmul.f32 %v428, %v476
    %v509 = vmul.f32 %v429, %v477
    %v510 = vmul.f32 %v430, %v478
    %v511 = vmul.f32 %v431, %v479
    %v512 = vmul.f32 %v432, %v480
    %v513 = vmul.f32 %v433, %v481
    %v514 = vmul.f32 %v434, %v482
    %v515 = vmul.f32 %v435, %v451
    %v516 = vmul.f32 %v436, %v452
    %v517 = vmul.f32 %v437, %v453
    %v518 = vmul.f32 %v438, %v454
    %v519 = vmul.f32 %v439, %v455
    %v520 = vmul.f32 %v440, %v456
    %v521 = vmul.f32 %v441, %v457
    %v522 = vmul.f32 %v442, %v458
    %v523 = vmul.f32 %v443, %v459
    %v524 = vmul.f32 %v444, %v460
    %v525 = vmul.f32 %v445, %v461
    %v526 = vmul.f32 %v446, %v462
    %v527 = vmul.f32 %v447, %v463
    %v528 = vmul.f32 %v448, %v464
    %v529 = vmul.f32 %v449, %v465
    %v530 = vmul.f32 %v450, %v466
    %v531 = vmul.f32 %v435, %v467
    %v532 = vmul.f32 %v436, %v468
    %v533 = vmul.f32 %v437, %v469
    %v534 = vmul.f32 %v438, %v470
    %v535 = vmul.f32 %v439, %v471
    %v536 = vmul.f32 %v440, %v472
    %v537 = vmul.f32 %v441, %v473
    %v538 = vmul.f32 %v442, %v474
    %v539 = vmul.f32 %v443, %v475
    %v540 = vmul.f32 %v444, %v476
    %v541 = vmul.f32 %v445, %v477
    %v542 = vmul.f32 %v446, %v478
    %v543 = vmul.f32 %v447, %v479
    %v544 = vmul.f32 %v448, %v480
    %v545 = vmul.f32 %v449, %v481
    %v546 = vmul.f32 %v450, %v482
    %v547 = vrot.slane %v387, 7
    %v548 = vrot.slane %v388, 7
    %v549 = vrot.slane %v389, 7
    %v550 = vrot.slane %v390, 7
    %v551 = vrot.slane %v391, 7
    %v552 = vrot.slane %v392, 7
    %v553 = vrot.slane %v393, 7
    %v554 = vrot.slane %v394, 7
    %v555 = vrot.slane %v395, 7
    %v556 = vrot.slane %v396, 7
    %v557 = vrot.slane %v397, 7
    %v558 = vrot.slane %v398, 7
    %v559 = vrot.slane %v399, 7
    %v560 = vrot.slane %v400, 7
    %v561 = vrot.slane %v401, 7
    %v562 = vrot.slane %v402, 7
    %v563 = vrot.slane %v403, 7
    %v564 = vrot.slane %v404, 7
    %v565 = vrot.slane %v405, 7
    %v566 = vrot.slane %v406, 7
    %v567 = vrot.slane %v407, 7
    %v568 = vrot.slane %v408, 7
    %v569 = vrot.slane %v409, 7
    %v570 = vrot.slane %v410, 7
    %v571 = vrot.slane %v411, 7
    %v572 = vrot.slane %v412, 7
    %v573 = vrot.slane %v413, 7
    %v574 = vrot.slane %v414, 7
    %v575 = vrot.slane %v415, 7
    %v576 = vrot.slane %v416, 7
    %v577 = vrot.slane %v417, 7
    %v578 = vrot.slane %v418, 7
    %v579 = vlaneseq
    %v580 = vshrl.u32 %v579, 7
    %vm581 = vcmp.lt.s32.totalorder %v580, 1
    %v582 = vsel %vm581, %v575, %v577
    %v583 = vsel %vm581, %v576, %v578
    %v584 = vsel %vm581, %v573, %v575
    %v585 = vsel %vm581, %v574, %v576
    %v586 = vsel %vm581, %v571, %v573
    %v587 = vsel %vm581, %v572, %v574
    %v588 = vsel %vm581, %v569, %v571
    %v589 = vsel %vm581, %v570, %v572
    %v590 = vsel %vm581, %v567, %v569
    %v591 = vsel %vm581, %v568, %v570
    %v592 = vsel %vm581, %v565, %v567
    %v593 = vsel %vm581, %v566, %v568
    %v594 = vsel %vm581, %v563, %v565
    %v595 = vsel %vm581, %v564, %v566
    %v596 = vsel %vm581, %v561, %v563
    %v597 = vsel %vm581, %v562, %v564
    %v598 = vsel %vm581, %v559, %v561
    %v599 = vsel %vm581, %v560, %v562
    %v600 = vsel %vm581, %v557, %v559
    %v601 = vsel %vm581, %v558, %v560
    %v602 = vsel %vm581, %v555, %v557
    %v603 = vsel %vm581, %v556, %v558
    %v604 = vsel %vm581, %v553, %v555
    %v605 = vsel %vm581, %v554, %v556
    %v606 = vsel %vm581, %v551, %v553
    %v607 = vsel %vm581, %v552, %v554
    %v608 = vsel %vm581, %v549, %v551
    %v609 = vsel %vm581, %v550, %v552
    %v610 = vsel %vm581, %v547, %v549
    %v611 = vsel %vm581, %v548, %v550
    %v612 = vsel %vm581, %v577, %v547
    %v613 = vsel %vm581, %v578, %v548
    %615 = vset.pattern.permute.xlu0 0
    %616 = vperm.xlu0 %615, %v483
    %v617 = vpop.permute.xlu0 %616
    %620 = vset.pattern.permute.xlu0 0
    %621 = vperm.xlu0 %620, %v484
    %v622 = vpop.permute.xlu0 %621
    %625 = vset.pattern.permute.xlu0 0
    %626 = vperm.xlu0 %625, %v485
    %v627 = vpop.permute.xlu0 %626
    %630 = vset.pattern.permute.xlu0 0
    %631 = vperm.xlu0 %630, %v486
    %v632 = vpop.permute.xlu0 %631
    %635 = vset.pattern.permute.xlu0 0
    %636 = vperm.xlu0 %635, %v487
    %v637 = vpop.permute.xlu0 %636
    %640 = vset.pattern.permute.xlu0 0
    %641 = vperm.xlu0 %640, %v488
    %v642 = vpop.permute.xlu0 %641
    %645 = vset.pattern.permute.xlu0 0
    %646 = vperm.xlu0 %645, %v489
    %v647 = vpop.permute.xlu0 %646
    %650 = vset.pattern.permute.xlu0 0
    %651 = vperm.xlu0 %650, %v490
    %v652 = vpop.permute.xlu0 %651
    %655 = vset.pattern.permute.xlu0 0
    %656 = vperm.xlu0 %655, %v491
    %v657 = vpop.permute.xlu0 %656
    %660 = vset.pattern.permute.xlu0 0
    %661 = vperm.xlu0 %660, %v492
    %v662 = vpop.permute.xlu0 %661
    %665 = vset.pattern.permute.xlu0 0
    %666 = vperm.xlu0 %665, %v493
    %v667 = vpop.permute.xlu0 %666
    %670 = vset.pattern.permute.xlu0 0
    %671 = vperm.xlu0 %670, %v494
    %v672 = vpop.permute.xlu0 %671
    %675 = vset.pattern.permute.xlu0 0
    %676 = vperm.xlu0 %675, %v495
    %v677 = vpop.permute.xlu0 %676
    %680 = vset.pattern.permute.xlu0 0
    %681 = vperm.xlu0 %680, %v496
    %v682 = vpop.permute.xlu0 %681
    %685 = vset.pattern.permute.xlu0 0
    %686 = vperm.xlu0 %685, %v497
    %v687 = vpop.permute.xlu0 %686
    %690 = vset.pattern.permute.xlu0 0
    %691 = vperm.xlu0 %690, %v498
    %v692 = vpop.permute.xlu0 %691
    %v694 = vmul.f32 %v582, %v617
    %v695 = vmul.f32 %v583, %v617
    %v696 = vmul.f32 %v612, %v622
    %v697 = vmul.f32 %v613, %v622
    %v698 = vmul.f32 %v610, %v627
    %v699 = vmul.f32 %v611, %v627
    %v700 = vmul.f32 %v608, %v632
    %v701 = vmul.f32 %v609, %v632
    %v702 = vmul.f32 %v606, %v637
    %v703 = vmul.f32 %v607, %v637
    %v704 = vmul.f32 %v604, %v642
    %v705 = vmul.f32 %v605, %v642
    %v706 = vmul.f32 %v602, %v647
    %v707 = vmul.f32 %v603, %v647
    %v708 = vmul.f32 %v600, %v652
    %v709 = vmul.f32 %v601, %v652
    %v710 = vmul.f32 %v598, %v657
    %v711 = vmul.f32 %v599, %v657
    %v712 = vmul.f32 %v596, %v662
    %v713 = vmul.f32 %v597, %v662
    %v714 = vmul.f32 %v594, %v667
    %v715 = vmul.f32 %v595, %v667
    %v716 = vmul.f32 %v592, %v672
    %v717 = vmul.f32 %v593, %v672
    %v718 = vmul.f32 %v590, %v677
    %v719 = vmul.f32 %v591, %v677
    %v720 = vmul.f32 %v588, %v682
    %v721 = vmul.f32 %v589, %v682
    %v722 = vmul.f32 %v586, %v687
    %v723 = vmul.f32 %v587, %v687
    %v724 = vmul.f32 %v584, %v692
    %v725 = vmul.f32 %v585, %v692
    %v726 = vpack.c.bf16 %v696, %v694
    %v727 = vpack.c.bf16 %v697, %v695
    %v728 = vpack.c.bf16 %v700, %v698
    %v729 = vpack.c.bf16 %v701, %v699
    %v730 = vpack.c.bf16 %v704, %v702
    %v731 = vpack.c.bf16 %v705, %v703
    %v732 = vpack.c.bf16 %v708, %v706
    %v733 = vpack.c.bf16 %v709, %v707
    %v734 = vpack.c.bf16 %v712, %v710
    %v735 = vpack.c.bf16 %v713, %v711
    %v736 = vpack.c.bf16 %v716, %v714
    %v737 = vpack.c.bf16 %v717, %v715
    %v738 = vpack.c.bf16 %v720, %v718
    %v739 = vpack.c.bf16 %v721, %v719
    %v740 = vpack.c.bf16 %v724, %v722
    %v741 = vpack.c.bf16 %v725, %v723
    %v742 = vld [vmem:[#allocation7] sm:$0xff]
    %v743 = vld [vmem:[#allocation7 + $0x8] sm:$0xff]
    %v744 = vld [vmem:[#allocation7 + $0x10] sm:$0xff]
    %v745 = vld [vmem:[#allocation7 + $0x18] sm:$0xff]
    %v746 = vld [vmem:[#allocation7 + $0x20] sm:$0xff]
    %v747 = vld [vmem:[#allocation7 + $0x28] sm:$0xff]
    %v748 = vld [vmem:[#allocation7 + $0x30] sm:$0xff]
    %v749 = vld [vmem:[#allocation7 + $0x38] sm:$0xff]
    %v750 = vld [vmem:[#allocation7 + $0x40] sm:$0xff]
    %v751 = vld [vmem:[#allocation7 + $0x48] sm:$0xff]
    %v752 = vld [vmem:[#allocation7 + $0x50] sm:$0xff]
    %v753 = vld [vmem:[#allocation7 + $0x58] sm:$0xff]
    %v754 = vld [vmem:[#allocation7 + $0x60] sm:$0xff]
    %v755 = vld [vmem:[#allocation7 + $0x68] sm:$0xff]
    %v756 = vld [vmem:[#allocation7 + $0x70] sm:$0xff]
    %v757 = vld [vmem:[#allocation7 + $0x78] sm:$0xff]
    %v758 = vld [vmem:[#allocation7 + $0x80] sm:$0xff]
    %v759 = vld [vmem:[#allocation7 + $0x88] sm:$0xff]
    %v760 = vld [vmem:[#allocation7 + $0x90] sm:$0xff]
    %v761 = vld [vmem:[#allocation7 + $0x98] sm:$0xff]
    %v762 = vld [vmem:[#allocation7 + $0xa0] sm:$0xff]
    %v763 = vld [vmem:[#allocation7 + $0xa8] sm:$0xff]
    %v764 = vld [vmem:[#allocation7 + $0xb0] sm:$0xff]
    %v765 = vld [vmem:[#allocation7 + $0xb8] sm:$0xff]
    %v766 = vld [vmem:[#allocation7 + $0xc0] sm:$0xff]
    %v767 = vld [vmem:[#allocation7 + $0xc8] sm:$0xff]
    %v768 = vld [vmem:[#allocation7 + $0xd0] sm:$0xff]
    %v769 = vld [vmem:[#allocation7 + $0xd8] sm:$0xff]
    %v770 = vld [vmem:[#allocation7 + $0xe0] sm:$0xff]
    %v771 = vld [vmem:[#allocation7 + $0xe8] sm:$0xff]
    %v772 = vld [vmem:[#allocation7 + $0xf0] sm:$0xff]
    %v773 = vld [vmem:[#allocation7 + $0xf8] sm:$0xff]
    %775 = vset.pattern.permute.xlu0 0
    %776 = vperm.xlu0 %775, %v419
    %v777 = vpop.permute.xlu0 %776
    %780 = vset.pattern.permute.xlu0 0
    %781 = vperm.xlu0 %780, %v420
    %v782 = vpop.permute.xlu0 %781
    %785 = vset.pattern.permute.xlu0 0
    %786 = vperm.xlu0 %785, %v421
    %v787 = vpop.permute.xlu0 %786
    %790 = vset.pattern.permute.xlu0 0
    %791 = vperm.xlu0 %790, %v422
    %v792 = vpop.permute.xlu0 %791
    %795 = vset.pattern.permute.xlu0 0
    %796 = vperm.xlu0 %795, %v423
    %v797 = vpop.permute.xlu0 %796
    %800 = vset.pattern.permute.xlu0 0
    %801 = vperm.xlu0 %800, %v424
    %v802 = vpop.permute.xlu0 %801
    %805 = vset.pattern.permute.xlu0 0
    %806 = vperm.xlu0 %805, %v425
    %v807 = vpop.permute.xlu0 %806
    %810 = vset.pattern.permute.xlu0 0
    %811 = vperm.xlu0 %810, %v426
    %v812 = vpop.permute.xlu0 %811
    %815 = vset.pattern.permute.xlu0 0
    %816 = vperm.xlu0 %815, %v427
    %v817 = vpop.permute.xlu0 %816
    %820 = vset.pattern.permute.xlu0 0
    %821 = vperm.xlu0 %820, %v428
    %v822 = vpop.permute.xlu0 %821
    %825 = vset.pattern.permute.xlu0 0
    %826 = vperm.xlu0 %825, %v429
    %v827 = vpop.permute.xlu0 %826
    %830 = vset.pattern.permute.xlu0 0
    %831 = vperm.xlu0 %830, %v430
    %v832 = vpop.permute.xlu0 %831
    %835 = vset.pattern.permute.xlu0 0
    %836 = vperm.xlu0 %835, %v431
    %v837 = vpop.permute.xlu0 %836
    %840 = vset.pattern.permute.xlu0 0
    %841 = vperm.xlu0 %840, %v432
    %v842 = vpop.permute.xlu0 %841
    %845 = vset.pattern.permute.xlu0 0
    %846 = vperm.xlu0 %845, %v433
    %v847 = vpop.permute.xlu0 %846
    %850 = vset.pattern.permute.xlu0 0
    %851 = vperm.xlu0 %850, %v434
    %v852 = vpop.permute.xlu0 %851
    %v854 = vmul.f32 %v417, %v777
    %v855 = vmul.f32 %v418, %v777
    %v856 = vmul.f32 %v387, %v782
    %v857 = vmul.f32 %v388, %v782
    %v858 = vmul.f32 %v389, %v787
    %v859 = vmul.f32 %v390, %v787
    %v860 = vmul.f32 %v391, %v792
    %v861 = vmul.f32 %v392, %v792
    %v862 = vmul.f32 %v393, %v797
    %v863 = vmul.f32 %v394, %v797
    %v864 = vmul.f32 %v395, %v802
    %v865 = vmul.f32 %v396, %v802
    %v866 = vmul.f32 %v397, %v807
    %v867 = vmul.f32 %v398, %v807
    %v868 = vmul.f32 %v399, %v812
    %v869 = vmul.f32 %v400, %v812
    %v870 = vmul.f32 %v401, %v817
    %v871 = vmul.f32 %v402, %v817
    %v872 = vmul.f32 %v403, %v822
    %v873 = vmul.f32 %v404, %v822
    %v874 = vmul.f32 %v405, %v827
    %v875 = vmul.f32 %v406, %v827
    %v876 = vmul.f32 %v407, %v832
    %v877 = vmul.f32 %v408, %v832
    %v878 = vmul.f32 %v409, %v837
    %v879 = vmul.f32 %v410, %v837
    %v880 = vmul.f32 %v411, %v842
    %v881 = vmul.f32 %v412, %v842
    %v882 = vmul.f32 %v413, %v847
    %v883 = vmul.f32 %v414, %v847
    %v884 = vmul.f32 %v415, %v852
    %v885 = vmul.f32 %v416, %v852
    %v886 = vpack.c.bf16 %v856, %v854
    %v887 = vpack.c.bf16 %v857, %v855
    %v888 = vpack.c.bf16 %v860, %v858
    %v889 = vpack.c.bf16 %v861, %v859
    %v890 = vpack.c.bf16 %v864, %v862
    %v891 = vpack.c.bf16 %v865, %v863
    %v892 = vpack.c.bf16 %v868, %v866
    %v893 = vpack.c.bf16 %v869, %v867
    %v894 = vpack.c.bf16 %v872, %v870
    %v895 = vpack.c.bf16 %v873, %v871
    %v896 = vpack.c.bf16 %v876, %v874
    %v897 = vpack.c.bf16 %v877, %v875
    %v898 = vpack.c.bf16 %v880, %v878
    %v899 = vpack.c.bf16 %v881, %v879
    %v900 = vpack.c.bf16 %v884, %v882
    %v901 = vpack.c.bf16 %v885, %v883
    %s902 = scalar_lea.vmem [#allocation7], 256
    %v903 = vld [vmem:[%s902] sm:$0xff]
    %v904 = vld [vmem:[%s902 + $0x8] sm:$0xff]
    %v905 = vld [vmem:[%s902 + $0x10] sm:$0xff]
    %v906 = vld [vmem:[%s902 + $0x18] sm:$0xff]
    %v907 = vld [vmem:[%s902 + $0x20] sm:$0xff]
    %v908 = vld [vmem:[%s902 + $0x28] sm:$0xff]
    %v909 = vld [vmem:[%s902 + $0x30] sm:$0xff]
    %v910 = vld [vmem:[%s902 + $0x38] sm:$0xff]
    %v911 = vld [vmem:[%s902 + $0x40] sm:$0xff]
    %v912 = vld [vmem:[%s902 + $0x48] sm:$0xff]
    %v913 = vld [vmem:[%s902 + $0x50] sm:$0xff]
    %v914 = vld [vmem:[%s902 + $0x58] sm:$0xff]
    %v915 = vld [vmem:[%s902 + $0x60] sm:$0xff]
    %v916 = vld [vmem:[%s902 + $0x68] sm:$0xff]
    %v917 = vld [vmem:[%s902 + $0x70] sm:$0xff]
    %v918 = vld [vmem:[%s902 + $0x78] sm:$0xff]
    %v919 = vld [vmem:[%s902 + $0x80] sm:$0xff]
    %v920 = vld [vmem:[%s902 + $0x88] sm:$0xff]
    %v921 = vld [vmem:[%s902 + $0x90] sm:$0xff]
    %v922 = vld [vmem:[%s902 + $0x98] sm:$0xff]
    %v923 = vld [vmem:[%s902 + $0xa0] sm:$0xff]
    %v924 = vld [vmem:[%s902 + $0xa8] sm:$0xff]
    %v925 = vld [vmem:[%s902 + $0xb0] sm:$0xff]
    %v926 = vld [vmem:[%s902 + $0xb8] sm:$0xff]
    %v927 = vld [vmem:[%s902 + $0xc0] sm:$0xff]
    %v928 = vld [vmem:[%s902 + $0xc8] sm:$0xff]
    %v929 = vld [vmem:[%s902 + $0xd0] sm:$0xff]
    %v930 = vld [vmem:[%s902 + $0xd8] sm:$0xff]
    %v931 = vld [vmem:[%s902 + $0xe0] sm:$0xff]
    %v932 = vld [vmem:[%s902 + $0xe8] sm:$0xff]
    %v933 = vld [vmem:[%s902 + $0xf0] sm:$0xff]
    %v934 = vld [vmem:[%s902 + $0xf8] sm:$0xff]
    %v967 = vunpack.c.l.b16 %v903
    %v968 = vunpack.c.h.b16 %v903
    %v969 = vunpack.c.l.b16 %v904
    %v970 = vunpack.c.h.b16 %v904
    %v971 = vunpack.c.l.b16 %v905
    %v972 = vunpack.c.h.b16 %v905
    %v973 = vunpack.c.l.b16 %v906
    %v974 = vunpack.c.h.b16 %v906
    %v975 = vunpack.c.l.b16 %v907
    %v976 = vunpack.c.h.b16 %v907
    %v977 = vunpack.c.l.b16 %v908
    %v978 = vunpack.c.h.b16 %v908
    %v979 = vunpack.c.l.b16 %v909
    %v980 = vunpack.c.h.b16 %v909
    %v981 = vunpack.c.l.b16 %v910
    %v982 = vunpack.c.h.b16 %v910
    %v983 = vunpack.c.l.b16 %v911
    %v984 = vunpack.c.h.b16 %v911
    %v985 = vunpack.c.l.b16 %v912
    %v986 = vunpack.c.h.b16 %v912
    %v987 = vunpack.c.l.b16 %v913
    %v988 = vunpack.c.h.b16 %v913
    %v989 = vunpack.c.l.b16 %v914
    %v990 = vunpack.c.h.b16 %v914
    %v991 = vunpack.c.l.b16 %v915
    %v992 = vunpack.c.h.b16 %v915
    %v993 = vunpack.c.l.b16 %v916
    %v994 = vunpack.c.h.b16 %v916
    %v995 = vunpack.c.l.b16 %v917
    %v996 = vunpack.c.h.b16 %v917
    %v997 = vunpack.c.l.b16 %v918
    %v998 = vunpack.c.h.b16 %v918
    %v999 = vunpack.c.l.b16 %v919
    %v1000 = vunpack.c.h.b16 %v919
    %v1001 = vunpack.c.l.b16 %v920
    %v1002 = vunpack.c.h.b16 %v920
    %v1003 = vunpack.c.l.b16 %v921
    %v1004 = vunpack.c.h.b16 %v921
    %v1005 = vunpack.c.l.b16 %v922
    %v1006 = vunpack.c.h.b16 %v922
    %v1007 = vunpack.c.l.b16 %v923
    %v1008 = vunpack.c.h.b16 %v923
    %v1009 = vunpack.c.l.b16 %v924
    %v1010 = vunpack.c.h.b16 %v924
    %v1011 = vunpack.c.l.b16 %v925
    %v1012 = vunpack.c.h.b16 %v925
    %v1013 = vunpack.c.l.b16 %v926
    %v1014 = vunpack.c.h.b16 %v926
    %v1015 = vunpack.c.l.b16 %v927
    %v1016 = vunpack.c.h.b16 %v927
    %v1017 = vunpack.c.l.b16 %v928
    %v1018 = vunpack.c.h.b16 %v928
    %v1019 = vunpack.c.l.b16 %v929
    %v1020 = vunpack.c.h.b16 %v929
    %v1021 = vunpack.c.l.b16 %v930
    %v1022 = vunpack.c.h.b16 %v930
    %v1023 = vunpack.c.l.b16 %v931
    %v1024 = vunpack.c.h.b16 %v931
    %v1025 = vunpack.c.l.b16 %v932
    %v1026 = vunpack.c.h.b16 %v932
    %v1027 = vunpack.c.l.b16 %v933
    %v1028 = vunpack.c.h.b16 %v933
    %v1029 = vunpack.c.l.b16 %v934
    %v1030 = vunpack.c.h.b16 %v934
    %v1031 = vpack.c.b16 %v969, %v967
    %v1032 = vpack.c.b16 %v970, %v968
    %v1033 = vpack.c.b16 %v973, %v971
    %v1034 = vpack.c.b16 %v974, %v972
    %v1035 = vpack.c.b16 %v977, %v975
    %v1036 = vpack.c.b16 %v978, %v976
    %v1037 = vpack.c.b16 %v981, %v979
    %v1038 = vpack.c.b16 %v982, %v980
    %v1039 = vpack.c.b16 %v985, %v983
    %v1040 = vpack.c.b16 %v986, %v984
    %v1041 = vpack.c.b16 %v989, %v987
    %v1042 = vpack.c.b16 %v990, %v988
    %v1043 = vpack.c.b16 %v993, %v991
    %v1044 = vpack.c.b16 %v994, %v992
    %v1045 = vpack.c.b16 %v997, %v995
    %v1046 = vpack.c.b16 %v998, %v996
    %v1047 = vpack.c.b16 %v1001, %v999
    %v1048 = vpack.c.b16 %v1002, %v1000
    %v1049 = vpack.c.b16 %v1005, %v1003
    %v1050 = vpack.c.b16 %v1006, %v1004
    %v1051 = vpack.c.b16 %v1009, %v1007
    %v1052 = vpack.c.b16 %v1010, %v1008
    %v1053 = vpack.c.b16 %v1013, %v1011
    %v1054 = vpack.c.b16 %v1014, %v1012
    %v1055 = vpack.c.b16 %v1017, %v1015
    %v1056 = vpack.c.b16 %v1018, %v1016
    %v1057 = vpack.c.b16 %v1021, %v1019
    %v1058 = vpack.c.b16 %v1022, %v1020
    %v1059 = vpack.c.b16 %v1025, %v1023
    %v1060 = vpack.c.b16 %v1026, %v1024
    %v1061 = vpack.c.b16 %v1029, %v1027
    %v1062 = vpack.c.b16 %v1030, %v1028
    %1095 = vmatprep.subr.bf16.mxu0 %v1046
    %1096 = vmatpush1.bf16.msra.mxu0 %v1045
    %1097 = vmatprep.subr.bf16.mxu0 %v1044
    %1098 = vmatpush1.bf16.msra.mxu0 %v1043
    %1099 = vmatprep.subr.bf16.mxu0 %v1042
    %1100 = vmatpush1.bf16.msra.mxu0 %v1041
    %1101 = vmatprep.subr.bf16.mxu0 %v1040
    %1102 = vmatpush1.bf16.msra.mxu0 %v1039
    %1103 = vmatprep.subr.bf16.mxu0 %v1038
    %1104 = vmatpush1.bf16.msra.mxu0 %v1037
    %1105 = vmatprep.subr.bf16.mxu0 %v1036
    %1106 = vmatpush1.bf16.msra.mxu0 %v1035
    %1107 = vmatprep.subr.bf16.mxu0 %v1034
    %1108 = vmatpush1.bf16.msra.mxu0 %v1033
    %1109 = vmatprep.subr.bf16.mxu0 %v1032
    %1110 = vmatpush1.bf16.msra.mxu0 %v1031
    %1111 = vmatprep.subr.bf16.mxu0 %v1062
    %1112 = vmatpush2.bf16.msra.mxu0 %v1061
    %1113 = vmatprep.subr.bf16.mxu0 %v1060
    %1114 = vmatpush2.bf16.msra.mxu0 %v1059
    %1115 = vmatprep.subr.bf16.mxu0 %v1058
    %1116 = vmatpush2.bf16.msra.mxu0 %v1057
    %1117 = vmatprep.subr.bf16.mxu0 %v1056
    %1118 = vmatpush2.bf16.msra.mxu0 %v1055
    %1119 = vmatprep.subr.bf16.mxu0 %v1054
    %1120 = vmatpush2.bf16.msra.mxu0 %v1053
    %1121 = vmatprep.subr.bf16.mxu0 %v1052
    %1122 = vmatpush2.bf16.msra.mxu0 %v1051
    %1123 = vmatprep.subr.bf16.mxu0 %v1050
    %1124 = vmatpush2.bf16.msra.mxu0 %v1049
    %1125 = vmatprep.subr.bf16.mxu0 %v1048
    %1126 = vmatpush2.bf16.msra.mxu0 %v1047
    %1127 = vmatprep.mubr.bf16.mxu0 %v887
    %1128 = vmatmul.mubr.bf16.gmra.mxu0 %v886
    %v1129 = vpop.f32.mrf.mxu0
    %v1130 = vadd.f32 0.0, %v1129
    %v1131 = vpop.f32.mrf.mxu0
    %v1132 = vadd.f32 0.0, %v1131
    %v1133 = vpop.f32.mrf.mxu0
    %v1134 = vadd.f32 0.0, %v1133
    %v1135 = vpop.f32.mrf.mxu0
    %v1136 = vadd.f32 0.0, %v1135
    %1137 = vmatprep.mubr.bf16.mxu0 %v889
    %1138 = vmatmul.mubr.bf16.gmra.mxu0 %v888
    %v1139 = vpop.f32.mrf.mxu0
    %v1140 = vadd.f32 0.0, %v1139
    %v1141 = vpop.f32.mrf.mxu0
    %v1142 = vadd.f32 0.0, %v1141
    %v1143 = vpop.f32.mrf.mxu0
    %v1144 = vadd.f32 0.0, %v1143
    %v1145 = vpop.f32.mrf.mxu0
    %v1146 = vadd.f32 0.0, %v1145
    %1147 = vmatprep.mubr.bf16.mxu0 %v891
    %1148 = vmatmul.mubr.bf16.gmra.mxu0 %v890
    %v1149 = vpop.f32.mrf.mxu0
    %v1150 = vadd.f32 0.0, %v1149
    %v1151 = vpop.f32.mrf.mxu0
    %v1152 = vadd.f32 0.0, %v1151
    %v1153 = vpop.f32.mrf.mxu0
    %v1154 = vadd.f32 0.0, %v1153
    %v1155 = vpop.f32.mrf.mxu0
    %v1156 = vadd.f32 0.0, %v1155
    %1157 = vmatprep.mubr.bf16.mxu0 %v893
    %1158 = vmatmul.mubr.bf16.gmra.mxu0 %v892
    %v1159 = vpop.f32.mrf.mxu0
    %v1160 = vadd.f32 0.0, %v1159
    %v1161 = vpop.f32.mrf.mxu0
    %v1162 = vadd.f32 0.0, %v1161
    %v1163 = vpop.f32.mrf.mxu0
    %v1164 = vadd.f32 0.0, %v1163
    %v1165 = vpop.f32.mrf.mxu0
    %v1166 = vadd.f32 0.0, %v1165
    %1167 = vmatprep.mubr.bf16.mxu0 %v895
    %1168 = vmatmul.mubr.bf16.gmra.mxu0 %v894
    %v1169 = vpop.f32.mrf.mxu0
    %v1170 = vadd.f32 0.0, %v1169
    %v1171 = vpop.f32.mrf.mxu0
    %v1172 = vadd.f32 0.0, %v1171
    %v1173 = vpop.f32.mrf.mxu0
    %v1174 = vadd.f32 0.0, %v1173
    %v1175 = vpop.f32.mrf.mxu0
    %v1176 = vadd.f32 0.0, %v1175
    %1177 = vmatprep.mubr.bf16.mxu0 %v897
    %1178 = vmatmul.mubr.bf16.gmra.mxu0 %v896
    %v1179 = vpop.f32.mrf.mxu0
    %v1180 = vadd.f32 0.0, %v1179
    %v1181 = vpop.f32.mrf.mxu0
    %v1182 = vadd.f32 0.0, %v1181
    %v1183 = vpop.f32.mrf.mxu0
    %v1184 = vadd.f32 0.0, %v1183
    %v1185 = vpop.f32.mrf.mxu0
    %v1186 = vadd.f32 0.0, %v1185
    %1187 = vmatprep.mubr.bf16.mxu0 %v899
    %1188 = vmatmul.mubr.bf16.gmra.mxu0 %v898
    %v1189 = vpop.f32.mrf.mxu0
    %v1190 = vadd.f32 0.0, %v1189
    %v1191 = vpop.f32.mrf.mxu0
    %v1192 = vadd.f32 0.0, %v1191
    %v1193 = vpop.f32.mrf.mxu0
    %v1194 = vadd.f32 0.0, %v1193
    %v1195 = vpop.f32.mrf.mxu0
    %v1196 = vadd.f32 0.0, %v1195
    %1197 = vmatprep.mubr.bf16.mxu0 %v901
    %1198 = vmatmul.mubr.bf16.gmra.mxu0 %v900
    %v1199 = vpop.f32.mrf.mxu0
    %v1200 = vadd.f32 0.0, %v1199
    %v1201 = vpop.f32.mrf.mxu0
    %v1202 = vadd.f32 0.0, %v1201
    %v1203 = vpop.f32.mrf.mxu0
    %v1204 = vadd.f32 0.0, %v1203
    %v1205 = vpop.f32.mrf.mxu0
    %v1206 = vadd.f32 0.0, %v1205
    %1207 = vdwg.mxu0
    %v1240 = vunpack.c.l.b16 %v742
    %v1241 = vunpack.c.h.b16 %v742
    %v1242 = vunpack.c.l.b16 %v743
    %v1243 = vunpack.c.h.b16 %v743
    %v1244 = vunpack.c.l.b16 %v744
    %v1245 = vunpack.c.h.b16 %v744
    %v1246 = vunpack.c.l.b16 %v745
    %v1247 = vunpack.c.h.b16 %v745
    %v1248 = vunpack.c.l.b16 %v746
    %v1249 = vunpack.c.h.b16 %v746
    %v1250 = vunpack.c.l.b16 %v747
    %v1251 = vunpack.c.h.b16 %v747
    %v1252 = vunpack.c.l.b16 %v748
    %v1253 = vunpack.c.h.b16 %v748
    %v1254 = vunpack.c.l.b16 %v749
    %v1255 = vunpack.c.h.b16 %v749
    %v1256 = vunpack.c.l.b16 %v750
    %v1257 = vunpack.c.h.b16 %v750
    %v1258 = vunpack.c.l.b16 %v751
    %v1259 = vunpack.c.h.b16 %v751
    %v1260 = vunpack.c.l.b16 %v752
    %v1261 = vunpack.c.h.b16 %v752
    %v1262 = vunpack.c.l.b16 %v753
    %v1263 = vunpack.c.h.b16 %v753
    %v1264 = vunpack.c.l.b16 %v754
    %v1265 = vunpack.c.h.b16 %v754
    %v1266 = vunpack.c.l.b16 %v755
    %v1267 = vunpack.c.h.b16 %v755
    %v1268 = vunpack.c.l.b16 %v756
    %v1269 = vunpack.c.h.b16 %v756
    %v1270 = vunpack.c.l.b16 %v757
    %v1271 = vunpack.c.h.b16 %v757
    %v1272 = vunpack.c.l.b16 %v758
    %v1273 = vunpack.c.h.b16 %v758
    %v1274 = vunpack.c.l.b16 %v759
    %v1275 = vunpack.c.h.b16 %v759
    %v1276 = vunpack.c.l.b16 %v760
    %v1277 = vunpack.c.h.b16 %v760
    %v1278 = vunpack.c.l.b16 %v761
    %v1279 = vunpack.c.h.b16 %v761
    %v1280 = vunpack.c.l.b16 %v762
    %v1281 = vunpack.c.h.b16 %v762
    %v1282 = vunpack.c.l.b16 %v763
    %v1283 = vunpack.c.h.b16 %v763
    %v1284 = vunpack.c.l.b16 %v764
    %v1285 = vunpack.c.h.b16 %v764
    %v1286 = vunpack.c.l.b16 %v765
    %v1287 = vunpack.c.h.b16 %v765
    %v1288 = vunpack.c.l.b16 %v766
    %v1289 = vunpack.c.h.b16 %v766
    %v1290 = vunpack.c.l.b16 %v767
    %v1291 = vunpack.c.h.b16 %v767
    %v1292 = vunpack.c.l.b16 %v768
    %v1293 = vunpack.c.h.b16 %v768
    %v1294 = vunpack.c.l.b16 %v769
    %v1295 = vunpack.c.h.b16 %v769
    %v1296 = vunpack.c.l.b16 %v770
    %v1297 = vunpack.c.h.b16 %v770
    %v1298 = vunpack.c.l.b16 %v771
    %v1299 = vunpack.c.h.b16 %v771
    %v1300 = vunpack.c.l.b16 %v772
    %v1301 = vunpack.c.h.b16 %v772
    %v1302 = vunpack.c.l.b16 %v773
    %v1303 = vunpack.c.h.b16 %v773
    %v1304 = vpack.c.b16 %v1242, %v1240
    %v1305 = vpack.c.b16 %v1243, %v1241
    %v1306 = vpack.c.b16 %v1246, %v1244
    %v1307 = vpack.c.b16 %v1247, %v1245
    %v1308 = vpack.c.b16 %v1250, %v1248
    %v1309 = vpack.c.b16 %v1251, %v1249
    %v1310 = vpack.c.b16 %v1254, %v1252
    %v1311 = vpack.c.b16 %v1255, %v1253
    %v1312 = vpack.c.b16 %v1258, %v1256
    %v1313 = vpack.c.b16 %v1259, %v1257
    %v1314 = vpack.c.b16 %v1262, %v1260
    %v1315 = vpack.c.b16 %v1263, %v1261
    %v1316 = vpack.c.b16 %v1266, %v1264
    %v1317 = vpack.c.b16 %v1267, %v1265
    %v1318 = vpack.c.b16 %v1270, %v1268
    %v1319 = vpack.c.b16 %v1271, %v1269
    %v1320 = vpack.c.b16 %v1274, %v1272
    %v1321 = vpack.c.b16 %v1275, %v1273
    %v1322 = vpack.c.b16 %v1278, %v1276
    %v1323 = vpack.c.b16 %v1279, %v1277
    %v1324 = vpack.c.b16 %v1282, %v1280
    %v1325 = vpack.c.b16 %v1283, %v1281
    %v1326 = vpack.c.b16 %v1286, %v1284
    %v1327 = vpack.c.b16 %v1287, %v1285
    %v1328 = vpack.c.b16 %v1290, %v1288
    %v1329 = vpack.c.b16 %v1291, %v1289
    %v1330 = vpack.c.b16 %v1294, %v1292
    %v1331 = vpack.c.b16 %v1295, %v1293
    %v1332 = vpack.c.b16 %v1298, %v1296
    %v1333 = vpack.c.b16 %v1299, %v1297
    %v1334 = vpack.c.b16 %v1302, %v1300
    %v1335 = vpack.c.b16 %v1303, %v1301
    %1368 = vmatprep.subr.bf16.mxu0 %v1319
    %1369 = vmatpush1.bf16.msra.mxu0 %v1318
    %1370 = vmatprep.subr.bf16.mxu0 %v1317
    %1371 = vmatpush1.bf16.msra.mxu0 %v1316
    %1372 = vmatprep.subr.bf16.mxu0 %v1315
    %1373 = vmatpush1.bf16.msra.mxu0 %v1314
    %1374 = vmatprep.subr.bf16.mxu0 %v1313
    %1375 = vmatpush1.bf16.msra.mxu0 %v1312
    %1376 = vmatprep.subr.bf16.mxu0 %v1311
    %1377 = vmatpush1.bf16.msra.mxu0 %v1310
    %1378 = vmatprep.subr.bf16.mxu0 %v1309
    %1379 = vmatpush1.bf16.msra.mxu0 %v1308
    %1380 = vmatprep.subr.bf16.mxu0 %v1307
    %1381 = vmatpush1.bf16.msra.mxu0 %v1306
    %1382 = vmatprep.subr.bf16.mxu0 %v1305
    %1383 = vmatpush1.bf16.msra.mxu0 %v1304
    %1384 = vmatprep.subr.bf16.mxu0 %v1335
    %1385 = vmatpush2.bf16.msra.mxu0 %v1334
    %1386 = vmatprep.subr.bf16.mxu0 %v1333
    %1387 = vmatpush2.bf16.msra.mxu0 %v1332
    %1388 = vmatprep.subr.bf16.mxu0 %v1331
    %1389 = vmatpush2.bf16.msra.mxu0 %v1330
    %1390 = vmatprep.subr.bf16.mxu0 %v1329
    %1391 = vmatpush2.bf16.msra.mxu0 %v1328
    %1392 = vmatprep.subr.bf16.mxu0 %v1327
    %1393 = vmatpush2.bf16.msra.mxu0 %v1326
    %1394 = vmatprep.subr.bf16.mxu0 %v1325
    %1395 = vmatpush2.bf16.msra.mxu0 %v1324
    %1396 = vmatprep.subr.bf16.mxu0 %v1323
    %1397 = vmatpush2.bf16.msra.mxu0 %v1322
    %1398 = vmatprep.subr.bf16.mxu0 %v1321
    %1399 = vmatpush2.bf16.msra.mxu0 %v1320
    %1400 = vmatprep.mubr.bf16.mxu0 %v727
    %1401 = vmatmul.mubr.bf16.gmra.mxu0 %v726
    %v1402 = vpop.f32.mrf.mxu0
    %v1403 = vadd.f32 %v1130, %v1402
    %v1404 = vpop.f32.mrf.mxu0
    %v1405 = vadd.f32 %v1132, %v1404
    %v1406 = vpop.f32.mrf.mxu0
    %v1407 = vadd.f32 %v1134, %v1406
    %v1408 = vpop.f32.mrf.mxu0
    %v1409 = vadd.f32 %v1136, %v1408
    %1410 = vmatprep.mubr.bf16.mxu0 %v729
    %1411 = vmatmul.mubr.bf16.gmra.mxu0 %v728
    %v1412 = vpop.f32.mrf.mxu0
    %v1413 = vadd.f32 %v1140, %v1412
    %v1414 = vpop.f32.mrf.mxu0
    %v1415 = vadd.f32 %v1142, %v1414
    %v1416 = vpop.f32.mrf.mxu0
    %v1417 = vadd.f32 %v1144, %v1416
    %v1418 = vpop.f32.mrf.mxu0
    %v1419 = vadd.f32 %v1146, %v1418
    %1420 = vmatprep.mubr.bf16.mxu0 %v731
    %1421 = vmatmul.mubr.bf16.gmra.mxu0 %v730
    %v1422 = vpop.f32.mrf.mxu0
    %v1423 = vadd.f32 %v1150, %v1422
    %v1424 = vpop.f32.mrf.mxu0
    %v1425 = vadd.f32 %v1152, %v1424
    %v1426 = vpop.f32.mrf.mxu0
    %v1427 = vadd.f32 %v1154, %v1426
    %v1428 = vpop.f32.mrf.mxu0
    %v1429 = vadd.f32 %v1156, %v1428
    %1430 = vmatprep.mubr.bf16.mxu0 %v733
    %1431 = vmatmul.mubr.bf16.gmra.mxu0 %v732
    %v1432 = vpop.f32.mrf.mxu0
    %v1433 = vadd.f32 %v1160, %v1432
    %v1434 = vpop.f32.mrf.mxu0
    %v1435 = vadd.f32 %v1162, %v1434
    %v1436 = vpop.f32.mrf.mxu0
    %v1437 = vadd.f32 %v1164, %v1436
    %v1438 = vpop.f32.mrf.mxu0
    %v1439 = vadd.f32 %v1166, %v1438
    %1440 = vmatprep.mubr.bf16.mxu0 %v735
    %1441 = vmatmul.mubr.bf16.gmra.mxu0 %v734
    %v1442 = vpop.f32.mrf.mxu0
    %v1443 = vadd.f32 %v1170, %v1442
    %v1444 = vpop.f32.mrf.mxu0
    %v1445 = vadd.f32 %v1172, %v1444
    %v1446 = vpop.f32.mrf.mxu0
    %v1447 = vadd.f32 %v1174, %v1446
    %v1448 = vpop.f32.mrf.mxu0
    %v1449 = vadd.f32 %v1176, %v1448
    %1450 = vmatprep.mubr.bf16.mxu0 %v737
    %1451 = vmatmul.mubr.bf16.gmra.mxu0 %v736
    %v1452 = vpop.f32.mrf.mxu0
    %v1453 = vadd.f32 %v1180, %v1452
    %v1454 = vpop.f32.mrf.mxu0
    %v1455 = vadd.f32 %v1182, %v1454
    %v1456 = vpop.f32.mrf.mxu0
    %v1457 = vadd.f32 %v1184, %v1456
    %v1458 = vpop.f32.mrf.mxu0
    %v1459 = vadd.f32 %v1186, %v1458
    %1460 = vmatprep.mubr.bf16.mxu0 %v739
    %1461 = vmatmul.mubr.bf16.gmra.mxu0 %v738
    %v1462 = vpop.f32.mrf.mxu0
    %v1463 = vadd.f32 %v1190, %v1462
    %v1464 = vpop.f32.mrf.mxu0
    %v1465 = vadd.f32 %v1192, %v1464
    %v1466 = vpop.f32.mrf.mxu0
    %v1467 = vadd.f32 %v1194, %v1466
    %v1468 = vpop.f32.mrf.mxu0
    %v1469 = vadd.f32 %v1196, %v1468
    %1470 = vmatprep.mubr.bf16.mxu0 %v741
    %1471 = vmatmul.mubr.bf16.gmra.mxu0 %v740
    %v1472 = vpop.f32.mrf.mxu0
    %v1473 = vadd.f32 %v1200, %v1472
    %v1474 = vpop.f32.mrf.mxu0
    %v1475 = vadd.f32 %v1202, %v1474
    %v1476 = vpop.f32.mrf.mxu0
    %v1477 = vadd.f32 %v1204, %v1476
    %v1478 = vpop.f32.mrf.mxu0
    %v1479 = vadd.f32 %v1206, %v1478
    %1480 = vdwg.mxu0
    %v1481 = vrot.slane %v387, 1
    %v1482 = vrot.slane %v388, 1
    %v1483 = vrot.slane %v389, 1
    %v1484 = vrot.slane %v390, 1
    %v1485 = vrot.slane %v391, 1
    %v1486 = vrot.slane %v392, 1
    %v1487 = vrot.slane %v393, 1
    %v1488 = vrot.slane %v394, 1
    %v1489 = vrot.slane %v395, 1
    %v1490 = vrot.slane %v396, 1
    %v1491 = vrot.slane %v397, 1
    %v1492 = vrot.slane %v398, 1
    %v1493 = vrot.slane %v399, 1
    %v1494 = vrot.slane %v400, 1
    %v1495 = vrot.slane %v401, 1
    %v1496 = vrot.slane %v402, 1
    %v1497 = vrot.slane %v403, 1
    %v1498 = vrot.slane %v404, 1
    %v1499 = vrot.slane %v405, 1
    %v1500 = vrot.slane %v406, 1
    %v1501 = vrot.slane %v407, 1
    %v1502 = vrot.slane %v408, 1
    %v1503 = vrot.slane %v409, 1
    %v1504 = vrot.slane %v410, 1
    %v1505 = vrot.slane %v411, 1
    %v1506 = vrot.slane %v412, 1
    %v1507 = vrot.slane %v413, 1
    %v1508 = vrot.slane %v414, 1
    %v1509 = vrot.slane %v415, 1
    %v1510 = vrot.slane %v416, 1
    %v1511 = vrot.slane %v417, 1
    %v1512 = vrot.slane %v418, 1
    %vm1513 = vcmp.lt.s32.totalorder %v580, 7
    %v1514 = vsel %vm1513, %v1509, %v1511
    %v1515 = vsel %vm1513, %v1510, %v1512
    %v1516 = vsel %vm1513, %v1507, %v1509
    %v1517 = vsel %vm1513, %v1508, %v1510
    %v1518 = vsel %vm1513, %v1505, %v1507
    %v1519 = vsel %vm1513, %v1506, %v1508
    %v1520 = vsel %vm1513, %v1503, %v1505
    %v1521 = vsel %vm1513, %v1504, %v1506
    %v1522 = vsel %vm1513, %v1501, %v1503
    %v1523 = vsel %vm1513, %v1502, %v1504
    %v1524 = vsel %vm1513, %v1499, %v1501
    %v1525 = vsel %vm1513, %v1500, %v1502
    %v1526 = vsel %vm1513, %v1497, %v1499
    %v1527 = vsel %vm1513, %v1498, %v1500
    %v1528 = vsel %vm1513, %v1495, %v1497
    %v1529 = vsel %vm1513, %v1496, %v1498
    %v1530 = vsel %vm1513, %v1493, %v1495
    %v1531 = vsel %vm1513, %v1494, %v1496
    %v1532 = vsel %vm1513, %v1491, %v1493
    %v1533 = vsel %vm1513, %v1492, %v1494
    %v1534 = vsel %vm1513, %v1489, %v1491
    %v1535 = vsel %vm1513, %v1490, %v1492
    %v1536 = vsel %vm1513, %v1487, %v1489
    %v1537 = vsel %vm1513, %v1488, %v1490
    %v1538 = vsel %vm1513, %v1485, %v1487
    %v1539 = vsel %vm1513, %v1486, %v1488
    %v1540 = vsel %vm1513, %v1483, %v1485
    %v1541 = vsel %vm1513, %v1484, %v1486
    %v1542 = vsel %vm1513, %v1481, %v1483
    %v1543 = vsel %vm1513, %v1482, %v1484
    %v1544 = vsel %vm1513, %v1511, %v1481
    %v1545 = vsel %vm1513, %v1512, %v1482
    %1547 = vset.pattern.permute.xlu0 0
    %1548 = vperm.xlu0 %1547, %v499
    %v1549 = vpop.permute.xlu0 %1548
    %1552 = vset.pattern.permute.xlu0 0
    %1553 = vperm.xlu0 %1552, %v500
    %v1554 = vpop.permute.xlu0 %1553
    %1557 = vset.pattern.permute.xlu0 0
    %1558 = vperm.xlu0 %1557, %v501
    %v1559 = vpop.permute.xlu0 %1558
    %1562 = vset.pattern.permute.xlu0 0
    %1563 = vperm.xlu0 %1562, %v502
    %v1564 = vpop.permute.xlu0 %1563
    %1567 = vset.pattern.permute.xlu0 0
    %1568 = vperm.xlu0 %1567, %v503
    %v1569 = vpop.permute.xlu0 %1568
    %1572 = vset.pattern.permute.xlu0 0
    %1573 = vperm.xlu0 %1572, %v504
    %v1574 = vpop.permute.xlu0 %1573
    %1577 = vset.pattern.permute.xlu0 0
    %1578 = vperm.xlu0 %1577, %v505
    %v1579 = vpop.permute.xlu0 %1578
    %1582 = vset.pattern.permute.xlu0 0
    %1583 = vperm.xlu0 %1582, %v506
    %v1584 = vpop.permute.xlu0 %1583
    %1587 = vset.pattern.permute.xlu0 0
    %1588 = vperm.xlu0 %1587, %v507
    %v1589 = vpop.permute.xlu0 %1588
    %1592 = vset.pattern.permute.xlu0 0
    %1593 = vperm.xlu0 %1592, %v508
    %v1594 = vpop.permute.xlu0 %1593
    %1597 = vset.pattern.permute.xlu0 0
    %1598 = vperm.xlu0 %1597, %v509
    %v1599 = vpop.permute.xlu0 %1598
    %1602 = vset.pattern.permute.xlu0 0
    %1603 = vperm.xlu0 %1602, %v510
    %v1604 = vpop.permute.xlu0 %1603
    %1607 = vset.pattern.permute.xlu0 0
    %1608 = vperm.xlu0 %1607, %v511
    %v1609 = vpop.permute.xlu0 %1608
    %1612 = vset.pattern.permute.xlu0 0
    %1613 = vperm.xlu0 %1612, %v512
    %v1614 = vpop.permute.xlu0 %1613
    %1617 = vset.pattern.permute.xlu0 0
    %1618 = vperm.xlu0 %1617, %v513
    %v1619 = vpop.permute.xlu0 %1618
    %1622 = vset.pattern.permute.xlu0 0
    %1623 = vperm.xlu0 %1622, %v514
    %v1624 = vpop.permute.xlu0 %1623
    %v1626 = vmul.f32 %v1544, %v1549
    %v1627 = vmul.f32 %v1545, %v1549
    %v1628 = vmul.f32 %v1542, %v1554
    %v1629 = vmul.f32 %v1543, %v1554
    %v1630 = vmul.f32 %v1540, %v1559
    %v1631 = vmul.f32 %v1541, %v1559
    %v1632 = vmul.f32 %v1538, %v1564
    %v1633 = vmul.f32 %v1539, %v1564
    %v1634 = vmul.f32 %v1536, %v1569
    %v1635 = vmul.f32 %v1537, %v1569
    %v1636 = vmul.f32 %v1534, %v1574
    %v1637 = vmul.f32 %v1535, %v1574
    %v1638 = vmul.f32 %v1532, %v1579
    %v1639 = vmul.f32 %v1533, %v1579
    %v1640 = vmul.f32 %v1530, %v1584
    %v1641 = vmul.f32 %v1531, %v1584
    %v1642 = vmul.f32 %v1528, %v1589
    %v1643 = vmul.f32 %v1529, %v1589
    %v1644 = vmul.f32 %v1526, %v1594
    %v1645 = vmul.f32 %v1527, %v1594
    %v1646 = vmul.f32 %v1524, %v1599
    %v1647 = vmul.f32 %v1525, %v1599
    %v1648 = vmul.f32 %v1522, %v1604
    %v1649 = vmul.f32 %v1523, %v1604
    %v1650 = vmul.f32 %v1520, %v1609
    %v1651 = vmul.f32 %v1521, %v1609
    %v1652 = vmul.f32 %v1518, %v1614
    %v1653 = vmul.f32 %v1519, %v1614
    %v1654 = vmul.f32 %v1516, %v1619
    %v1655 = vmul.f32 %v1517, %v1619
    %v1656 = vmul.f32 %v1514, %v1624
    %v1657 = vmul.f32 %v1515, %v1624
    %v1658 = vpack.c.bf16 %v1628, %v1626
    %v1659 = vpack.c.bf16 %v1629, %v1627
    %v1660 = vpack.c.bf16 %v1632, %v1630
    %v1661 = vpack.c.bf16 %v1633, %v1631
    %v1662 = vpack.c.bf16 %v1636, %v1634
    %v1663 = vpack.c.bf16 %v1637, %v1635
    %v1664 = vpack.c.bf16 %v1640, %v1638
    %v1665 = vpack.c.bf16 %v1641, %v1639
    %v1666 = vpack.c.bf16 %v1644, %v1642
    %v1667 = vpack.c.bf16 %v1645, %v1643
    %v1668 = vpack.c.bf16 %v1648, %v1646
    %v1669 = vpack.c.bf16 %v1649, %v1647
    %v1670 = vpack.c.bf16 %v1652, %v1650
    %v1671 = vpack.c.bf16 %v1653, %v1651
    %v1672 = vpack.c.bf16 %v1656, %v1654
    %v1673 = vpack.c.bf16 %v1657, %v1655
    %s1674 = scalar_lea.vmem [#allocation7], 512
    %v1675 = vld [vmem:[%s1674] sm:$0xff]
    %v1676 = vld [vmem:[%s1674 + $0x8] sm:$0xff]
    %v1677 = vld [vmem:[%s1674 + $0x10] sm:$0xff]
    %v1678 = vld [vmem:[%s1674 + $0x18] sm:$0xff]
    %v1679 = vld [vmem:[%s1674 + $0x20] sm:$0xff]
    %v1680 = vld [vmem:[%s1674 + $0x28] sm:$0xff]
    %v1681 = vld [vmem:[%s1674 + $0x30] sm:$0xff]
    %v1682 = vld [vmem:[%s1674 + $0x38] sm:$0xff]
    %v1683 = vld [vmem:[%s1674 + $0x40] sm:$0xff]
    %v1684 = vld [vmem:[%s1674 + $0x48] sm:$0xff]
    %v1685 = vld [vmem:[%s1674 + $0x50] sm:$0xff]
    %v1686 = vld [vmem:[%s1674 + $0x58] sm:$0xff]
    %v1687 = vld [vmem:[%s1674 + $0x60] sm:$0xff]
    %v1688 = vld [vmem:[%s1674 + $0x68] sm:$0xff]
    %v1689 = vld [vmem:[%s1674 + $0x70] sm:$0xff]
    %v1690 = vld [vmem:[%s1674 + $0x78] sm:$0xff]
    %v1691 = vld [vmem:[%s1674 + $0x80] sm:$0xff]
    %v1692 = vld [vmem:[%s1674 + $0x88] sm:$0xff]
    %v1693 = vld [vmem:[%s1674 + $0x90] sm:$0xff]
    %v1694 = vld [vmem:[%s1674 + $0x98] sm:$0xff]
    %v1695 = vld [vmem:[%s1674 + $0xa0] sm:$0xff]
    %v1696 = vld [vmem:[%s1674 + $0xa8] sm:$0xff]
    %v1697 = vld [vmem:[%s1674 + $0xb0] sm:$0xff]
    %v1698 = vld [vmem:[%s1674 + $0xb8] sm:$0xff]
    %v1699 = vld [vmem:[%s1674 + $0xc0] sm:$0xff]
    %v1700 = vld [vmem:[%s1674 + $0xc8] sm:$0xff]
    %v1701 = vld [vmem:[%s1674 + $0xd0] sm:$0xff]
    %v1702 = vld [vmem:[%s1674 + $0xd8] sm:$0xff]
    %v1703 = vld [vmem:[%s1674 + $0xe0] sm:$0xff]
    %v1704 = vld [vmem:[%s1674 + $0xe8] sm:$0xff]
    %v1705 = vld [vmem:[%s1674 + $0xf0] sm:$0xff]
    %v1706 = vld [vmem:[%s1674 + $0xf8] sm:$0xff]
    %v1739 = vunpack.c.l.b16 %v1675
    %v1740 = vunpack.c.h.b16 %v1675
    %v1741 = vunpack.c.l.b16 %v1676
    %v1742 = vunpack.c.h.b16 %v1676
    %v1743 = vunpack.c.l.b16 %v1677
    %v1744 = vunpack.c.h.b16 %v1677
    %v1745 = vunpack.c.l.b16 %v1678
    %v1746 = vunpack.c.h.b16 %v1678
    %v1747 = vunpack.c.l.b16 %v1679
    %v1748 = vunpack.c.h.b16 %v1679
    %v1749 = vunpack.c.l.b16 %v1680
    %v1750 = vunpack.c.h.b16 %v1680
    %v1751 = vunpack.c.l.b16 %v1681
    %v1752 = vunpack.c.h.b16 %v1681
    %v1753 = vunpack.c.l.b16 %v1682
    %v1754 = vunpack.c.h.b16 %v1682
    %v1755 = vunpack.c.l.b16 %v1683
    %v1756 = vunpack.c.h.b16 %v1683
    %v1757 = vunpack.c.l.b16 %v1684
    %v1758 = vunpack.c.h.b16 %v1684
    %v1759 = vunpack.c.l.b16 %v1685
    %v1760 = vunpack.c.h.b16 %v1685
    %v1761 = vunpack.c.l.b16 %v1686
    %v1762 = vunpack.c.h.b16 %v1686
    %v1763 = vunpack.c.l.b16 %v1687
    %v1764 = vunpack.c.h.b16 %v1687
    %v1765 = vunpack.c.l.b16 %v1688
    %v1766 = vunpack.c.h.b16 %v1688
    %v1767 = vunpack.c.l.b16 %v1689
    %v1768 = vunpack.c.h.b16 %v1689
    %v1769 = vunpack.c.l.b16 %v1690
    %v1770 = vunpack.c.h.b16 %v1690
    %v1771 = vunpack.c.l.b16 %v1691
    %v1772 = vunpack.c.h.b16 %v1691
    %v1773 = vunpack.c.l.b16 %v1692
    %v1774 = vunpack.c.h.b16 %v1692
    %v1775 = vunpack.c.l.b16 %v1693
    %v1776 = vunpack.c.h.b16 %v1693
    %v1777 = vunpack.c.l.b16 %v1694
    %v1778 = vunpack.c.h.b16 %v1694
    %v1779 = vunpack.c.l.b16 %v1695
    %v1780 = vunpack.c.h.b16 %v1695
    %v1781 = vunpack.c.l.b16 %v1696
    %v1782 = vunpack.c.h.b16 %v1696
    %v1783 = vunpack.c.l.b16 %v1697
    %v1784 = vunpack.c.h.b16 %v1697
    %v1785 = vunpack.c.l.b16 %v1698
    %v1786 = vunpack.c.h.b16 %v1698
    %v1787 = vunpack.c.l.b16 %v1699
    %v1788 = vunpack.c.h.b16 %v1699
    %v1789 = vunpack.c.l.b16 %v1700
    %v1790 = vunpack.c.h.b16 %v1700
    %v1791 = vunpack.c.l.b16 %v1701
    %v1792 = vunpack.c.h.b16 %v1701
    %v1793 = vunpack.c.l.b16 %v1702
    %v1794 = vunpack.c.h.b16 %v1702
    %v1795 = vunpack.c.l.b16 %v1703
    %v1796 = vunpack.c.h.b16 %v1703
    %v1797 = vunpack.c.l.b16 %v1704
    %v1798 = vunpack.c.h.b16 %v1704
    %v1799 = vunpack.c.l.b16 %v1705
    %v1800 = vunpack.c.h.b16 %v1705
    %v1801 = vunpack.c.l.b16 %v1706
    %v1802 = vunpack.c.h.b16 %v1706
    %v1803 = vpack.c.b16 %v1741, %v1739
    %v1804 = vpack.c.b16 %v1742, %v1740
    %v1805 = vpack.c.b16 %v1745, %v1743
    %v1806 = vpack.c.b16 %v1746, %v1744
    %v1807 = vpack.c.b16 %v1749, %v1747
    %v1808 = vpack.c.b16 %v1750, %v1748
    %v1809 = vpack.c.b16 %v1753, %v1751
    %v1810 = vpack.c.b16 %v1754, %v1752
    %v1811 = vpack.c.b16 %v1757, %v1755
    %v1812 = vpack.c.b16 %v1758, %v1756
    %v1813 = vpack.c.b16 %v1761, %v1759
    %v1814 = vpack.c.b16 %v1762, %v1760
    %v1815 = vpack.c.b16 %v1765, %v1763
    %v1816 = vpack.c.b16 %v1766, %v1764
    %v1817 = vpack.c.b16 %v1769, %v1767
    %v1818 = vpack.c.b16 %v1770, %v1768
    %v1819 = vpack.c.b16 %v1773, %v1771
    %v1820 = vpack.c.b16 %v1774, %v1772
    %v1821 = vpack.c.b16 %v1777, %v1775
    %v1822 = vpack.c.b16 %v1778, %v1776
    %v1823 = vpack.c.b16 %v1781, %v1779
    %v1824 = vpack.c.b16 %v1782, %v1780
    %v1825 = vpack.c.b16 %v1785, %v1783
    %v1826 = vpack.c.b16 %v1786, %v1784
    %v1827 = vpack.c.b16 %v1789, %v1787
    %v1828 = vpack.c.b16 %v1790, %v1788
    %v1829 = vpack.c.b16 %v1793, %v1791
    %v1830 = vpack.c.b16 %v1794, %v1792
    %v1831 = vpack.c.b16 %v1797, %v1795
    %v1832 = vpack.c.b16 %v1798, %v1796
    %v1833 = vpack.c.b16 %v1801, %v1799
    %v1834 = vpack.c.b16 %v1802, %v1800
    %1867 = vmatprep.subr.bf16.mxu0 %v1818
    %1868 = vmatpush1.bf16.msra.mxu0 %v1817
    %1869 = vmatprep.subr.bf16.mxu0 %v1816
    %1870 = vmatpush1.bf16.msra.mxu0 %v1815
    %1871 = vmatprep.subr.bf16.mxu0 %v1814
    %1872 = vmatpush1.bf16.msra.mxu0 %v1813
    %1873 = vmatprep.subr.bf16.mxu0 %v1812
    %1874 = vmatpush1.bf16.msra.mxu0 %v1811
    %1875 = vmatprep.subr.bf16.mxu0 %v1810
    %1876 = vmatpush1.bf16.msra.mxu0 %v1809
    %1877 = vmatprep.subr.bf16.mxu0 %v1808
    %1878 = vmatpush1.bf16.msra.mxu0 %v1807
    %1879 = vmatprep.subr.bf16.mxu0 %v1806
    %1880 = vmatpush1.bf16.msra.mxu0 %v1805
    %1881 = vmatprep.subr.bf16.mxu0 %v1804
    %1882 = vmatpush1.bf16.msra.mxu0 %v1803
    %1883 = vmatprep.subr.bf16.mxu0 %v1834
    %1884 = vmatpush2.bf16.msra.mxu0 %v1833
    %1885 = vmatprep.subr.bf16.mxu0 %v1832
    %1886 = vmatpush2.bf16.msra.mxu0 %v1831
    %1887 = vmatprep.subr.bf16.mxu0 %v1830
    %1888 = vmatpush2.bf16.msra.mxu0 %v1829
    %1889 = vmatprep.subr.bf16.mxu0 %v1828
    %1890 = vmatpush2.bf16.msra.mxu0 %v1827
    %1891 = vmatprep.subr.bf16.mxu0 %v1826
    %1892 = vmatpush2.bf16.msra.mxu0 %v1825
    %1893 = vmatprep.subr.bf16.mxu0 %v1824
    %1894 = vmatpush2.bf16.msra.mxu0 %v1823
    %1895 = vmatprep.subr.bf16.mxu0 %v1822
    %1896 = vmatpush2.bf16.msra.mxu0 %v1821
    %1897 = vmatprep.subr.bf16.mxu0 %v1820
    %1898 = vmatpush2.bf16.msra.mxu0 %v1819
    %1899 = vmatprep.mubr.bf16.mxu0 %v1659
    %1900 = vmatmul.mubr.bf16.gmra.mxu0 %v1658
    %v1901 = vpop.f32.mrf.mxu0
    %v1902 = vadd.f32 0.0, %v1901
    %v1903 = vpop.f32.mrf.mxu0
    %v1904 = vadd.f32 0.0, %v1903
    %v1905 = vpop.f32.mrf.mxu0
    %v1906 = vadd.f32 0.0, %v1905
    %v1907 = vpop.f32.mrf.mxu0
    %v1908 = vadd.f32 0.0, %v1907
    %1909 = vmatprep.mubr.bf16.mxu0 %v1661
    %1910 = vmatmul.mubr.bf16.gmra.mxu0 %v1660
    %v1911 = vpop.f32.mrf.mxu0
    %v1912 = vadd.f32 0.0, %v1911
    %v1913 = vpop.f32.mrf.mxu0
    %v1914 = vadd.f32 0.0, %v1913
    %v1915 = vpop.f32.mrf.mxu0
    %v1916 = vadd.f32 0.0, %v1915
    %v1917 = vpop.f32.mrf.mxu0
    %v1918 = vadd.f32 0.0, %v1917
    %1919 = vmatprep.mubr.bf16.mxu0 %v1663
    %1920 = vmatmul.mubr.bf16.gmra.mxu0 %v1662
    %v1921 = vpop.f32.mrf.mxu0
    %v1922 = vadd.f32 0.0, %v1921
    %v1923 = vpop.f32.mrf.mxu0
    %v1924 = vadd.f32 0.0, %v1923
    %v1925 = vpop.f32.mrf.mxu0
    %v1926 = vadd.f32 0.0, %v1925
    %v1927 = vpop.f32.mrf.mxu0
    %v1928 = vadd.f32 0.0, %v1927
    %1929 = vmatprep.mubr.bf16.mxu0 %v1665
    %1930 = vmatmul.mubr.bf16.gmra.mxu0 %v1664
    %v1931 = vpop.f32.mrf.mxu0
    %v1932 = vadd.f32 0.0, %v1931
    %v1933 = vpop.f32.mrf.mxu0
    %v1934 = vadd.f32 0.0, %v1933
    %v1935 = vpop.f32.mrf.mxu0
    %v1936 = vadd.f32 0.0, %v1935
    %v1937 = vpop.f32.mrf.mxu0
    %v1938 = vadd.f32 0.0, %v1937
    %1939 = vmatprep.mubr.bf16.mxu0 %v1667
    %1940 = vmatmul.mubr.bf16.gmra.mxu0 %v1666
    %v1941 = vpop.f32.mrf.mxu0
    %v1942 = vadd.f32 0.0, %v1941
    %v1943 = vpop.f32.mrf.mxu0
    %v1944 = vadd.f32 0.0, %v1943
    %v1945 = vpop.f32.mrf.mxu0
    %v1946 = vadd.f32 0.0, %v1945
    %v1947 = vpop.f32.mrf.mxu0
    %v1948 = vadd.f32 0.0, %v1947
    %1949 = vmatprep.mubr.bf16.mxu0 %v1669
    %1950 = vmatmul.mubr.bf16.gmra.mxu0 %v1668
    %v1951 = vpop.f32.mrf.mxu0
    %v1952 = vadd.f32 0.0, %v1951
    %v1953 = vpop.f32.mrf.mxu0
    %v1954 = vadd.f32 0.0, %v1953
    %v1955 = vpop.f32.mrf.mxu0
    %v1956 = vadd.f32 0.0, %v1955
    %v1957 = vpop.f32.mrf.mxu0
    %v1958 = vadd.f32 0.0, %v1957
    %1959 = vmatprep.mubr.bf16.mxu0 %v1671
    %1960 = vmatmul.mubr.bf16.gmra.mxu0 %v1670
    %v1961 = vpop.f32.mrf.mxu0
    %v1962 = vadd.f32 0.0, %v1961
    %v1963 = vpop.f32.mrf.mxu0
    %v1964 = vadd.f32 0.0, %v1963
    %v1965 = vpop.f32.mrf.mxu0
    %v1966 = vadd.f32 0.0, %v1965
    %v1967 = vpop.f32.mrf.mxu0
    %v1968 = vadd.f32 0.0, %v1967
    %1969 = vmatprep.mubr.bf16.mxu0 %v1673
    %1970 = vmatmul.mubr.bf16.gmra.mxu0 %v1672
    %v1971 = vpop.f32.mrf.mxu0
    %v1972 = vadd.f32 0.0, %v1971
    %v1973 = vpop.f32.mrf.mxu0
    %v1974 = vadd.f32 0.0, %v1973
    %v1975 = vpop.f32.mrf.mxu0
    %v1976 = vadd.f32 0.0, %v1975
    %v1977 = vpop.f32.mrf.mxu0
    %v1978 = vadd.f32 0.0, %v1977
    %1979 = vdwg.mxu0
    %v1980 = vadd.f32 %v1403, %v1902
    %v1981 = vadd.f32 %v1405, %v1904
    %v1982 = vadd.f32 %v1407, %v1906
    %v1983 = vadd.f32 %v1409, %v1908
    %v1984 = vadd.f32 %v1413, %v1912
    %v1985 = vadd.f32 %v1415, %v1914
    %v1986 = vadd.f32 %v1417, %v1916
    %v1987 = vadd.f32 %v1419, %v1918
    %v1988 = vadd.f32 %v1423, %v1922
    %v1989 = vadd.f32 %v1425, %v1924
    %v1990 = vadd.f32 %v1427, %v1926
    %v1991 = vadd.f32 %v1429, %v1928
    %v1992 = vadd.f32 %v1433, %v1932
    %v1993 = vadd.f32 %v1435, %v1934
    %v1994 = vadd.f32 %v1437, %v1936
    %v1995 = vadd.f32 %v1439, %v1938
    %v1996 = vadd.f32 %v1443, %v1942
    %v1997 = vadd.f32 %v1445, %v1944
    %v1998 = vadd.f32 %v1447, %v1946
    %v1999 = vadd.f32 %v1449, %v1948
    %v2000 = vadd.f32 %v1453, %v1952
    %v2001 = vadd.f32 %v1455, %v1954
    %v2002 = vadd.f32 %v1457, %v1956
    %v2003 = vadd.f32 %v1459, %v1958
    %v2004 = vadd.f32 %v1463, %v1962
    %v2005 = vadd.f32 %v1465, %v1964
    %v2006 = vadd.f32 %v1467, %v1966
    %v2007 = vadd.f32 %v1469, %v1968
    %v2008 = vadd.f32 %v1473, %v1972
    %v2009 = vadd.f32 %v1475, %v1974
    %v2010 = vadd.f32 %v1477, %v1976
    %v2011 = vadd.f32 %v1479, %v1978
    %2013 = vset.pattern.permute.xlu0 0
    %2014 = vperm.xlu0 %2013, %v451
    %v2015 = vpop.permute.xlu0 %2014
    %2018 = vset.pattern.permute.xlu0 0
    %2019 = vperm.xlu0 %2018, %v452
    %v2020 = vpop.permute.xlu0 %2019
    %2023 = vset.pattern.permute.xlu0 0
    %2024 = vperm.xlu0 %2023, %v453
    %v2025 = vpop.permute.xlu0 %2024
    %2028 = vset.pattern.permute.xlu0 0
    %2029 = vperm.xlu0 %2028, %v454
    %v2030 = vpop.permute.xlu0 %2029
    %2033 = vset.pattern.permute.xlu0 0
    %2034 = vperm.xlu0 %2033, %v455
    %v2035 = vpop.permute.xlu0 %2034
    %2038 = vset.pattern.permute.xlu0 0
    %2039 = vperm.xlu0 %2038, %v456
    %v2040 = vpop.permute.xlu0 %2039
    %2043 = vset.pattern.permute.xlu0 0
    %2044 = vperm.xlu0 %2043, %v457
    %v2045 = vpop.permute.xlu0 %2044
    %2048 = vset.pattern.permute.xlu0 0
    %2049 = vperm.xlu0 %2048, %v458
    %v2050 = vpop.permute.xlu0 %2049
    %2053 = vset.pattern.permute.xlu0 0
    %2054 = vperm.xlu0 %2053, %v459
    %v2055 = vpop.permute.xlu0 %2054
    %2058 = vset.pattern.permute.xlu0 0
    %2059 = vperm.xlu0 %2058, %v460
    %v2060 = vpop.permute.xlu0 %2059
    %2063 = vset.pattern.permute.xlu0 0
    %2064 = vperm.xlu0 %2063, %v461
    %v2065 = vpop.permute.xlu0 %2064
    %2068 = vset.pattern.permute.xlu0 0
    %2069 = vperm.xlu0 %2068, %v462
    %v2070 = vpop.permute.xlu0 %2069
    %2073 = vset.pattern.permute.xlu0 0
    %2074 = vperm.xlu0 %2073, %v463
    %v2075 = vpop.permute.xlu0 %2074
    %2078 = vset.pattern.permute.xlu0 0
    %2079 = vperm.xlu0 %2078, %v464
    %v2080 = vpop.permute.xlu0 %2079
    %2083 = vset.pattern.permute.xlu0 0
    %2084 = vperm.xlu0 %2083, %v465
    %v2085 = vpop.permute.xlu0 %2084
    %2088 = vset.pattern.permute.xlu0 0
    %2089 = vperm.xlu0 %2088, %v466
    %v2090 = vpop.permute.xlu0 %2089
    %v2092 = vmul.f32 %v612, %v2015
    %v2093 = vmul.f32 %v613, %v2015
    %v2094 = vmul.f32 %v610, %v2020
    %v2095 = vmul.f32 %v611, %v2020
    %v2096 = vmul.f32 %v608, %v2025
    %v2097 = vmul.f32 %v609, %v2025
    %v2098 = vmul.f32 %v606, %v2030
    %v2099 = vmul.f32 %v607, %v2030
    %v2100 = vmul.f32 %v604, %v2035
    %v2101 = vmul.f32 %v605, %v2035
    %v2102 = vmul.f32 %v602, %v2040
    %v2103 = vmul.f32 %v603, %v2040
    %v2104 = vmul.f32 %v600, %v2045
    %v2105 = vmul.f32 %v601, %v2045
    %v2106 = vmul.f32 %v598, %v2050
    %v2107 = vmul.f32 %v599, %v2050
    %v2108 = vmul.f32 %v596, %v2055
    %v2109 = vmul.f32 %v597, %v2055
    %v2110 = vmul.f32 %v594, %v2060
    %v2111 = vmul.f32 %v595, %v2060
    %v2112 = vmul.f32 %v592, %v2065
    %v2113 = vmul.f32 %v593, %v2065
    %v2114 = vmul.f32 %v590, %v2070
    %v2115 = vmul.f32 %v591, %v2070
    %v2116 = vmul.f32 %v588, %v2075
    %v2117 = vmul.f32 %v589, %v2075
    %v2118 = vmul.f32 %v586, %v2080
    %v2119 = vmul.f32 %v587, %v2080
    %v2120 = vmul.f32 %v584, %v2085
    %v2121 = vmul.f32 %v585, %v2085
    %v2122 = vmul.f32 %v582, %v2090
    %v2123 = vmul.f32 %v583, %v2090
    %v2124 = vpack.c.bf16 %v2094, %v2092
    %v2125 = vpack.c.bf16 %v2095, %v2093
    %v2126 = vpack.c.bf16 %v2098, %v2096
    %v2127 = vpack.c.bf16 %v2099, %v2097
    %v2128 = vpack.c.bf16 %v2102, %v2100
    %v2129 = vpack.c.bf16 %v2103, %v2101
    %v2130 = vpack.c.bf16 %v2106, %v2104
    %v2131 = vpack.c.bf16 %v2107, %v2105
    %v2132 = vpack.c.bf16 %v2110, %v2108
    %v2133 = vpack.c.bf16 %v2111, %v2109
    %v2134 = vpack.c.bf16 %v2114, %v2112
    %v2135 = vpack.c.bf16 %v2115, %v2113
    %v2136 = vpack.c.bf16 %v2118, %v2116
    %v2137 = vpack.c.bf16 %v2119, %v2117
    %v2138 = vpack.c.bf16 %v2122, %v2120
    %v2139 = vpack.c.bf16 %v2123, %v2121
    %s2140 = scalar_lea.vmem [#allocation7], 768
    %v2141 = vld [vmem:[%s2140] sm:$0xff]
    %v2142 = vld [vmem:[%s2140 + $0x8] sm:$0xff]
    %v2143 = vld [vmem:[%s2140 + $0x10] sm:$0xff]
    %v2144 = vld [vmem:[%s2140 + $0x18] sm:$0xff]
    %v2145 = vld [vmem:[%s2140 + $0x20] sm:$0xff]
    %v2146 = vld [vmem:[%s2140 + $0x28] sm:$0xff]
    %v2147 = vld [vmem:[%s2140 + $0x30] sm:$0xff]
    %v2148 = vld [vmem:[%s2140 + $0x38] sm:$0xff]
    %v2149 = vld [vmem:[%s2140 + $0x40] sm:$0xff]
    %v2150 = vld [vmem:[%s2140 + $0x48] sm:$0xff]
    %v2151 = vld [vmem:[%s2140 + $0x50] sm:$0xff]
    %v2152 = vld [vmem:[%s2140 + $0x58] sm:$0xff]
    %v2153 = vld [vmem:[%s2140 + $0x60] sm:$0xff]
    %v2154 = vld [vmem:[%s2140 + $0x68] sm:$0xff]
    %v2155 = vld [vmem:[%s2140 + $0x70] sm:$0xff]
    %v2156 = vld [vmem:[%s2140 + $0x78] sm:$0xff]
    %v2157 = vld [vmem:[%s2140 + $0x80] sm:$0xff]
    %v2158 = vld [vmem:[%s2140 + $0x88] sm:$0xff]
    %v2159 = vld [vmem:[%s2140 + $0x90] sm:$0xff]
    %v2160 = vld [vmem:[%s2140 + $0x98] sm:$0xff]
    %v2161 = vld [vmem:[%s2140 + $0xa0] sm:$0xff]
    %v2162 = vld [vmem:[%s2140 + $0xa8] sm:$0xff]
    %v2163 = vld [vmem:[%s2140 + $0xb0] sm:$0xff]
    %v2164 = vld [vmem:[%s2140 + $0xb8] sm:$0xff]
    %v2165 = vld [vmem:[%s2140 + $0xc0] sm:$0xff]
    %v2166 = vld [vmem:[%s2140 + $0xc8] sm:$0xff]
    %v2167 = vld [vmem:[%s2140 + $0xd0] sm:$0xff]
    %v2168 = vld [vmem:[%s2140 + $0xd8] sm:$0xff]
    %v2169 = vld [vmem:[%s2140 + $0xe0] sm:$0xff]
    %v2170 = vld [vmem:[%s2140 + $0xe8] sm:$0xff]
    %v2171 = vld [vmem:[%s2140 + $0xf0] sm:$0xff]
    %v2172 = vld [vmem:[%s2140 + $0xf8] sm:$0xff]
    %v2205 = vunpack.c.l.b16 %v2141
    %v2206 = vunpack.c.h.b16 %v2141
    %v2207 = vunpack.c.l.b16 %v2142
    %v2208 = vunpack.c.h.b16 %v2142
    %v2209 = vunpack.c.l.b16 %v2143
    %v2210 = vunpack.c.h.b16 %v2143
    %v2211 = vunpack.c.l.b16 %v2144
    %v2212 = vunpack.c.h.b16 %v2144
    %v2213 = vunpack.c.l.b16 %v2145
    %v2214 = vunpack.c.h.b16 %v2145
    %v2215 = vunpack.c.l.b16 %v2146
    %v2216 = vunpack.c.h.b16 %v2146
    %v2217 = vunpack.c.l.b16 %v2147
    %v2218 = vunpack.c.h.b16 %v2147
    %v2219 = vunpack.c.l.b16 %v2148
    %v2220 = vunpack.c.h.b16 %v2148
    %v2221 = vunpack.c.l.b16 %v2149
    %v2222 = vunpack.c.h.b16 %v2149
    %v2223 = vunpack.c.l.b16 %v2150
    %v2224 = vunpack.c.h.b16 %v2150
    %v2225 = vunpack.c.l.b16 %v2151
    %v2226 = vunpack.c.h.b16 %v2151
    %v2227 = vunpack.c.l.b16 %v2152
    %v2228 = vunpack.c.h.b16 %v2152
    %v2229 = vunpack.c.l.b16 %v2153
    %v2230 = vunpack.c.h.b16 %v2153
    %v2231 = vunpack.c.l.b16 %v2154
    %v2232 = vunpack.c.h.b16 %v2154
    %v2233 = vunpack.c.l.b16 %v2155
    %v2234 = vunpack.c.h.b16 %v2155
    %v2235 = vunpack.c.l.b16 %v2156
    %v2236 = vunpack.c.h.b16 %v2156
    %v2237 = vunpack.c.l.b16 %v2157
    %v2238 = vunpack.c.h.b16 %v2157
    %v2239 = vunpack.c.l.b16 %v2158
    %v2240 = vunpack.c.h.b16 %v2158
    %v2241 = vunpack.c.l.b16 %v2159
    %v2242 = vunpack.c.h.b16 %v2159
    %v2243 = vunpack.c.l.b16 %v2160
    %v2244 = vunpack.c.h.b16 %v2160
    %v2245 = vunpack.c.l.b16 %v2161
    %v2246 = vunpack.c.h.b16 %v2161
    %v2247 = vunpack.c.l.b16 %v2162
    %v2248 = vunpack.c.h.b16 %v2162
    %v2249 = vunpack.c.l.b16 %v2163
    %v2250 = vunpack.c.h.b16 %v2163
    %v2251 = vunpack.c.l.b16 %v2164
    %v2252 = vunpack.c.h.b16 %v2164
    %v2253 = vunpack.c.l.b16 %v2165
    %v2254 = vunpack.c.h.b16 %v2165
    %v2255 = vunpack.c.l.b16 %v2166
    %v2256 = vunpack.c.h.b16 %v2166
    %v2257 = vunpack.c.l.b16 %v2167
    %v2258 = vunpack.c.h.b16 %v2167
    %v2259 = vunpack.c.l.b16 %v2168
    %v2260 = vunpack.c.h.b16 %v2168
    %v2261 = vunpack.c.l.b16 %v2169
    %v2262 = vunpack.c.h.b16 %v2169
    %v2263 = vunpack.c.l.b16 %v2170
    %v2264 = vunpack.c.h.b16 %v2170
    %v2265 = vunpack.c.l.b16 %v2171
    %v2266 = vunpack.c.h.b16 %v2171
    %v2267 = vunpack.c.l.b16 %v2172
    %v2268 = vunpack.c.h.b16 %v2172
    %v2269 = vpack.c.b16 %v2207, %v2205
    %v2270 = vpack.c.b16 %v2208, %v2206
    %v2271 = vpack.c.b16 %v2211, %v2209
    %v2272 = vpack.c.b16 %v2212, %v2210
    %v2273 = vpack.c.b16 %v2215, %v2213
    %v2274 = vpack.c.b16 %v2216, %v2214
    %v2275 = vpack.c.b16 %v2219, %v2217
    %v2276 = vpack.c.b16 %v2220, %v2218
    %v2277 = vpack.c.b16 %v2223, %v2221
    %v2278 = vpack.c.b16 %v2224, %v2222
    %v2279 = vpack.c.b16 %v2227, %v2225
    %v2280 = vpack.c.b16 %v2228, %v2226
    %v2281 = vpack.c.b16 %v2231, %v2229
    %v2282 = vpack.c.b16 %v2232, %v2230
    %v2283 = vpack.c.b16 %v2235, %v2233
    %v2284 = vpack.c.b16 %v2236, %v2234
    %v2285 = vpack.c.b16 %v2239, %v2237
    %v2286 = vpack.c.b16 %v2240, %v2238
    %v2287 = vpack.c.b16 %v2243, %v2241
    %v2288 = vpack.c.b16 %v2244, %v2242
    %v2289 = vpack.c.b16 %v2247, %v2245
    %v2290 = vpack.c.b16 %v2248, %v2246
    %v2291 = vpack.c.b16 %v2251, %v2249
    %v2292 = vpack.c.b16 %v2252, %v2250
    %v2293 = vpack.c.b16 %v2255, %v2253
    %v2294 = vpack.c.b16 %v2256, %v2254
    %v2295 = vpack.c.b16 %v2259, %v2257
    %v2296 = vpack.c.b16 %v2260, %v2258
    %v2297 = vpack.c.b16 %v2263, %v2261
    %v2298 = vpack.c.b16 %v2264, %v2262
    %v2299 = vpack.c.b16 %v2267, %v2265
    %v2300 = vpack.c.b16 %v2268, %v2266
    %2333 = vmatprep.subr.bf16.mxu0 %v2284
    %2334 = vmatpush1.bf16.msra.mxu0 %v2283
    %2335 = vmatprep.subr.bf16.mxu0 %v2282
    %2336 = vmatpush1.bf16.msra.mxu0 %v2281
    %2337 = vmatprep.subr.bf16.mxu0 %v2280
    %2338 = vmatpush1.bf16.msra.mxu0 %v2279
    %2339 = vmatprep.subr.bf16.mxu0 %v2278
    %2340 = vmatpush1.bf16.msra.mxu0 %v2277
    %2341 = vmatprep.subr.bf16.mxu0 %v2276
    %2342 = vmatpush1.bf16.msra.mxu0 %v2275
    %2343 = vmatprep.subr.bf16.mxu0 %v2274
    %2344 = vmatpush1.bf16.msra.mxu0 %v2273
    %2345 = vmatprep.subr.bf16.mxu0 %v2272
    %2346 = vmatpush1.bf16.msra.mxu0 %v2271
    %2347 = vmatprep.subr.bf16.mxu0 %v2270
    %2348 = vmatpush1.bf16.msra.mxu0 %v2269
    %2349 = vmatprep.subr.bf16.mxu0 %v2300
    %2350 = vmatpush2.bf16.msra.mxu0 %v2299
    %2351 = vmatprep.subr.bf16.mxu0 %v2298
    %2352 = vmatpush2.bf16.msra.mxu0 %v2297
    %2353 = vmatprep.subr.bf16.mxu0 %v2296
    %2354 = vmatpush2.bf16.msra.mxu0 %v2295
    %2355 = vmatprep.subr.bf16.mxu0 %v2294
    %2356 = vmatpush2.bf16.msra.mxu0 %v2293
    %2357 = vmatprep.subr.bf16.mxu0 %v2292
    %2358 = vmatpush2.bf16.msra.mxu0 %v2291
    %2359 = vmatprep.subr.bf16.mxu0 %v2290
    %2360 = vmatpush2.bf16.msra.mxu0 %v2289
    %2361 = vmatprep.subr.bf16.mxu0 %v2288
    %2362 = vmatpush2.bf16.msra.mxu0 %v2287
    %2363 = vmatprep.subr.bf16.mxu0 %v2286
    %2364 = vmatpush2.bf16.msra.mxu0 %v2285
    %2365 = vmatprep.mubr.bf16.mxu0 %v2125
    %2366 = vmatmul.mubr.bf16.gmra.mxu0 %v2124
    %v2367 = vpop.f32.mrf.mxu0
    %v2368 = vadd.f32 0.0, %v2367
    %v2369 = vpop.f32.mrf.mxu0
    %v2370 = vadd.f32 0.0, %v2369
    %v2371 = vpop.f32.mrf.mxu0
    %v2372 = vadd.f32 0.0, %v2371
    %v2373 = vpop.f32.mrf.mxu0
    %v2374 = vadd.f32 0.0, %v2373
    %2375 = vmatprep.mubr.bf16.mxu0 %v2127
    %2376 = vmatmul.mubr.bf16.gmra.mxu0 %v2126
    %v2377 = vpop.f32.mrf.mxu0
    %v2378 = vadd.f32 0.0, %v2377
    %v2379 = vpop.f32.mrf.mxu0
    %v2380 = vadd.f32 0.0, %v2379
    %v2381 = vpop.f32.mrf.mxu0
    %v2382 = vadd.f32 0.0, %v2381
    %v2383 = vpop.f32.mrf.mxu0
    %v2384 = vadd.f32 0.0, %v2383
    %2385 = vmatprep.mubr.bf16.mxu0 %v2129
    %2386 = vmatmul.mubr.bf16.gmra.mxu0 %v2128
    %v2387 = vpop.f32.mrf.mxu0
    %v2388 = vadd.f32 0.0, %v2387
    %v2389 = vpop.f32.mrf.mxu0
    %v2390 = vadd.f32 0.0, %v2389
    %v2391 = vpop.f32.mrf.mxu0
    %v2392 = vadd.f32 0.0, %v2391
    %v2393 = vpop.f32.mrf.mxu0
    %v2394 = vadd.f32 0.0, %v2393
    %2395 = vmatprep.mubr.bf16.mxu0 %v2131
    %2396 = vmatmul.mubr.bf16.gmra.mxu0 %v2130
    %v2397 = vpop.f32.mrf.mxu0
    %v2398 = vadd.f32 0.0, %v2397
    %v2399 = vpop.f32.mrf.mxu0
    %v2400 = vadd.f32 0.0, %v2399
    %v2401 = vpop.f32.mrf.mxu0
    %v2402 = vadd.f32 0.0, %v2401
    %v2403 = vpop.f32.mrf.mxu0
    %v2404 = vadd.f32 0.0, %v2403
    %2405 = vmatprep.mubr.bf16.mxu0 %v2133
    %2406 = vmatmul.mubr.bf16.gmra.mxu0 %v2132
    %v2407 = vpop.f32.mrf.mxu0
    %v2408 = vadd.f32 0.0, %v2407
    %v2409 = vpop.f32.mrf.mxu0
    %v2410 = vadd.f32 0.0, %v2409
    %v2411 = vpop.f32.mrf.mxu0
    %v2412 = vadd.f32 0.0, %v2411
    %v2413 = vpop.f32.mrf.mxu0
    %v2414 = vadd.f32 0.0, %v2413
    %2415 = vmatprep.mubr.bf16.mxu0 %v2135
    %2416 = vmatmul.mubr.bf16.gmra.mxu0 %v2134
    %v2417 = vpop.f32.mrf.mxu0
    %v2418 = vadd.f32 0.0, %v2417
    %v2419 = vpop.f32.mrf.mxu0
    %v2420 = vadd.f32 0.0, %v2419
    %v2421 = vpop.f32.mrf.mxu0
    %v2422 = vadd.f32 0.0, %v2421
    %v2423 = vpop.f32.mrf.mxu0
    %v2424 = vadd.f32 0.0, %v2423
    %2425 = vmatprep.mubr.bf16.mxu0 %v2137
    %2426 = vmatmul.mubr.bf16.gmra.mxu0 %v2136
    %v2427 = vpop.f32.mrf.mxu0
    %v2428 = vadd.f32 0.0, %v2427
    %v2429 = vpop.f32.mrf.mxu0
    %v2430 = vadd.f32 0.0, %v2429
    %v2431 = vpop.f32.mrf.mxu0
    %v2432 = vadd.f32 0.0, %v2431
    %v2433 = vpop.f32.mrf.mxu0
    %v2434 = vadd.f32 0.0, %v2433
    %2435 = vmatprep.mubr.bf16.mxu0 %v2139
    %2436 = vmatmul.mubr.bf16.gmra.mxu0 %v2138
    %v2437 = vpop.f32.mrf.mxu0
    %v2438 = vadd.f32 0.0, %v2437
    %v2439 = vpop.f32.mrf.mxu0
    %v2440 = vadd.f32 0.0, %v2439
    %v2441 = vpop.f32.mrf.mxu0
    %v2442 = vadd.f32 0.0, %v2441
    %v2443 = vpop.f32.mrf.mxu0
    %v2444 = vadd.f32 0.0, %v2443
    %2445 = vdwg.mxu0
    %v2446 = vadd.f32 %v1980, %v2368
    %v2447 = vadd.f32 %v1981, %v2370
    %v2448 = vadd.f32 %v1982, %v2372
    %v2449 = vadd.f32 %v1983, %v2374
    %v2450 = vadd.f32 %v1984, %v2378
    %v2451 = vadd.f32 %v1985, %v2380
    %v2452 = vadd.f32 %v1986, %v2382
    %v2453 = vadd.f32 %v1987, %v2384
    %v2454 = vadd.f32 %v1988, %v2388
    %v2455 = vadd.f32 %v1989, %v2390
    %v2456 = vadd.f32 %v1990, %v2392
    %v2457 = vadd.f32 %v1991, %v2394
    %v2458 = vadd.f32 %v1992, %v2398
    %v2459 = vadd.f32 %v1993, %v2400
    %v2460 = vadd.f32 %v1994, %v2402
    %v2461 = vadd.f32 %v1995, %v2404
    %v2462 = vadd.f32 %v1996, %v2408
    %v2463 = vadd.f32 %v1997, %v2410
    %v2464 = vadd.f32 %v1998, %v2412
    %v2465 = vadd.f32 %v1999, %v2414
    %v2466 = vadd.f32 %v2000, %v2418
    %v2467 = vadd.f32 %v2001, %v2420
    %v2468 = vadd.f32 %v2002, %v2422
    %v2469 = vadd.f32 %v2003, %v2424
    %v2470 = vadd.f32 %v2004, %v2428
    %v2471 = vadd.f32 %v2005, %v2430
    %v2472 = vadd.f32 %v2006, %v2432
    %v2473 = vadd.f32 %v2007, %v2434
    %v2474 = vadd.f32 %v2008, %v2438
    %v2475 = vadd.f32 %v2009, %v2440
    %v2476 = vadd.f32 %v2010, %v2442
    %v2477 = vadd.f32 %v2011, %v2444
    %v2478 = vpack.c.bf16 %v389, %v387
    %v2479 = vpack.c.bf16 %v390, %v388
    %v2480 = vpack.c.bf16 %v393, %v391
    %v2481 = vpack.c.bf16 %v394, %v392
    %v2482 = vpack.c.bf16 %v397, %v395
    %v2483 = vpack.c.bf16 %v398, %v396
    %v2484 = vpack.c.bf16 %v401, %v399
    %v2485 = vpack.c.bf16 %v402, %v400
    %v2486 = vpack.c.bf16 %v405, %v403
    %v2487 = vpack.c.bf16 %v406, %v404
    %v2488 = vpack.c.bf16 %v409, %v407
    %v2489 = vpack.c.bf16 %v410, %v408
    %v2490 = vpack.c.bf16 %v413, %v411
    %v2491 = vpack.c.bf16 %v414, %v412
    %v2492 = vpack.c.bf16 %v417, %v415
    %v2493 = vpack.c.bf16 %v418, %v416
    %s2494 = scalar_lea.vmem [#allocation7], 1024
    %v2495 = vld [vmem:[%s2494] sm:$0xff]
    %v2496 = vld [vmem:[%s2494 + $0x8] sm:$0xff]
    %v2497 = vld [vmem:[%s2494 + $0x10] sm:$0xff]
    %v2498 = vld [vmem:[%s2494 + $0x18] sm:$0xff]
    %v2499 = vld [vmem:[%s2494 + $0x20] sm:$0xff]
    %v2500 = vld [vmem:[%s2494 + $0x28] sm:$0xff]
    %v2501 = vld [vmem:[%s2494 + $0x30] sm:$0xff]
    %v2502 = vld [vmem:[%s2494 + $0x38] sm:$0xff]
    %v2503 = vld [vmem:[%s2494 + $0x40] sm:$0xff]
    %v2504 = vld [vmem:[%s2494 + $0x48] sm:$0xff]
    %v2505 = vld [vmem:[%s2494 + $0x50] sm:$0xff]
    %v2506 = vld [vmem:[%s2494 + $0x58] sm:$0xff]
    %v2507 = vld [vmem:[%s2494 + $0x60] sm:$0xff]
    %v2508 = vld [vmem:[%s2494 + $0x68] sm:$0xff]
    %v2509 = vld [vmem:[%s2494 + $0x70] sm:$0xff]
    %v2510 = vld [vmem:[%s2494 + $0x78] sm:$0xff]
    %v2511 = vld [vmem:[%s2494 + $0x80] sm:$0xff]
    %v2512 = vld [vmem:[%s2494 + $0x88] sm:$0xff]
    %v2513 = vld [vmem:[%s2494 + $0x90] sm:$0xff]
    %v2514 = vld [vmem:[%s2494 + $0x98] sm:$0xff]
    %v2515 = vld [vmem:[%s2494 + $0xa0] sm:$0xff]
    %v2516 = vld [vmem:[%s2494 + $0xa8] sm:$0xff]
    %v2517 = vld [vmem:[%s2494 + $0xb0] sm:$0xff]
    %v2518 = vld [vmem:[%s2494 + $0xb8] sm:$0xff]
    %v2519 = vld [vmem:[%s2494 + $0xc0] sm:$0xff]
    %v2520 = vld [vmem:[%s2494 + $0xc8] sm:$0xff]
    %v2521 = vld [vmem:[%s2494 + $0xd0] sm:$0xff]
    %v2522 = vld [vmem:[%s2494 + $0xd8] sm:$0xff]
    %v2523 = vld [vmem:[%s2494 + $0xe0] sm:$0xff]
    %v2524 = vld [vmem:[%s2494 + $0xe8] sm:$0xff]
    %v2525 = vld [vmem:[%s2494 + $0xf0] sm:$0xff]
    %v2526 = vld [vmem:[%s2494 + $0xf8] sm:$0xff]
    %v2559 = vunpack.c.l.b16 %v2495
    %v2560 = vunpack.c.h.b16 %v2495
    %v2561 = vunpack.c.l.b16 %v2496
    %v2562 = vunpack.c.h.b16 %v2496
    %v2563 = vunpack.c.l.b16 %v2497
    %v2564 = vunpack.c.h.b16 %v2497
    %v2565 = vunpack.c.l.b16 %v2498
    %v2566 = vunpack.c.h.b16 %v2498
    %v2567 = vunpack.c.l.b16 %v2499
    %v2568 = vunpack.c.h.b16 %v2499
    %v2569 = vunpack.c.l.b16 %v2500
    %v2570 = vunpack.c.h.b16 %v2500
    %v2571 = vunpack.c.l.b16 %v2501
    %v2572 = vunpack.c.h.b16 %v2501
    %v2573 = vunpack.c.l.b16 %v2502
    %v2574 = vunpack.c.h.b16 %v2502
    %v2575 = vunpack.c.l.b16 %v2503
    %v2576 = vunpack.c.h.b16 %v2503
    %v2577 = vunpack.c.l.b16 %v2504
    %v2578 = vunpack.c.h.b16 %v2504
    %v2579 = vunpack.c.l.b16 %v2505
    %v2580 = vunpack.c.h.b16 %v2505
    %v2581 = vunpack.c.l.b16 %v2506
    %v2582 = vunpack.c.h.b16 %v2506
    %v2583 = vunpack.c.l.b16 %v2507
    %v2584 = vunpack.c.h.b16 %v2507
    %v2585 = vunpack.c.l.b16 %v2508
    %v2586 = vunpack.c.h.b16 %v2508
    %v2587 = vunpack.c.l.b16 %v2509
    %v2588 = vunpack.c.h.b16 %v2509
    %v2589 = vunpack.c.l.b16 %v2510
    %v2590 = vunpack.c.h.b16 %v2510
    %v2591 = vunpack.c.l.b16 %v2511
    %v2592 = vunpack.c.h.b16 %v2511
    %v2593 = vunpack.c.l.b16 %v2512
    %v2594 = vunpack.c.h.b16 %v2512
    %v2595 = vunpack.c.l.b16 %v2513
    %v2596 = vunpack.c.h.b16 %v2513
    %v2597 = vunpack.c.l.b16 %v2514
    %v2598 = vunpack.c.h.b16 %v2514
    %v2599 = vunpack.c.l.b16 %v2515
    %v2600 = vunpack.c.h.b16 %v2515
    %v2601 = vunpack.c.l.b16 %v2516
    %v2602 = vunpack.c.h.b16 %v2516
    %v2603 = vunpack.c.l.b16 %v2517
    %v2604 = vunpack.c.h.b16 %v2517
    %v2605 = vunpack.c.l.b16 %v2518
    %v2606 = vunpack.c.h.b16 %v2518
    %v2607 = vunpack.c.l.b16 %v2519
    %v2608 = vunpack.c.h.b16 %v2519
    %v2609 = vunpack.c.l.b16 %v2520
    %v2610 = vunpack.c.h.b16 %v2520
    %v2611 = vunpack.c.l.b16 %v2521
    %v2612 = vunpack.c.h.b16 %v2521
    %v2613 = vunpack.c.l.b16 %v2522
    %v2614 = vunpack.c.h.b16 %v2522
    %v2615 = vunpack.c.l.b16 %v2523
    %v2616 = vunpack.c.h.b16 %v2523
    %v2617 = vunpack.c.l.b16 %v2524
    %v2618 = vunpack.c.h.b16 %v2524
    %v2619 = vunpack.c.l.b16 %v2525
    %v2620 = vunpack.c.h.b16 %v2525
    %v2621 = vunpack.c.l.b16 %v2526
    %v2622 = vunpack.c.h.b16 %v2526
    %v2623 = vpack.c.b16 %v2561, %v2559
    %v2624 = vpack.c.b16 %v2562, %v2560
    %v2625 = vpack.c.b16 %v2565, %v2563
    %v2626 = vpack.c.b16 %v2566, %v2564
    %v2627 = vpack.c.b16 %v2569, %v2567
    %v2628 = vpack.c.b16 %v2570, %v2568
    %v2629 = vpack.c.b16 %v2573, %v2571
    %v2630 = vpack.c.b16 %v2574, %v2572
    %v2631 = vpack.c.b16 %v2577, %v2575
    %v2632 = vpack.c.b16 %v2578, %v2576
    %v2633 = vpack.c.b16 %v2581, %v2579
    %v2634 = vpack.c.b16 %v2582, %v2580
    %v2635 = vpack.c.b16 %v2585, %v2583
    %v2636 = vpack.c.b16 %v2586, %v2584
    %v2637 = vpack.c.b16 %v2589, %v2587
    %v2638 = vpack.c.b16 %v2590, %v2588
    %v2639 = vpack.c.b16 %v2593, %v2591
    %v2640 = vpack.c.b16 %v2594, %v2592
    %v2641 = vpack.c.b16 %v2597, %v2595
    %v2642 = vpack.c.b16 %v2598, %v2596
    %v2643 = vpack.c.b16 %v2601, %v2599
    %v2644 = vpack.c.b16 %v2602, %v2600
    %v2645 = vpack.c.b16 %v2605, %v2603
    %v2646 = vpack.c.b16 %v2606, %v2604
    %v2647 = vpack.c.b16 %v2609, %v2607
    %v2648 = vpack.c.b16 %v2610, %v2608
    %v2649 = vpack.c.b16 %v2613, %v2611
    %v2650 = vpack.c.b16 %v2614, %v2612
    %v2651 = vpack.c.b16 %v2617, %v2615
    %v2652 = vpack.c.b16 %v2618, %v2616
    %v2653 = vpack.c.b16 %v2621, %v2619
    %v2654 = vpack.c.b16 %v2622, %v2620
    %2687 = vmatprep.subr.bf16.mxu0 %v2638
    %2688 = vmatpush1.bf16.msra.mxu0 %v2637
    %2689 = vmatprep.subr.bf16.mxu0 %v2636
    %2690 = vmatpush1.bf16.msra.mxu0 %v2635
    %2691 = vmatprep.subr.bf16.mxu0 %v2634
    %2692 = vmatpush1.bf16.msra.mxu0 %v2633
    %2693 = vmatprep.subr.bf16.mxu0 %v2632
    %2694 = vmatpush1.bf16.msra.mxu0 %v2631
    %2695 = vmatprep.subr.bf16.mxu0 %v2630
    %2696 = vmatpush1.bf16.msra.mxu0 %v2629
    %2697 = vmatprep.subr.bf16.mxu0 %v2628
    %2698 = vmatpush1.bf16.msra.mxu0 %v2627
    %2699 = vmatprep.subr.bf16.mxu0 %v2626
    %2700 = vmatpush1.bf16.msra.mxu0 %v2625
    %2701 = vmatprep.subr.bf16.mxu0 %v2624
    %2702 = vmatpush1.bf16.msra.mxu0 %v2623
    %2703 = vmatprep.subr.bf16.mxu0 %v2654
    %2704 = vmatpush2.bf16.msra.mxu0 %v2653
    %2705 = vmatprep.subr.bf16.mxu0 %v2652
    %2706 = vmatpush2.bf16.msra.mxu0 %v2651
    %2707 = vmatprep.subr.bf16.mxu0 %v2650
    %2708 = vmatpush2.bf16.msra.mxu0 %v2649
    %2709 = vmatprep.subr.bf16.mxu0 %v2648
    %2710 = vmatpush2.bf16.msra.mxu0 %v2647
    %2711 = vmatprep.subr.bf16.mxu0 %v2646
    %2712 = vmatpush2.bf16.msra.mxu0 %v2645
    %2713 = vmatprep.subr.bf16.mxu0 %v2644
    %2714 = vmatpush2.bf16.msra.mxu0 %v2643
    %2715 = vmatprep.subr.bf16.mxu0 %v2642
    %2716 = vmatpush2.bf16.msra.mxu0 %v2641
    %2717 = vmatprep.subr.bf16.mxu0 %v2640
    %2718 = vmatpush2.bf16.msra.mxu0 %v2639
    %2719 = vmatprep.mubr.bf16.mxu0 %v2479
    %2720 = vmatmul.mubr.bf16.gmra.mxu0 %v2478
    %v2721 = vpop.f32.mrf.mxu0
    %v2722 = vadd.f32 0.0, %v2721
    %v2723 = vpop.f32.mrf.mxu0
    %v2724 = vadd.f32 0.0, %v2723
    %v2725 = vpop.f32.mrf.mxu0
    %v2726 = vadd.f32 0.0, %v2725
    %v2727 = vpop.f32.mrf.mxu0
    %v2728 = vadd.f32 0.0, %v2727
    %2729 = vmatprep.mubr.bf16.mxu0 %v2481
    %2730 = vmatmul.mubr.bf16.gmra.mxu0 %v2480
    %v2731 = vpop.f32.mrf.mxu0
    %v2732 = vadd.f32 0.0, %v2731
    %v2733 = vpop.f32.mrf.mxu0
    %v2734 = vadd.f32 0.0, %v2733
    %v2735 = vpop.f32.mrf.mxu0
    %v2736 = vadd.f32 0.0, %v2735
    %v2737 = vpop.f32.mrf.mxu0
    %v2738 = vadd.f32 0.0, %v2737
    %2739 = vmatprep.mubr.bf16.mxu0 %v2483
    %2740 = vmatmul.mubr.bf16.gmra.mxu0 %v2482
    %v2741 = vpop.f32.mrf.mxu0
    %v2742 = vadd.f32 0.0, %v2741
    %v2743 = vpop.f32.mrf.mxu0
    %v2744 = vadd.f32 0.0, %v2743
    %v2745 = vpop.f32.mrf.mxu0
    %v2746 = vadd.f32 0.0, %v2745
    %v2747 = vpop.f32.mrf.mxu0
    %v2748 = vadd.f32 0.0, %v2747
    %2749 = vmatprep.mubr.bf16.mxu0 %v2485
    %2750 = vmatmul.mubr.bf16.gmra.mxu0 %v2484
    %v2751 = vpop.f32.mrf.mxu0
    %v2752 = vadd.f32 0.0, %v2751
    %v2753 = vpop.f32.mrf.mxu0
    %v2754 = vadd.f32 0.0, %v2753
    %v2755 = vpop.f32.mrf.mxu0
    %v2756 = vadd.f32 0.0, %v2755
    %v2757 = vpop.f32.mrf.mxu0
    %v2758 = vadd.f32 0.0, %v2757
    %2759 = vmatprep.mubr.bf16.mxu0 %v2487
    %2760 = vmatmul.mubr.bf16.gmra.mxu0 %v2486
    %v2761 = vpop.f32.mrf.mxu0
    %v2762 = vadd.f32 0.0, %v2761
    %v2763 = vpop.f32.mrf.mxu0
    %v2764 = vadd.f32 0.0, %v2763
    %v2765 = vpop.f32.mrf.mxu0
    %v2766 = vadd.f32 0.0, %v2765
    %v2767 = vpop.f32.mrf.mxu0
    %v2768 = vadd.f32 0.0, %v2767
    %2769 = vmatprep.mubr.bf16.mxu0 %v2489
    %2770 = vmatmul.mubr.bf16.gmra.mxu0 %v2488
    %v2771 = vpop.f32.mrf.mxu0
    %v2772 = vadd.f32 0.0, %v2771
    %v2773 = vpop.f32.mrf.mxu0
    %v2774 = vadd.f32 0.0, %v2773
    %v2775 = vpop.f32.mrf.mxu0
    %v2776 = vadd.f32 0.0, %v2775
    %v2777 = vpop.f32.mrf.mxu0
    %v2778 = vadd.f32 0.0, %v2777
    %2779 = vmatprep.mubr.bf16.mxu0 %v2491
    %2780 = vmatmul.mubr.bf16.gmra.mxu0 %v2490
    %v2781 = vpop.f32.mrf.mxu0
    %v2782 = vadd.f32 0.0, %v2781
    %v2783 = vpop.f32.mrf.mxu0
    %v2784 = vadd.f32 0.0, %v2783
    %v2785 = vpop.f32.mrf.mxu0
    %v2786 = vadd.f32 0.0, %v2785
    %v2787 = vpop.f32.mrf.mxu0
    %v2788 = vadd.f32 0.0, %v2787
    %2789 = vmatprep.mubr.bf16.mxu0 %v2493
    %2790 = vmatmul.mubr.bf16.gmra.mxu0 %v2492
    %v2791 = vpop.f32.mrf.mxu0
    %v2792 = vadd.f32 0.0, %v2791
    %v2793 = vpop.f32.mrf.mxu0
    %v2794 = vadd.f32 0.0, %v2793
    %v2795 = vpop.f32.mrf.mxu0
    %v2796 = vadd.f32 0.0, %v2795
    %v2797 = vpop.f32.mrf.mxu0
    %v2798 = vadd.f32 0.0, %v2797
    %2799 = vdwg.mxu0
    %v2800 = vadd.f32 %v2446, %v2722
    %v2801 = vadd.f32 %v2447, %v2724
    %v2802 = vadd.f32 %v2448, %v2726
    %v2803 = vadd.f32 %v2449, %v2728
    %v2804 = vadd.f32 %v2450, %v2732
    %v2805 = vadd.f32 %v2451, %v2734
    %v2806 = vadd.f32 %v2452, %v2736
    %v2807 = vadd.f32 %v2453, %v2738
    %v2808 = vadd.f32 %v2454, %v2742
    %v2809 = vadd.f32 %v2455, %v2744
    %v2810 = vadd.f32 %v2456, %v2746
    %v2811 = vadd.f32 %v2457, %v2748
    %v2812 = vadd.f32 %v2458, %v2752
    %v2813 = vadd.f32 %v2459, %v2754
    %v2814 = vadd.f32 %v2460, %v2756
    %v2815 = vadd.f32 %v2461, %v2758
    %v2816 = vadd.f32 %v2462, %v2762
    %v2817 = vadd.f32 %v2463, %v2764
    %v2818 = vadd.f32 %v2464, %v2766
    %v2819 = vadd.f32 %v2465, %v2768
    %v2820 = vadd.f32 %v2466, %v2772
    %v2821 = vadd.f32 %v2467, %v2774
    %v2822 = vadd.f32 %v2468, %v2776
    %v2823 = vadd.f32 %v2469, %v2778
    %v2824 = vadd.f32 %v2470, %v2782
    %v2825 = vadd.f32 %v2471, %v2784
    %v2826 = vadd.f32 %v2472, %v2786
    %v2827 = vadd.f32 %v2473, %v2788
    %v2828 = vadd.f32 %v2474, %v2792
    %v2829 = vadd.f32 %v2475, %v2794
    %v2830 = vadd.f32 %v2476, %v2796
    %v2831 = vadd.f32 %v2477, %v2798
    %2833 = vset.pattern.permute.xlu0 0
    %2834 = vperm.xlu0 %2833, %v467
    %v2835 = vpop.permute.xlu0 %2834
    %2838 = vset.pattern.permute.xlu0 0
    %2839 = vperm.xlu0 %2838, %v468
    %v2840 = vpop.permute.xlu0 %2839
    %2843 = vset.pattern.permute.xlu0 0
    %2844 = vperm.xlu0 %2843, %v469
    %v2845 = vpop.permute.xlu0 %2844
    %2848 = vset.pattern.permute.xlu0 0
    %2849 = vperm.xlu0 %2848, %v470
    %v2850 = vpop.permute.xlu0 %2849
    %2853 = vset.pattern.permute.xlu0 0
    %2854 = vperm.xlu0 %2853, %v471
    %v2855 = vpop.permute.xlu0 %2854
    %2858 = vset.pattern.permute.xlu0 0
    %2859 = vperm.xlu0 %2858, %v472
    %v2860 = vpop.permute.xlu0 %2859
    %2863 = vset.pattern.permute.xlu0 0
    %2864 = vperm.xlu0 %2863, %v473
    %v2865 = vpop.permute.xlu0 %2864
    %2868 = vset.pattern.permute.xlu0 0
    %2869 = vperm.xlu0 %2868, %v474
    %v2870 = vpop.permute.xlu0 %2869
    %2873 = vset.pattern.permute.xlu0 0
    %2874 = vperm.xlu0 %2873, %v475
    %v2875 = vpop.permute.xlu0 %2874
    %2878 = vset.pattern.permute.xlu0 0
    %2879 = vperm.xlu0 %2878, %v476
    %v2880 = vpop.permute.xlu0 %2879
    %2883 = vset.pattern.permute.xlu0 0
    %2884 = vperm.xlu0 %2883, %v477
    %v2885 = vpop.permute.xlu0 %2884
    %2888 = vset.pattern.permute.xlu0 0
    %2889 = vperm.xlu0 %2888, %v478
    %v2890 = vpop.permute.xlu0 %2889
    %2893 = vset.pattern.permute.xlu0 0
    %2894 = vperm.xlu0 %2893, %v479
    %v2895 = vpop.permute.xlu0 %2894
    %2898 = vset.pattern.permute.xlu0 0
    %2899 = vperm.xlu0 %2898, %v480
    %v2900 = vpop.permute.xlu0 %2899
    %2903 = vset.pattern.permute.xlu0 0
    %2904 = vperm.xlu0 %2903, %v481
    %v2905 = vpop.permute.xlu0 %2904
    %2908 = vset.pattern.permute.xlu0 0
    %2909 = vperm.xlu0 %2908, %v482
    %v2910 = vpop.permute.xlu0 %2909
    %v2912 = vmul.f32 %v1542, %v2835
    %v2913 = vmul.f32 %v1543, %v2835
    %v2914 = vmul.f32 %v1540, %v2840
    %v2915 = vmul.f32 %v1541, %v2840
    %v2916 = vmul.f32 %v1538, %v2845
    %v2917 = vmul.f32 %v1539, %v2845
    %v2918 = vmul.f32 %v1536, %v2850
    %v2919 = vmul.f32 %v1537, %v2850
    %v2920 = vmul.f32 %v1534, %v2855
    %v2921 = vmul.f32 %v1535, %v2855
    %v2922 = vmul.f32 %v1532, %v2860
    %v2923 = vmul.f32 %v1533, %v2860
    %v2924 = vmul.f32 %v1530, %v2865
    %v2925 = vmul.f32 %v1531, %v2865
    %v2926 = vmul.f32 %v1528, %v2870
    %v2927 = vmul.f32 %v1529, %v2870
    %v2928 = vmul.f32 %v1526, %v2875
    %v2929 = vmul.f32 %v1527, %v2875
    %v2930 = vmul.f32 %v1524, %v2880
    %v2931 = vmul.f32 %v1525, %v2880
    %v2932 = vmul.f32 %v1522, %v2885
    %v2933 = vmul.f32 %v1523, %v2885
    %v2934 = vmul.f32 %v1520, %v2890
    %v2935 = vmul.f32 %v1521, %v2890
    %v2936 = vmul.f32 %v1518, %v2895
    %v2937 = vmul.f32 %v1519, %v2895
    %v2938 = vmul.f32 %v1516, %v2900
    %v2939 = vmul.f32 %v1517, %v2900
    %v2940 = vmul.f32 %v1514, %v2905
    %v2941 = vmul.f32 %v1515, %v2905
    %v2942 = vmul.f32 %v1544, %v2910
    %v2943 = vmul.f32 %v1545, %v2910
    %v2944 = vpack.c.bf16 %v2914, %v2912
    %v2945 = vpack.c.bf16 %v2915, %v2913
    %v2946 = vpack.c.bf16 %v2918, %v2916
    %v2947 = vpack.c.bf16 %v2919, %v2917
    %v2948 = vpack.c.bf16 %v2922, %v2920
    %v2949 = vpack.c.bf16 %v2923, %v2921
    %v2950 = vpack.c.bf16 %v2926, %v2924
    %v2951 = vpack.c.bf16 %v2927, %v2925
    %v2952 = vpack.c.bf16 %v2930, %v2928
    %v2953 = vpack.c.bf16 %v2931, %v2929
    %v2954 = vpack.c.bf16 %v2934, %v2932
    %v2955 = vpack.c.bf16 %v2935, %v2933
    %v2956 = vpack.c.bf16 %v2938, %v2936
    %v2957 = vpack.c.bf16 %v2939, %v2937
    %v2958 = vpack.c.bf16 %v2942, %v2940
    %v2959 = vpack.c.bf16 %v2943, %v2941
    %s2960 = scalar_lea.vmem [#allocation7], 1280
    %v2961 = vld [vmem:[%s2960] sm:$0xff]
    %v2962 = vld [vmem:[%s2960 + $0x8] sm:$0xff]
    %v2963 = vld [vmem:[%s2960 + $0x10] sm:$0xff]
    %v2964 = vld [vmem:[%s2960 + $0x18] sm:$0xff]
    %v2965 = vld [vmem:[%s2960 + $0x20] sm:$0xff]
    %v2966 = vld [vmem:[%s2960 + $0x28] sm:$0xff]
    %v2967 = vld [vmem:[%s2960 + $0x30] sm:$0xff]
    %v2968 = vld [vmem:[%s2960 + $0x38] sm:$0xff]
    %v2969 = vld [vmem:[%s2960 + $0x40] sm:$0xff]
    %v2970 = vld [vmem:[%s2960 + $0x48] sm:$0xff]
    %v2971 = vld [vmem:[%s2960 + $0x50] sm:$0xff]
    %v2972 = vld [vmem:[%s2960 + $0x58] sm:$0xff]
    %v2973 = vld [vmem:[%s2960 + $0x60] sm:$0xff]
    %v2974 = vld [vmem:[%s2960 + $0x68] sm:$0xff]
    %v2975 = vld [vmem:[%s2960 + $0x70] sm:$0xff]
    %v2976 = vld [vmem:[%s2960 + $0x78] sm:$0xff]
    %v2977 = vld [vmem:[%s2960 + $0x80] sm:$0xff]
    %v2978 = vld [vmem:[%s2960 + $0x88] sm:$0xff]
    %v2979 = vld [vmem:[%s2960 + $0x90] sm:$0xff]
    %v2980 = vld [vmem:[%s2960 + $0x98] sm:$0xff]
    %v2981 = vld [vmem:[%s2960 + $0xa0] sm:$0xff]
    %v2982 = vld [vmem:[%s2960 + $0xa8] sm:$0xff]
    %v2983 = vld [vmem:[%s2960 + $0xb0] sm:$0xff]
    %v2984 = vld [vmem:[%s2960 + $0xb8] sm:$0xff]
    %v2985 = vld [vmem:[%s2960 + $0xc0] sm:$0xff]
    %v2986 = vld [vmem:[%s2960 + $0xc8] sm:$0xff]
    %v2987 = vld [vmem:[%s2960 + $0xd0] sm:$0xff]
    %v2988 = vld [vmem:[%s2960 + $0xd8] sm:$0xff]
    %v2989 = vld [vmem:[%s2960 + $0xe0] sm:$0xff]
    %v2990 = vld [vmem:[%s2960 + $0xe8] sm:$0xff]
    %v2991 = vld [vmem:[%s2960 + $0xf0] sm:$0xff]
    %v2992 = vld [vmem:[%s2960 + $0xf8] sm:$0xff]
    %v3025 = vunpack.c.l.b16 %v2961
    %v3026 = vunpack.c.h.b16 %v2961
    %v3027 = vunpack.c.l.b16 %v2962
    %v3028 = vunpack.c.h.b16 %v2962
    %v3029 = vunpack.c.l.b16 %v2963
    %v3030 = vunpack.c.h.b16 %v2963
    %v3031 = vunpack.c.l.b16 %v2964
    %v3032 = vunpack.c.h.b16 %v2964
    %v3033 = vunpack.c.l.b16 %v2965
    %v3034 = vunpack.c.h.b16 %v2965
    %v3035 = vunpack.c.l.b16 %v2966
    %v3036 = vunpack.c.h.b16 %v2966
    %v3037 = vunpack.c.l.b16 %v2967
    %v3038 = vunpack.c.h.b16 %v2967
    %v3039 = vunpack.c.l.b16 %v2968
    %v3040 = vunpack.c.h.b16 %v2968
    %v3041 = vunpack.c.l.b16 %v2969
    %v3042 = vunpack.c.h.b16 %v2969
    %v3043 = vunpack.c.l.b16 %v2970
    %v3044 = vunpack.c.h.b16 %v2970
    %v3045 = vunpack.c.l.b16 %v2971
    %v3046 = vunpack.c.h.b16 %v2971
    %v3047 = vunpack.c.l.b16 %v2972
    %v3048 = vunpack.c.h.b16 %v2972
    %v3049 = vunpack.c.l.b16 %v2973
    %v3050 = vunpack.c.h.b16 %v2973
    %v3051 = vunpack.c.l.b16 %v2974
    %v3052 = vunpack.c.h.b16 %v2974
    %v3053 = vunpack.c.l.b16 %v2975
    %v3054 = vunpack.c.h.b16 %v2975
    %v3055 = vunpack.c.l.b16 %v2976
    %v3056 = vunpack.c.h.b16 %v2976
    %v3057 = vunpack.c.l.b16 %v2977
    %v3058 = vunpack.c.h.b16 %v2977
    %v3059 = vunpack.c.l.b16 %v2978
    %v3060 = vunpack.c.h.b16 %v2978
    %v3061 = vunpack.c.l.b16 %v2979
    %v3062 = vunpack.c.h.b16 %v2979
    %v3063 = vunpack.c.l.b16 %v2980
    %v3064 = vunpack.c.h.b16 %v2980
    %v3065 = vunpack.c.l.b16 %v2981
    %v3066 = vunpack.c.h.b16 %v2981
    %v3067 = vunpack.c.l.b16 %v2982
    %v3068 = vunpack.c.h.b16 %v2982
    %v3069 = vunpack.c.l.b16 %v2983
    %v3070 = vunpack.c.h.b16 %v2983
    %v3071 = vunpack.c.l.b16 %v2984
    %v3072 = vunpack.c.h.b16 %v2984
    %v3073 = vunpack.c.l.b16 %v2985
    %v3074 = vunpack.c.h.b16 %v2985
    %v3075 = vunpack.c.l.b16 %v2986
    %v3076 = vunpack.c.h.b16 %v2986
    %v3077 = vunpack.c.l.b16 %v2987
    %v3078 = vunpack.c.h.b16 %v2987
    %v3079 = vunpack.c.l.b16 %v2988
    %v3080 = vunpack.c.h.b16 %v2988
    %v3081 = vunpack.c.l.b16 %v2989
    %v3082 = vunpack.c.h.b16 %v2989
    %v3083 = vunpack.c.l.b16 %v2990
    %v3084 = vunpack.c.h.b16 %v2990
    %v3085 = vunpack.c.l.b16 %v2991
    %v3086 = vunpack.c.h.b16 %v2991
    %v3087 = vunpack.c.l.b16 %v2992
    %v3088 = vunpack.c.h.b16 %v2992
    %v3089 = vpack.c.b16 %v3027, %v3025
    %v3090 = vpack.c.b16 %v3028, %v3026
    %v3091 = vpack.c.b16 %v3031, %v3029
    %v3092 = vpack.c.b16 %v3032, %v3030
    %v3093 = vpack.c.b16 %v3035, %v3033
    %v3094 = vpack.c.b16 %v3036, %v3034
    %v3095 = vpack.c.b16 %v3039, %v3037
    %v3096 = vpack.c.b16 %v3040, %v3038
    %v3097 = vpack.c.b16 %v3043, %v3041
    %v3098 = vpack.c.b16 %v3044, %v3042
    %v3099 = vpack.c.b16 %v3047, %v3045
    %v3100 = vpack.c.b16 %v3048, %v3046
    %v3101 = vpack.c.b16 %v3051, %v3049
    %v3102 = vpack.c.b16 %v3052, %v3050
    %v3103 = vpack.c.b16 %v3055, %v3053
    %v3104 = vpack.c.b16 %v3056, %v3054
    %v3105 = vpack.c.b16 %v3059, %v3057
    %v3106 = vpack.c.b16 %v3060, %v3058
    %v3107 = vpack.c.b16 %v3063, %v3061
    %v3108 = vpack.c.b16 %v3064, %v3062
    %v3109 = vpack.c.b16 %v3067, %v3065
    %v3110 = vpack.c.b16 %v3068, %v3066
    %v3111 = vpack.c.b16 %v3071, %v3069
    %v3112 = vpack.c.b16 %v3072, %v3070
    %v3113 = vpack.c.b16 %v3075, %v3073
    %v3114 = vpack.c.b16 %v3076, %v3074
    %v3115 = vpack.c.b16 %v3079, %v3077
    %v3116 = vpack.c.b16 %v3080, %v3078
    %v3117 = vpack.c.b16 %v3083, %v3081
    %v3118 = vpack.c.b16 %v3084, %v3082
    %v3119 = vpack.c.b16 %v3087, %v3085
    %v3120 = vpack.c.b16 %v3088, %v3086
    %3153 = vmatprep.subr.bf16.mxu0 %v3104
    %3154 = vmatpush1.bf16.msra.mxu0 %v3103
    %3155 = vmatprep.subr.bf16.mxu0 %v3102
    %3156 = vmatpush1.bf16.msra.mxu0 %v3101
    %3157 = vmatprep.subr.bf16.mxu0 %v3100
    %3158 = vmatpush1.bf16.msra.mxu0 %v3099
    %3159 = vmatprep.subr.bf16.mxu0 %v3098
    %3160 = vmatpush1.bf16.msra.mxu0 %v3097
    %3161 = vmatprep.subr.bf16.mxu0 %v3096
    %3162 = vmatpush1.bf16.msra.mxu0 %v3095
    %3163 = vmatprep.subr.bf16.mxu0 %v3094
    %3164 = vmatpush1.bf16.msra.mxu0 %v3093
    %3165 = vmatprep.subr.bf16.mxu0 %v3092
    %3166 = vmatpush1.bf16.msra.mxu0 %v3091
    %3167 = vmatprep.subr.bf16.mxu0 %v3090
    %3168 = vmatpush1.bf16.msra.mxu0 %v3089
    %3169 = vmatprep.subr.bf16.mxu0 %v3120
    %3170 = vmatpush2.bf16.msra.mxu0 %v3119
    %3171 = vmatprep.subr.bf16.mxu0 %v3118
    %3172 = vmatpush2.bf16.msra.mxu0 %v3117
    %3173 = vmatprep.subr.bf16.mxu0 %v3116
    %3174 = vmatpush2.bf16.msra.mxu0 %v3115
    %3175 = vmatprep.subr.bf16.mxu0 %v3114
    %3176 = vmatpush2.bf16.msra.mxu0 %v3113
    %3177 = vmatprep.subr.bf16.mxu0 %v3112
    %3178 = vmatpush2.bf16.msra.mxu0 %v3111
    %3179 = vmatprep.subr.bf16.mxu0 %v3110
    %3180 = vmatpush2.bf16.msra.mxu0 %v3109
    %3181 = vmatprep.subr.bf16.mxu0 %v3108
    %3182 = vmatpush2.bf16.msra.mxu0 %v3107
    %3183 = vmatprep.subr.bf16.mxu0 %v3106
    %3184 = vmatpush2.bf16.msra.mxu0 %v3105
    %3185 = vmatprep.mubr.bf16.mxu0 %v2945
    %3186 = vmatmul.mubr.bf16.gmra.mxu0 %v2944
    %v3187 = vpop.f32.mrf.mxu0
    %v3188 = vadd.f32 0.0, %v3187
    %v3189 = vpop.f32.mrf.mxu0
    %v3190 = vadd.f32 0.0, %v3189
    %v3191 = vpop.f32.mrf.mxu0
    %v3192 = vadd.f32 0.0, %v3191
    %v3193 = vpop.f32.mrf.mxu0
    %v3194 = vadd.f32 0.0, %v3193
    %3195 = vmatprep.mubr.bf16.mxu0 %v2947
    %3196 = vmatmul.mubr.bf16.gmra.mxu0 %v2946
    %v3197 = vpop.f32.mrf.mxu0
    %v3198 = vadd.f32 0.0, %v3197
    %v3199 = vpop.f32.mrf.mxu0
    %v3200 = vadd.f32 0.0, %v3199
    %v3201 = vpop.f32.mrf.mxu0
    %v3202 = vadd.f32 0.0, %v3201
    %v3203 = vpop.f32.mrf.mxu0
    %v3204 = vadd.f32 0.0, %v3203
    %3205 = vmatprep.mubr.bf16.mxu0 %v2949
    %3206 = vmatmul.mubr.bf16.gmra.mxu0 %v2948
    %v3207 = vpop.f32.mrf.mxu0
    %v3208 = vadd.f32 0.0, %v3207
    %v3209 = vpop.f32.mrf.mxu0
    %v3210 = vadd.f32 0.0, %v3209
    %v3211 = vpop.f32.mrf.mxu0
    %v3212 = vadd.f32 0.0, %v3211
    %v3213 = vpop.f32.mrf.mxu0
    %v3214 = vadd.f32 0.0, %v3213
    %3215 = vmatprep.mubr.bf16.mxu0 %v2951
    %3216 = vmatmul.mubr.bf16.gmra.mxu0 %v2950
    %v3217 = vpop.f32.mrf.mxu0
    %v3218 = vadd.f32 0.0, %v3217
    %v3219 = vpop.f32.mrf.mxu0
    %v3220 = vadd.f32 0.0, %v3219
    %v3221 = vpop.f32.mrf.mxu0
    %v3222 = vadd.f32 0.0, %v3221
    %v3223 = vpop.f32.mrf.mxu0
    %v3224 = vadd.f32 0.0, %v3223
    %3225 = vmatprep.mubr.bf16.mxu0 %v2953
    %3226 = vmatmul.mubr.bf16.gmra.mxu0 %v2952
    %v3227 = vpop.f32.mrf.mxu0
    %v3228 = vadd.f32 0.0, %v3227
    %v3229 = vpop.f32.mrf.mxu0
    %v3230 = vadd.f32 0.0, %v3229
    %v3231 = vpop.f32.mrf.mxu0
    %v3232 = vadd.f32 0.0, %v3231
    %v3233 = vpop.f32.mrf.mxu0
    %v3234 = vadd.f32 0.0, %v3233
    %3235 = vmatprep.mubr.bf16.mxu0 %v2955
    %3236 = vmatmul.mubr.bf16.gmra.mxu0 %v2954
    %v3237 = vpop.f32.mrf.mxu0
    %v3238 = vadd.f32 0.0, %v3237
    %v3239 = vpop.f32.mrf.mxu0
    %v3240 = vadd.f32 0.0, %v3239
    %v3241 = vpop.f32.mrf.mxu0
    %v3242 = vadd.f32 0.0, %v3241
    %v3243 = vpop.f32.mrf.mxu0
    %v3244 = vadd.f32 0.0, %v3243
    %3245 = vmatprep.mubr.bf16.mxu0 %v2957
    %3246 = vmatmul.mubr.bf16.gmra.mxu0 %v2956
    %v3247 = vpop.f32.mrf.mxu0
    %v3248 = vadd.f32 0.0, %v3247
    %v3249 = vpop.f32.mrf.mxu0
    %v3250 = vadd.f32 0.0, %v3249
    %v3251 = vpop.f32.mrf.mxu0
    %v3252 = vadd.f32 0.0, %v3251
    %v3253 = vpop.f32.mrf.mxu0
    %v3254 = vadd.f32 0.0, %v3253
    %3255 = vmatprep.mubr.bf16.mxu0 %v2959
    %3256 = vmatmul.mubr.bf16.gmra.mxu0 %v2958
    %v3257 = vpop.f32.mrf.mxu0
    %v3258 = vadd.f32 0.0, %v3257
    %v3259 = vpop.f32.mrf.mxu0
    %v3260 = vadd.f32 0.0, %v3259
    %v3261 = vpop.f32.mrf.mxu0
    %v3262 = vadd.f32 0.0, %v3261
    %v3263 = vpop.f32.mrf.mxu0
    %v3264 = vadd.f32 0.0, %v3263
    %3265 = vdwg.mxu0
    %v3266 = vadd.f32 %v2800, %v3188
    %v3267 = vadd.f32 %v2801, %v3190
    %v3268 = vadd.f32 %v2802, %v3192
    %v3269 = vadd.f32 %v2803, %v3194
    %v3270 = vadd.f32 %v2804, %v3198
    %v3271 = vadd.f32 %v2805, %v3200
    %v3272 = vadd.f32 %v2806, %v3202
    %v3273 = vadd.f32 %v2807, %v3204
    %v3274 = vadd.f32 %v2808, %v3208
    %v3275 = vadd.f32 %v2809, %v3210
    %v3276 = vadd.f32 %v2810, %v3212
    %v3277 = vadd.f32 %v2811, %v3214
    %v3278 = vadd.f32 %v2812, %v3218
    %v3279 = vadd.f32 %v2813, %v3220
    %v3280 = vadd.f32 %v2814, %v3222
    %v3281 = vadd.f32 %v2815, %v3224
    %v3282 = vadd.f32 %v2816, %v3228
    %v3283 = vadd.f32 %v2817, %v3230
    %v3284 = vadd.f32 %v2818, %v3232
    %v3285 = vadd.f32 %v2819, %v3234
    %v3286 = vadd.f32 %v2820, %v3238
    %v3287 = vadd.f32 %v2821, %v3240
    %v3288 = vadd.f32 %v2822, %v3242
    %v3289 = vadd.f32 %v2823, %v3244
    %v3290 = vadd.f32 %v2824, %v3248
    %v3291 = vadd.f32 %v2825, %v3250
    %v3292 = vadd.f32 %v2826, %v3252
    %v3293 = vadd.f32 %v2827, %v3254
    %v3294 = vadd.f32 %v2828, %v3258
    %v3295 = vadd.f32 %v2829, %v3260
    %v3296 = vadd.f32 %v2830, %v3262
    %v3297 = vadd.f32 %v2831, %v3264
    %3299 = vset.pattern.permute.xlu0 0
    %3300 = vperm.xlu0 %3299, %v515
    %v3301 = vpop.permute.xlu0 %3300
    %3304 = vset.pattern.permute.xlu0 0
    %3305 = vperm.xlu0 %3304, %v516
    %v3306 = vpop.permute.xlu0 %3305
    %3309 = vset.pattern.permute.xlu0 0
    %3310 = vperm.xlu0 %3309, %v517
    %v3311 = vpop.permute.xlu0 %3310
    %3314 = vset.pattern.permute.xlu0 0
    %3315 = vperm.xlu0 %3314, %v518
    %v3316 = vpop.permute.xlu0 %3315
    %3319 = vset.pattern.permute.xlu0 0
    %3320 = vperm.xlu0 %3319, %v519
    %v3321 = vpop.permute.xlu0 %3320
    %3324 = vset.pattern.permute.xlu0 0
    %3325 = vperm.xlu0 %3324, %v520
    %v3326 = vpop.permute.xlu0 %3325
    %3329 = vset.pattern.permute.xlu0 0
    %3330 = vperm.xlu0 %3329, %v521
    %v3331 = vpop.permute.xlu0 %3330
    %3334 = vset.pattern.permute.xlu0 0
    %3335 = vperm.xlu0 %3334, %v522
    %v3336 = vpop.permute.xlu0 %3335
    %3339 = vset.pattern.permute.xlu0 0
    %3340 = vperm.xlu0 %3339, %v523
    %v3341 = vpop.permute.xlu0 %3340
    %3344 = vset.pattern.permute.xlu0 0
    %3345 = vperm.xlu0 %3344, %v524
    %v3346 = vpop.permute.xlu0 %3345
    %3349 = vset.pattern.permute.xlu0 0
    %3350 = vperm.xlu0 %3349, %v525
    %v3351 = vpop.permute.xlu0 %3350
    %3354 = vset.pattern.permute.xlu0 0
    %3355 = vperm.xlu0 %3354, %v526
    %v3356 = vpop.permute.xlu0 %3355
    %3359 = vset.pattern.permute.xlu0 0
    %3360 = vperm.xlu0 %3359, %v527
    %v3361 = vpop.permute.xlu0 %3360
    %3364 = vset.pattern.permute.xlu0 0
    %3365 = vperm.xlu0 %3364, %v528
    %v3366 = vpop.permute.xlu0 %3365
    %3369 = vset.pattern.permute.xlu0 0
    %3370 = vperm.xlu0 %3369, %v529
    %v3371 = vpop.permute.xlu0 %3370
    %3374 = vset.pattern.permute.xlu0 0
    %3375 = vperm.xlu0 %3374, %v530
    %v3376 = vpop.permute.xlu0 %3375
    %v3378 = vmul.f32 %v610, %v3301
    %v3379 = vmul.f32 %v611, %v3301
    %v3380 = vmul.f32 %v608, %v3306
    %v3381 = vmul.f32 %v609, %v3306
    %v3382 = vmul.f32 %v606, %v3311
    %v3383 = vmul.f32 %v607, %v3311
    %v3384 = vmul.f32 %v604, %v3316
    %v3385 = vmul.f32 %v605, %v3316
    %v3386 = vmul.f32 %v602, %v3321
    %v3387 = vmul.f32 %v603, %v3321
    %v3388 = vmul.f32 %v600, %v3326
    %v3389 = vmul.f32 %v601, %v3326
    %v3390 = vmul.f32 %v598, %v3331
    %v3391 = vmul.f32 %v599, %v3331
    %v3392 = vmul.f32 %v596, %v3336
    %v3393 = vmul.f32 %v597, %v3336
    %v3394 = vmul.f32 %v594, %v3341
    %v3395 = vmul.f32 %v595, %v3341
    %v3396 = vmul.f32 %v592, %v3346
    %v3397 = vmul.f32 %v593, %v3346
    %v3398 = vmul.f32 %v590, %v3351
    %v3399 = vmul.f32 %v591, %v3351
    %v3400 = vmul.f32 %v588, %v3356
    %v3401 = vmul.f32 %v589, %v3356
    %v3402 = vmul.f32 %v586, %v3361
    %v3403 = vmul.f32 %v587, %v3361
    %v3404 = vmul.f32 %v584, %v3366
    %v3405 = vmul.f32 %v585, %v3366
    %v3406 = vmul.f32 %v582, %v3371
    %v3407 = vmul.f32 %v583, %v3371
    %v3408 = vmul.f32 %v612, %v3376
    %v3409 = vmul.f32 %v613, %v3376
    %v3410 = vpack.c.bf16 %v3380, %v3378
    %v3411 = vpack.c.bf16 %v3381, %v3379
    %v3412 = vpack.c.bf16 %v3384, %v3382
    %v3413 = vpack.c.bf16 %v3385, %v3383
    %v3414 = vpack.c.bf16 %v3388, %v3386
    %v3415 = vpack.c.bf16 %v3389, %v3387
    %v3416 = vpack.c.bf16 %v3392, %v3390
    %v3417 = vpack.c.bf16 %v3393, %v3391
    %v3418 = vpack.c.bf16 %v3396, %v3394
    %v3419 = vpack.c.bf16 %v3397, %v3395
    %v3420 = vpack.c.bf16 %v3400, %v3398
    %v3421 = vpack.c.bf16 %v3401, %v3399
    %v3422 = vpack.c.bf16 %v3404, %v3402
    %v3423 = vpack.c.bf16 %v3405, %v3403
    %v3424 = vpack.c.bf16 %v3408, %v3406
    %v3425 = vpack.c.bf16 %v3409, %v3407
    %s3426 = scalar_lea.vmem [#allocation7], 1536
    %v3427 = vld [vmem:[%s3426] sm:$0xff]
    %v3428 = vld [vmem:[%s3426 + $0x8] sm:$0xff]
    %v3429 = vld [vmem:[%s3426 + $0x10] sm:$0xff]
    %v3430 = vld [vmem:[%s3426 + $0x18] sm:$0xff]
    %v3431 = vld [vmem:[%s3426 + $0x20] sm:$0xff]
    %v3432 = vld [vmem:[%s3426 + $0x28] sm:$0xff]
    %v3433 = vld [vmem:[%s3426 + $0x30] sm:$0xff]
    %v3434 = vld [vmem:[%s3426 + $0x38] sm:$0xff]
    %v3435 = vld [vmem:[%s3426 + $0x40] sm:$0xff]
    %v3436 = vld [vmem:[%s3426 + $0x48] sm:$0xff]
    %v3437 = vld [vmem:[%s3426 + $0x50] sm:$0xff]
    %v3438 = vld [vmem:[%s3426 + $0x58] sm:$0xff]
    %v3439 = vld [vmem:[%s3426 + $0x60] sm:$0xff]
    %v3440 = vld [vmem:[%s3426 + $0x68] sm:$0xff]
    %v3441 = vld [vmem:[%s3426 + $0x70] sm:$0xff]
    %v3442 = vld [vmem:[%s3426 + $0x78] sm:$0xff]
    %v3443 = vld [vmem:[%s3426 + $0x80] sm:$0xff]
    %v3444 = vld [vmem:[%s3426 + $0x88] sm:$0xff]
    %v3445 = vld [vmem:[%s3426 + $0x90] sm:$0xff]
    %v3446 = vld [vmem:[%s3426 + $0x98] sm:$0xff]
    %v3447 = vld [vmem:[%s3426 + $0xa0] sm:$0xff]
    %v3448 = vld [vmem:[%s3426 + $0xa8] sm:$0xff]
    %v3449 = vld [vmem:[%s3426 + $0xb0] sm:$0xff]
    %v3450 = vld [vmem:[%s3426 + $0xb8] sm:$0xff]
    %v3451 = vld [vmem:[%s3426 + $0xc0] sm:$0xff]
    %v3452 = vld [vmem:[%s3426 + $0xc8] sm:$0xff]
    %v3453 = vld [vmem:[%s3426 + $0xd0] sm:$0xff]
    %v3454 = vld [vmem:[%s3426 + $0xd8] sm:$0xff]
    %v3455 = vld [vmem:[%s3426 + $0xe0] sm:$0xff]
    %v3456 = vld [vmem:[%s3426 + $0xe8] sm:$0xff]
    %v3457 = vld [vmem:[%s3426 + $0xf0] sm:$0xff]
    %v3458 = vld [vmem:[%s3426 + $0xf8] sm:$0xff]
    %v3491 = vunpack.c.l.b16 %v3427
    %v3492 = vunpack.c.h.b16 %v3427
    %v3493 = vunpack.c.l.b16 %v3428
    %v3494 = vunpack.c.h.b16 %v3428
    %v3495 = vunpack.c.l.b16 %v3429
    %v3496 = vunpack.c.h.b16 %v3429
    %v3497 = vunpack.c.l.b16 %v3430
    %v3498 = vunpack.c.h.b16 %v3430
    %v3499 = vunpack.c.l.b16 %v3431
    %v3500 = vunpack.c.h.b16 %v3431
    %v3501 = vunpack.c.l.b16 %v3432
    %v3502 = vunpack.c.h.b16 %v3432
    %v3503 = vunpack.c.l.b16 %v3433
    %v3504 = vunpack.c.h.b16 %v3433
    %v3505 = vunpack.c.l.b16 %v3434
    %v3506 = vunpack.c.h.b16 %v3434
    %v3507 = vunpack.c.l.b16 %v3435
    %v3508 = vunpack.c.h.b16 %v3435
    %v3509 = vunpack.c.l.b16 %v3436
    %v3510 = vunpack.c.h.b16 %v3436
    %v3511 = vunpack.c.l.b16 %v3437
    %v3512 = vunpack.c.h.b16 %v3437
    %v3513 = vunpack.c.l.b16 %v3438
    %v3514 = vunpack.c.h.b16 %v3438
    %v3515 = vunpack.c.l.b16 %v3439
    %v3516 = vunpack.c.h.b16 %v3439
    %v3517 = vunpack.c.l.b16 %v3440
    %v3518 = vunpack.c.h.b16 %v3440
    %v3519 = vunpack.c.l.b16 %v3441
    %v3520 = vunpack.c.h.b16 %v3441
    %v3521 = vunpack.c.l.b16 %v3442
    %v3522 = vunpack.c.h.b16 %v3442
    %v3523 = vunpack.c.l.b16 %v3443
    %v3524 = vunpack.c.h.b16 %v3443
    %v3525 = vunpack.c.l.b16 %v3444
    %v3526 = vunpack.c.h.b16 %v3444
    %v3527 = vunpack.c.l.b16 %v3445
    %v3528 = vunpack.c.h.b16 %v3445
    %v3529 = vunpack.c.l.b16 %v3446
    %v3530 = vunpack.c.h.b16 %v3446
    %v3531 = vunpack.c.l.b16 %v3447
    %v3532 = vunpack.c.h.b16 %v3447
    %v3533 = vunpack.c.l.b16 %v3448
    %v3534 = vunpack.c.h.b16 %v3448
    %v3535 = vunpack.c.l.b16 %v3449
    %v3536 = vunpack.c.h.b16 %v3449
    %v3537 = vunpack.c.l.b16 %v3450
    %v3538 = vunpack.c.h.b16 %v3450
    %v3539 = vunpack.c.l.b16 %v3451
    %v3540 = vunpack.c.h.b16 %v3451
    %v3541 = vunpack.c.l.b16 %v3452
    %v3542 = vunpack.c.h.b16 %v3452
    %v3543 = vunpack.c.l.b16 %v3453
    %v3544 = vunpack.c.h.b16 %v3453
    %v3545 = vunpack.c.l.b16 %v3454
    %v3546 = vunpack.c.h.b16 %v3454
    %v3547 = vunpack.c.l.b16 %v3455
    %v3548 = vunpack.c.h.b16 %v3455
    %v3549 = vunpack.c.l.b16 %v3456
    %v3550 = vunpack.c.h.b16 %v3456
    %v3551 = vunpack.c.l.b16 %v3457
    %v3552 = vunpack.c.h.b16 %v3457
    %v3553 = vunpack.c.l.b16 %v3458
    %v3554 = vunpack.c.h.b16 %v3458
    %v3555 = vpack.c.b16 %v3493, %v3491
    %v3556 = vpack.c.b16 %v3494, %v3492
    %v3557 = vpack.c.b16 %v3497, %v3495
    %v3558 = vpack.c.b16 %v3498, %v3496
    %v3559 = vpack.c.b16 %v3501, %v3499
    %v3560 = vpack.c.b16 %v3502, %v3500
    %v3561 = vpack.c.b16 %v3505, %v3503
    %v3562 = vpack.c.b16 %v3506, %v3504
    %v3563 = vpack.c.b16 %v3509, %v3507
    %v3564 = vpack.c.b16 %v3510, %v3508
    %v3565 = vpack.c.b16 %v3513, %v3511
    %v3566 = vpack.c.b16 %v3514, %v3512
    %v3567 = vpack.c.b16 %v3517, %v3515
    %v3568 = vpack.c.b16 %v3518, %v3516
    %v3569 = vpack.c.b16 %v3521, %v3519
    %v3570 = vpack.c.b16 %v3522, %v3520
    %v3571 = vpack.c.b16 %v3525, %v3523
    %v3572 = vpack.c.b16 %v3526, %v3524
    %v3573 = vpack.c.b16 %v3529, %v3527
    %v3574 = vpack.c.b16 %v3530, %v3528
    %v3575 = vpack.c.b16 %v3533, %v3531
    %v3576 = vpack.c.b16 %v3534, %v3532
    %v3577 = vpack.c.b16 %v3537, %v3535
    %v3578 = vpack.c.b16 %v3538, %v3536
    %v3579 = vpack.c.b16 %v3541, %v3539
    %v3580 = vpack.c.b16 %v3542, %v3540
    %v3581 = vpack.c.b16 %v3545, %v3543
    %v3582 = vpack.c.b16 %v3546, %v3544
    %v3583 = vpack.c.b16 %v3549, %v3547
    %v3584 = vpack.c.b16 %v3550, %v3548
    %v3585 = vpack.c.b16 %v3553, %v3551
    %v3586 = vpack.c.b16 %v3554, %v3552
    %3619 = vmatprep.subr.bf16.mxu0 %v3570
    %3620 = vmatpush1.bf16.msra.mxu0 %v3569
    %3621 = vmatprep.subr.bf16.mxu0 %v3568
    %3622 = vmatpush1.bf16.msra.mxu0 %v3567
    %3623 = vmatprep.subr.bf16.mxu0 %v3566
    %3624 = vmatpush1.bf16.msra.mxu0 %v3565
    %3625 = vmatprep.subr.bf16.mxu0 %v3564
    %3626 = vmatpush1.bf16.msra.mxu0 %v3563
    %3627 = vmatprep.subr.bf16.mxu0 %v3562
    %3628 = vmatpush1.bf16.msra.mxu0 %v3561
    %3629 = vmatprep.subr.bf16.mxu0 %v3560
    %3630 = vmatpush1.bf16.msra.mxu0 %v3559
    %3631 = vmatprep.subr.bf16.mxu0 %v3558
    %3632 = vmatpush1.bf16.msra.mxu0 %v3557
    %3633 = vmatprep.subr.bf16.mxu0 %v3556
    %3634 = vmatpush1.bf16.msra.mxu0 %v3555
    %3635 = vmatprep.subr.bf16.mxu0 %v3586
    %3636 = vmatpush2.bf16.msra.mxu0 %v3585
    %3637 = vmatprep.subr.bf16.mxu0 %v3584
    %3638 = vmatpush2.bf16.msra.mxu0 %v3583
    %3639 = vmatprep.subr.bf16.mxu0 %v3582
    %3640 = vmatpush2.bf16.msra.mxu0 %v3581
    %3641 = vmatprep.subr.bf16.mxu0 %v3580
    %3642 = vmatpush2.bf16.msra.mxu0 %v3579
    %3643 = vmatprep.subr.bf16.mxu0 %v3578
    %3644 = vmatpush2.bf16.msra.mxu0 %v3577
    %3645 = vmatprep.subr.bf16.mxu0 %v3576
    %3646 = vmatpush2.bf16.msra.mxu0 %v3575
    %3647 = vmatprep.subr.bf16.mxu0 %v3574
    %3648 = vmatpush2.bf16.msra.mxu0 %v3573
    %3649 = vmatprep.subr.bf16.mxu0 %v3572
    %3650 = vmatpush2.bf16.msra.mxu0 %v3571
    %3651 = vmatprep.mubr.bf16.mxu0 %v3411
    %3652 = vmatmul.mubr.bf16.gmra.mxu0 %v3410
    %v3653 = vpop.f32.mrf.mxu0
    %v3654 = vadd.f32 0.0, %v3653
    %v3655 = vpop.f32.mrf.mxu0
    %v3656 = vadd.f32 0.0, %v3655
    %v3657 = vpop.f32.mrf.mxu0
    %v3658 = vadd.f32 0.0, %v3657
    %v3659 = vpop.f32.mrf.mxu0
    %v3660 = vadd.f32 0.0, %v3659
    %3661 = vmatprep.mubr.bf16.mxu0 %v3413
    %3662 = vmatmul.mubr.bf16.gmra.mxu0 %v3412
    %v3663 = vpop.f32.mrf.mxu0
    %v3664 = vadd.f32 0.0, %v3663
    %v3665 = vpop.f32.mrf.mxu0
    %v3666 = vadd.f32 0.0, %v3665
    %v3667 = vpop.f32.mrf.mxu0
    %v3668 = vadd.f32 0.0, %v3667
    %v3669 = vpop.f32.mrf.mxu0
    %v3670 = vadd.f32 0.0, %v3669
    %3671 = vmatprep.mubr.bf16.mxu0 %v3415
    %3672 = vmatmul.mubr.bf16.gmra.mxu0 %v3414
    %v3673 = vpop.f32.mrf.mxu0
    %v3674 = vadd.f32 0.0, %v3673
    %v3675 = vpop.f32.mrf.mxu0
    %v3676 = vadd.f32 0.0, %v3675
    %v3677 = vpop.f32.mrf.mxu0
    %v3678 = vadd.f32 0.0, %v3677
    %v3679 = vpop.f32.mrf.mxu0
    %v3680 = vadd.f32 0.0, %v3679
    %3681 = vmatprep.mubr.bf16.mxu0 %v3417
    %3682 = vmatmul.mubr.bf16.gmra.mxu0 %v3416
    %v3683 = vpop.f32.mrf.mxu0
    %v3684 = vadd.f32 0.0, %v3683
    %v3685 = vpop.f32.mrf.mxu0
    %v3686 = vadd.f32 0.0, %v3685
    %v3687 = vpop.f32.mrf.mxu0
    %v3688 = vadd.f32 0.0, %v3687
    %v3689 = vpop.f32.mrf.mxu0
    %v3690 = vadd.f32 0.0, %v3689
    %3691 = vmatprep.mubr.bf16.mxu0 %v3419
    %3692 = vmatmul.mubr.bf16.gmra.mxu0 %v3418
    %v3693 = vpop.f32.mrf.mxu0
    %v3694 = vadd.f32 0.0, %v3693
    %v3695 = vpop.f32.mrf.mxu0
    %v3696 = vadd.f32 0.0, %v3695
    %v3697 = vpop.f32.mrf.mxu0
    %v3698 = vadd.f32 0.0, %v3697
    %v3699 = vpop.f32.mrf.mxu0
    %v3700 = vadd.f32 0.0, %v3699
    %3701 = vmatprep.mubr.bf16.mxu0 %v3421
    %3702 = vmatmul.mubr.bf16.gmra.mxu0 %v3420
    %v3703 = vpop.f32.mrf.mxu0
    %v3704 = vadd.f32 0.0, %v3703
    %v3705 = vpop.f32.mrf.mxu0
    %v3706 = vadd.f32 0.0, %v3705
    %v3707 = vpop.f32.mrf.mxu0
    %v3708 = vadd.f32 0.0, %v3707
    %v3709 = vpop.f32.mrf.mxu0
    %v3710 = vadd.f32 0.0, %v3709
    %3711 = vmatprep.mubr.bf16.mxu0 %v3423
    %3712 = vmatmul.mubr.bf16.gmra.mxu0 %v3422
    %v3713 = vpop.f32.mrf.mxu0
    %v3714 = vadd.f32 0.0, %v3713
    %v3715 = vpop.f32.mrf.mxu0
    %v3716 = vadd.f32 0.0, %v3715
    %v3717 = vpop.f32.mrf.mxu0
    %v3718 = vadd.f32 0.0, %v3717
    %v3719 = vpop.f32.mrf.mxu0
    %v3720 = vadd.f32 0.0, %v3719
    %3721 = vmatprep.mubr.bf16.mxu0 %v3425
    %3722 = vmatmul.mubr.bf16.gmra.mxu0 %v3424
    %v3723 = vpop.f32.mrf.mxu0
    %v3724 = vadd.f32 0.0, %v3723
    %v3725 = vpop.f32.mrf.mxu0
    %v3726 = vadd.f32 0.0, %v3725
    %v3727 = vpop.f32.mrf.mxu0
    %v3728 = vadd.f32 0.0, %v3727
    %v3729 = vpop.f32.mrf.mxu0
    %v3730 = vadd.f32 0.0, %v3729
    %3731 = vdwg.mxu0
    %v3732 = vadd.f32 %v3266, %v3654
    %v3733 = vadd.f32 %v3267, %v3656
    %v3734 = vadd.f32 %v3268, %v3658
    %v3735 = vadd.f32 %v3269, %v3660
    %v3736 = vadd.f32 %v3270, %v3664
    %v3737 = vadd.f32 %v3271, %v3666
    %v3738 = vadd.f32 %v3272, %v3668
    %v3739 = vadd.f32 %v3273, %v3670
    %v3740 = vadd.f32 %v3274, %v3674
    %v3741 = vadd.f32 %v3275, %v3676
    %v3742 = vadd.f32 %v3276, %v3678
    %v3743 = vadd.f32 %v3277, %v3680
    %v3744 = vadd.f32 %v3278, %v3684
    %v3745 = vadd.f32 %v3279, %v3686
    %v3746 = vadd.f32 %v3280, %v3688
    %v3747 = vadd.f32 %v3281, %v3690
    %v3748 = vadd.f32 %v3282, %v3694
    %v3749 = vadd.f32 %v3283, %v3696
    %v3750 = vadd.f32 %v3284, %v3698
    %v3751 = vadd.f32 %v3285, %v3700
    %v3752 = vadd.f32 %v3286, %v3704
    %v3753 = vadd.f32 %v3287, %v3706
    %v3754 = vadd.f32 %v3288, %v3708
    %v3755 = vadd.f32 %v3289, %v3710
    %v3756 = vadd.f32 %v3290, %v3714
    %v3757 = vadd.f32 %v3291, %v3716
    %v3758 = vadd.f32 %v3292, %v3718
    %v3759 = vadd.f32 %v3293, %v3720
    %v3760 = vadd.f32 %v3294, %v3724
    %v3761 = vadd.f32 %v3295, %v3726
    %v3762 = vadd.f32 %v3296, %v3728
    %v3763 = vadd.f32 %v3297, %v3730
    %3765 = vset.pattern.permute.xlu0 0
    %3766 = vperm.xlu0 %3765, %v435
    %v3767 = vpop.permute.xlu0 %3766
    %3770 = vset.pattern.permute.xlu0 0
    %3771 = vperm.xlu0 %3770, %v436
    %v3772 = vpop.permute.xlu0 %3771
    %3775 = vset.pattern.permute.xlu0 0
    %3776 = vperm.xlu0 %3775, %v437
    %v3777 = vpop.permute.xlu0 %3776
    %3780 = vset.pattern.permute.xlu0 0
    %3781 = vperm.xlu0 %3780, %v438
    %v3782 = vpop.permute.xlu0 %3781
    %3785 = vset.pattern.permute.xlu0 0
    %3786 = vperm.xlu0 %3785, %v439
    %v3787 = vpop.permute.xlu0 %3786
    %3790 = vset.pattern.permute.xlu0 0
    %3791 = vperm.xlu0 %3790, %v440
    %v3792 = vpop.permute.xlu0 %3791
    %3795 = vset.pattern.permute.xlu0 0
    %3796 = vperm.xlu0 %3795, %v441
    %v3797 = vpop.permute.xlu0 %3796
    %3800 = vset.pattern.permute.xlu0 0
    %3801 = vperm.xlu0 %3800, %v442
    %v3802 = vpop.permute.xlu0 %3801
    %3805 = vset.pattern.permute.xlu0 0
    %3806 = vperm.xlu0 %3805, %v443
    %v3807 = vpop.permute.xlu0 %3806
    %3810 = vset.pattern.permute.xlu0 0
    %3811 = vperm.xlu0 %3810, %v444
    %v3812 = vpop.permute.xlu0 %3811
    %3815 = vset.pattern.permute.xlu0 0
    %3816 = vperm.xlu0 %3815, %v445
    %v3817 = vpop.permute.xlu0 %3816
    %3820 = vset.pattern.permute.xlu0 0
    %3821 = vperm.xlu0 %3820, %v446
    %v3822 = vpop.permute.xlu0 %3821
    %3825 = vset.pattern.permute.xlu0 0
    %3826 = vperm.xlu0 %3825, %v447
    %v3827 = vpop.permute.xlu0 %3826
    %3830 = vset.pattern.permute.xlu0 0
    %3831 = vperm.xlu0 %3830, %v448
    %v3832 = vpop.permute.xlu0 %3831
    %3835 = vset.pattern.permute.xlu0 0
    %3836 = vperm.xlu0 %3835, %v449
    %v3837 = vpop.permute.xlu0 %3836
    %3840 = vset.pattern.permute.xlu0 0
    %3841 = vperm.xlu0 %3840, %v450
    %v3842 = vpop.permute.xlu0 %3841
    %v3844 = vmul.f32 %v389, %v3767
    %v3845 = vmul.f32 %v390, %v3767
    %v3846 = vmul.f32 %v391, %v3772
    %v3847 = vmul.f32 %v392, %v3772
    %v3848 = vmul.f32 %v393, %v3777
    %v3849 = vmul.f32 %v394, %v3777
    %v3850 = vmul.f32 %v395, %v3782
    %v3851 = vmul.f32 %v396, %v3782
    %v3852 = vmul.f32 %v397, %v3787
    %v3853 = vmul.f32 %v398, %v3787
    %v3854 = vmul.f32 %v399, %v3792
    %v3855 = vmul.f32 %v400, %v3792
    %v3856 = vmul.f32 %v401, %v3797
    %v3857 = vmul.f32 %v402, %v3797
    %v3858 = vmul.f32 %v403, %v3802
    %v3859 = vmul.f32 %v404, %v3802
    %v3860 = vmul.f32 %v405, %v3807
    %v3861 = vmul.f32 %v406, %v3807
    %v3862 = vmul.f32 %v407, %v3812
    %v3863 = vmul.f32 %v408, %v3812
    %v3864 = vmul.f32 %v409, %v3817
    %v3865 = vmul.f32 %v410, %v3817
    %v3866 = vmul.f32 %v411, %v3822
    %v3867 = vmul.f32 %v412, %v3822
    %v3868 = vmul.f32 %v413, %v3827
    %v3869 = vmul.f32 %v414, %v3827
    %v3870 = vmul.f32 %v415, %v3832
    %v3871 = vmul.f32 %v416, %v3832
    %v3872 = vmul.f32 %v417, %v3837
    %v3873 = vmul.f32 %v418, %v3837
    %v3874 = vmul.f32 %v387, %v3842
    %v3875 = vmul.f32 %v388, %v3842
    %v3876 = vpack.c.bf16 %v3846, %v3844
    %v3877 = vpack.c.bf16 %v3847, %v3845
    %v3878 = vpack.c.bf16 %v3850, %v3848
    %v3879 = vpack.c.bf16 %v3851, %v3849
    %v3880 = vpack.c.bf16 %v3854, %v3852
    %v3881 = vpack.c.bf16 %v3855, %v3853
    %v3882 = vpack.c.bf16 %v3858, %v3856
    %v3883 = vpack.c.bf16 %v3859, %v3857
    %v3884 = vpack.c.bf16 %v3862, %v3860
    %v3885 = vpack.c.bf16 %v3863, %v3861
    %v3886 = vpack.c.bf16 %v3866, %v3864
    %v3887 = vpack.c.bf16 %v3867, %v3865
    %v3888 = vpack.c.bf16 %v3870, %v3868
    %v3889 = vpack.c.bf16 %v3871, %v3869
    %v3890 = vpack.c.bf16 %v3874, %v3872
    %v3891 = vpack.c.bf16 %v3875, %v3873
    %s3892 = scalar_lea.vmem [#allocation7], 1792
    %v3893 = vld [vmem:[%s3892] sm:$0xff]
    %v3894 = vld [vmem:[%s3892 + $0x8] sm:$0xff]
    %v3895 = vld [vmem:[%s3892 + $0x10] sm:$0xff]
    %v3896 = vld [vmem:[%s3892 + $0x18] sm:$0xff]
    %v3897 = vld [vmem:[%s3892 + $0x20] sm:$0xff]
    %v3898 = vld [vmem:[%s3892 + $0x28] sm:$0xff]
    %v3899 = vld [vmem:[%s3892 + $0x30] sm:$0xff]
    %v3900 = vld [vmem:[%s3892 + $0x38] sm:$0xff]
    %v3901 = vld [vmem:[%s3892 + $0x40] sm:$0xff]
    %v3902 = vld [vmem:[%s3892 + $0x48] sm:$0xff]
    %v3903 = vld [vmem:[%s3892 + $0x50] sm:$0xff]
    %v3904 = vld [vmem:[%s3892 + $0x58] sm:$0xff]
    %v3905 = vld [vmem:[%s3892 + $0x60] sm:$0xff]
    %v3906 = vld [vmem:[%s3892 + $0x68] sm:$0xff]
    %v3907 = vld [vmem:[%s3892 + $0x70] sm:$0xff]
    %v3908 = vld [vmem:[%s3892 + $0x78] sm:$0xff]
    %v3909 = vld [vmem:[%s3892 + $0x80] sm:$0xff]
    %v3910 = vld [vmem:[%s3892 + $0x88] sm:$0xff]
    %v3911 = vld [vmem:[%s3892 + $0x90] sm:$0xff]
    %v3912 = vld [vmem:[%s3892 + $0x98] sm:$0xff]
    %v3913 = vld [vmem:[%s3892 + $0xa0] sm:$0xff]
    %v3914 = vld [vmem:[%s3892 + $0xa8] sm:$0xff]
    %v3915 = vld [vmem:[%s3892 + $0xb0] sm:$0xff]
    %v3916 = vld [vmem:[%s3892 + $0xb8] sm:$0xff]
    %v3917 = vld [vmem:[%s3892 + $0xc0] sm:$0xff]
    %v3918 = vld [vmem:[%s3892 + $0xc8] sm:$0xff]
    %v3919 = vld [vmem:[%s3892 + $0xd0] sm:$0xff]
    %v3920 = vld [vmem:[%s3892 + $0xd8] sm:$0xff]
    %v3921 = vld [vmem:[%s3892 + $0xe0] sm:$0xff]
    %v3922 = vld [vmem:[%s3892 + $0xe8] sm:$0xff]
    %v3923 = vld [vmem:[%s3892 + $0xf0] sm:$0xff]
    %v3924 = vld [vmem:[%s3892 + $0xf8] sm:$0xff]
    %v3957 = vunpack.c.l.b16 %v3893
    %v3958 = vunpack.c.h.b16 %v3893
    %v3959 = vunpack.c.l.b16 %v3894
    %v3960 = vunpack.c.h.b16 %v3894
    %v3961 = vunpack.c.l.b16 %v3895
    %v3962 = vunpack.c.h.b16 %v3895
    %v3963 = vunpack.c.l.b16 %v3896
    %v3964 = vunpack.c.h.b16 %v3896
    %v3965 = vunpack.c.l.b16 %v3897
    %v3966 = vunpack.c.h.b16 %v3897
    %v3967 = vunpack.c.l.b16 %v3898
    %v3968 = vunpack.c.h.b16 %v3898
    %v3969 = vunpack.c.l.b16 %v3899
    %v3970 = vunpack.c.h.b16 %v3899
    %v3971 = vunpack.c.l.b16 %v3900
    %v3972 = vunpack.c.h.b16 %v3900
    %v3973 = vunpack.c.l.b16 %v3901
    %v3974 = vunpack.c.h.b16 %v3901
    %v3975 = vunpack.c.l.b16 %v3902
    %v3976 = vunpack.c.h.b16 %v3902
    %v3977 = vunpack.c.l.b16 %v3903
    %v3978 = vunpack.c.h.b16 %v3903
    %v3979 = vunpack.c.l.b16 %v3904
    %v3980 = vunpack.c.h.b16 %v3904
    %v3981 = vunpack.c.l.b16 %v3905
    %v3982 = vunpack.c.h.b16 %v3905
    %v3983 = vunpack.c.l.b16 %v3906
    %v3984 = vunpack.c.h.b16 %v3906
    %v3985 = vunpack.c.l.b16 %v3907
    %v3986 = vunpack.c.h.b16 %v3907
    %v3987 = vunpack.c.l.b16 %v3908
    %v3988 = vunpack.c.h.b16 %v3908
    %v3989 = vunpack.c.l.b16 %v3909
    %v3990 = vunpack.c.h.b16 %v3909
    %v3991 = vunpack.c.l.b16 %v3910
    %v3992 = vunpack.c.h.b16 %v3910
    %v3993 = vunpack.c.l.b16 %v3911
    %v3994 = vunpack.c.h.b16 %v3911
    %v3995 = vunpack.c.l.b16 %v3912
    %v3996 = vunpack.c.h.b16 %v3912
    %v3997 = vunpack.c.l.b16 %v3913
    %v3998 = vunpack.c.h.b16 %v3913
    %v3999 = vunpack.c.l.b16 %v3914
    %v4000 = vunpack.c.h.b16 %v3914
    %v4001 = vunpack.c.l.b16 %v3915
    %v4002 = vunpack.c.h.b16 %v3915
    %v4003 = vunpack.c.l.b16 %v3916
    %v4004 = vunpack.c.h.b16 %v3916
    %v4005 = vunpack.c.l.b16 %v3917
    %v4006 = vunpack.c.h.b16 %v3917
    %v4007 = vunpack.c.l.b16 %v3918
    %v4008 = vunpack.c.h.b16 %v3918
    %v4009 = vunpack.c.l.b16 %v3919
    %v4010 = vunpack.c.h.b16 %v3919
    %v4011 = vunpack.c.l.b16 %v3920
    %v4012 = vunpack.c.h.b16 %v3920
    %v4013 = vunpack.c.l.b16 %v3921
    %v4014 = vunpack.c.h.b16 %v3921
    %v4015 = vunpack.c.l.b16 %v3922
    %v4016 = vunpack.c.h.b16 %v3922
    %v4017 = vunpack.c.l.b16 %v3923
    %v4018 = vunpack.c.h.b16 %v3923
    %v4019 = vunpack.c.l.b16 %v3924
    %v4020 = vunpack.c.h.b16 %v3924
    %v4021 = vpack.c.b16 %v3959, %v3957
    %v4022 = vpack.c.b16 %v3960, %v3958
    %v4023 = vpack.c.b16 %v3963, %v3961
    %v4024 = vpack.c.b16 %v3964, %v3962
    %v4025 = vpack.c.b16 %v3967, %v3965
    %v4026 = vpack.c.b16 %v3968, %v3966
    %v4027 = vpack.c.b16 %v3971, %v3969
    %v4028 = vpack.c.b16 %v3972, %v3970
    %v4029 = vpack.c.b16 %v3975, %v3973
    %v4030 = vpack.c.b16 %v3976, %v3974
    %v4031 = vpack.c.b16 %v3979, %v3977
    %v4032 = vpack.c.b16 %v3980, %v3978
    %v4033 = vpack.c.b16 %v3983, %v3981
    %v4034 = vpack.c.b16 %v3984, %v3982
    %v4035 = vpack.c.b16 %v3987, %v3985
    %v4036 = vpack.c.b16 %v3988, %v3986
    %v4037 = vpack.c.b16 %v3991, %v3989
    %v4038 = vpack.c.b16 %v3992, %v3990
    %v4039 = vpack.c.b16 %v3995, %v3993
    %v4040 = vpack.c.b16 %v3996, %v3994
    %v4041 = vpack.c.b16 %v3999, %v3997
    %v4042 = vpack.c.b16 %v4000, %v3998
    %v4043 = vpack.c.b16 %v4003, %v4001
    %v4044 = vpack.c.b16 %v4004, %v4002
    %v4045 = vpack.c.b16 %v4007, %v4005
    %v4046 = vpack.c.b16 %v4008, %v4006
    %v4047 = vpack.c.b16 %v4011, %v4009
    %v4048 = vpack.c.b16 %v4012, %v4010
    %v4049 = vpack.c.b16 %v4015, %v4013
    %v4050 = vpack.c.b16 %v4016, %v4014
    %v4051 = vpack.c.b16 %v4019, %v4017
    %v4052 = vpack.c.b16 %v4020, %v4018
    %4085 = vmatprep.subr.bf16.mxu0 %v4036
    %4086 = vmatpush1.bf16.msra.mxu0 %v4035
    %4087 = vmatprep.subr.bf16.mxu0 %v4034
    %4088 = vmatpush1.bf16.msra.mxu0 %v4033
    %4089 = vmatprep.subr.bf16.mxu0 %v4032
    %4090 = vmatpush1.bf16.msra.mxu0 %v4031
    %4091 = vmatprep.subr.bf16.mxu0 %v4030
    %4092 = vmatpush1.bf16.msra.mxu0 %v4029
    %4093 = vmatprep.subr.bf16.mxu0 %v4028
    %4094 = vmatpush1.bf16.msra.mxu0 %v4027
    %4095 = vmatprep.subr.bf16.mxu0 %v4026
    %4096 = vmatpush1.bf16.msra.mxu0 %v4025
    %4097 = vmatprep.subr.bf16.mxu0 %v4024
    %4098 = vmatpush1.bf16.msra.mxu0 %v4023
    %4099 = vmatprep.subr.bf16.mxu0 %v4022
    %4100 = vmatpush1.bf16.msra.mxu0 %v4021
    %4101 = vmatprep.subr.bf16.mxu0 %v4052
    %4102 = vmatpush2.bf16.msra.mxu0 %v4051
    %4103 = vmatprep.subr.bf16.mxu0 %v4050
    %4104 = vmatpush2.bf16.msra.mxu0 %v4049
    %4105 = vmatprep.subr.bf16.mxu0 %v4048
    %4106 = vmatpush2.bf16.msra.mxu0 %v4047
    %4107 = vmatprep.subr.bf16.mxu0 %v4046
    %4108 = vmatpush2.bf16.msra.mxu0 %v4045
    %4109 = vmatprep.subr.bf16.mxu0 %v4044
    %4110 = vmatpush2.bf16.msra.mxu0 %v4043
    %4111 = vmatprep.subr.bf16.mxu0 %v4042
    %4112 = vmatpush2.bf16.msra.mxu0 %v4041
    %4113 = vmatprep.subr.bf16.mxu0 %v4040
    %4114 = vmatpush2.bf16.msra.mxu0 %v4039
    %4115 = vmatprep.subr.bf16.mxu0 %v4038
    %4116 = vmatpush2.bf16.msra.mxu0 %v4037
    %4117 = vmatprep.mubr.bf16.mxu0 %v3877
    %4118 = vmatmul.mubr.bf16.gmra.mxu0 %v3876
    %v4119 = vpop.f32.mrf.mxu0
    %v4120 = vadd.f32 0.0, %v4119
    %v4121 = vpop.f32.mrf.mxu0
    %v4122 = vadd.f32 0.0, %v4121
    %v4123 = vpop.f32.mrf.mxu0
    %v4124 = vadd.f32 0.0, %v4123
    %v4125 = vpop.f32.mrf.mxu0
    %v4126 = vadd.f32 0.0, %v4125
    %4127 = vmatprep.mubr.bf16.mxu0 %v3879
    %4128 = vmatmul.mubr.bf16.gmra.mxu0 %v3878
    %v4129 = vpop.f32.mrf.mxu0
    %v4130 = vadd.f32 0.0, %v4129
    %v4131 = vpop.f32.mrf.mxu0
    %v4132 = vadd.f32 0.0, %v4131
    %v4133 = vpop.f32.mrf.mxu0
    %v4134 = vadd.f32 0.0, %v4133
    %v4135 = vpop.f32.mrf.mxu0
    %v4136 = vadd.f32 0.0, %v4135
    %4137 = vmatprep.mubr.bf16.mxu0 %v3881
    %4138 = vmatmul.mubr.bf16.gmra.mxu0 %v3880
    %v4139 = vpop.f32.mrf.mxu0
    %v4140 = vadd.f32 0.0, %v4139
    %v4141 = vpop.f32.mrf.mxu0
    %v4142 = vadd.f32 0.0, %v4141
    %v4143 = vpop.f32.mrf.mxu0
    %v4144 = vadd.f32 0.0, %v4143
    %v4145 = vpop.f32.mrf.mxu0
    %v4146 = vadd.f32 0.0, %v4145
    %4147 = vmatprep.mubr.bf16.mxu0 %v3883
    %4148 = vmatmul.mubr.bf16.gmra.mxu0 %v3882
    %v4149 = vpop.f32.mrf.mxu0
    %v4150 = vadd.f32 0.0, %v4149
    %v4151 = vpop.f32.mrf.mxu0
    %v4152 = vadd.f32 0.0, %v4151
    %v4153 = vpop.f32.mrf.mxu0
    %v4154 = vadd.f32 0.0, %v4153
    %v4155 = vpop.f32.mrf.mxu0
    %v4156 = vadd.f32 0.0, %v4155
    %4157 = vmatprep.mubr.bf16.mxu0 %v3885
    %4158 = vmatmul.mubr.bf16.gmra.mxu0 %v3884
    %v4159 = vpop.f32.mrf.mxu0
    %v4160 = vadd.f32 0.0, %v4159
    %v4161 = vpop.f32.mrf.mxu0
    %v4162 = vadd.f32 0.0, %v4161
    %v4163 = vpop.f32.mrf.mxu0
    %v4164 = vadd.f32 0.0, %v4163
    %v4165 = vpop.f32.mrf.mxu0
    %v4166 = vadd.f32 0.0, %v4165
    %4167 = vmatprep.mubr.bf16.mxu0 %v3887
    %4168 = vmatmul.mubr.bf16.gmra.mxu0 %v3886
    %v4169 = vpop.f32.mrf.mxu0
    %v4170 = vadd.f32 0.0, %v4169
    %v4171 = vpop.f32.mrf.mxu0
    %v4172 = vadd.f32 0.0, %v4171
    %v4173 = vpop.f32.mrf.mxu0
    %v4174 = vadd.f32 0.0, %v4173
    %v4175 = vpop.f32.mrf.mxu0
    %v4176 = vadd.f32 0.0, %v4175
    %4177 = vmatprep.mubr.bf16.mxu0 %v3889
    %4178 = vmatmul.mubr.bf16.gmra.mxu0 %v3888
    %v4179 = vpop.f32.mrf.mxu0
    %v4180 = vadd.f32 0.0, %v4179
    %v4181 = vpop.f32.mrf.mxu0
    %v4182 = vadd.f32 0.0, %v4181
    %v4183 = vpop.f32.mrf.mxu0
    %v4184 = vadd.f32 0.0, %v4183
    %v4185 = vpop.f32.mrf.mxu0
    %v4186 = vadd.f32 0.0, %v4185
    %4187 = vmatprep.mubr.bf16.mxu0 %v3891
    %4188 = vmatmul.mubr.bf16.gmra.mxu0 %v3890
    %v4189 = vpop.f32.mrf.mxu0
    %v4190 = vadd.f32 0.0, %v4189
    %v4191 = vpop.f32.mrf.mxu0
    %v4192 = vadd.f32 0.0, %v4191
    %v4193 = vpop.f32.mrf.mxu0
    %v4194 = vadd.f32 0.0, %v4193
    %v4195 = vpop.f32.mrf.mxu0
    %v4196 = vadd.f32 0.0, %v4195
    %4197 = vdwg.mxu0
    %v4198 = vadd.f32 %v3732, %v4120
    %v4199 = vadd.f32 %v3733, %v4122
    %v4200 = vadd.f32 %v3734, %v4124
    %v4201 = vadd.f32 %v3735, %v4126
    %v4202 = vadd.f32 %v3736, %v4130
    %v4203 = vadd.f32 %v3737, %v4132
    %v4204 = vadd.f32 %v3738, %v4134
    %v4205 = vadd.f32 %v3739, %v4136
    %v4206 = vadd.f32 %v3740, %v4140
    %v4207 = vadd.f32 %v3741, %v4142
    %v4208 = vadd.f32 %v3742, %v4144
    %v4209 = vadd.f32 %v3743, %v4146
    %v4210 = vadd.f32 %v3744, %v4150
    %v4211 = vadd.f32 %v3745, %v4152
    %v4212 = vadd.f32 %v3746, %v4154
    %v4213 = vadd.f32 %v3747, %v4156
    %v4214 = vadd.f32 %v3748, %v4160
    %v4215 = vadd.f32 %v3749, %v4162
    %v4216 = vadd.f32 %v3750, %v4164
    %v4217 = vadd.f32 %v3751, %v4166
    %v4218 = vadd.f32 %v3752, %v4170
    %v4219 = vadd.f32 %v3753, %v4172
    %v4220 = vadd.f32 %v3754, %v4174
    %v4221 = vadd.f32 %v3755, %v4176
    %v4222 = vadd.f32 %v3756, %v4180
    %v4223 = vadd.f32 %v3757, %v4182
    %v4224 = vadd.f32 %v3758, %v4184
    %v4225 = vadd.f32 %v3759, %v4186
    %v4226 = vadd.f32 %v3760, %v4190
    %v4227 = vadd.f32 %v3761, %v4192
    %v4228 = vadd.f32 %v3762, %v4194
    %v4229 = vadd.f32 %v3763, %v4196
    %4231 = vset.pattern.permute.xlu0 0
    %4232 = vperm.xlu0 %4231, %v531
    %v4233 = vpop.permute.xlu0 %4232
    %4236 = vset.pattern.permute.xlu0 0
    %4237 = vperm.xlu0 %4236, %v532
    %v4238 = vpop.permute.xlu0 %4237
    %4241 = vset.pattern.permute.xlu0 0
    %4242 = vperm.xlu0 %4241, %v533
    %v4243 = vpop.permute.xlu0 %4242
    %4246 = vset.pattern.permute.xlu0 0
    %4247 = vperm.xlu0 %4246, %v534
    %v4248 = vpop.permute.xlu0 %4247
    %4251 = vset.pattern.permute.xlu0 0
    %4252 = vperm.xlu0 %4251, %v535
    %v4253 = vpop.permute.xlu0 %4252
    %4256 = vset.pattern.permute.xlu0 0
    %4257 = vperm.xlu0 %4256, %v536
    %v4258 = vpop.permute.xlu0 %4257
    %4261 = vset.pattern.permute.xlu0 0
    %4262 = vperm.xlu0 %4261, %v537
    %v4263 = vpop.permute.xlu0 %4262
    %4266 = vset.pattern.permute.xlu0 0
    %4267 = vperm.xlu0 %4266, %v538
    %v4268 = vpop.permute.xlu0 %4267
    %4271 = vset.pattern.permute.xlu0 0
    %4272 = vperm.xlu0 %4271, %v539
    %v4273 = vpop.permute.xlu0 %4272
    %4276 = vset.pattern.permute.xlu0 0
    %4277 = vperm.xlu0 %4276, %v540
    %v4278 = vpop.permute.xlu0 %4277
    %4281 = vset.pattern.permute.xlu0 0
    %4282 = vperm.xlu0 %4281, %v541
    %v4283 = vpop.permute.xlu0 %4282
    %4286 = vset.pattern.permute.xlu0 0
    %4287 = vperm.xlu0 %4286, %v542
    %v4288 = vpop.permute.xlu0 %4287
    %4291 = vset.pattern.permute.xlu0 0
    %4292 = vperm.xlu0 %4291, %v543
    %v4293 = vpop.permute.xlu0 %4292
    %4296 = vset.pattern.permute.xlu0 0
    %4297 = vperm.xlu0 %4296, %v544
    %v4298 = vpop.permute.xlu0 %4297
    %4301 = vset.pattern.permute.xlu0 0
    %4302 = vperm.xlu0 %4301, %v545
    %v4303 = vpop.permute.xlu0 %4302
    %4306 = vset.pattern.permute.xlu0 0
    %4307 = vperm.xlu0 %4306, %v546
    %v4308 = vpop.permute.xlu0 %4307
    %v4310 = vmul.f32 %v1540, %v4233
    %v4311 = vmul.f32 %v1541, %v4233
    %v4312 = vmul.f32 %v1538, %v4238
    %v4313 = vmul.f32 %v1539, %v4238
    %v4314 = vmul.f32 %v1536, %v4243
    %v4315 = vmul.f32 %v1537, %v4243
    %v4316 = vmul.f32 %v1534, %v4248
    %v4317 = vmul.f32 %v1535, %v4248
    %v4318 = vmul.f32 %v1532, %v4253
    %v4319 = vmul.f32 %v1533, %v4253
    %v4320 = vmul.f32 %v1530, %v4258
    %v4321 = vmul.f32 %v1531, %v4258
    %v4322 = vmul.f32 %v1528, %v4263
    %v4323 = vmul.f32 %v1529, %v4263
    %v4324 = vmul.f32 %v1526, %v4268
    %v4325 = vmul.f32 %v1527, %v4268
    %v4326 = vmul.f32 %v1524, %v4273
    %v4327 = vmul.f32 %v1525, %v4273
    %v4328 = vmul.f32 %v1522, %v4278
    %v4329 = vmul.f32 %v1523, %v4278
    %v4330 = vmul.f32 %v1520, %v4283
    %v4331 = vmul.f32 %v1521, %v4283
    %v4332 = vmul.f32 %v1518, %v4288
    %v4333 = vmul.f32 %v1519, %v4288
    %v4334 = vmul.f32 %v1516, %v4293
    %v4335 = vmul.f32 %v1517, %v4293
    %v4336 = vmul.f32 %v1514, %v4298
    %v4337 = vmul.f32 %v1515, %v4298
    %v4338 = vmul.f32 %v1544, %v4303
    %v4339 = vmul.f32 %v1545, %v4303
    %v4340 = vmul.f32 %v1542, %v4308
    %v4341 = vmul.f32 %v1543, %v4308
    %v4342 = vpack.c.bf16 %v4312, %v4310
    %v4343 = vpack.c.bf16 %v4313, %v4311
    %v4344 = vpack.c.bf16 %v4316, %v4314
    %v4345 = vpack.c.bf16 %v4317, %v4315
    %v4346 = vpack.c.bf16 %v4320, %v4318
    %v4347 = vpack.c.bf16 %v4321, %v4319
    %v4348 = vpack.c.bf16 %v4324, %v4322
    %v4349 = vpack.c.bf16 %v4325, %v4323
    %v4350 = vpack.c.bf16 %v4328, %v4326
    %v4351 = vpack.c.bf16 %v4329, %v4327
    %v4352 = vpack.c.bf16 %v4332, %v4330
    %v4353 = vpack.c.bf16 %v4333, %v4331
    %v4354 = vpack.c.bf16 %v4336, %v4334
    %v4355 = vpack.c.bf16 %v4337, %v4335
    %v4356 = vpack.c.bf16 %v4340, %v4338
    %v4357 = vpack.c.bf16 %v4341, %v4339
    %s4358 = scalar_lea.vmem [#allocation7], 2048
    %v4359 = vld [vmem:[%s4358] sm:$0xff]
    %v4360 = vld [vmem:[%s4358 + $0x8] sm:$0xff]
    %v4361 = vld [vmem:[%s4358 + $0x10] sm:$0xff]
    %v4362 = vld [vmem:[%s4358 + $0x18] sm:$0xff]
    %v4363 = vld [vmem:[%s4358 + $0x20] sm:$0xff]
    %v4364 = vld [vmem:[%s4358 + $0x28] sm:$0xff]
    %v4365 = vld [vmem:[%s4358 + $0x30] sm:$0xff]
    %v4366 = vld [vmem:[%s4358 + $0x38] sm:$0xff]
    %v4367 = vld [vmem:[%s4358 + $0x40] sm:$0xff]
    %v4368 = vld [vmem:[%s4358 + $0x48] sm:$0xff]
    %v4369 = vld [vmem:[%s4358 + $0x50] sm:$0xff]
    %v4370 = vld [vmem:[%s4358 + $0x58] sm:$0xff]
    %v4371 = vld [vmem:[%s4358 + $0x60] sm:$0xff]
    %v4372 = vld [vmem:[%s4358 + $0x68] sm:$0xff]
    %v4373 = vld [vmem:[%s4358 + $0x70] sm:$0xff]
    %v4374 = vld [vmem:[%s4358 + $0x78] sm:$0xff]
    %v4375 = vld [vmem:[%s4358 + $0x80] sm:$0xff]
    %v4376 = vld [vmem:[%s4358 + $0x88] sm:$0xff]
    %v4377 = vld [vmem:[%s4358 + $0x90] sm:$0xff]
    %v4378 = vld [vmem:[%s4358 + $0x98] sm:$0xff]
    %v4379 = vld [vmem:[%s4358 + $0xa0] sm:$0xff]
    %v4380 = vld [vmem:[%s4358 + $0xa8] sm:$0xff]
    %v4381 = vld [vmem:[%s4358 + $0xb0] sm:$0xff]
    %v4382 = vld [vmem:[%s4358 + $0xb8] sm:$0xff]
    %v4383 = vld [vmem:[%s4358 + $0xc0] sm:$0xff]
    %v4384 = vld [vmem:[%s4358 + $0xc8] sm:$0xff]
    %v4385 = vld [vmem:[%s4358 + $0xd0] sm:$0xff]
    %v4386 = vld [vmem:[%s4358 + $0xd8] sm:$0xff]
    %v4387 = vld [vmem:[%s4358 + $0xe0] sm:$0xff]
    %v4388 = vld [vmem:[%s4358 + $0xe8] sm:$0xff]
    %v4389 = vld [vmem:[%s4358 + $0xf0] sm:$0xff]
    %v4390 = vld [vmem:[%s4358 + $0xf8] sm:$0xff]
    %v4423 = vunpack.c.l.b16 %v4359
    %v4424 = vunpack.c.h.b16 %v4359
    %v4425 = vunpack.c.l.b16 %v4360
    %v4426 = vunpack.c.h.b16 %v4360
    %v4427 = vunpack.c.l.b16 %v4361
    %v4428 = vunpack.c.h.b16 %v4361
    %v4429 = vunpack.c.l.b16 %v4362
    %v4430 = vunpack.c.h.b16 %v4362
    %v4431 = vunpack.c.l.b16 %v4363
    %v4432 = vunpack.c.h.b16 %v4363
    %v4433 = vunpack.c.l.b16 %v4364
    %v4434 = vunpack.c.h.b16 %v4364
    %v4435 = vunpack.c.l.b16 %v4365
    %v4436 = vunpack.c.h.b16 %v4365
    %v4437 = vunpack.c.l.b16 %v4366
    %v4438 = vunpack.c.h.b16 %v4366
    %v4439 = vunpack.c.l.b16 %v4367
    %v4440 = vunpack.c.h.b16 %v4367
    %v4441 = vunpack.c.l.b16 %v4368
    %v4442 = vunpack.c.h.b16 %v4368
    %v4443 = vunpack.c.l.b16 %v4369
    %v4444 = vunpack.c.h.b16 %v4369
    %v4445 = vunpack.c.l.b16 %v4370
    %v4446 = vunpack.c.h.b16 %v4370
    %v4447 = vunpack.c.l.b16 %v4371
    %v4448 = vunpack.c.h.b16 %v4371
    %v4449 = vunpack.c.l.b16 %v4372
    %v4450 = vunpack.c.h.b16 %v4372
    %v4451 = vunpack.c.l.b16 %v4373
    %v4452 = vunpack.c.h.b16 %v4373
    %v4453 = vunpack.c.l.b16 %v4374
    %v4454 = vunpack.c.h.b16 %v4374
    %v4455 = vunpack.c.l.b16 %v4375
    %v4456 = vunpack.c.h.b16 %v4375
    %v4457 = vunpack.c.l.b16 %v4376
    %v4458 = vunpack.c.h.b16 %v4376
    %v4459 = vunpack.c.l.b16 %v4377
    %v4460 = vunpack.c.h.b16 %v4377
    %v4461 = vunpack.c.l.b16 %v4378
    %v4462 = vunpack.c.h.b16 %v4378
    %v4463 = vunpack.c.l.b16 %v4379
    %v4464 = vunpack.c.h.b16 %v4379
    %v4465 = vunpack.c.l.b16 %v4380
    %v4466 = vunpack.c.h.b16 %v4380
    %v4467 = vunpack.c.l.b16 %v4381
    %v4468 = vunpack.c.h.b16 %v4381
    %v4469 = vunpack.c.l.b16 %v4382
    %v4470 = vunpack.c.h.b16 %v4382
    %v4471 = vunpack.c.l.b16 %v4383
    %v4472 = vunpack.c.h.b16 %v4383
    %v4473 = vunpack.c.l.b16 %v4384
    %v4474 = vunpack.c.h.b16 %v4384
    %v4475 = vunpack.c.l.b16 %v4385
    %v4476 = vunpack.c.h.b16 %v4385
    %v4477 = vunpack.c.l.b16 %v4386
    %v4478 = vunpack.c.h.b16 %v4386
    %v4479 = vunpack.c.l.b16 %v4387
    %v4480 = vunpack.c.h.b16 %v4387
    %v4481 = vunpack.c.l.b16 %v4388
    %v4482 = vunpack.c.h.b16 %v4388
    %v4483 = vunpack.c.l.b16 %v4389
    %v4484 = vunpack.c.h.b16 %v4389
    %v4485 = vunpack.c.l.b16 %v4390
    %v4486 = vunpack.c.h.b16 %v4390
    %v4487 = vpack.c.b16 %v4425, %v4423
    %v4488 = vpack.c.b16 %v4426, %v4424
    %v4489 = vpack.c.b16 %v4429, %v4427
    %v4490 = vpack.c.b16 %v4430, %v4428
    %v4491 = vpack.c.b16 %v4433, %v4431
    %v4492 = vpack.c.b16 %v4434, %v4432
    %v4493 = vpack.c.b16 %v4437, %v4435
    %v4494 = vpack.c.b16 %v4438, %v4436
    %v4495 = vpack.c.b16 %v4441, %v4439
    %v4496 = vpack.c.b16 %v4442, %v4440
    %v4497 = vpack.c.b16 %v4445, %v4443
    %v4498 = vpack.c.b16 %v4446, %v4444
    %v4499 = vpack.c.b16 %v4449, %v4447
    %v4500 = vpack.c.b16 %v4450, %v4448
    %v4501 = vpack.c.b16 %v4453, %v4451
    %v4502 = vpack.c.b16 %v4454, %v4452
    %v4503 = vpack.c.b16 %v4457, %v4455
    %v4504 = vpack.c.b16 %v4458, %v4456
    %v4505 = vpack.c.b16 %v4461, %v4459
    %v4506 = vpack.c.b16 %v4462, %v4460
    %v4507 = vpack.c.b16 %v4465, %v4463
    %v4508 = vpack.c.b16 %v4466, %v4464
    %v4509 = vpack.c.b16 %v4469, %v4467
    %v4510 = vpack.c.b16 %v4470, %v4468
    %v4511 = vpack.c.b16 %v4473, %v4471
    %v4512 = vpack.c.b16 %v4474, %v4472
    %v4513 = vpack.c.b16 %v4477, %v4475
    %v4514 = vpack.c.b16 %v4478, %v4476
    %v4515 = vpack.c.b16 %v4481, %v4479
    %v4516 = vpack.c.b16 %v4482, %v4480
    %v4517 = vpack.c.b16 %v4485, %v4483
    %v4518 = vpack.c.b16 %v4486, %v4484
    %4551 = vmatprep.subr.bf16.mxu0 %v4502
    %4552 = vmatpush1.bf16.msra.mxu0 %v4501
    %4553 = vmatprep.subr.bf16.mxu0 %v4500
    %4554 = vmatpush1.bf16.msra.mxu0 %v4499
    %4555 = vmatprep.subr.bf16.mxu0 %v4498
    %4556 = vmatpush1.bf16.msra.mxu0 %v4497
    %4557 = vmatprep.subr.bf16.mxu0 %v4496
    %4558 = vmatpush1.bf16.msra.mxu0 %v4495
    %4559 = vmatprep.subr.bf16.mxu0 %v4494
    %4560 = vmatpush1.bf16.msra.mxu0 %v4493
    %4561 = vmatprep.subr.bf16.mxu0 %v4492
    %4562 = vmatpush1.bf16.msra.mxu0 %v4491
    %4563 = vmatprep.subr.bf16.mxu0 %v4490
    %4564 = vmatpush1.bf16.msra.mxu0 %v4489
    %4565 = vmatprep.subr.bf16.mxu0 %v4488
    %4566 = vmatpush1.bf16.msra.mxu0 %v4487
    %4567 = vmatprep.subr.bf16.mxu0 %v4518
    %4568 = vmatpush2.bf16.msra.mxu0 %v4517
    %4569 = vmatprep.subr.bf16.mxu0 %v4516
    %4570 = vmatpush2.bf16.msra.mxu0 %v4515
    %4571 = vmatprep.subr.bf16.mxu0 %v4514
    %4572 = vmatpush2.bf16.msra.mxu0 %v4513
    %4573 = vmatprep.subr.bf16.mxu0 %v4512
    %4574 = vmatpush2.bf16.msra.mxu0 %v4511
    %4575 = vmatprep.subr.bf16.mxu0 %v4510
    %4576 = vmatpush2.bf16.msra.mxu0 %v4509
    %4577 = vmatprep.subr.bf16.mxu0 %v4508
    %4578 = vmatpush2.bf16.msra.mxu0 %v4507
    %4579 = vmatprep.subr.bf16.mxu0 %v4506
    %4580 = vmatpush2.bf16.msra.mxu0 %v4505
    %4581 = vmatprep.subr.bf16.mxu0 %v4504
    %4582 = vmatpush2.bf16.msra.mxu0 %v4503
    %4583 = vmatprep.mubr.bf16.mxu0 %v4343
    %4584 = vmatmul.mubr.bf16.gmra.mxu0 %v4342
    %v4585 = vpop.f32.mrf.mxu0
    %v4586 = vadd.f32 0.0, %v4585
    %v4587 = vpop.f32.mrf.mxu0
    %v4588 = vadd.f32 0.0, %v4587
    %v4589 = vpop.f32.mrf.mxu0
    %v4590 = vadd.f32 0.0, %v4589
    %v4591 = vpop.f32.mrf.mxu0
    %v4592 = vadd.f32 0.0, %v4591
    %4593 = vmatprep.mubr.bf16.mxu0 %v4345
    %4594 = vmatmul.mubr.bf16.gmra.mxu0 %v4344
    %v4595 = vpop.f32.mrf.mxu0
    %v4596 = vadd.f32 0.0, %v4595
    %v4597 = vpop.f32.mrf.mxu0
    %v4598 = vadd.f32 0.0, %v4597
    %v4599 = vpop.f32.mrf.mxu0
    %v4600 = vadd.f32 0.0, %v4599
    %v4601 = vpop.f32.mrf.mxu0
    %v4602 = vadd.f32 0.0, %v4601
    %4603 = vmatprep.mubr.bf16.mxu0 %v4347
    %4604 = vmatmul.mubr.bf16.gmra.mxu0 %v4346
    %v4605 = vpop.f32.mrf.mxu0
    %v4606 = vadd.f32 0.0, %v4605
    %v4607 = vpop.f32.mrf.mxu0
    %v4608 = vadd.f32 0.0, %v4607
    %v4609 = vpop.f32.mrf.mxu0
    %v4610 = vadd.f32 0.0, %v4609
    %v4611 = vpop.f32.mrf.mxu0
    %v4612 = vadd.f32 0.0, %v4611
    %4613 = vmatprep.mubr.bf16.mxu0 %v4349
    %4614 = vmatmul.mubr.bf16.gmra.mxu0 %v4348
    %v4615 = vpop.f32.mrf.mxu0
    %v4616 = vadd.f32 0.0, %v4615
    %v4617 = vpop.f32.mrf.mxu0
    %v4618 = vadd.f32 0.0, %v4617
    %v4619 = vpop.f32.mrf.mxu0
    %v4620 = vadd.f32 0.0, %v4619
    %v4621 = vpop.f32.mrf.mxu0
    %v4622 = vadd.f32 0.0, %v4621
    %4623 = vmatprep.mubr.bf16.mxu0 %v4351
    %4624 = vmatmul.mubr.bf16.gmra.mxu0 %v4350
    %v4625 = vpop.f32.mrf.mxu0
    %v4626 = vadd.f32 0.0, %v4625
    %v4627 = vpop.f32.mrf.mxu0
    %v4628 = vadd.f32 0.0, %v4627
    %v4629 = vpop.f32.mrf.mxu0
    %v4630 = vadd.f32 0.0, %v4629
    %v4631 = vpop.f32.mrf.mxu0
    %v4632 = vadd.f32 0.0, %v4631
    %4633 = vmatprep.mubr.bf16.mxu0 %v4353
    %4634 = vmatmul.mubr.bf16.gmra.mxu0 %v4352
    %v4635 = vpop.f32.mrf.mxu0
    %v4636 = vadd.f32 0.0, %v4635
    %v4637 = vpop.f32.mrf.mxu0
    %v4638 = vadd.f32 0.0, %v4637
    %v4639 = vpop.f32.mrf.mxu0
    %v4640 = vadd.f32 0.0, %v4639
    %v4641 = vpop.f32.mrf.mxu0
    %v4642 = vadd.f32 0.0, %v4641
    %4643 = vmatprep.mubr.bf16.mxu0 %v4355
    %4644 = vmatmul.mubr.bf16.gmra.mxu0 %v4354
    %v4645 = vpop.f32.mrf.mxu0
    %v4646 = vadd.f32 0.0, %v4645
    %v4647 = vpop.f32.mrf.mxu0
    %v4648 = vadd.f32 0.0, %v4647
    %v4649 = vpop.f32.mrf.mxu0
    %v4650 = vadd.f32 0.0, %v4649
    %v4651 = vpop.f32.mrf.mxu0
    %v4652 = vadd.f32 0.0, %v4651
    %4653 = vmatprep.mubr.bf16.mxu0 %v4357
    %4654 = vmatmul.mubr.bf16.gmra.mxu0 %v4356
    %v4655 = vpop.f32.mrf.mxu0
    %v4656 = vadd.f32 0.0, %v4655
    %v4657 = vpop.f32.mrf.mxu0
    %v4658 = vadd.f32 0.0, %v4657
    %v4659 = vpop.f32.mrf.mxu0
    %v4660 = vadd.f32 0.0, %v4659
    %v4661 = vpop.f32.mrf.mxu0
    %v4662 = vadd.f32 0.0, %v4661
    %4663 = vdwg.mxu0
    %v4664 = vadd.f32 %v4198, %v4586
    %v4665 = vadd.f32 %v4199, %v4588
    %v4666 = vadd.f32 %v4200, %v4590
    %v4667 = vadd.f32 %v4201, %v4592
    %v4668 = vadd.f32 %v4202, %v4596
    %v4669 = vadd.f32 %v4203, %v4598
    %v4670 = vadd.f32 %v4204, %v4600
    %v4671 = vadd.f32 %v4205, %v4602
    %v4672 = vadd.f32 %v4206, %v4606
    %v4673 = vadd.f32 %v4207, %v4608
    %v4674 = vadd.f32 %v4208, %v4610
    %v4675 = vadd.f32 %v4209, %v4612
    %v4676 = vadd.f32 %v4210, %v4616
    %v4677 = vadd.f32 %v4211, %v4618
    %v4678 = vadd.f32 %v4212, %v4620
    %v4679 = vadd.f32 %v4213, %v4622
    %v4680 = vadd.f32 %v4214, %v4626
    %v4681 = vadd.f32 %v4215, %v4628
    %v4682 = vadd.f32 %v4216, %v4630
    %v4683 = vadd.f32 %v4217, %v4632
    %v4684 = vadd.f32 %v4218, %v4636
    %v4685 = vadd.f32 %v4219, %v4638
    %v4686 = vadd.f32 %v4220, %v4640
    %v4687 = vadd.f32 %v4221, %v4642
    %v4688 = vadd.f32 %v4222, %v4646
    %v4689 = vadd.f32 %v4223, %v4648
    %v4690 = vadd.f32 %v4224, %v4650
    %v4691 = vadd.f32 %v4225, %v4652
    %v4692 = vadd.f32 %v4226, %v4656
    %v4693 = vadd.f32 %v4227, %v4658
    %v4694 = vadd.f32 %v4228, %v4660
    %v4695 = vadd.f32 %v4229, %v4662
    %v4696 = vld [vmem:[#allocation8] sm:$0x3]
    %v4698 = vlaneseq
    %v4699 = vshrl.u32 %v4698, 7
    %v4700 = vsub.s32 0, %v4699
    %v4701 = vrot.slane %v4696, %v4700
    %v4702 = vlaneseq
    %v4703 = vshrl.u32 %v4702, 7
    %v4704 = vsub.s32 1, %v4703
    %v4705 = vrot.slane %v4696, %v4704
    %v4708 = vadd.f32 %v4664, %v4701
    %v4709 = vadd.f32 %v4665, %v4705
    %v4710 = vadd.f32 %v4666, %v4701
    %v4711 = vadd.f32 %v4667, %v4705
    %v4712 = vadd.f32 %v4668, %v4701
    %v4713 = vadd.f32 %v4669, %v4705
    %v4714 = vadd.f32 %v4670, %v4701
    %v4715 = vadd.f32 %v4671, %v4705
    %v4716 = vadd.f32 %v4672, %v4701
    %v4717 = vadd.f32 %v4673, %v4705
    %v4718 = vadd.f32 %v4674, %v4701
    %v4719 = vadd.f32 %v4675, %v4705
    %v4720 = vadd.f32 %v4676, %v4701
    %v4721 = vadd.f32 %v4677, %v4705
    %v4722 = vadd.f32 %v4678, %v4701
    %v4723 = vadd.f32 %v4679, %v4705
    %v4724 = vadd.f32 %v4680, %v4701
    %v4725 = vadd.f32 %v4681, %v4705
    %v4726 = vadd.f32 %v4682, %v4701
    %v4727 = vadd.f32 %v4683, %v4705
    %v4728 = vadd.f32 %v4684, %v4701
    %v4729 = vadd.f32 %v4685, %v4705
    %v4730 = vadd.f32 %v4686, %v4701
    %v4731 = vadd.f32 %v4687, %v4705
    %v4732 = vadd.f32 %v4688, %v4701
    %v4733 = vadd.f32 %v4689, %v4705
    %v4734 = vadd.f32 %v4690, %v4701
    %v4735 = vadd.f32 %v4691, %v4705
    %v4736 = vadd.f32 %v4692, %v4701
    %v4737 = vadd.f32 %v4693, %v4705
    %v4738 = vadd.f32 %v4694, %v4701
    %v4739 = vadd.f32 %v4695, %v4705
    %v4740 = vmax.f32 %v4708, 0.0
    %v4741 = vmax.f32 %v4709, 0.0
    %v4742 = vmax.f32 %v4710, 0.0
    %v4743 = vmax.f32 %v4711, 0.0
    %v4744 = vmax.f32 %v4712, 0.0
    %v4745 = vmax.f32 %v4713, 0.0
    %v4746 = vmax.f32 %v4714, 0.0
    %v4747 = vmax.f32 %v4715, 0.0
    %v4748 = vmax.f32 %v4716, 0.0
    %v4749 = vmax.f32 %v4717, 0.0
    %v4750 = vmax.f32 %v4718, 0.0
    %v4751 = vmax.f32 %v4719, 0.0
    %v4752 = vmax.f32 %v4720, 0.0
    %v4753 = vmax.f32 %v4721, 0.0
    %v4754 = vmax.f32 %v4722, 0.0
    %v4755 = vmax.f32 %v4723, 0.0
    %v4756 = vmax.f32 %v4724, 0.0
    %v4757 = vmax.f32 %v4725, 0.0
    %v4758 = vmax.f32 %v4726, 0.0
    %v4759 = vmax.f32 %v4727, 0.0
    %v4760 = vmax.f32 %v4728, 0.0
    %v4761 = vmax.f32 %v4729, 0.0
    %v4762 = vmax.f32 %v4730, 0.0
    %v4763 = vmax.f32 %v4731, 0.0
    %v4764 = vmax.f32 %v4732, 0.0
    %v4765 = vmax.f32 %v4733, 0.0
    %v4766 = vmax.f32 %v4734, 0.0
    %v4767 = vmax.f32 %v4735, 0.0
    %v4768 = vmax.f32 %v4736, 0.0
    %v4769 = vmax.f32 %v4737, 0.0
    %v4770 = vmax.f32 %v4738, 0.0
    %v4771 = vmax.f32 %v4739, 0.0
    %v4772 = vrot.slane %v4740, 7
    %v4773 = vrot.slane %v4741, 7
    %v4774 = vrot.slane %v4742, 7
    %v4775 = vrot.slane %v4743, 7
    %v4776 = vrot.slane %v4744, 7
    %v4777 = vrot.slane %v4745, 7
    %v4778 = vrot.slane %v4746, 7
    %v4779 = vrot.slane %v4747, 7
    %v4780 = vrot.slane %v4748, 7
    %v4781 = vrot.slane %v4749, 7
    %v4782 = vrot.slane %v4750, 7
    %v4783 = vrot.slane %v4751, 7
    %v4784 = vrot.slane %v4752, 7
    %v4785 = vrot.slane %v4753, 7
    %v4786 = vrot.slane %v4754, 7
    %v4787 = vrot.slane %v4755, 7
    %v4788 = vrot.slane %v4756, 7
    %v4789 = vrot.slane %v4757, 7
    %v4790 = vrot.slane %v4758, 7
    %v4791 = vrot.slane %v4759, 7
    %v4792 = vrot.slane %v4760, 7
    %v4793 = vrot.slane %v4761, 7
    %v4794 = vrot.slane %v4762, 7
    %v4795 = vrot.slane %v4763, 7
    %v4796 = vrot.slane %v4764, 7
    %v4797 = vrot.slane %v4765, 7
    %v4798 = vrot.slane %v4766, 7
    %v4799 = vrot.slane %v4767, 7
    %v4800 = vrot.slane %v4768, 7
    %v4801 = vrot.slane %v4769, 7
    %v4802 = vrot.slane %v4770, 7
    %v4803 = vrot.slane %v4771, 7
    %v4804 = vsel %vm581, %v4800, %v4802
    %v4805 = vsel %vm581, %v4801, %v4803
    %v4806 = vsel %vm581, %v4798, %v4800
    %v4807 = vsel %vm581, %v4799, %v4801
    %v4808 = vsel %vm581, %v4796, %v4798
    %v4809 = vsel %vm581, %v4797, %v4799
    %v4810 = vsel %vm581, %v4794, %v4796
    %v4811 = vsel %vm581, %v4795, %v4797
    %v4812 = vsel %vm581, %v4792, %v4794
    %v4813 = vsel %vm581, %v4793, %v4795
    %v4814 = vsel %vm581, %v4790, %v4792
    %v4815 = vsel %vm581, %v4791, %v4793
    %v4816 = vsel %vm581, %v4788, %v4790
    %v4817 = vsel %vm581, %v4789, %v4791
    %v4818 = vsel %vm581, %v4786, %v4788
    %v4819 = vsel %vm581, %v4787, %v4789
    %v4820 = vsel %vm581, %v4784, %v4786
    %v4821 = vsel %vm581, %v4785, %v4787
    %v4822 = vsel %vm581, %v4782, %v4784
    %v4823 = vsel %vm581, %v4783, %v4785
    %v4824 = vsel %vm581, %v4780, %v4782
    %v4825 = vsel %vm581, %v4781, %v4783
    %v4826 = vsel %vm581, %v4778, %v4780
    %v4827 = vsel %vm581, %v4779, %v4781
    %v4828 = vsel %vm581, %v4776, %v4778
    %v4829 = vsel %vm581, %v4777, %v4779
    %v4830 = vsel %vm581, %v4774, %v4776
    %v4831 = vsel %vm581, %v4775, %v4777
    %v4832 = vsel %vm581, %v4772, %v4774
    %v4833 = vsel %vm581, %v4773, %v4775
    %v4834 = vsel %vm581, %v4802, %v4772
    %v4835 = vsel %vm581, %v4803, %v4773
    %v4836 = vmul.f32 %v4804, %v617
    %v4837 = vmul.f32 %v4805, %v617
    %v4838 = vmul.f32 %v4834, %v622
    %v4839 = vmul.f32 %v4835, %v622
    %v4840 = vmul.f32 %v4832, %v627
    %v4841 = vmul.f32 %v4833, %v627
    %v4842 = vmul.f32 %v4830, %v632
    %v4843 = vmul.f32 %v4831, %v632
    %v4844 = vmul.f32 %v4828, %v637
    %v4845 = vmul.f32 %v4829, %v637
    %v4846 = vmul.f32 %v4826, %v642
    %v4847 = vmul.f32 %v4827, %v642
    %v4848 = vmul.f32 %v4824, %v647
    %v4849 = vmul.f32 %v4825, %v647
    %v4850 = vmul.f32 %v4822, %v652
    %v4851 = vmul.f32 %v4823, %v652
    %v4852 = vmul.f32 %v4820, %v657
    %v4853 = vmul.f32 %v4821, %v657
    %v4854 = vmul.f32 %v4818, %v662
    %v4855 = vmul.f32 %v4819, %v662
    %v4856 = vmul.f32 %v4816, %v667
    %v4857 = vmul.f32 %v4817, %v667
    %v4858 = vmul.f32 %v4814, %v672
    %v4859 = vmul.f32 %v4815, %v672
    %v4860 = vmul.f32 %v4812, %v677
    %v4861 = vmul.f32 %v4813, %v677
    %v4862 = vmul.f32 %v4810, %v682
    %v4863 = vmul.f32 %v4811, %v682
    %v4864 = vmul.f32 %v4808, %v687
    %v4865 = vmul.f32 %v4809, %v687
    %v4866 = vmul.f32 %v4806, %v692
    %v4867 = vmul.f32 %v4807, %v692
    %v4868 = vpack.c.bf16 %v4838, %v4836
    %v4869 = vpack.c.bf16 %v4839, %v4837
    %v4870 = vpack.c.bf16 %v4842, %v4840
    %v4871 = vpack.c.bf16 %v4843, %v4841
    %v4872 = vpack.c.bf16 %v4846, %v4844
    %v4873 = vpack.c.bf16 %v4847, %v4845
    %v4874 = vpack.c.bf16 %v4850, %v4848
    %v4875 = vpack.c.bf16 %v4851, %v4849
    %v4876 = vpack.c.bf16 %v4854, %v4852
    %v4877 = vpack.c.bf16 %v4855, %v4853
    %v4878 = vpack.c.bf16 %v4858, %v4856
    %v4879 = vpack.c.bf16 %v4859, %v4857
    %v4880 = vpack.c.bf16 %v4862, %v4860
    %v4881 = vpack.c.bf16 %v4863, %v4861
    %v4882 = vpack.c.bf16 %v4866, %v4864
    %v4883 = vpack.c.bf16 %v4867, %v4865
    %v4884 = vld [vmem:[#allocation10] sm:$0xff]
    %v4885 = vld [vmem:[#allocation10 + $0x8] sm:$0xff]
    %v4886 = vld [vmem:[#allocation10 + $0x10] sm:$0xff]
    %v4887 = vld [vmem:[#allocation10 + $0x18] sm:$0xff]
    %v4888 = vld [vmem:[#allocation10 + $0x20] sm:$0xff]
    %v4889 = vld [vmem:[#allocation10 + $0x28] sm:$0xff]
    %v4890 = vld [vmem:[#allocation10 + $0x30] sm:$0xff]
    %v4891 = vld [vmem:[#allocation10 + $0x38] sm:$0xff]
    %v4892 = vld [vmem:[#allocation10 + $0x40] sm:$0xff]
    %v4893 = vld [vmem:[#allocation10 + $0x48] sm:$0xff]
    %v4894 = vld [vmem:[#allocation10 + $0x50] sm:$0xff]
    %v4895 = vld [vmem:[#allocation10 + $0x58] sm:$0xff]
    %v4896 = vld [vmem:[#allocation10 + $0x60] sm:$0xff]
    %v4897 = vld [vmem:[#allocation10 + $0x68] sm:$0xff]
    %v4898 = vld [vmem:[#allocation10 + $0x70] sm:$0xff]
    %v4899 = vld [vmem:[#allocation10 + $0x78] sm:$0xff]
    %v4900 = vld [vmem:[#allocation10 + $0x80] sm:$0xff]
    %v4901 = vld [vmem:[#allocation10 + $0x88] sm:$0xff]
    %v4902 = vld [vmem:[#allocation10 + $0x90] sm:$0xff]
    %v4903 = vld [vmem:[#allocation10 + $0x98] sm:$0xff]
    %v4904 = vld [vmem:[#allocation10 + $0xa0] sm:$0xff]
    %v4905 = vld [vmem:[#allocation10 + $0xa8] sm:$0xff]
    %v4906 = vld [vmem:[#allocation10 + $0xb0] sm:$0xff]
    %v4907 = vld [vmem:[#allocation10 + $0xb8] sm:$0xff]
    %v4908 = vld [vmem:[#allocation10 + $0xc0] sm:$0xff]
    %v4909 = vld [vmem:[#allocation10 + $0xc8] sm:$0xff]
    %v4910 = vld [vmem:[#allocation10 + $0xd0] sm:$0xff]
    %v4911 = vld [vmem:[#allocation10 + $0xd8] sm:$0xff]
    %v4912 = vld [vmem:[#allocation10 + $0xe0] sm:$0xff]
    %v4913 = vld [vmem:[#allocation10 + $0xe8] sm:$0xff]
    %v4914 = vld [vmem:[#allocation10 + $0xf0] sm:$0xff]
    %v4915 = vld [vmem:[#allocation10 + $0xf8] sm:$0xff]
    %v4916 = vmul.f32 %v4770, %v777
    %v4917 = vmul.f32 %v4771, %v777
    %v4918 = vmul.f32 %v4740, %v782
    %v4919 = vmul.f32 %v4741, %v782
    %v4920 = vmul.f32 %v4742, %v787
    %v4921 = vmul.f32 %v4743, %v787
    %v4922 = vmul.f32 %v4744, %v792
    %v4923 = vmul.f32 %v4745, %v792
    %v4924 = vmul.f32 %v4746, %v797
    %v4925 = vmul.f32 %v4747, %v797
    %v4926 = vmul.f32 %v4748, %v802
    %v4927 = vmul.f32 %v4749, %v802
    %v4928 = vmul.f32 %v4750, %v807
    %v4929 = vmul.f32 %v4751, %v807
    %v4930 = vmul.f32 %v4752, %v812
    %v4931 = vmul.f32 %v4753, %v812
    %v4932 = vmul.f32 %v4754, %v817
    %v4933 = vmul.f32 %v4755, %v817
    %v4934 = vmul.f32 %v4756, %v822
    %v4935 = vmul.f32 %v4757, %v822
    %v4936 = vmul.f32 %v4758, %v827
    %v4937 = vmul.f32 %v4759, %v827
    %v4938 = vmul.f32 %v4760, %v832
    %v4939 = vmul.f32 %v4761, %v832
    %v4940 = vmul.f32 %v4762, %v837
    %v4941 = vmul.f32 %v4763, %v837
    %v4942 = vmul.f32 %v4764, %v842
    %v4943 = vmul.f32 %v4765, %v842
    %v4944 = vmul.f32 %v4766, %v847
    %v4945 = vmul.f32 %v4767, %v847
    %v4946 = vmul.f32 %v4768, %v852
    %v4947 = vmul.f32 %v4769, %v852
    %v4948 = vpack.c.bf16 %v4918, %v4916
    %v4949 = vpack.c.bf16 %v4919, %v4917
    %v4950 = vpack.c.bf16 %v4922, %v4920
    %v4951 = vpack.c.bf16 %v4923, %v4921
    %v4952 = vpack.c.bf16 %v4926, %v4924
    %v4953 = vpack.c.bf16 %v4927, %v4925
    %v4954 = vpack.c.bf16 %v4930, %v4928
    %v4955 = vpack.c.bf16 %v4931, %v4929
    %v4956 = vpack.c.bf16 %v4934, %v4932
    %v4957 = vpack.c.bf16 %v4935, %v4933
    %v4958 = vpack.c.bf16 %v4938, %v4936
    %v4959 = vpack.c.bf16 %v4939, %v4937
    %v4960 = vpack.c.bf16 %v4942, %v4940
    %v4961 = vpack.c.bf16 %v4943, %v4941
    %v4962 = vpack.c.bf16 %v4946, %v4944
    %v4963 = vpack.c.bf16 %v4947, %v4945
    %s4964 = scalar_lea.vmem [#allocation10], 256
    %v4965 = vld [vmem:[%s4964] sm:$0xff]
    %v4966 = vld [vmem:[%s4964 + $0x8] sm:$0xff]
    %v4967 = vld [vmem:[%s4964 + $0x10] sm:$0xff]
    %v4968 = vld [vmem:[%s4964 + $0x18] sm:$0xff]
    %v4969 = vld [vmem:[%s4964 + $0x20] sm:$0xff]
    %v4970 = vld [vmem:[%s4964 + $0x28] sm:$0xff]
    %v4971 = vld [vmem:[%s4964 + $0x30] sm:$0xff]
    %v4972 = vld [vmem:[%s4964 + $0x38] sm:$0xff]
    %v4973 = vld [vmem:[%s4964 + $0x40] sm:$0xff]
    %v4974 = vld [vmem:[%s4964 + $0x48] sm:$0xff]
    %v4975 = vld [vmem:[%s4964 + $0x50] sm:$0xff]
    %v4976 = vld [vmem:[%s4964 + $0x58] sm:$0xff]
    %v4977 = vld [vmem:[%s4964 + $0x60] sm:$0xff]
    %v4978 = vld [vmem:[%s4964 + $0x68] sm:$0xff]
    %v4979 = vld [vmem:[%s4964 + $0x70] sm:$0xff]
    %v4980 = vld [vmem:[%s4964 + $0x78] sm:$0xff]
    %v4981 = vld [vmem:[%s4964 + $0x80] sm:$0xff]
    %v4982 = vld [vmem:[%s4964 + $0x88] sm:$0xff]
    %v4983 = vld [vmem:[%s4964 + $0x90] sm:$0xff]
    %v4984 = vld [vmem:[%s4964 + $0x98] sm:$0xff]
    %v4985 = vld [vmem:[%s4964 + $0xa0] sm:$0xff]
    %v4986 = vld [vmem:[%s4964 + $0xa8] sm:$0xff]
    %v4987 = vld [vmem:[%s4964 + $0xb0] sm:$0xff]
    %v4988 = vld [vmem:[%s4964 + $0xb8] sm:$0xff]
    %v4989 = vld [vmem:[%s4964 + $0xc0] sm:$0xff]
    %v4990 = vld [vmem:[%s4964 + $0xc8] sm:$0xff]
    %v4991 = vld [vmem:[%s4964 + $0xd0] sm:$0xff]
    %v4992 = vld [vmem:[%s4964 + $0xd8] sm:$0xff]
    %v4993 = vld [vmem:[%s4964 + $0xe0] sm:$0xff]
    %v4994 = vld [vmem:[%s4964 + $0xe8] sm:$0xff]
    %v4995 = vld [vmem:[%s4964 + $0xf0] sm:$0xff]
    %v4996 = vld [vmem:[%s4964 + $0xf8] sm:$0xff]
    %v5029 = vunpack.c.l.b16 %v4965
    %v5030 = vunpack.c.h.b16 %v4965
    %v5031 = vunpack.c.l.b16 %v4966
    %v5032 = vunpack.c.h.b16 %v4966
    %v5033 = vunpack.c.l.b16 %v4967
    %v5034 = vunpack.c.h.b16 %v4967
    %v5035 = vunpack.c.l.b16 %v4968
    %v5036 = vunpack.c.h.b16 %v4968
    %v5037 = vunpack.c.l.b16 %v4969
    %v5038 = vunpack.c.h.b16 %v4969
    %v5039 = vunpack.c.l.b16 %v4970
    %v5040 = vunpack.c.h.b16 %v4970
    %v5041 = vunpack.c.l.b16 %v4971
    %v5042 = vunpack.c.h.b16 %v4971
    %v5043 = vunpack.c.l.b16 %v4972
    %v5044 = vunpack.c.h.b16 %v4972
    %v5045 = vunpack.c.l.b16 %v4973
    %v5046 = vunpack.c.h.b16 %v4973
    %v5047 = vunpack.c.l.b16 %v4974
    %v5048 = vunpack.c.h.b16 %v4974
    %v5049 = vunpack.c.l.b16 %v4975
    %v5050 = vunpack.c.h.b16 %v4975
    %v5051 = vunpack.c.l.b16 %v4976
    %v5052 = vunpack.c.h.b16 %v4976
    %v5053 = vunpack.c.l.b16 %v4977
    %v5054 = vunpack.c.h.b16 %v4977
    %v5055 = vunpack.c.l.b16 %v4978
    %v5056 = vunpack.c.h.b16 %v4978
    %v5057 = vunpack.c.l.b16 %v4979
    %v5058 = vunpack.c.h.b16 %v4979
    %v5059 = vunpack.c.l.b16 %v4980
    %v5060 = vunpack.c.h.b16 %v4980
    %v5061 = vunpack.c.l.b16 %v4981
    %v5062 = vunpack.c.h.b16 %v4981
    %v5063 = vunpack.c.l.b16 %v4982
    %v5064 = vunpack.c.h.b16 %v4982
    %v5065 = vunpack.c.l.b16 %v4983
    %v5066 = vunpack.c.h.b16 %v4983
    %v5067 = vunpack.c.l.b16 %v4984
    %v5068 = vunpack.c.h.b16 %v4984
    %v5069 = vunpack.c.l.b16 %v4985
    %v5070 = vunpack.c.h.b16 %v4985
    %v5071 = vunpack.c.l.b16 %v4986
    %v5072 = vunpack.c.h.b16 %v4986
    %v5073 = vunpack.c.l.b16 %v4987
    %v5074 = vunpack.c.h.b16 %v4987
    %v5075 = vunpack.c.l.b16 %v4988
    %v5076 = vunpack.c.h.b16 %v4988
    %v5077 = vunpack.c.l.b16 %v4989
    %v5078 = vunpack.c.h.b16 %v4989
    %v5079 = vunpack.c.l.b16 %v4990
    %v5080 = vunpack.c.h.b16 %v4990
    %v5081 = vunpack.c.l.b16 %v4991
    %v5082 = vunpack.c.h.b16 %v4991
    %v5083 = vunpack.c.l.b16 %v4992
    %v5084 = vunpack.c.h.b16 %v4992
    %v5085 = vunpack.c.l.b16 %v4993
    %v5086 = vunpack.c.h.b16 %v4993
    %v5087 = vunpack.c.l.b16 %v4994
    %v5088 = vunpack.c.h.b16 %v4994
    %v5089 = vunpack.c.l.b16 %v4995
    %v5090 = vunpack.c.h.b16 %v4995
    %v5091 = vunpack.c.l.b16 %v4996
    %v5092 = vunpack.c.h.b16 %v4996
    %v5093 = vpack.c.b16 %v5031, %v5029
    %v5094 = vpack.c.b16 %v5032, %v5030
    %v5095 = vpack.c.b16 %v5035, %v5033
    %v5096 = vpack.c.b16 %v5036, %v5034
    %v5097 = vpack.c.b16 %v5039, %v5037
    %v5098 = vpack.c.b16 %v5040, %v5038
    %v5099 = vpack.c.b16 %v5043, %v5041
    %v5100 = vpack.c.b16 %v5044, %v5042
    %v5101 = vpack.c.b16 %v5047, %v5045
    %v5102 = vpack.c.b16 %v5048, %v5046
    %v5103 = vpack.c.b16 %v5051, %v5049
    %v5104 = vpack.c.b16 %v5052, %v5050
    %v5105 = vpack.c.b16 %v5055, %v5053
    %v5106 = vpack.c.b16 %v5056, %v5054
    %v5107 = vpack.c.b16 %v5059, %v5057
    %v5108 = vpack.c.b16 %v5060, %v5058
    %v5109 = vpack.c.b16 %v5063, %v5061
    %v5110 = vpack.c.b16 %v5064, %v5062
    %v5111 = vpack.c.b16 %v5067, %v5065
    %v5112 = vpack.c.b16 %v5068, %v5066
    %v5113 = vpack.c.b16 %v5071, %v5069
    %v5114 = vpack.c.b16 %v5072, %v5070
    %v5115 = vpack.c.b16 %v5075, %v5073
    %v5116 = vpack.c.b16 %v5076, %v5074
    %v5117 = vpack.c.b16 %v5079, %v5077
    %v5118 = vpack.c.b16 %v5080, %v5078
    %v5119 = vpack.c.b16 %v5083, %v5081
    %v5120 = vpack.c.b16 %v5084, %v5082
    %v5121 = vpack.c.b16 %v5087, %v5085
    %v5122 = vpack.c.b16 %v5088, %v5086
    %v5123 = vpack.c.b16 %v5091, %v5089
    %v5124 = vpack.c.b16 %v5092, %v5090
    %5157 = vmatprep.subr.bf16.mxu0 %v5108
    %5158 = vmatpush1.bf16.msra.mxu0 %v5107
    %5159 = vmatprep.subr.bf16.mxu0 %v5106
    %5160 = vmatpush1.bf16.msra.mxu0 %v5105
    %5161 = vmatprep.subr.bf16.mxu0 %v5104
    %5162 = vmatpush1.bf16.msra.mxu0 %v5103
    %5163 = vmatprep.subr.bf16.mxu0 %v5102
    %5164 = vmatpush1.bf16.msra.mxu0 %v5101
    %5165 = vmatprep.subr.bf16.mxu0 %v5100
    %5166 = vmatpush1.bf16.msra.mxu0 %v5099
    %5167 = vmatprep.subr.bf16.mxu0 %v5098
    %5168 = vmatpush1.bf16.msra.mxu0 %v5097
    %5169 = vmatprep.subr.bf16.mxu0 %v5096
    %5170 = vmatpush1.bf16.msra.mxu0 %v5095
    %5171 = vmatprep.subr.bf16.mxu0 %v5094
    %5172 = vmatpush1.bf16.msra.mxu0 %v5093
    %5173 = vmatprep.subr.bf16.mxu0 %v5124
    %5174 = vmatpush2.bf16.msra.mxu0 %v5123
    %5175 = vmatprep.subr.bf16.mxu0 %v5122
    %5176 = vmatpush2.bf16.msra.mxu0 %v5121
    %5177 = vmatprep.subr.bf16.mxu0 %v5120
    %5178 = vmatpush2.bf16.msra.mxu0 %v5119
    %5179 = vmatprep.subr.bf16.mxu0 %v5118
    %5180 = vmatpush2.bf16.msra.mxu0 %v5117
    %5181 = vmatprep.subr.bf16.mxu0 %v5116
    %5182 = vmatpush2.bf16.msra.mxu0 %v5115
    %5183 = vmatprep.subr.bf16.mxu0 %v5114
    %5184 = vmatpush2.bf16.msra.mxu0 %v5113
    %5185 = vmatprep.subr.bf16.mxu0 %v5112
    %5186 = vmatpush2.bf16.msra.mxu0 %v5111
    %5187 = vmatprep.subr.bf16.mxu0 %v5110
    %5188 = vmatpush2.bf16.msra.mxu0 %v5109
    %5189 = vmatprep.mubr.bf16.mxu0 %v4949
    %5190 = vmatmul.mubr.bf16.gmra.mxu0 %v4948
    %v5191 = vpop.f32.mrf.mxu0
    %v5192 = vadd.f32 0.0, %v5191
    %v5193 = vpop.f32.mrf.mxu0
    %v5194 = vadd.f32 0.0, %v5193
    %v5195 = vpop.f32.mrf.mxu0
    %v5196 = vadd.f32 0.0, %v5195
    %v5197 = vpop.f32.mrf.mxu0
    %v5198 = vadd.f32 0.0, %v5197
    %5199 = vmatprep.mubr.bf16.mxu0 %v4951
    %5200 = vmatmul.mubr.bf16.gmra.mxu0 %v4950
    %v5201 = vpop.f32.mrf.mxu0
    %v5202 = vadd.f32 0.0, %v5201
    %v5203 = vpop.f32.mrf.mxu0
    %v5204 = vadd.f32 0.0, %v5203
    %v5205 = vpop.f32.mrf.mxu0
    %v5206 = vadd.f32 0.0, %v5205
    %v5207 = vpop.f32.mrf.mxu0
    %v5208 = vadd.f32 0.0, %v5207
    %5209 = vmatprep.mubr.bf16.mxu0 %v4953
    %5210 = vmatmul.mubr.bf16.gmra.mxu0 %v4952
    %v5211 = vpop.f32.mrf.mxu0
    %v5212 = vadd.f32 0.0, %v5211
    %v5213 = vpop.f32.mrf.mxu0
    %v5214 = vadd.f32 0.0, %v5213
    %v5215 = vpop.f32.mrf.mxu0
    %v5216 = vadd.f32 0.0, %v5215
    %v5217 = vpop.f32.mrf.mxu0
    %v5218 = vadd.f32 0.0, %v5217
    %5219 = vmatprep.mubr.bf16.mxu0 %v4955
    %5220 = vmatmul.mubr.bf16.gmra.mxu0 %v4954
    %v5221 = vpop.f32.mrf.mxu0
    %v5222 = vadd.f32 0.0, %v5221
    %v5223 = vpop.f32.mrf.mxu0
    %v5224 = vadd.f32 0.0, %v5223
    %v5225 = vpop.f32.mrf.mxu0
    %v5226 = vadd.f32 0.0, %v5225
    %v5227 = vpop.f32.mrf.mxu0
    %v5228 = vadd.f32 0.0, %v5227
    %5229 = vmatprep.mubr.bf16.mxu0 %v4957
    %5230 = vmatmul.mubr.bf16.gmra.mxu0 %v4956
    %v5231 = vpop.f32.mrf.mxu0
    %v5232 = vadd.f32 0.0, %v5231
    %v5233 = vpop.f32.mrf.mxu0
    %v5234 = vadd.f32 0.0, %v5233
    %v5235 = vpop.f32.mrf.mxu0
    %v5236 = vadd.f32 0.0, %v5235
    %v5237 = vpop.f32.mrf.mxu0
    %v5238 = vadd.f32 0.0, %v5237
    %5239 = vmatprep.mubr.bf16.mxu0 %v4959
    %5240 = vmatmul.mubr.bf16.gmra.mxu0 %v4958
    %v5241 = vpop.f32.mrf.mxu0
    %v5242 = vadd.f32 0.0, %v5241
    %v5243 = vpop.f32.mrf.mxu0
    %v5244 = vadd.f32 0.0, %v5243
    %v5245 = vpop.f32.mrf.mxu0
    %v5246 = vadd.f32 0.0, %v5245
    %v5247 = vpop.f32.mrf.mxu0
    %v5248 = vadd.f32 0.0, %v5247
    %5249 = vmatprep.mubr.bf16.mxu0 %v4961
    %5250 = vmatmul.mubr.bf16.gmra.mxu0 %v4960
    %v5251 = vpop.f32.mrf.mxu0
    %v5252 = vadd.f32 0.0, %v5251
    %v5253 = vpop.f32.mrf.mxu0
    %v5254 = vadd.f32 0.0, %v5253
    %v5255 = vpop.f32.mrf.mxu0
    %v5256 = vadd.f32 0.0, %v5255
    %v5257 = vpop.f32.mrf.mxu0
    %v5258 = vadd.f32 0.0, %v5257
    %5259 = vmatprep.mubr.bf16.mxu0 %v4963
    %5260 = vmatmul.mubr.bf16.gmra.mxu0 %v4962
    %v5261 = vpop.f32.mrf.mxu0
    %v5262 = vadd.f32 0.0, %v5261
    %v5263 = vpop.f32.mrf.mxu0
    %v5264 = vadd.f32 0.0, %v5263
    %v5265 = vpop.f32.mrf.mxu0
    %v5266 = vadd.f32 0.0, %v5265
    %v5267 = vpop.f32.mrf.mxu0
    %v5268 = vadd.f32 0.0, %v5267
    %5269 = vdwg.mxu0
    %v5302 = vunpack.c.l.b16 %v4884
    %v5303 = vunpack.c.h.b16 %v4884
    %v5304 = vunpack.c.l.b16 %v4885
    %v5305 = vunpack.c.h.b16 %v4885
    %v5306 = vunpack.c.l.b16 %v4886
    %v5307 = vunpack.c.h.b16 %v4886
    %v5308 = vunpack.c.l.b16 %v4887
    %v5309 = vunpack.c.h.b16 %v4887
    %v5310 = vunpack.c.l.b16 %v4888
    %v5311 = vunpack.c.h.b16 %v4888
    %v5312 = vunpack.c.l.b16 %v4889
    %v5313 = vunpack.c.h.b16 %v4889
    %v5314 = vunpack.c.l.b16 %v4890
    %v5315 = vunpack.c.h.b16 %v4890
    %v5316 = vunpack.c.l.b16 %v4891
    %v5317 = vunpack.c.h.b16 %v4891
    %v5318 = vunpack.c.l.b16 %v4892
    %v5319 = vunpack.c.h.b16 %v4892
    %v5320 = vunpack.c.l.b16 %v4893
    %v5321 = vunpack.c.h.b16 %v4893
    %v5322 = vunpack.c.l.b16 %v4894
    %v5323 = vunpack.c.h.b16 %v4894
    %v5324 = vunpack.c.l.b16 %v4895
    %v5325 = vunpack.c.h.b16 %v4895
    %v5326 = vunpack.c.l.b16 %v4896
    %v5327 = vunpack.c.h.b16 %v4896
    %v5328 = vunpack.c.l.b16 %v4897
    %v5329 = vunpack.c.h.b16 %v4897
    %v5330 = vunpack.c.l.b16 %v4898
    %v5331 = vunpack.c.h.b16 %v4898
    %v5332 = vunpack.c.l.b16 %v4899
    %v5333 = vunpack.c.h.b16 %v4899
    %v5334 = vunpack.c.l.b16 %v4900
    %v5335 = vunpack.c.h.b16 %v4900
    %v5336 = vunpack.c.l.b16 %v4901
    %v5337 = vunpack.c.h.b16 %v4901
    %v5338 = vunpack.c.l.b16 %v4902
    %v5339 = vunpack.c.h.b16 %v4902
    %v5340 = vunpack.c.l.b16 %v4903
    %v5341 = vunpack.c.h.b16 %v4903
    %v5342 = vunpack.c.l.b16 %v4904
    %v5343 = vunpack.c.h.b16 %v4904
    %v5344 = vunpack.c.l.b16 %v4905
    %v5345 = vunpack.c.h.b16 %v4905
    %v5346 = vunpack.c.l.b16 %v4906
    %v5347 = vunpack.c.h.b16 %v4906
    %v5348 = vunpack.c.l.b16 %v4907
    %v5349 = vunpack.c.h.b16 %v4907
    %v5350 = vunpack.c.l.b16 %v4908
    %v5351 = vunpack.c.h.b16 %v4908
    %v5352 = vunpack.c.l.b16 %v4909
    %v5353 = vunpack.c.h.b16 %v4909
    %v5354 = vunpack.c.l.b16 %v4910
    %v5355 = vunpack.c.h.b16 %v4910
    %v5356 = vunpack.c.l.b16 %v4911
    %v5357 = vunpack.c.h.b16 %v4911
    %v5358 = vunpack.c.l.b16 %v4912
    %v5359 = vunpack.c.h.b16 %v4912
    %v5360 = vunpack.c.l.b16 %v4913
    %v5361 = vunpack.c.h.b16 %v4913
    %v5362 = vunpack.c.l.b16 %v4914
    %v5363 = vunpack.c.h.b16 %v4914
    %v5364 = vunpack.c.l.b16 %v4915
    %v5365 = vunpack.c.h.b16 %v4915
    %v5366 = vpack.c.b16 %v5304, %v5302
    %v5367 = vpack.c.b16 %v5305, %v5303
    %v5368 = vpack.c.b16 %v5308, %v5306
    %v5369 = vpack.c.b16 %v5309, %v5307
    %v5370 = vpack.c.b16 %v5312, %v5310
    %v5371 = vpack.c.b16 %v5313, %v5311
    %v5372 = vpack.c.b16 %v5316, %v5314
    %v5373 = vpack.c.b16 %v5317, %v5315
    %v5374 = vpack.c.b16 %v5320, %v5318
    %v5375 = vpack.c.b16 %v5321, %v5319
    %v5376 = vpack.c.b16 %v5324, %v5322
    %v5377 = vpack.c.b16 %v5325, %v5323
    %v5378 = vpack.c.b16 %v5328, %v5326
    %v5379 = vpack.c.b16 %v5329, %v5327
    %v5380 = vpack.c.b16 %v5332, %v5330
    %v5381 = vpack.c.b16 %v5333, %v5331
    %v5382 = vpack.c.b16 %v5336, %v5334
    %v5383 = vpack.c.b16 %v5337, %v5335
    %v5384 = vpack.c.b16 %v5340, %v5338
    %v5385 = vpack.c.b16 %v5341, %v5339
    %v5386 = vpack.c.b16 %v5344, %v5342
    %v5387 = vpack.c.b16 %v5345, %v5343
    %v5388 = vpack.c.b16 %v5348, %v5346
    %v5389 = vpack.c.b16 %v5349, %v5347
    %v5390 = vpack.c.b16 %v5352, %v5350
    %v5391 = vpack.c.b16 %v5353, %v5351
    %v5392 = vpack.c.b16 %v5356, %v5354
    %v5393 = vpack.c.b16 %v5357, %v5355
    %v5394 = vpack.c.b16 %v5360, %v5358
    %v5395 = vpack.c.b16 %v5361, %v5359
    %v5396 = vpack.c.b16 %v5364, %v5362
    %v5397 = vpack.c.b16 %v5365, %v5363
    %5430 = vmatprep.subr.bf16.mxu0 %v5381
    %5431 = vmatpush1.bf16.msra.mxu0 %v5380
    %5432 = vmatprep.subr.bf16.mxu0 %v5379
    %5433 = vmatpush1.bf16.msra.mxu0 %v5378
    %5434 = vmatprep.subr.bf16.mxu0 %v5377
    %5435 = vmatpush1.bf16.msra.mxu0 %v5376
    %5436 = vmatprep.subr.bf16.mxu0 %v5375
    %5437 = vmatpush1.bf16.msra.mxu0 %v5374
    %5438 = vmatprep.subr.bf16.mxu0 %v5373
    %5439 = vmatpush1.bf16.msra.mxu0 %v5372
    %5440 = vmatprep.subr.bf16.mxu0 %v5371
    %5441 = vmatpush1.bf16.msra.mxu0 %v5370
    %5442 = vmatprep.subr.bf16.mxu0 %v5369
    %5443 = vmatpush1.bf16.msra.mxu0 %v5368
    %5444 = vmatprep.subr.bf16.mxu0 %v5367
    %5445 = vmatpush1.bf16.msra.mxu0 %v5366
    %5446 = vmatprep.subr.bf16.mxu0 %v5397
    %5447 = vmatpush2.bf16.msra.mxu0 %v5396
    %5448 = vmatprep.subr.bf16.mxu0 %v5395
    %5449 = vmatpush2.bf16.msra.mxu0 %v5394
    %5450 = vmatprep.subr.bf16.mxu0 %v5393
    %5451 = vmatpush2.bf16.msra.mxu0 %v5392
    %5452 = vmatprep.subr.bf16.mxu0 %v5391
    %5453 = vmatpush2.bf16.msra.mxu0 %v5390
    %5454 = vmatprep.subr.bf16.mxu0 %v5389
    %5455 = vmatpush2.bf16.msra.mxu0 %v5388
    %5456 = vmatprep.subr.bf16.mxu0 %v5387
    %5457 = vmatpush2.bf16.msra.mxu0 %v5386
    %5458 = vmatprep.subr.bf16.mxu0 %v5385
    %5459 = vmatpush2.bf16.msra.mxu0 %v5384
    %5460 = vmatprep.subr.bf16.mxu0 %v5383
    %5461 = vmatpush2.bf16.msra.mxu0 %v5382
    %5462 = vmatprep.mubr.bf16.mxu0 %v4869
    %5463 = vmatmul.mubr.bf16.gmra.mxu0 %v4868
    %v5464 = vpop.f32.mrf.mxu0
    %v5465 = vadd.f32 %v5192, %v5464
    %v5466 = vpop.f32.mrf.mxu0
    %v5467 = vadd.f32 %v5194, %v5466
    %v5468 = vpop.f32.mrf.mxu0
    %v5469 = vadd.f32 %v5196, %v5468
    %v5470 = vpop.f32.mrf.mxu0
    %v5471 = vadd.f32 %v5198, %v5470
    %5472 = vmatprep.mubr.bf16.mxu0 %v4871
    %5473 = vmatmul.mubr.bf16.gmra.mxu0 %v4870
    %v5474 = vpop.f32.mrf.mxu0
    %v5475 = vadd.f32 %v5202, %v5474
    %v5476 = vpop.f32.mrf.mxu0
    %v5477 = vadd.f32 %v5204, %v5476
    %v5478 = vpop.f32.mrf.mxu0
    %v5479 = vadd.f32 %v5206, %v5478
    %v5480 = vpop.f32.mrf.mxu0
    %v5481 = vadd.f32 %v5208, %v5480
    %5482 = vmatprep.mubr.bf16.mxu0 %v4873
    %5483 = vmatmul.mubr.bf16.gmra.mxu0 %v4872
    %v5484 = vpop.f32.mrf.mxu0
    %v5485 = vadd.f32 %v5212, %v5484
    %v5486 = vpop.f32.mrf.mxu0
    %v5487 = vadd.f32 %v5214, %v5486
    %v5488 = vpop.f32.mrf.mxu0
    %v5489 = vadd.f32 %v5216, %v5488
    %v5490 = vpop.f32.mrf.mxu0
    %v5491 = vadd.f32 %v5218, %v5490
    %5492 = vmatprep.mubr.bf16.mxu0 %v4875
    %5493 = vmatmul.mubr.bf16.gmra.mxu0 %v4874
    %v5494 = vpop.f32.mrf.mxu0
    %v5495 = vadd.f32 %v5222, %v5494
    %v5496 = vpop.f32.mrf.mxu0
    %v5497 = vadd.f32 %v5224, %v5496
    %v5498 = vpop.f32.mrf.mxu0
    %v5499 = vadd.f32 %v5226, %v5498
    %v5500 = vpop.f32.mrf.mxu0
    %v5501 = vadd.f32 %v5228, %v5500
    %5502 = vmatprep.mubr.bf16.mxu0 %v4877
    %5503 = vmatmul.mubr.bf16.gmra.mxu0 %v4876
    %v5504 = vpop.f32.mrf.mxu0
    %v5505 = vadd.f32 %v5232, %v5504
    %v5506 = vpop.f32.mrf.mxu0
    %v5507 = vadd.f32 %v5234, %v5506
    %v5508 = vpop.f32.mrf.mxu0
    %v5509 = vadd.f32 %v5236, %v5508
    %v5510 = vpop.f32.mrf.mxu0
    %v5511 = vadd.f32 %v5238, %v5510
    %5512 = vmatprep.mubr.bf16.mxu0 %v4879
    %5513 = vmatmul.mubr.bf16.gmra.mxu0 %v4878
    %v5514 = vpop.f32.mrf.mxu0
    %v5515 = vadd.f32 %v5242, %v5514
    %v5516 = vpop.f32.mrf.mxu0
    %v5517 = vadd.f32 %v5244, %v5516
    %v5518 = vpop.f32.mrf.mxu0
    %v5519 = vadd.f32 %v5246, %v5518
    %v5520 = vpop.f32.mrf.mxu0
    %v5521 = vadd.f32 %v5248, %v5520
    %5522 = vmatprep.mubr.bf16.mxu0 %v4881
    %5523 = vmatmul.mubr.bf16.gmra.mxu0 %v4880
    %v5524 = vpop.f32.mrf.mxu0
    %v5525 = vadd.f32 %v5252, %v5524
    %v5526 = vpop.f32.mrf.mxu0
    %v5527 = vadd.f32 %v5254, %v5526
    %v5528 = vpop.f32.mrf.mxu0
    %v5529 = vadd.f32 %v5256, %v5528
    %v5530 = vpop.f32.mrf.mxu0
    %v5531 = vadd.f32 %v5258, %v5530
    %5532 = vmatprep.mubr.bf16.mxu0 %v4883
    %5533 = vmatmul.mubr.bf16.gmra.mxu0 %v4882
    %v5534 = vpop.f32.mrf.mxu0
    %v5535 = vadd.f32 %v5262, %v5534
    %v5536 = vpop.f32.mrf.mxu0
    %v5537 = vadd.f32 %v5264, %v5536
    %v5538 = vpop.f32.mrf.mxu0
    %v5539 = vadd.f32 %v5266, %v5538
    %v5540 = vpop.f32.mrf.mxu0
    %v5541 = vadd.f32 %v5268, %v5540
    %5542 = vdwg.mxu0
    %v5543 = vrot.slane %v4740, 1
    %v5544 = vrot.slane %v4741, 1
    %v5545 = vrot.slane %v4742, 1
    %v5546 = vrot.slane %v4743, 1
    %v5547 = vrot.slane %v4744, 1
    %v5548 = vrot.slane %v4745, 1
    %v5549 = vrot.slane %v4746, 1
    %v5550 = vrot.slane %v4747, 1
    %v5551 = vrot.slane %v4748, 1
    %v5552 = vrot.slane %v4749, 1
    %v5553 = vrot.slane %v4750, 1
    %v5554 = vrot.slane %v4751, 1
    %v5555 = vrot.slane %v4752, 1
    %v5556 = vrot.slane %v4753, 1
    %v5557 = vrot.slane %v4754, 1
    %v5558 = vrot.slane %v4755, 1
    %v5559 = vrot.slane %v4756, 1
    %v5560 = vrot.slane %v4757, 1
    %v5561 = vrot.slane %v4758, 1
    %v5562 = vrot.slane %v4759, 1
    %v5563 = vrot.slane %v4760, 1
    %v5564 = vrot.slane %v4761, 1
    %v5565 = vrot.slane %v4762, 1
    %v5566 = vrot.slane %v4763, 1
    %v5567 = vrot.slane %v4764, 1
    %v5568 = vrot.slane %v4765, 1
    %v5569 = vrot.slane %v4766, 1
    %v5570 = vrot.slane %v4767, 1
    %v5571 = vrot.slane %v4768, 1
    %v5572 = vrot.slane %v4769, 1
    %v5573 = vrot.slane %v4770, 1
    %v5574 = vrot.slane %v4771, 1
    %v5575 = vsel %vm1513, %v5571, %v5573
    %v5576 = vsel %vm1513, %v5572, %v5574
    %v5577 = vsel %vm1513, %v5569, %v5571
    %v5578 = vsel %vm1513, %v5570, %v5572
    %v5579 = vsel %vm1513, %v5567, %v5569
    %v5580 = vsel %vm1513, %v5568, %v5570
    %v5581 = vsel %vm1513, %v5565, %v5567
    %v5582 = vsel %vm1513, %v5566, %v5568
    %v5583 = vsel %vm1513, %v5563, %v5565
    %v5584 = vsel %vm1513, %v5564, %v5566
    %v5585 = vsel %vm1513, %v5561, %v5563
    %v5586 = vsel %vm1513, %v5562, %v5564
    %v5587 = vsel %vm1513, %v5559, %v5561
    %v5588 = vsel %vm1513, %v5560, %v5562
    %v5589 = vsel %vm1513, %v5557, %v5559
    %v5590 = vsel %vm1513, %v5558, %v5560
    %v5591 = vsel %vm1513, %v5555, %v5557
    %v5592 = vsel %vm1513, %v5556, %v5558
    %v5593 = vsel %vm1513, %v5553, %v5555
    %v5594 = vsel %vm1513, %v5554, %v5556
    %v5595 = vsel %vm1513, %v5551, %v5553
    %v5596 = vsel %vm1513, %v5552, %v5554
    %v5597 = vsel %vm1513, %v5549, %v5551
    %v5598 = vsel %vm1513, %v5550, %v5552
    %v5599 = vsel %vm1513, %v5547, %v5549
    %v5600 = vsel %vm1513, %v5548, %v5550
    %v5601 = vsel %vm1513, %v5545, %v5547
    %v5602 = vsel %vm1513, %v5546, %v5548
    %v5603 = vsel %vm1513, %v5543, %v5545
    %v5604 = vsel %vm1513, %v5544, %v5546
    %v5605 = vsel %vm1513, %v5573, %v5543
    %v5606 = vsel %vm1513, %v5574, %v5544
    %v5607 = vmul.f32 %v5605, %v1549
    %v5608 = vmul.f32 %v5606, %v1549
    %v5609 = vmul.f32 %v5603, %v1554
    %v5610 = vmul.f32 %v5604, %v1554
    %v5611 = vmul.f32 %v5601, %v1559
    %v5612 = vmul.f32 %v5602, %v1559
    %v5613 = vmul.f32 %v5599, %v1564
    %v5614 = vmul.f32 %v5600, %v1564
    %v5615 = vmul.f32 %v5597, %v1569
    %v5616 = vmul.f32 %v5598, %v1569
    %v5617 = vmul.f32 %v5595, %v1574
    %v5618 = vmul.f32 %v5596, %v1574
    %v5619 = vmul.f32 %v5593, %v1579
    %v5620 = vmul.f32 %v5594, %v1579
    %v5621 = vmul.f32 %v5591, %v1584
    %v5622 = vmul.f32 %v5592, %v1584
    %v5623 = vmul.f32 %v5589, %v1589
    %v5624 = vmul.f32 %v5590, %v1589
    %v5625 = vmul.f32 %v5587, %v1594
    %v5626 = vmul.f32 %v5588, %v1594
    %v5627 = vmul.f32 %v5585, %v1599
    %v5628 = vmul.f32 %v5586, %v1599
    %v5629 = vmul.f32 %v5583, %v1604
    %v5630 = vmul.f32 %v5584, %v1604
    %v5631 = vmul.f32 %v5581, %v1609
    %v5632 = vmul.f32 %v5582, %v1609
    %v5633 = vmul.f32 %v5579, %v1614
    %v5634 = vmul.f32 %v5580, %v1614
    %v5635 = vmul.f32 %v5577, %v1619
    %v5636 = vmul.f32 %v5578, %v1619
    %v5637 = vmul.f32 %v5575, %v1624
    %v5638 = vmul.f32 %v5576, %v1624
    %v5639 = vpack.c.bf16 %v5609, %v5607
    %v5640 = vpack.c.bf16 %v5610, %v5608
    %v5641 = vpack.c.bf16 %v5613, %v5611
    %v5642 = vpack.c.bf16 %v5614, %v5612
    %v5643 = vpack.c.bf16 %v5617, %v5615
    %v5644 = vpack.c.bf16 %v5618, %v5616
    %v5645 = vpack.c.bf16 %v5621, %v5619
    %v5646 = vpack.c.bf16 %v5622, %v5620
    %v5647 = vpack.c.bf16 %v5625, %v5623
    %v5648 = vpack.c.bf16 %v5626, %v5624
    %v5649 = vpack.c.bf16 %v5629, %v5627
    %v5650 = vpack.c.bf16 %v5630, %v5628
    %v5651 = vpack.c.bf16 %v5633, %v5631
    %v5652 = vpack.c.bf16 %v5634, %v5632
    %v5653 = vpack.c.bf16 %v5637, %v5635
    %v5654 = vpack.c.bf16 %v5638, %v5636
    %s5655 = scalar_lea.vmem [#allocation10], 512
    %v5656 = vld [vmem:[%s5655] sm:$0xff]
    %v5657 = vld [vmem:[%s5655 + $0x8] sm:$0xff]
    %v5658 = vld [vmem:[%s5655 + $0x10] sm:$0xff]
    %v5659 = vld [vmem:[%s5655 + $0x18] sm:$0xff]
    %v5660 = vld [vmem:[%s5655 + $0x20] sm:$0xff]
    %v5661 = vld [vmem:[%s5655 + $0x28] sm:$0xff]
    %v5662 = vld [vmem:[%s5655 + $0x30] sm:$0xff]
    %v5663 = vld [vmem:[%s5655 + $0x38] sm:$0xff]
    %v5664 = vld [vmem:[%s5655 + $0x40] sm:$0xff]
    %v5665 = vld [vmem:[%s5655 + $0x48] sm:$0xff]
    %v5666 = vld [vmem:[%s5655 + $0x50] sm:$0xff]
    %v5667 = vld [vmem:[%s5655 + $0x58] sm:$0xff]
    %v5668 = vld [vmem:[%s5655 + $0x60] sm:$0xff]
    %v5669 = vld [vmem:[%s5655 + $0x68] sm:$0xff]
    %v5670 = vld [vmem:[%s5655 + $0x70] sm:$0xff]
    %v5671 = vld [vmem:[%s5655 + $0x78] sm:$0xff]
    %v5672 = vld [vmem:[%s5655 + $0x80] sm:$0xff]
    %v5673 = vld [vmem:[%s5655 + $0x88] sm:$0xff]
    %v5674 = vld [vmem:[%s5655 + $0x90] sm:$0xff]
    %v5675 = vld [vmem:[%s5655 + $0x98] sm:$0xff]
    %v5676 = vld [vmem:[%s5655 + $0xa0] sm:$0xff]
    %v5677 = vld [vmem:[%s5655 + $0xa8] sm:$0xff]
    %v5678 = vld [vmem:[%s5655 + $0xb0] sm:$0xff]
    %v5679 = vld [vmem:[%s5655 + $0xb8] sm:$0xff]
    %v5680 = vld [vmem:[%s5655 + $0xc0] sm:$0xff]
    %v5681 = vld [vmem:[%s5655 + $0xc8] sm:$0xff]
    %v5682 = vld [vmem:[%s5655 + $0xd0] sm:$0xff]
    %v5683 = vld [vmem:[%s5655 + $0xd8] sm:$0xff]
    %v5684 = vld [vmem:[%s5655 + $0xe0] sm:$0xff]
    %v5685 = vld [vmem:[%s5655 + $0xe8] sm:$0xff]
    %v5686 = vld [vmem:[%s5655 + $0xf0] sm:$0xff]
    %v5687 = vld [vmem:[%s5655 + $0xf8] sm:$0xff]
    %v5720 = vunpack.c.l.b16 %v5656
    %v5721 = vunpack.c.h.b16 %v5656
    %v5722 = vunpack.c.l.b16 %v5657
    %v5723 = vunpack.c.h.b16 %v5657
    %v5724 = vunpack.c.l.b16 %v5658
    %v5725 = vunpack.c.h.b16 %v5658
    %v5726 = vunpack.c.l.b16 %v5659
    %v5727 = vunpack.c.h.b16 %v5659
    %v5728 = vunpack.c.l.b16 %v5660
    %v5729 = vunpack.c.h.b16 %v5660
    %v5730 = vunpack.c.l.b16 %v5661
    %v5731 = vunpack.c.h.b16 %v5661
    %v5732 = vunpack.c.l.b16 %v5662
    %v5733 = vunpack.c.h.b16 %v5662
    %v5734 = vunpack.c.l.b16 %v5663
    %v5735 = vunpack.c.h.b16 %v5663
    %v5736 = vunpack.c.l.b16 %v5664
    %v5737 = vunpack.c.h.b16 %v5664
    %v5738 = vunpack.c.l.b16 %v5665
    %v5739 = vunpack.c.h.b16 %v5665
    %v5740 = vunpack.c.l.b16 %v5666
    %v5741 = vunpack.c.h.b16 %v5666
    %v5742 = vunpack.c.l.b16 %v5667
    %v5743 = vunpack.c.h.b16 %v5667
    %v5744 = vunpack.c.l.b16 %v5668
    %v5745 = vunpack.c.h.b16 %v5668
    %v5746 = vunpack.c.l.b16 %v5669
    %v5747 = vunpack.c.h.b16 %v5669
    %v5748 = vunpack.c.l.b16 %v5670
    %v5749 = vunpack.c.h.b16 %v5670
    %v5750 = vunpack.c.l.b16 %v5671
    %v5751 = vunpack.c.h.b16 %v5671
    %v5752 = vunpack.c.l.b16 %v5672
    %v5753 = vunpack.c.h.b16 %v5672
    %v5754 = vunpack.c.l.b16 %v5673
    %v5755 = vunpack.c.h.b16 %v5673
    %v5756 = vunpack.c.l.b16 %v5674
    %v5757 = vunpack.c.h.b16 %v5674
    %v5758 = vunpack.c.l.b16 %v5675
    %v5759 = vunpack.c.h.b16 %v5675
    %v5760 = vunpack.c.l.b16 %v5676
    %v5761 = vunpack.c.h.b16 %v5676
    %v5762 = vunpack.c.l.b16 %v5677
    %v5763 = vunpack.c.h.b16 %v5677
    %v5764 = vunpack.c.l.b16 %v5678
    %v5765 = vunpack.c.h.b16 %v5678
    %v5766 = vunpack.c.l.b16 %v5679
    %v5767 = vunpack.c.h.b16 %v5679
    %v5768 = vunpack.c.l.b16 %v5680
    %v5769 = vunpack.c.h.b16 %v5680
    %v5770 = vunpack.c.l.b16 %v5681
    %v5771 = vunpack.c.h.b16 %v5681
    %v5772 = vunpack.c.l.b16 %v5682
    %v5773 = vunpack.c.h.b16 %v5682
    %v5774 = vunpack.c.l.b16 %v5683
    %v5775 = vunpack.c.h.b16 %v5683
    %v5776 = vunpack.c.l.b16 %v5684
    %v5777 = vunpack.c.h.b16 %v5684
    %v5778 = vunpack.c.l.b16 %v5685
    %v5779 = vunpack.c.h.b16 %v5685
    %v5780 = vunpack.c.l.b16 %v5686
    %v5781 = vunpack.c.h.b16 %v5686
    %v5782 = vunpack.c.l.b16 %v5687
    %v5783 = vunpack.c.h.b16 %v5687
    %v5784 = vpack.c.b16 %v5722, %v5720
    %v5785 = vpack.c.b16 %v5723, %v5721
    %v5786 = vpack.c.b16 %v5726, %v5724
    %v5787 = vpack.c.b16 %v5727, %v5725
    %v5788 = vpack.c.b16 %v5730, %v5728
    %v5789 = vpack.c.b16 %v5731, %v5729
    %v5790 = vpack.c.b16 %v5734, %v5732
    %v5791 = vpack.c.b16 %v5735, %v5733
    %v5792 = vpack.c.b16 %v5738, %v5736
    %v5793 = vpack.c.b16 %v5739, %v5737
    %v5794 = vpack.c.b16 %v5742, %v5740
    %v5795 = vpack.c.b16 %v5743, %v5741
    %v5796 = vpack.c.b16 %v5746, %v5744
    %v5797 = vpack.c.b16 %v5747, %v5745
    %v5798 = vpack.c.b16 %v5750, %v5748
    %v5799 = vpack.c.b16 %v5751, %v5749
    %v5800 = vpack.c.b16 %v5754, %v5752
    %v5801 = vpack.c.b16 %v5755, %v5753
    %v5802 = vpack.c.b16 %v5758, %v5756
    %v5803 = vpack.c.b16 %v5759, %v5757
    %v5804 = vpack.c.b16 %v5762, %v5760
    %v5805 = vpack.c.b16 %v5763, %v5761
    %v5806 = vpack.c.b16 %v5766, %v5764
    %v5807 = vpack.c.b16 %v5767, %v5765
    %v5808 = vpack.c.b16 %v5770, %v5768
    %v5809 = vpack.c.b16 %v5771, %v5769
    %v5810 = vpack.c.b16 %v5774, %v5772
    %v5811 = vpack.c.b16 %v5775, %v5773
    %v5812 = vpack.c.b16 %v5778, %v5776
    %v5813 = vpack.c.b16 %v5779, %v5777
    %v5814 = vpack.c.b16 %v5782, %v5780
    %v5815 = vpack.c.b16 %v5783, %v5781
    %5848 = vmatprep.subr.bf16.mxu0 %v5799
    %5849 = vmatpush1.bf16.msra.mxu0 %v5798
    %5850 = vmatprep.subr.bf16.mxu0 %v5797
    %5851 = vmatpush1.bf16.msra.mxu0 %v5796
    %5852 = vmatprep.subr.bf16.mxu0 %v5795
    %5853 = vmatpush1.bf16.msra.mxu0 %v5794
    %5854 = vmatprep.subr.bf16.mxu0 %v5793
    %5855 = vmatpush1.bf16.msra.mxu0 %v5792
    %5856 = vmatprep.subr.bf16.mxu0 %v5791
    %5857 = vmatpush1.bf16.msra.mxu0 %v5790
    %5858 = vmatprep.subr.bf16.mxu0 %v5789
    %5859 = vmatpush1.bf16.msra.mxu0 %v5788
    %5860 = vmatprep.subr.bf16.mxu0 %v5787
    %5861 = vmatpush1.bf16.msra.mxu0 %v5786
    %5862 = vmatprep.subr.bf16.mxu0 %v5785
    %5863 = vmatpush1.bf16.msra.mxu0 %v5784
    %5864 = vmatprep.subr.bf16.mxu0 %v5815
    %5865 = vmatpush2.bf16.msra.mxu0 %v5814
    %5866 = vmatprep.subr.bf16.mxu0 %v5813
    %5867 = vmatpush2.bf16.msra.mxu0 %v5812
    %5868 = vmatprep.subr.bf16.mxu0 %v5811
    %5869 = vmatpush2.bf16.msra.mxu0 %v5810
    %5870 = vmatprep.subr.bf16.mxu0 %v5809
    %5871 = vmatpush2.bf16.msra.mxu0 %v5808
    %5872 = vmatprep.subr.bf16.mxu0 %v5807
    %5873 = vmatpush2.bf16.msra.mxu0 %v5806
    %5874 = vmatprep.subr.bf16.mxu0 %v5805
    %5875 = vmatpush2.bf16.msra.mxu0 %v5804
    %5876 = vmatprep.subr.bf16.mxu0 %v5803
    %5877 = vmatpush2.bf16.msra.mxu0 %v5802
    %5878 = vmatprep.subr.bf16.mxu0 %v5801
    %5879 = vmatpush2.bf16.msra.mxu0 %v5800
    %5880 = vmatprep.mubr.bf16.mxu0 %v5640
    %5881 = vmatmul.mubr.bf16.gmra.mxu0 %v5639
    %v5882 = vpop.f32.mrf.mxu0
    %v5883 = vadd.f32 0.0, %v5882
    %v5884 = vpop.f32.mrf.mxu0
    %v5885 = vadd.f32 0.0, %v5884
    %v5886 = vpop.f32.mrf.mxu0
    %v5887 = vadd.f32 0.0, %v5886
    %v5888 = vpop.f32.mrf.mxu0
    %v5889 = vadd.f32 0.0, %v5888
    %5890 = vmatprep.mubr.bf16.mxu0 %v5642
    %5891 = vmatmul.mubr.bf16.gmra.mxu0 %v5641
    %v5892 = vpop.f32.mrf.mxu0
    %v5893 = vadd.f32 0.0, %v5892
    %v5894 = vpop.f32.mrf.mxu0
    %v5895 = vadd.f32 0.0, %v5894
    %v5896 = vpop.f32.mrf.mxu0
    %v5897 = vadd.f32 0.0, %v5896
    %v5898 = vpop.f32.mrf.mxu0
    %v5899 = vadd.f32 0.0, %v5898
    %5900 = vmatprep.mubr.bf16.mxu0 %v5644
    %5901 = vmatmul.mubr.bf16.gmra.mxu0 %v5643
    %v5902 = vpop.f32.mrf.mxu0
    %v5903 = vadd.f32 0.0, %v5902
    %v5904 = vpop.f32.mrf.mxu0
    %v5905 = vadd.f32 0.0, %v5904
    %v5906 = vpop.f32.mrf.mxu0
    %v5907 = vadd.f32 0.0, %v5906
    %v5908 = vpop.f32.mrf.mxu0
    %v5909 = vadd.f32 0.0, %v5908
    %5910 = vmatprep.mubr.bf16.mxu0 %v5646
    %5911 = vmatmul.mubr.bf16.gmra.mxu0 %v5645
    %v5912 = vpop.f32.mrf.mxu0
    %v5913 = vadd.f32 0.0, %v5912
    %v5914 = vpop.f32.mrf.mxu0
    %v5915 = vadd.f32 0.0, %v5914
    %v5916 = vpop.f32.mrf.mxu0
    %v5917 = vadd.f32 0.0, %v5916
    %v5918 = vpop.f32.mrf.mxu0
    %v5919 = vadd.f32 0.0, %v5918
    %5920 = vmatprep.mubr.bf16.mxu0 %v5648
    %5921 = vmatmul.mubr.bf16.gmra.mxu0 %v5647
    %v5922 = vpop.f32.mrf.mxu0
    %v5923 = vadd.f32 0.0, %v5922
    %v5924 = vpop.f32.mrf.mxu0
    %v5925 = vadd.f32 0.0, %v5924
    %v5926 = vpop.f32.mrf.mxu0
    %v5927 = vadd.f32 0.0, %v5926
    %v5928 = vpop.f32.mrf.mxu0
    %v5929 = vadd.f32 0.0, %v5928
    %5930 = vmatprep.mubr.bf16.mxu0 %v5650
    %5931 = vmatmul.mubr.bf16.gmra.mxu0 %v5649
    %v5932 = vpop.f32.mrf.mxu0
    %v5933 = vadd.f32 0.0, %v5932
    %v5934 = vpop.f32.mrf.mxu0
    %v5935 = vadd.f32 0.0, %v5934
    %v5936 = vpop.f32.mrf.mxu0
    %v5937 = vadd.f32 0.0, %v5936
    %v5938 = vpop.f32.mrf.mxu0
    %v5939 = vadd.f32 0.0, %v5938
    %5940 = vmatprep.mubr.bf16.mxu0 %v5652
    %5941 = vmatmul.mubr.bf16.gmra.mxu0 %v5651
    %v5942 = vpop.f32.mrf.mxu0
    %v5943 = vadd.f32 0.0, %v5942
    %v5944 = vpop.f32.mrf.mxu0
    %v5945 = vadd.f32 0.0, %v5944
    %v5946 = vpop.f32.mrf.mxu0
    %v5947 = vadd.f32 0.0, %v5946
    %v5948 = vpop.f32.mrf.mxu0
    %v5949 = vadd.f32 0.0, %v5948
    %5950 = vmatprep.mubr.bf16.mxu0 %v5654
    %5951 = vmatmul.mubr.bf16.gmra.mxu0 %v5653
    %v5952 = vpop.f32.mrf.mxu0
    %v5953 = vadd.f32 0.0, %v5952
    %v5954 = vpop.f32.mrf.mxu0
    %v5955 = vadd.f32 0.0, %v5954
    %v5956 = vpop.f32.mrf.mxu0
    %v5957 = vadd.f32 0.0, %v5956
    %v5958 = vpop.f32.mrf.mxu0
    %v5959 = vadd.f32 0.0, %v5958
    %5960 = vdwg.mxu0
    %v5961 = vadd.f32 %v5465, %v5883
    %v5962 = vadd.f32 %v5467, %v5885
    %v5963 = vadd.f32 %v5469, %v5887
    %v5964 = vadd.f32 %v5471, %v5889
    %v5965 = vadd.f32 %v5475, %v5893
    %v5966 = vadd.f32 %v5477, %v5895
    %v5967 = vadd.f32 %v5479, %v5897
    %v5968 = vadd.f32 %v5481, %v5899
    %v5969 = vadd.f32 %v5485, %v5903
    %v5970 = vadd.f32 %v5487, %v5905
    %v5971 = vadd.f32 %v5489, %v5907
    %v5972 = vadd.f32 %v5491, %v5909
    %v5973 = vadd.f32 %v5495, %v5913
    %v5974 = vadd.f32 %v5497, %v5915
    %v5975 = vadd.f32 %v5499, %v5917
    %v5976 = vadd.f32 %v5501, %v5919
    %v5977 = vadd.f32 %v5505, %v5923
    %v5978 = vadd.f32 %v5507, %v5925
    %v5979 = vadd.f32 %v5509, %v5927
    %v5980 = vadd.f32 %v5511, %v5929
    %v5981 = vadd.f32 %v5515, %v5933
    %v5982 = vadd.f32 %v5517, %v5935
    %v5983 = vadd.f32 %v5519, %v5937
    %v5984 = vadd.f32 %v5521, %v5939
    %v5985 = vadd.f32 %v5525, %v5943
    %v5986 = vadd.f32 %v5527, %v5945
    %v5987 = vadd.f32 %v5529, %v5947
    %v5988 = vadd.f32 %v5531, %v5949
    %v5989 = vadd.f32 %v5535, %v5953
    %v5990 = vadd.f32 %v5537, %v5955
    %v5991 = vadd.f32 %v5539, %v5957
    %v5992 = vadd.f32 %v5541, %v5959
    %v5993 = vmul.f32 %v4834, %v2015
    %v5994 = vmul.f32 %v4835, %v2015
    %v5995 = vmul.f32 %v4832, %v2020
    %v5996 = vmul.f32 %v4833, %v2020
    %v5997 = vmul.f32 %v4830, %v2025
    %v5998 = vmul.f32 %v4831, %v2025
    %v5999 = vmul.f32 %v4828, %v2030
    %v6000 = vmul.f32 %v4829, %v2030
    %v6001 = vmul.f32 %v4826, %v2035
    %v6002 = vmul.f32 %v4827, %v2035
    %v6003 = vmul.f32 %v4824, %v2040
    %v6004 = vmul.f32 %v4825, %v2040
    %v6005 = vmul.f32 %v4822, %v2045
    %v6006 = vmul.f32 %v4823, %v2045
    %v6007 = vmul.f32 %v4820, %v2050
    %v6008 = vmul.f32 %v4821, %v2050
    %v6009 = vmul.f32 %v4818, %v2055
    %v6010 = vmul.f32 %v4819, %v2055
    %v6011 = vmul.f32 %v4816, %v2060
    %v6012 = vmul.f32 %v4817, %v2060
    %v6013 = vmul.f32 %v4814, %v2065
    %v6014 = vmul.f32 %v4815, %v2065
    %v6015 = vmul.f32 %v4812, %v2070
    %v6016 = vmul.f32 %v4813, %v2070
    %v6017 = vmul.f32 %v4810, %v2075
    %v6018 = vmul.f32 %v4811, %v2075
    %v6019 = vmul.f32 %v4808, %v2080
    %v6020 = vmul.f32 %v4809, %v2080
    %v6021 = vmul.f32 %v4806, %v2085
    %v6022 = vmul.f32 %v4807, %v2085
    %v6023 = vmul.f32 %v4804, %v2090
    %v6024 = vmul.f32 %v4805, %v2090
    %v6025 = vpack.c.bf16 %v5995, %v5993
    %v6026 = vpack.c.bf16 %v5996, %v5994
    %v6027 = vpack.c.bf16 %v5999, %v5997
    %v6028 = vpack.c.bf16 %v6000, %v5998
    %v6029 = vpack.c.bf16 %v6003, %v6001
    %v6030 = vpack.c.bf16 %v6004, %v6002
    %v6031 = vpack.c.bf16 %v6007, %v6005
    %v6032 = vpack.c.bf16 %v6008, %v6006
    %v6033 = vpack.c.bf16 %v6011, %v6009
    %v6034 = vpack.c.bf16 %v6012, %v6010
    %v6035 = vpack.c.bf16 %v6015, %v6013
    %v6036 = vpack.c.bf16 %v6016, %v6014
    %v6037 = vpack.c.bf16 %v6019, %v6017
    %v6038 = vpack.c.bf16 %v6020, %v6018
    %v6039 = vpack.c.bf16 %v6023, %v6021
    %v6040 = vpack.c.bf16 %v6024, %v6022
    %s6041 = scalar_lea.vmem [#allocation10], 768
    %v6042 = vld [vmem:[%s6041] sm:$0xff]
    %v6043 = vld [vmem:[%s6041 + $0x8] sm:$0xff]
    %v6044 = vld [vmem:[%s6041 + $0x10] sm:$0xff]
    %v6045 = vld [vmem:[%s6041 + $0x18] sm:$0xff]
    %v6046 = vld [vmem:[%s6041 + $0x20] sm:$0xff]
    %v6047 = vld [vmem:[%s6041 + $0x28] sm:$0xff]
    %v6048 = vld [vmem:[%s6041 + $0x30] sm:$0xff]
    %v6049 = vld [vmem:[%s6041 + $0x38] sm:$0xff]
    %v6050 = vld [vmem:[%s6041 + $0x40] sm:$0xff]
    %v6051 = vld [vmem:[%s6041 + $0x48] sm:$0xff]
    %v6052 = vld [vmem:[%s6041 + $0x50] sm:$0xff]
    %v6053 = vld [vmem:[%s6041 + $0x58] sm:$0xff]
    %v6054 = vld [vmem:[%s6041 + $0x60] sm:$0xff]
    %v6055 = vld [vmem:[%s6041 + $0x68] sm:$0xff]
    %v6056 = vld [vmem:[%s6041 + $0x70] sm:$0xff]
    %v6057 = vld [vmem:[%s6041 + $0x78] sm:$0xff]
    %v6058 = vld [vmem:[%s6041 + $0x80] sm:$0xff]
    %v6059 = vld [vmem:[%s6041 + $0x88] sm:$0xff]
    %v6060 = vld [vmem:[%s6041 + $0x90] sm:$0xff]
    %v6061 = vld [vmem:[%s6041 + $0x98] sm:$0xff]
    %v6062 = vld [vmem:[%s6041 + $0xa0] sm:$0xff]
    %v6063 = vld [vmem:[%s6041 + $0xa8] sm:$0xff]
    %v6064 = vld [vmem:[%s6041 + $0xb0] sm:$0xff]
    %v6065 = vld [vmem:[%s6041 + $0xb8] sm:$0xff]
    %v6066 = vld [vmem:[%s6041 + $0xc0] sm:$0xff]
    %v6067 = vld [vmem:[%s6041 + $0xc8] sm:$0xff]
    %v6068 = vld [vmem:[%s6041 + $0xd0] sm:$0xff]
    %v6069 = vld [vmem:[%s6041 + $0xd8] sm:$0xff]
    %v6070 = vld [vmem:[%s6041 + $0xe0] sm:$0xff]
    %v6071 = vld [vmem:[%s6041 + $0xe8] sm:$0xff]
    %v6072 = vld [vmem:[%s6041 + $0xf0] sm:$0xff]
    %v6073 = vld [vmem:[%s6041 + $0xf8] sm:$0xff]
    %v6106 = vunpack.c.l.b16 %v6042
    %v6107 = vunpack.c.h.b16 %v6042
    %v6108 = vunpack.c.l.b16 %v6043
    %v6109 = vunpack.c.h.b16 %v6043
    %v6110 = vunpack.c.l.b16 %v6044
    %v6111 = vunpack.c.h.b16 %v6044
    %v6112 = vunpack.c.l.b16 %v6045
    %v6113 = vunpack.c.h.b16 %v6045
    %v6114 = vunpack.c.l.b16 %v6046
    %v6115 = vunpack.c.h.b16 %v6046
    %v6116 = vunpack.c.l.b16 %v6047
    %v6117 = vunpack.c.h.b16 %v6047
    %v6118 = vunpack.c.l.b16 %v6048
    %v6119 = vunpack.c.h.b16 %v6048
    %v6120 = vunpack.c.l.b16 %v6049
    %v6121 = vunpack.c.h.b16 %v6049
    %v6122 = vunpack.c.l.b16 %v6050
    %v6123 = vunpack.c.h.b16 %v6050
    %v6124 = vunpack.c.l.b16 %v6051
    %v6125 = vunpack.c.h.b16 %v6051
    %v6126 = vunpack.c.l.b16 %v6052
    %v6127 = vunpack.c.h.b16 %v6052
    %v6128 = vunpack.c.l.b16 %v6053
    %v6129 = vunpack.c.h.b16 %v6053
    %v6130 = vunpack.c.l.b16 %v6054
    %v6131 = vunpack.c.h.b16 %v6054
    %v6132 = vunpack.c.l.b16 %v6055
    %v6133 = vunpack.c.h.b16 %v6055
    %v6134 = vunpack.c.l.b16 %v6056
    %v6135 = vunpack.c.h.b16 %v6056
    %v6136 = vunpack.c.l.b16 %v6057
    %v6137 = vunpack.c.h.b16 %v6057
    %v6138 = vunpack.c.l.b16 %v6058
    %v6139 = vunpack.c.h.b16 %v6058
    %v6140 = vunpack.c.l.b16 %v6059
    %v6141 = vunpack.c.h.b16 %v6059
    %v6142 = vunpack.c.l.b16 %v6060
    %v6143 = vunpack.c.h.b16 %v6060
    %v6144 = vunpack.c.l.b16 %v6061
    %v6145 = vunpack.c.h.b16 %v6061
    %v6146 = vunpack.c.l.b16 %v6062
    %v6147 = vunpack.c.h.b16 %v6062
    %v6148 = vunpack.c.l.b16 %v6063
    %v6149 = vunpack.c.h.b16 %v6063
    %v6150 = vunpack.c.l.b16 %v6064
    %v6151 = vunpack.c.h.b16 %v6064
    %v6152 = vunpack.c.l.b16 %v6065
    %v6153 = vunpack.c.h.b16 %v6065
    %v6154 = vunpack.c.l.b16 %v6066
    %v6155 = vunpack.c.h.b16 %v6066
    %v6156 = vunpack.c.l.b16 %v6067
    %v6157 = vunpack.c.h.b16 %v6067
    %v6158 = vunpack.c.l.b16 %v6068
    %v6159 = vunpack.c.h.b16 %v6068
    %v6160 = vunpack.c.l.b16 %v6069
    %v6161 = vunpack.c.h.b16 %v6069
    %v6162 = vunpack.c.l.b16 %v6070
    %v6163 = vunpack.c.h.b16 %v6070
    %v6164 = vunpack.c.l.b16 %v6071
    %v6165 = vunpack.c.h.b16 %v6071
    %v6166 = vunpack.c.l.b16 %v6072
    %v6167 = vunpack.c.h.b16 %v6072
    %v6168 = vunpack.c.l.b16 %v6073
    %v6169 = vunpack.c.h.b16 %v6073
    %v6170 = vpack.c.b16 %v6108, %v6106
    %v6171 = vpack.c.b16 %v6109, %v6107
    %v6172 = vpack.c.b16 %v6112, %v6110
    %v6173 = vpack.c.b16 %v6113, %v6111
    %v6174 = vpack.c.b16 %v6116, %v6114
    %v6175 = vpack.c.b16 %v6117, %v6115
    %v6176 = vpack.c.b16 %v6120, %v6118
    %v6177 = vpack.c.b16 %v6121, %v6119
    %v6178 = vpack.c.b16 %v6124, %v6122
    %v6179 = vpack.c.b16 %v6125, %v6123
    %v6180 = vpack.c.b16 %v6128, %v6126
    %v6181 = vpack.c.b16 %v6129, %v6127
    %v6182 = vpack.c.b16 %v6132, %v6130
    %v6183 = vpack.c.b16 %v6133, %v6131
    %v6184 = vpack.c.b16 %v6136, %v6134
    %v6185 = vpack.c.b16 %v6137, %v6135
    %v6186 = vpack.c.b16 %v6140, %v6138
    %v6187 = vpack.c.b16 %v6141, %v6139
    %v6188 = vpack.c.b16 %v6144, %v6142
    %v6189 = vpack.c.b16 %v6145, %v6143
    %v6190 = vpack.c.b16 %v6148, %v6146
    %v6191 = vpack.c.b16 %v6149, %v6147
    %v6192 = vpack.c.b16 %v6152, %v6150
    %v6193 = vpack.c.b16 %v6153, %v6151
    %v6194 = vpack.c.b16 %v6156, %v6154
    %v6195 = vpack.c.b16 %v6157, %v6155
    %v6196 = vpack.c.b16 %v6160, %v6158
    %v6197 = vpack.c.b16 %v6161, %v6159
    %v6198 = vpack.c.b16 %v6164, %v6162
    %v6199 = vpack.c.b16 %v6165, %v6163
    %v6200 = vpack.c.b16 %v6168, %v6166
    %v6201 = vpack.c.b16 %v6169, %v6167
    %6234 = vmatprep.subr.bf16.mxu0 %v6185
    %6235 = vmatpush1.bf16.msra.mxu0 %v6184
    %6236 = vmatprep.subr.bf16.mxu0 %v6183
    %6237 = vmatpush1.bf16.msra.mxu0 %v6182
    %6238 = vmatprep.subr.bf16.mxu0 %v6181
    %6239 = vmatpush1.bf16.msra.mxu0 %v6180
    %6240 = vmatprep.subr.bf16.mxu0 %v6179
    %6241 = vmatpush1.bf16.msra.mxu0 %v6178
    %6242 = vmatprep.subr.bf16.mxu0 %v6177
    %6243 = vmatpush1.bf16.msra.mxu0 %v6176
    %6244 = vmatprep.subr.bf16.mxu0 %v6175
    %6245 = vmatpush1.bf16.msra.mxu0 %v6174
    %6246 = vmatprep.subr.bf16.mxu0 %v6173
    %6247 = vmatpush1.bf16.msra.mxu0 %v6172
    %6248 = vmatprep.subr.bf16.mxu0 %v6171
    %6249 = vmatpush1.bf16.msra.mxu0 %v6170
    %6250 = vmatprep.subr.bf16.mxu0 %v6201
    %6251 = vmatpush2.bf16.msra.mxu0 %v6200
    %6252 = vmatprep.subr.bf16.mxu0 %v6199
    %6253 = vmatpush2.bf16.msra.mxu0 %v6198
    %6254 = vmatprep.subr.bf16.mxu0 %v6197
    %6255 = vmatpush2.bf16.msra.mxu0 %v6196
    %6256 = vmatprep.subr.bf16.mxu0 %v6195
    %6257 = vmatpush2.bf16.msra.mxu0 %v6194
    %6258 = vmatprep.subr.bf16.mxu0 %v6193
    %6259 = vmatpush2.bf16.msra.mxu0 %v6192
    %6260 = vmatprep.subr.bf16.mxu0 %v6191
    %6261 = vmatpush2.bf16.msra.mxu0 %v6190
    %6262 = vmatprep.subr.bf16.mxu0 %v6189
    %6263 = vmatpush2.bf16.msra.mxu0 %v6188
    %6264 = vmatprep.subr.bf16.mxu0 %v6187
    %6265 = vmatpush2.bf16.msra.mxu0 %v6186
    %6266 = vmatprep.mubr.bf16.mxu0 %v6026
    %6267 = vmatmul.mubr.bf16.gmra.mxu0 %v6025
    %v6268 = vpop.f32.mrf.mxu0
    %v6269 = vadd.f32 0.0, %v6268
    %v6270 = vpop.f32.mrf.mxu0
    %v6271 = vadd.f32 0.0, %v6270
    %v6272 = vpop.f32.mrf.mxu0
    %v6273 = vadd.f32 0.0, %v6272
    %v6274 = vpop.f32.mrf.mxu0
    %v6275 = vadd.f32 0.0, %v6274
    %6276 = vmatprep.mubr.bf16.mxu0 %v6028
    %6277 = vmatmul.mubr.bf16.gmra.mxu0 %v6027
    %v6278 = vpop.f32.mrf.mxu0
    %v6279 = vadd.f32 0.0, %v6278
    %v6280 = vpop.f32.mrf.mxu0
    %v6281 = vadd.f32 0.0, %v6280
    %v6282 = vpop.f32.mrf.mxu0
    %v6283 = vadd.f32 0.0, %v6282
    %v6284 = vpop.f32.mrf.mxu0
    %v6285 = vadd.f32 0.0, %v6284
    %6286 = vmatprep.mubr.bf16.mxu0 %v6030
    %6287 = vmatmul.mubr.bf16.gmra.mxu0 %v6029
    %v6288 = vpop.f32.mrf.mxu0
    %v6289 = vadd.f32 0.0, %v6288
    %v6290 = vpop.f32.mrf.mxu0
    %v6291 = vadd.f32 0.0, %v6290
    %v6292 = vpop.f32.mrf.mxu0
    %v6293 = vadd.f32 0.0, %v6292
    %v6294 = vpop.f32.mrf.mxu0
    %v6295 = vadd.f32 0.0, %v6294
    %6296 = vmatprep.mubr.bf16.mxu0 %v6032
    %6297 = vmatmul.mubr.bf16.gmra.mxu0 %v6031
    %v6298 = vpop.f32.mrf.mxu0
    %v6299 = vadd.f32 0.0, %v6298
    %v6300 = vpop.f32.mrf.mxu0
    %v6301 = vadd.f32 0.0, %v6300
    %v6302 = vpop.f32.mrf.mxu0
    %v6303 = vadd.f32 0.0, %v6302
    %v6304 = vpop.f32.mrf.mxu0
    %v6305 = vadd.f32 0.0, %v6304
    %6306 = vmatprep.mubr.bf16.mxu0 %v6034
    %6307 = vmatmul.mubr.bf16.gmra.mxu0 %v6033
    %v6308 = vpop.f32.mrf.mxu0
    %v6309 = vadd.f32 0.0, %v6308
    %v6310 = vpop.f32.mrf.mxu0
    %v6311 = vadd.f32 0.0, %v6310
    %v6312 = vpop.f32.mrf.mxu0
    %v6313 = vadd.f32 0.0, %v6312
    %v6314 = vpop.f32.mrf.mxu0
    %v6315 = vadd.f32 0.0, %v6314
    %6316 = vmatprep.mubr.bf16.mxu0 %v6036
    %6317 = vmatmul.mubr.bf16.gmra.mxu0 %v6035
    %v6318 = vpop.f32.mrf.mxu0
    %v6319 = vadd.f32 0.0, %v6318
    %v6320 = vpop.f32.mrf.mxu0
    %v6321 = vadd.f32 0.0, %v6320
    %v6322 = vpop.f32.mrf.mxu0
    %v6323 = vadd.f32 0.0, %v6322
    %v6324 = vpop.f32.mrf.mxu0
    %v6325 = vadd.f32 0.0, %v6324
    %6326 = vmatprep.mubr.bf16.mxu0 %v6038
    %6327 = vmatmul.mubr.bf16.gmra.mxu0 %v6037
    %v6328 = vpop.f32.mrf.mxu0
    %v6329 = vadd.f32 0.0, %v6328
    %v6330 = vpop.f32.mrf.mxu0
    %v6331 = vadd.f32 0.0, %v6330
    %v6332 = vpop.f32.mrf.mxu0
    %v6333 = vadd.f32 0.0, %v6332
    %v6334 = vpop.f32.mrf.mxu0
    %v6335 = vadd.f32 0.0, %v6334
    %6336 = vmatprep.mubr.bf16.mxu0 %v6040
    %6337 = vmatmul.mubr.bf16.gmra.mxu0 %v6039
    %v6338 = vpop.f32.mrf.mxu0
    %v6339 = vadd.f32 0.0, %v6338
    %v6340 = vpop.f32.mrf.mxu0
    %v6341 = vadd.f32 0.0, %v6340
    %v6342 = vpop.f32.mrf.mxu0
    %v6343 = vadd.f32 0.0, %v6342
    %v6344 = vpop.f32.mrf.mxu0
    %v6345 = vadd.f32 0.0, %v6344
    %6346 = vdwg.mxu0
    %v6347 = vadd.f32 %v5961, %v6269
    %v6348 = vadd.f32 %v5962, %v6271
    %v6349 = vadd.f32 %v5963, %v6273
    %v6350 = vadd.f32 %v5964, %v6275
    %v6351 = vadd.f32 %v5965, %v6279
    %v6352 = vadd.f32 %v5966, %v6281
    %v6353 = vadd.f32 %v5967, %v6283
    %v6354 = vadd.f32 %v5968, %v6285
    %v6355 = vadd.f32 %v5969, %v6289
    %v6356 = vadd.f32 %v5970, %v6291
    %v6357 = vadd.f32 %v5971, %v6293
    %v6358 = vadd.f32 %v5972, %v6295
    %v6359 = vadd.f32 %v5973, %v6299
    %v6360 = vadd.f32 %v5974, %v6301
    %v6361 = vadd.f32 %v5975, %v6303
    %v6362 = vadd.f32 %v5976, %v6305
    %v6363 = vadd.f32 %v5977, %v6309
    %v6364 = vadd.f32 %v5978, %v6311
    %v6365 = vadd.f32 %v5979, %v6313
    %v6366 = vadd.f32 %v5980, %v6315
    %v6367 = vadd.f32 %v5981, %v6319
    %v6368 = vadd.f32 %v5982, %v6321
    %v6369 = vadd.f32 %v5983, %v6323
    %v6370 = vadd.f32 %v5984, %v6325
    %v6371 = vadd.f32 %v5985, %v6329
    %v6372 = vadd.f32 %v5986, %v6331
    %v6373 = vadd.f32 %v5987, %v6333
    %v6374 = vadd.f32 %v5988, %v6335
    %v6375 = vadd.f32 %v5989, %v6339
    %v6376 = vadd.f32 %v5990, %v6341
    %v6377 = vadd.f32 %v5991, %v6343
    %v6378 = vadd.f32 %v5992, %v6345
    %v6379 = vpack.c.bf16 %v4742, %v4740
    %v6380 = vpack.c.bf16 %v4743, %v4741
    %v6381 = vpack.c.bf16 %v4746, %v4744
    %v6382 = vpack.c.bf16 %v4747, %v4745
    %v6383 = vpack.c.bf16 %v4750, %v4748
    %v6384 = vpack.c.bf16 %v4751, %v4749
    %v6385 = vpack.c.bf16 %v4754, %v4752
    %v6386 = vpack.c.bf16 %v4755, %v4753
    %v6387 = vpack.c.bf16 %v4758, %v4756
    %v6388 = vpack.c.bf16 %v4759, %v4757
    %v6389 = vpack.c.bf16 %v4762, %v4760
    %v6390 = vpack.c.bf16 %v4763, %v4761
    %v6391 = vpack.c.bf16 %v4766, %v4764
    %v6392 = vpack.c.bf16 %v4767, %v4765
    %v6393 = vpack.c.bf16 %v4770, %v4768
    %v6394 = vpack.c.bf16 %v4771, %v4769
    %s6395 = scalar_lea.vmem [#allocation10], 1024
    %v6396 = vld [vmem:[%s6395] sm:$0xff]
    %v6397 = vld [vmem:[%s6395 + $0x8] sm:$0xff]
    %v6398 = vld [vmem:[%s6395 + $0x10] sm:$0xff]
    %v6399 = vld [vmem:[%s6395 + $0x18] sm:$0xff]
    %v6400 = vld [vmem:[%s6395 + $0x20] sm:$0xff]
    %v6401 = vld [vmem:[%s6395 + $0x28] sm:$0xff]
    %v6402 = vld [vmem:[%s6395 + $0x30] sm:$0xff]
    %v6403 = vld [vmem:[%s6395 + $0x38] sm:$0xff]
    %v6404 = vld [vmem:[%s6395 + $0x40] sm:$0xff]
    %v6405 = vld [vmem:[%s6395 + $0x48] sm:$0xff]
    %v6406 = vld [vmem:[%s6395 + $0x50] sm:$0xff]
    %v6407 = vld [vmem:[%s6395 + $0x58] sm:$0xff]
    %v6408 = vld [vmem:[%s6395 + $0x60] sm:$0xff]
    %v6409 = vld [vmem:[%s6395 + $0x68] sm:$0xff]
    %v6410 = vld [vmem:[%s6395 + $0x70] sm:$0xff]
    %v6411 = vld [vmem:[%s6395 + $0x78] sm:$0xff]
    %v6412 = vld [vmem:[%s6395 + $0x80] sm:$0xff]
    %v6413 = vld [vmem:[%s6395 + $0x88] sm:$0xff]
    %v6414 = vld [vmem:[%s6395 + $0x90] sm:$0xff]
    %v6415 = vld [vmem:[%s6395 + $0x98] sm:$0xff]
    %v6416 = vld [vmem:[%s6395 + $0xa0] sm:$0xff]
    %v6417 = vld [vmem:[%s6395 + $0xa8] sm:$0xff]
    %v6418 = vld [vmem:[%s6395 + $0xb0] sm:$0xff]
    %v6419 = vld [vmem:[%s6395 + $0xb8] sm:$0xff]
    %v6420 = vld [vmem:[%s6395 + $0xc0] sm:$0xff]
    %v6421 = vld [vmem:[%s6395 + $0xc8] sm:$0xff]
    %v6422 = vld [vmem:[%s6395 + $0xd0] sm:$0xff]
    %v6423 = vld [vmem:[%s6395 + $0xd8] sm:$0xff]
    %v6424 = vld [vmem:[%s6395 + $0xe0] sm:$0xff]
    %v6425 = vld [vmem:[%s6395 + $0xe8] sm:$0xff]
    %v6426 = vld [vmem:[%s6395 + $0xf0] sm:$0xff]
    %v6427 = vld [vmem:[%s6395 + $0xf8] sm:$0xff]
    %v6460 = vunpack.c.l.b16 %v6396
    %v6461 = vunpack.c.h.b16 %v6396
    %v6462 = vunpack.c.l.b16 %v6397
    %v6463 = vunpack.c.h.b16 %v6397
    %v6464 = vunpack.c.l.b16 %v6398
    %v6465 = vunpack.c.h.b16 %v6398
    %v6466 = vunpack.c.l.b16 %v6399
    %v6467 = vunpack.c.h.b16 %v6399
    %v6468 = vunpack.c.l.b16 %v6400
    %v6469 = vunpack.c.h.b16 %v6400
    %v6470 = vunpack.c.l.b16 %v6401
    %v6471 = vunpack.c.h.b16 %v6401
    %v6472 = vunpack.c.l.b16 %v6402
    %v6473 = vunpack.c.h.b16 %v6402
    %v6474 = vunpack.c.l.b16 %v6403
    %v6475 = vunpack.c.h.b16 %v6403
    %v6476 = vunpack.c.l.b16 %v6404
    %v6477 = vunpack.c.h.b16 %v6404
    %v6478 = vunpack.c.l.b16 %v6405
    %v6479 = vunpack.c.h.b16 %v6405
    %v6480 = vunpack.c.l.b16 %v6406
    %v6481 = vunpack.c.h.b16 %v6406
    %v6482 = vunpack.c.l.b16 %v6407
    %v6483 = vunpack.c.h.b16 %v6407
    %v6484 = vunpack.c.l.b16 %v6408
    %v6485 = vunpack.c.h.b16 %v6408
    %v6486 = vunpack.c.l.b16 %v6409
    %v6487 = vunpack.c.h.b16 %v6409
    %v6488 = vunpack.c.l.b16 %v6410
    %v6489 = vunpack.c.h.b16 %v6410
    %v6490 = vunpack.c.l.b16 %v6411
    %v6491 = vunpack.c.h.b16 %v6411
    %v6492 = vunpack.c.l.b16 %v6412
    %v6493 = vunpack.c.h.b16 %v6412
    %v6494 = vunpack.c.l.b16 %v6413
    %v6495 = vunpack.c.h.b16 %v6413
    %v6496 = vunpack.c.l.b16 %v6414
    %v6497 = vunpack.c.h.b16 %v6414
    %v6498 = vunpack.c.l.b16 %v6415
    %v6499 = vunpack.c.h.b16 %v6415
    %v6500 = vunpack.c.l.b16 %v6416
    %v6501 = vunpack.c.h.b16 %v6416
    %v6502 = vunpack.c.l.b16 %v6417
    %v6503 = vunpack.c.h.b16 %v6417
    %v6504 = vunpack.c.l.b16 %v6418
    %v6505 = vunpack.c.h.b16 %v6418
    %v6506 = vunpack.c.l.b16 %v6419
    %v6507 = vunpack.c.h.b16 %v6419
    %v6508 = vunpack.c.l.b16 %v6420
    %v6509 = vunpack.c.h.b16 %v6420
    %v6510 = vunpack.c.l.b16 %v6421
    %v6511 = vunpack.c.h.b16 %v6421
    %v6512 = vunpack.c.l.b16 %v6422
    %v6513 = vunpack.c.h.b16 %v6422
    %v6514 = vunpack.c.l.b16 %v6423
    %v6515 = vunpack.c.h.b16 %v6423
    %v6516 = vunpack.c.l.b16 %v6424
    %v6517 = vunpack.c.h.b16 %v6424
    %v6518 = vunpack.c.l.b16 %v6425
    %v6519 = vunpack.c.h.b16 %v6425
    %v6520 = vunpack.c.l.b16 %v6426
    %v6521 = vunpack.c.h.b16 %v6426
    %v6522 = vunpack.c.l.b16 %v6427
    %v6523 = vunpack.c.h.b16 %v6427
    %v6524 = vpack.c.b16 %v6462, %v6460
    %v6525 = vpack.c.b16 %v6463, %v6461
    %v6526 = vpack.c.b16 %v6466, %v6464
    %v6527 = vpack.c.b16 %v6467, %v6465
    %v6528 = vpack.c.b16 %v6470, %v6468
    %v6529 = vpack.c.b16 %v6471, %v6469
    %v6530 = vpack.c.b16 %v6474, %v6472
    %v6531 = vpack.c.b16 %v6475, %v6473
    %v6532 = vpack.c.b16 %v6478, %v6476
    %v6533 = vpack.c.b16 %v6479, %v6477
    %v6534 = vpack.c.b16 %v6482, %v6480
    %v6535 = vpack.c.b16 %v6483, %v6481
    %v6536 = vpack.c.b16 %v6486, %v6484
    %v6537 = vpack.c.b16 %v6487, %v6485
    %v6538 = vpack.c.b16 %v6490, %v6488
    %v6539 = vpack.c.b16 %v6491, %v6489
    %v6540 = vpack.c.b16 %v6494, %v6492
    %v6541 = vpack.c.b16 %v6495, %v6493
    %v6542 = vpack.c.b16 %v6498, %v6496
    %v6543 = vpack.c.b16 %v6499, %v6497
    %v6544 = vpack.c.b16 %v6502, %v6500
    %v6545 = vpack.c.b16 %v6503, %v6501
    %v6546 = vpack.c.b16 %v6506, %v6504
    %v6547 = vpack.c.b16 %v6507, %v6505
    %v6548 = vpack.c.b16 %v6510, %v6508
    %v6549 = vpack.c.b16 %v6511, %v6509
    %v6550 = vpack.c.b16 %v6514, %v6512
    %v6551 = vpack.c.b16 %v6515, %v6513
    %v6552 = vpack.c.b16 %v6518, %v6516
    %v6553 = vpack.c.b16 %v6519, %v6517
    %v6554 = vpack.c.b16 %v6522, %v6520
    %v6555 = vpack.c.b16 %v6523, %v6521
    %6588 = vmatprep.subr.bf16.mxu0 %v6539
    %6589 = vmatpush1.bf16.msra.mxu0 %v6538
    %6590 = vmatprep.subr.bf16.mxu0 %v6537
    %6591 = vmatpush1.bf16.msra.mxu0 %v6536
    %6592 = vmatprep.subr.bf16.mxu0 %v6535
    %6593 = vmatpush1.bf16.msra.mxu0 %v6534
    %6594 = vmatprep.subr.bf16.mxu0 %v6533
    %6595 = vmatpush1.bf16.msra.mxu0 %v6532
    %6596 = vmatprep.subr.bf16.mxu0 %v6531
    %6597 = vmatpush1.bf16.msra.mxu0 %v6530
    %6598 = vmatprep.subr.bf16.mxu0 %v6529
    %6599 = vmatpush1.bf16.msra.mxu0 %v6528
    %6600 = vmatprep.subr.bf16.mxu0 %v6527
    %6601 = vmatpush1.bf16.msra.mxu0 %v6526
    %6602 = vmatprep.subr.bf16.mxu0 %v6525
    %6603 = vmatpush1.bf16.msra.mxu0 %v6524
    %6604 = vmatprep.subr.bf16.mxu0 %v6555
    %6605 = vmatpush2.bf16.msra.mxu0 %v6554
    %6606 = vmatprep.subr.bf16.mxu0 %v6553
    %6607 = vmatpush2.bf16.msra.mxu0 %v6552
    %6608 = vmatprep.subr.bf16.mxu0 %v6551
    %6609 = vmatpush2.bf16.msra.mxu0 %v6550
    %6610 = vmatprep.subr.bf16.mxu0 %v6549
    %6611 = vmatpush2.bf16.msra.mxu0 %v6548
    %6612 = vmatprep.subr.bf16.mxu0 %v6547
    %6613 = vmatpush2.bf16.msra.mxu0 %v6546
    %6614 = vmatprep.subr.bf16.mxu0 %v6545
    %6615 = vmatpush2.bf16.msra.mxu0 %v6544
    %6616 = vmatprep.subr.bf16.mxu0 %v6543
    %6617 = vmatpush2.bf16.msra.mxu0 %v6542
    %6618 = vmatprep.subr.bf16.mxu0 %v6541
    %6619 = vmatpush2.bf16.msra.mxu0 %v6540
    %6620 = vmatprep.mubr.bf16.mxu0 %v6380
    %6621 = vmatmul.mubr.bf16.gmra.mxu0 %v6379
    %v6622 = vpop.f32.mrf.mxu0
    %v6623 = vadd.f32 0.0, %v6622
    %v6624 = vpop.f32.mrf.mxu0
    %v6625 = vadd.f32 0.0, %v6624
    %v6626 = vpop.f32.mrf.mxu0
    %v6627 = vadd.f32 0.0, %v6626
    %v6628 = vpop.f32.mrf.mxu0
    %v6629 = vadd.f32 0.0, %v6628
    %6630 = vmatprep.mubr.bf16.mxu0 %v6382
    %6631 = vmatmul.mubr.bf16.gmra.mxu0 %v6381
    %v6632 = vpop.f32.mrf.mxu0
    %v6633 = vadd.f32 0.0, %v6632
    %v6634 = vpop.f32.mrf.mxu0
    %v6635 = vadd.f32 0.0, %v6634
    %v6636 = vpop.f32.mrf.mxu0
    %v6637 = vadd.f32 0.0, %v6636
    %v6638 = vpop.f32.mrf.mxu0
    %v6639 = vadd.f32 0.0, %v6638
    %6640 = vmatprep.mubr.bf16.mxu0 %v6384
    %6641 = vmatmul.mubr.bf16.gmra.mxu0 %v6383
    %v6642 = vpop.f32.mrf.mxu0
    %v6643 = vadd.f32 0.0, %v6642
    %v6644 = vpop.f32.mrf.mxu0
    %v6645 = vadd.f32 0.0, %v6644
    %v6646 = vpop.f32.mrf.mxu0
    %v6647 = vadd.f32 0.0, %v6646
    %v6648 = vpop.f32.mrf.mxu0
    %v6649 = vadd.f32 0.0, %v6648
    %6650 = vmatprep.mubr.bf16.mxu0 %v6386
    %6651 = vmatmul.mubr.bf16.gmra.mxu0 %v6385
    %v6652 = vpop.f32.mrf.mxu0
    %v6653 = vadd.f32 0.0, %v6652
    %v6654 = vpop.f32.mrf.mxu0
    %v6655 = vadd.f32 0.0, %v6654
    %v6656 = vpop.f32.mrf.mxu0
    %v6657 = vadd.f32 0.0, %v6656
    %v6658 = vpop.f32.mrf.mxu0
    %v6659 = vadd.f32 0.0, %v6658
    %6660 = vmatprep.mubr.bf16.mxu0 %v6388
    %6661 = vmatmul.mubr.bf16.gmra.mxu0 %v6387
    %v6662 = vpop.f32.mrf.mxu0
    %v6663 = vadd.f32 0.0, %v6662
    %v6664 = vpop.f32.mrf.mxu0
    %v6665 = vadd.f32 0.0, %v6664
    %v6666 = vpop.f32.mrf.mxu0
    %v6667 = vadd.f32 0.0, %v6666
    %v6668 = vpop.f32.mrf.mxu0
    %v6669 = vadd.f32 0.0, %v6668
    %6670 = vmatprep.mubr.bf16.mxu0 %v6390
    %6671 = vmatmul.mubr.bf16.gmra.mxu0 %v6389
    %v6672 = vpop.f32.mrf.mxu0
    %v6673 = vadd.f32 0.0, %v6672
    %v6674 = vpop.f32.mrf.mxu0
    %v6675 = vadd.f32 0.0, %v6674
    %v6676 = vpop.f32.mrf.mxu0
    %v6677 = vadd.f32 0.0, %v6676
    %v6678 = vpop.f32.mrf.mxu0
    %v6679 = vadd.f32 0.0, %v6678
    %6680 = vmatprep.mubr.bf16.mxu0 %v6392
    %6681 = vmatmul.mubr.bf16.gmra.mxu0 %v6391
    %v6682 = vpop.f32.mrf.mxu0
    %v6683 = vadd.f32 0.0, %v6682
    %v6684 = vpop.f32.mrf.mxu0
    %v6685 = vadd.f32 0.0, %v6684
    %v6686 = vpop.f32.mrf.mxu0
    %v6687 = vadd.f32 0.0, %v6686
    %v6688 = vpop.f32.mrf.mxu0
    %v6689 = vadd.f32 0.0, %v6688
    %6690 = vmatprep.mubr.bf16.mxu0 %v6394
    %6691 = vmatmul.mubr.bf16.gmra.mxu0 %v6393
    %v6692 = vpop.f32.mrf.mxu0
    %v6693 = vadd.f32 0.0, %v6692
    %v6694 = vpop.f32.mrf.mxu0
    %v6695 = vadd.f32 0.0, %v6694
    %v6696 = vpop.f32.mrf.mxu0
    %v6697 = vadd.f32 0.0, %v6696
    %v6698 = vpop.f32.mrf.mxu0
    %v6699 = vadd.f32 0.0, %v6698
    %6700 = vdwg.mxu0
    %v6701 = vadd.f32 %v6347, %v6623
    %v6702 = vadd.f32 %v6348, %v6625
    %v6703 = vadd.f32 %v6349, %v6627
    %v6704 = vadd.f32 %v6350, %v6629
    %v6705 = vadd.f32 %v6351, %v6633
    %v6706 = vadd.f32 %v6352, %v6635
    %v6707 = vadd.f32 %v6353, %v6637
    %v6708 = vadd.f32 %v6354, %v6639
    %v6709 = vadd.f32 %v6355, %v6643
    %v6710 = vadd.f32 %v6356, %v6645
    %v6711 = vadd.f32 %v6357, %v6647
    %v6712 = vadd.f32 %v6358, %v6649
    %v6713 = vadd.f32 %v6359, %v6653
    %v6714 = vadd.f32 %v6360, %v6655
    %v6715 = vadd.f32 %v6361, %v6657
    %v6716 = vadd.f32 %v6362, %v6659
    %v6717 = vadd.f32 %v6363, %v6663
    %v6718 = vadd.f32 %v6364, %v6665
    %v6719 = vadd.f32 %v6365, %v6667
    %v6720 = vadd.f32 %v6366, %v6669
    %v6721 = vadd.f32 %v6367, %v6673
    %v6722 = vadd.f32 %v6368, %v6675
    %v6723 = vadd.f32 %v6369, %v6677
    %v6724 = vadd.f32 %v6370, %v6679
    %v6725 = vadd.f32 %v6371, %v6683
    %v6726 = vadd.f32 %v6372, %v6685
    %v6727 = vadd.f32 %v6373, %v6687
    %v6728 = vadd.f32 %v6374, %v6689
    %v6729 = vadd.f32 %v6375, %v6693
    %v6730 = vadd.f32 %v6376, %v6695
    %v6731 = vadd.f32 %v6377, %v6697
    %v6732 = vadd.f32 %v6378, %v6699
    %v6733 = vmul.f32 %v5603, %v2835
    %v6734 = vmul.f32 %v5604, %v2835
    %v6735 = vmul.f32 %v5601, %v2840
    %v6736 = vmul.f32 %v5602, %v2840
    %v6737 = vmul.f32 %v5599, %v2845
    %v6738 = vmul.f32 %v5600, %v2845
    %v6739 = vmul.f32 %v5597, %v2850
    %v6740 = vmul.f32 %v5598, %v2850
    %v6741 = vmul.f32 %v5595, %v2855
    %v6742 = vmul.f32 %v5596, %v2855
    %v6743 = vmul.f32 %v5593, %v2860
    %v6744 = vmul.f32 %v5594, %v2860
    %v6745 = vmul.f32 %v5591, %v2865
    %v6746 = vmul.f32 %v5592, %v2865
    %v6747 = vmul.f32 %v5589, %v2870
    %v6748 = vmul.f32 %v5590, %v2870
    %v6749 = vmul.f32 %v5587, %v2875
    %v6750 = vmul.f32 %v5588, %v2875
    %v6751 = vmul.f32 %v5585, %v2880
    %v6752 = vmul.f32 %v5586, %v2880
    %v6753 = vmul.f32 %v5583, %v2885
    %v6754 = vmul.f32 %v5584, %v2885
    %v6755 = vmul.f32 %v5581, %v2890
    %v6756 = vmul.f32 %v5582, %v2890
    %v6757 = vmul.f32 %v5579, %v2895
    %v6758 = vmul.f32 %v5580, %v2895
    %v6759 = vmul.f32 %v5577, %v2900
    %v6760 = vmul.f32 %v5578, %v2900
    %v6761 = vmul.f32 %v5575, %v2905
    %v6762 = vmul.f32 %v5576, %v2905
    %v6763 = vmul.f32 %v5605, %v2910
    %v6764 = vmul.f32 %v5606, %v2910
    %v6765 = vpack.c.bf16 %v6735, %v6733
    %v6766 = vpack.c.bf16 %v6736, %v6734
    %v6767 = vpack.c.bf16 %v6739, %v6737
    %v6768 = vpack.c.bf16 %v6740, %v6738
    %v6769 = vpack.c.bf16 %v6743, %v6741
    %v6770 = vpack.c.bf16 %v6744, %v6742
    %v6771 = vpack.c.bf16 %v6747, %v6745
    %v6772 = vpack.c.bf16 %v6748, %v6746
    %v6773 = vpack.c.bf16 %v6751, %v6749
    %v6774 = vpack.c.bf16 %v6752, %v6750
    %v6775 = vpack.c.bf16 %v6755, %v6753
    %v6776 = vpack.c.bf16 %v6756, %v6754
    %v6777 = vpack.c.bf16 %v6759, %v6757
    %v6778 = vpack.c.bf16 %v6760, %v6758
    %v6779 = vpack.c.bf16 %v6763, %v6761
    %v6780 = vpack.c.bf16 %v6764, %v6762
    %s6781 = scalar_lea.vmem [#allocation10], 1280
    %v6782 = vld [vmem:[%s6781] sm:$0xff]
    %v6783 = vld [vmem:[%s6781 + $0x8] sm:$0xff]
    %v6784 = vld [vmem:[%s6781 + $0x10] sm:$0xff]
    %v6785 = vld [vmem:[%s6781 + $0x18] sm:$0xff]
    %v6786 = vld [vmem:[%s6781 + $0x20] sm:$0xff]
    %v6787 = vld [vmem:[%s6781 + $0x28] sm:$0xff]
    %v6788 = vld [vmem:[%s6781 + $0x30] sm:$0xff]
    %v6789 = vld [vmem:[%s6781 + $0x38] sm:$0xff]
    %v6790 = vld [vmem:[%s6781 + $0x40] sm:$0xff]
    %v6791 = vld [vmem:[%s6781 + $0x48] sm:$0xff]
    %v6792 = vld [vmem:[%s6781 + $0x50] sm:$0xff]
    %v6793 = vld [vmem:[%s6781 + $0x58] sm:$0xff]
    %v6794 = vld [vmem:[%s6781 + $0x60] sm:$0xff]
    %v6795 = vld [vmem:[%s6781 + $0x68] sm:$0xff]
    %v6796 = vld [vmem:[%s6781 + $0x70] sm:$0xff]
    %v6797 = vld [vmem:[%s6781 + $0x78] sm:$0xff]
    %v6798 = vld [vmem:[%s6781 + $0x80] sm:$0xff]
    %v6799 = vld [vmem:[%s6781 + $0x88] sm:$0xff]
    %v6800 = vld [vmem:[%s6781 + $0x90] sm:$0xff]
    %v6801 = vld [vmem:[%s6781 + $0x98] sm:$0xff]
    %v6802 = vld [vmem:[%s6781 + $0xa0] sm:$0xff]
    %v6803 = vld [vmem:[%s6781 + $0xa8] sm:$0xff]
    %v6804 = vld [vmem:[%s6781 + $0xb0] sm:$0xff]
    %v6805 = vld [vmem:[%s6781 + $0xb8] sm:$0xff]
    %v6806 = vld [vmem:[%s6781 + $0xc0] sm:$0xff]
    %v6807 = vld [vmem:[%s6781 + $0xc8] sm:$0xff]
    %v6808 = vld [vmem:[%s6781 + $0xd0] sm:$0xff]
    %v6809 = vld [vmem:[%s6781 + $0xd8] sm:$0xff]
    %v6810 = vld [vmem:[%s6781 + $0xe0] sm:$0xff]
    %v6811 = vld [vmem:[%s6781 + $0xe8] sm:$0xff]
    %v6812 = vld [vmem:[%s6781 + $0xf0] sm:$0xff]
    %v6813 = vld [vmem:[%s6781 + $0xf8] sm:$0xff]
    %v6846 = vunpack.c.l.b16 %v6782
    %v6847 = vunpack.c.h.b16 %v6782
    %v6848 = vunpack.c.l.b16 %v6783
    %v6849 = vunpack.c.h.b16 %v6783
    %v6850 = vunpack.c.l.b16 %v6784
    %v6851 = vunpack.c.h.b16 %v6784
    %v6852 = vunpack.c.l.b16 %v6785
    %v6853 = vunpack.c.h.b16 %v6785
    %v6854 = vunpack.c.l.b16 %v6786
    %v6855 = vunpack.c.h.b16 %v6786
    %v6856 = vunpack.c.l.b16 %v6787
    %v6857 = vunpack.c.h.b16 %v6787
    %v6858 = vunpack.c.l.b16 %v6788
    %v6859 = vunpack.c.h.b16 %v6788
    %v6860 = vunpack.c.l.b16 %v6789
    %v6861 = vunpack.c.h.b16 %v6789
    %v6862 = vunpack.c.l.b16 %v6790
    %v6863 = vunpack.c.h.b16 %v6790
    %v6864 = vunpack.c.l.b16 %v6791
    %v6865 = vunpack.c.h.b16 %v6791
    %v6866 = vunpack.c.l.b16 %v6792
    %v6867 = vunpack.c.h.b16 %v6792
    %v6868 = vunpack.c.l.b16 %v6793
    %v6869 = vunpack.c.h.b16 %v6793
    %v6870 = vunpack.c.l.b16 %v6794
    %v6871 = vunpack.c.h.b16 %v6794
    %v6872 = vunpack.c.l.b16 %v6795
    %v6873 = vunpack.c.h.b16 %v6795
    %v6874 = vunpack.c.l.b16 %v6796
    %v6875 = vunpack.c.h.b16 %v6796
    %v6876 = vunpack.c.l.b16 %v6797
    %v6877 = vunpack.c.h.b16 %v6797
    %v6878 = vunpack.c.l.b16 %v6798
    %v6879 = vunpack.c.h.b16 %v6798
    %v6880 = vunpack.c.l.b16 %v6799
    %v6881 = vunpack.c.h.b16 %v6799
    %v6882 = vunpack.c.l.b16 %v6800
    %v6883 = vunpack.c.h.b16 %v6800
    %v6884 = vunpack.c.l.b16 %v6801
    %v6885 = vunpack.c.h.b16 %v6801
    %v6886 = vunpack.c.l.b16 %v6802
    %v6887 = vunpack.c.h.b16 %v6802
    %v6888 = vunpack.c.l.b16 %v6803
    %v6889 = vunpack.c.h.b16 %v6803
    %v6890 = vunpack.c.l.b16 %v6804
    %v6891 = vunpack.c.h.b16 %v6804
    %v6892 = vunpack.c.l.b16 %v6805
    %v6893 = vunpack.c.h.b16 %v6805
    %v6894 = vunpack.c.l.b16 %v6806
    %v6895 = vunpack.c.h.b16 %v6806
    %v6896 = vunpack.c.l.b16 %v6807
    %v6897 = vunpack.c.h.b16 %v6807
    %v6898 = vunpack.c.l.b16 %v6808
    %v6899 = vunpack.c.h.b16 %v6808
    %v6900 = vunpack.c.l.b16 %v6809
    %v6901 = vunpack.c.h.b16 %v6809
    %v6902 = vunpack.c.l.b16 %v6810
    %v6903 = vunpack.c.h.b16 %v6810
    %v6904 = vunpack.c.l.b16 %v6811
    %v6905 = vunpack.c.h.b16 %v6811
    %v6906 = vunpack.c.l.b16 %v6812
    %v6907 = vunpack.c.h.b16 %v6812
    %v6908 = vunpack.c.l.b16 %v6813
    %v6909 = vunpack.c.h.b16 %v6813
    %v6910 = vpack.c.b16 %v6848, %v6846
    %v6911 = vpack.c.b16 %v6849, %v6847
    %v6912 = vpack.c.b16 %v6852, %v6850
    %v6913 = vpack.c.b16 %v6853, %v6851
    %v6914 = vpack.c.b16 %v6856, %v6854
    %v6915 = vpack.c.b16 %v6857, %v6855
    %v6916 = vpack.c.b16 %v6860, %v6858
    %v6917 = vpack.c.b16 %v6861, %v6859
    %v6918 = vpack.c.b16 %v6864, %v6862
    %v6919 = vpack.c.b16 %v6865, %v6863
    %v6920 = vpack.c.b16 %v6868, %v6866
    %v6921 = vpack.c.b16 %v6869, %v6867
    %v6922 = vpack.c.b16 %v6872, %v6870
    %v6923 = vpack.c.b16 %v6873, %v6871
    %v6924 = vpack.c.b16 %v6876, %v6874
    %v6925 = vpack.c.b16 %v6877, %v6875
    %v6926 = vpack.c.b16 %v6880, %v6878
    %v6927 = vpack.c.b16 %v6881, %v6879
    %v6928 = vpack.c.b16 %v6884, %v6882
    %v6929 = vpack.c.b16 %v6885, %v6883
    %v6930 = vpack.c.b16 %v6888, %v6886
    %v6931 = vpack.c.b16 %v6889, %v6887
    %v6932 = vpack.c.b16 %v6892, %v6890
    %v6933 = vpack.c.b16 %v6893, %v6891
    %v6934 = vpack.c.b16 %v6896, %v6894
    %v6935 = vpack.c.b16 %v6897, %v6895
    %v6936 = vpack.c.b16 %v6900, %v6898
    %v6937 = vpack.c.b16 %v6901, %v6899
    %v6938 = vpack.c.b16 %v6904, %v6902
    %v6939 = vpack.c.b16 %v6905, %v6903
    %v6940 = vpack.c.b16 %v6908, %v6906
    %v6941 = vpack.c.b16 %v6909, %v6907
    %6974 = vmatprep.subr.bf16.mxu0 %v6925
    %6975 = vmatpush1.bf16.msra.mxu0 %v6924
    %6976 = vmatprep.subr.bf16.mxu0 %v6923
    %6977 = vmatpush1.bf16.msra.mxu0 %v6922
    %6978 = vmatprep.subr.bf16.mxu0 %v6921
    %6979 = vmatpush1.bf16.msra.mxu0 %v6920
    %6980 = vmatprep.subr.bf16.mxu0 %v6919
    %6981 = vmatpush1.bf16.msra.mxu0 %v6918
    %6982 = vmatprep.subr.bf16.mxu0 %v6917
    %6983 = vmatpush1.bf16.msra.mxu0 %v6916
    %6984 = vmatprep.subr.bf16.mxu0 %v6915
    %6985 = vmatpush1.bf16.msra.mxu0 %v6914
    %6986 = vmatprep.subr.bf16.mxu0 %v6913
    %6987 = vmatpush1.bf16.msra.mxu0 %v6912
    %6988 = vmatprep.subr.bf16.mxu0 %v6911
    %6989 = vmatpush1.bf16.msra.mxu0 %v6910
    %6990 = vmatprep.subr.bf16.mxu0 %v6941
    %6991 = vmatpush2.bf16.msra.mxu0 %v6940
    %6992 = vmatprep.subr.bf16.mxu0 %v6939
    %6993 = vmatpush2.bf16.msra.mxu0 %v6938
    %6994 = vmatprep.subr.bf16.mxu0 %v6937
    %6995 = vmatpush2.bf16.msra.mxu0 %v6936
    %6996 = vmatprep.subr.bf16.mxu0 %v6935
    %6997 = vmatpush2.bf16.msra.mxu0 %v6934
    %6998 = vmatprep.subr.bf16.mxu0 %v6933
    %6999 = vmatpush2.bf16.msra.mxu0 %v6932
    %7000 = vmatprep.subr.bf16.mxu0 %v6931
    %7001 = vmatpush2.bf16.msra.mxu0 %v6930
    %7002 = vmatprep.subr.bf16.mxu0 %v6929
    %7003 = vmatpush2.bf16.msra.mxu0 %v6928
    %7004 = vmatprep.subr.bf16.mxu0 %v6927
    %7005 = vmatpush2.bf16.msra.mxu0 %v6926
    %7006 = vmatprep.mubr.bf16.mxu0 %v6766
    %7007 = vmatmul.mubr.bf16.gmra.mxu0 %v6765
    %v7008 = vpop.f32.mrf.mxu0
    %v7009 = vadd.f32 0.0, %v7008
    %v7010 = vpop.f32.mrf.mxu0
    %v7011 = vadd.f32 0.0, %v7010
    %v7012 = vpop.f32.mrf.mxu0
    %v7013 = vadd.f32 0.0, %v7012
    %v7014 = vpop.f32.mrf.mxu0
    %v7015 = vadd.f32 0.0, %v7014
    %7016 = vmatprep.mubr.bf16.mxu0 %v6768
    %7017 = vmatmul.mubr.bf16.gmra.mxu0 %v6767
    %v7018 = vpop.f32.mrf.mxu0
    %v7019 = vadd.f32 0.0, %v7018
    %v7020 = vpop.f32.mrf.mxu0
    %v7021 = vadd.f32 0.0, %v7020
    %v7022 = vpop.f32.mrf.mxu0
    %v7023 = vadd.f32 0.0, %v7022
    %v7024 = vpop.f32.mrf.mxu0
    %v7025 = vadd.f32 0.0, %v7024
    %7026 = vmatprep.mubr.bf16.mxu0 %v6770
    %7027 = vmatmul.mubr.bf16.gmra.mxu0 %v6769
    %v7028 = vpop.f32.mrf.mxu0
    %v7029 = vadd.f32 0.0, %v7028
    %v7030 = vpop.f32.mrf.mxu0
    %v7031 = vadd.f32 0.0, %v7030
    %v7032 = vpop.f32.mrf.mxu0
    %v7033 = vadd.f32 0.0, %v7032
    %v7034 = vpop.f32.mrf.mxu0
    %v7035 = vadd.f32 0.0, %v7034
    %7036 = vmatprep.mubr.bf16.mxu0 %v6772
    %7037 = vmatmul.mubr.bf16.gmra.mxu0 %v6771
    %v7038 = vpop.f32.mrf.mxu0
    %v7039 = vadd.f32 0.0, %v7038
    %v7040 = vpop.f32.mrf.mxu0
    %v7041 = vadd.f32 0.0, %v7040
    %v7042 = vpop.f32.mrf.mxu0
    %v7043 = vadd.f32 0.0, %v7042
    %v7044 = vpop.f32.mrf.mxu0
    %v7045 = vadd.f32 0.0, %v7044
    %7046 = vmatprep.mubr.bf16.mxu0 %v6774
    %7047 = vmatmul.mubr.bf16.gmra.mxu0 %v6773
    %v7048 = vpop.f32.mrf.mxu0
    %v7049 = vadd.f32 0.0, %v7048
    %v7050 = vpop.f32.mrf.mxu0
    %v7051 = vadd.f32 0.0, %v7050
    %v7052 = vpop.f32.mrf.mxu0
    %v7053 = vadd.f32 0.0, %v7052
    %v7054 = vpop.f32.mrf.mxu0
    %v7055 = vadd.f32 0.0, %v7054
    %7056 = vmatprep.mubr.bf16.mxu0 %v6776
    %7057 = vmatmul.mubr.bf16.gmra.mxu0 %v6775
    %v7058 = vpop.f32.mrf.mxu0
    %v7059 = vadd.f32 0.0, %v7058
    %v7060 = vpop.f32.mrf.mxu0
    %v7061 = vadd.f32 0.0, %v7060
    %v7062 = vpop.f32.mrf.mxu0
    %v7063 = vadd.f32 0.0, %v7062
    %v7064 = vpop.f32.mrf.mxu0
    %v7065 = vadd.f32 0.0, %v7064
    %7066 = vmatprep.mubr.bf16.mxu0 %v6778
    %7067 = vmatmul.mubr.bf16.gmra.mxu0 %v6777
    %v7068 = vpop.f32.mrf.mxu0
    %v7069 = vadd.f32 0.0, %v7068
    %v7070 = vpop.f32.mrf.mxu0
    %v7071 = vadd.f32 0.0, %v7070
    %v7072 = vpop.f32.mrf.mxu0
    %v7073 = vadd.f32 0.0, %v7072
    %v7074 = vpop.f32.mrf.mxu0
    %v7075 = vadd.f32 0.0, %v7074
    %7076 = vmatprep.mubr.bf16.mxu0 %v6780
    %7077 = vmatmul.mubr.bf16.gmra.mxu0 %v6779
    %v7078 = vpop.f32.mrf.mxu0
    %v7079 = vadd.f32 0.0, %v7078
    %v7080 = vpop.f32.mrf.mxu0
    %v7081 = vadd.f32 0.0, %v7080
    %v7082 = vpop.f32.mrf.mxu0
    %v7083 = vadd.f32 0.0, %v7082
    %v7084 = vpop.f32.mrf.mxu0
    %v7085 = vadd.f32 0.0, %v7084
    %7086 = vdwg.mxu0
    %v7087 = vadd.f32 %v6701, %v7009
    %v7088 = vadd.f32 %v6702, %v7011
    %v7089 = vadd.f32 %v6703, %v7013
    %v7090 = vadd.f32 %v6704, %v7015
    %v7091 = vadd.f32 %v6705, %v7019
    %v7092 = vadd.f32 %v6706, %v7021
    %v7093 = vadd.f32 %v6707, %v7023
    %v7094 = vadd.f32 %v6708, %v7025
    %v7095 = vadd.f32 %v6709, %v7029
    %v7096 = vadd.f32 %v6710, %v7031
    %v7097 = vadd.f32 %v6711, %v7033
    %v7098 = vadd.f32 %v6712, %v7035
    %v7099 = vadd.f32 %v6713, %v7039
    %v7100 = vadd.f32 %v6714, %v7041
    %v7101 = vadd.f32 %v6715, %v7043
    %v7102 = vadd.f32 %v6716, %v7045
    %v7103 = vadd.f32 %v6717, %v7049
    %v7104 = vadd.f32 %v6718, %v7051
    %v7105 = vadd.f32 %v6719, %v7053
    %v7106 = vadd.f32 %v6720, %v7055
    %v7107 = vadd.f32 %v6721, %v7059
    %v7108 = vadd.f32 %v6722, %v7061
    %v7109 = vadd.f32 %v6723, %v7063
    %v7110 = vadd.f32 %v6724, %v7065
    %v7111 = vadd.f32 %v6725, %v7069
    %v7112 = vadd.f32 %v6726, %v7071
    %v7113 = vadd.f32 %v6727, %v7073
    %v7114 = vadd.f32 %v6728, %v7075
    %v7115 = vadd.f32 %v6729, %v7079
    %v7116 = vadd.f32 %v6730, %v7081
    %v7117 = vadd.f32 %v6731, %v7083
    %v7118 = vadd.f32 %v6732, %v7085
    %v7119 = vmul.f32 %v4832, %v3301
    %v7120 = vmul.f32 %v4833, %v3301
    %v7121 = vmul.f32 %v4830, %v3306
    %v7122 = vmul.f32 %v4831, %v3306
    %v7123 = vmul.f32 %v4828, %v3311
    %v7124 = vmul.f32 %v4829, %v3311
    %v7125 = vmul.f32 %v4826, %v3316
    %v7126 = vmul.f32 %v4827, %v3316
    %v7127 = vmul.f32 %v4824, %v3321
    %v7128 = vmul.f32 %v4825, %v3321
    %v7129 = vmul.f32 %v4822, %v3326
    %v7130 = vmul.f32 %v4823, %v3326
    %v7131 = vmul.f32 %v4820, %v3331
    %v7132 = vmul.f32 %v4821, %v3331
    %v7133 = vmul.f32 %v4818, %v3336
    %v7134 = vmul.f32 %v4819, %v3336
    %v7135 = vmul.f32 %v4816, %v3341
    %v7136 = vmul.f32 %v4817, %v3341
    %v7137 = vmul.f32 %v4814, %v3346
    %v7138 = vmul.f32 %v4815, %v3346
    %v7139 = vmul.f32 %v4812, %v3351
    %v7140 = vmul.f32 %v4813, %v3351
    %v7141 = vmul.f32 %v4810, %v3356
    %v7142 = vmul.f32 %v4811, %v3356
    %v7143 = vmul.f32 %v4808, %v3361
    %v7144 = vmul.f32 %v4809, %v3361
    %v7145 = vmul.f32 %v4806, %v3366
    %v7146 = vmul.f32 %v4807, %v3366
    %v7147 = vmul.f32 %v4804, %v3371
    %v7148 = vmul.f32 %v4805, %v3371
    %v7149 = vmul.f32 %v4834, %v3376
    %v7150 = vmul.f32 %v4835, %v3376
    %v7151 = vpack.c.bf16 %v7121, %v7119
    %v7152 = vpack.c.bf16 %v7122, %v7120
    %v7153 = vpack.c.bf16 %v7125, %v7123
    %v7154 = vpack.c.bf16 %v7126, %v7124
    %v7155 = vpack.c.bf16 %v7129, %v7127
    %v7156 = vpack.c.bf16 %v7130, %v7128
    %v7157 = vpack.c.bf16 %v7133, %v7131
    %v7158 = vpack.c.bf16 %v7134, %v7132
    %v7159 = vpack.c.bf16 %v7137, %v7135
    %v7160 = vpack.c.bf16 %v7138, %v7136
    %v7161 = vpack.c.bf16 %v7141, %v7139
    %v7162 = vpack.c.bf16 %v7142, %v7140
    %v7163 = vpack.c.bf16 %v7145, %v7143
    %v7164 = vpack.c.bf16 %v7146, %v7144
    %v7165 = vpack.c.bf16 %v7149, %v7147
    %v7166 = vpack.c.bf16 %v7150, %v7148
    %s7167 = scalar_lea.vmem [#allocation10], 1536
    %v7168 = vld [vmem:[%s7167] sm:$0xff]
    %v7169 = vld [vmem:[%s7167 + $0x8] sm:$0xff]
    %v7170 = vld [vmem:[%s7167 + $0x10] sm:$0xff]
    %v7171 = vld [vmem:[%s7167 + $0x18] sm:$0xff]
    %v7172 = vld [vmem:[%s7167 + $0x20] sm:$0xff]
    %v7173 = vld [vmem:[%s7167 + $0x28] sm:$0xff]
    %v7174 = vld [vmem:[%s7167 + $0x30] sm:$0xff]
    %v7175 = vld [vmem:[%s7167 + $0x38] sm:$0xff]
    %v7176 = vld [vmem:[%s7167 + $0x40] sm:$0xff]
    %v7177 = vld [vmem:[%s7167 + $0x48] sm:$0xff]
    %v7178 = vld [vmem:[%s7167 + $0x50] sm:$0xff]
    %v7179 = vld [vmem:[%s7167 + $0x58] sm:$0xff]
    %v7180 = vld [vmem:[%s7167 + $0x60] sm:$0xff]
    %v7181 = vld [vmem:[%s7167 + $0x68] sm:$0xff]
    %v7182 = vld [vmem:[%s7167 + $0x70] sm:$0xff]
    %v7183 = vld [vmem:[%s7167 + $0x78] sm:$0xff]
    %v7184 = vld [vmem:[%s7167 + $0x80] sm:$0xff]
    %v7185 = vld [vmem:[%s7167 + $0x88] sm:$0xff]
    %v7186 = vld [vmem:[%s7167 + $0x90] sm:$0xff]
    %v7187 = vld [vmem:[%s7167 + $0x98] sm:$0xff]
    %v7188 = vld [vmem:[%s7167 + $0xa0] sm:$0xff]
    %v7189 = vld [vmem:[%s7167 + $0xa8] sm:$0xff]
    %v7190 = vld [vmem:[%s7167 + $0xb0] sm:$0xff]
    %v7191 = vld [vmem:[%s7167 + $0xb8] sm:$0xff]
    %v7192 = vld [vmem:[%s7167 + $0xc0] sm:$0xff]
    %v7193 = vld [vmem:[%s7167 + $0xc8] sm:$0xff]
    %v7194 = vld [vmem:[%s7167 + $0xd0] sm:$0xff]
    %v7195 = vld [vmem:[%s7167 + $0xd8] sm:$0xff]
    %v7196 = vld [vmem:[%s7167 + $0xe0] sm:$0xff]
    %v7197 = vld [vmem:[%s7167 + $0xe8] sm:$0xff]
    %v7198 = vld [vmem:[%s7167 + $0xf0] sm:$0xff]
    %v7199 = vld [vmem:[%s7167 + $0xf8] sm:$0xff]
    %v7232 = vunpack.c.l.b16 %v7168
    %v7233 = vunpack.c.h.b16 %v7168
    %v7234 = vunpack.c.l.b16 %v7169
    %v7235 = vunpack.c.h.b16 %v7169
    %v7236 = vunpack.c.l.b16 %v7170
    %v7237 = vunpack.c.h.b16 %v7170
    %v7238 = vunpack.c.l.b16 %v7171
    %v7239 = vunpack.c.h.b16 %v7171
    %v7240 = vunpack.c.l.b16 %v7172
    %v7241 = vunpack.c.h.b16 %v7172
    %v7242 = vunpack.c.l.b16 %v7173
    %v7243 = vunpack.c.h.b16 %v7173
    %v7244 = vunpack.c.l.b16 %v7174
    %v7245 = vunpack.c.h.b16 %v7174
    %v7246 = vunpack.c.l.b16 %v7175
    %v7247 = vunpack.c.h.b16 %v7175
    %v7248 = vunpack.c.l.b16 %v7176
    %v7249 = vunpack.c.h.b16 %v7176
    %v7250 = vunpack.c.l.b16 %v7177
    %v7251 = vunpack.c.h.b16 %v7177
    %v7252 = vunpack.c.l.b16 %v7178
    %v7253 = vunpack.c.h.b16 %v7178
    %v7254 = vunpack.c.l.b16 %v7179
    %v7255 = vunpack.c.h.b16 %v7179
    %v7256 = vunpack.c.l.b16 %v7180
    %v7257 = vunpack.c.h.b16 %v7180
    %v7258 = vunpack.c.l.b16 %v7181
    %v7259 = vunpack.c.h.b16 %v7181
    %v7260 = vunpack.c.l.b16 %v7182
    %v7261 = vunpack.c.h.b16 %v7182
    %v7262 = vunpack.c.l.b16 %v7183
    %v7263 = vunpack.c.h.b16 %v7183
    %v7264 = vunpack.c.l.b16 %v7184
    %v7265 = vunpack.c.h.b16 %v7184
    %v7266 = vunpack.c.l.b16 %v7185
    %v7267 = vunpack.c.h.b16 %v7185
    %v7268 = vunpack.c.l.b16 %v7186
    %v7269 = vunpack.c.h.b16 %v7186
    %v7270 = vunpack.c.l.b16 %v7187
    %v7271 = vunpack.c.h.b16 %v7187
    %v7272 = vunpack.c.l.b16 %v7188
    %v7273 = vunpack.c.h.b16 %v7188
    %v7274 = vunpack.c.l.b16 %v7189
    %v7275 = vunpack.c.h.b16 %v7189
    %v7276 = vunpack.c.l.b16 %v7190
    %v7277 = vunpack.c.h.b16 %v7190
    %v7278 = vunpack.c.l.b16 %v7191
    %v7279 = vunpack.c.h.b16 %v7191
    %v7280 = vunpack.c.l.b16 %v7192
    %v7281 = vunpack.c.h.b16 %v7192
    %v7282 = vunpack.c.l.b16 %v7193
    %v7283 = vunpack.c.h.b16 %v7193
    %v7284 = vunpack.c.l.b16 %v7194
    %v7285 = vunpack.c.h.b16 %v7194
    %v7286 = vunpack.c.l.b16 %v7195
    %v7287 = vunpack.c.h.b16 %v7195
    %v7288 = vunpack.c.l.b16 %v7196
    %v7289 = vunpack.c.h.b16 %v7196
    %v7290 = vunpack.c.l.b16 %v7197
    %v7291 = vunpack.c.h.b16 %v7197
    %v7292 = vunpack.c.l.b16 %v7198
    %v7293 = vunpack.c.h.b16 %v7198
    %v7294 = vunpack.c.l.b16 %v7199
    %v7295 = vunpack.c.h.b16 %v7199
    %v7296 = vpack.c.b16 %v7234, %v7232
    %v7297 = vpack.c.b16 %v7235, %v7233
    %v7298 = vpack.c.b16 %v7238, %v7236
    %v7299 = vpack.c.b16 %v7239, %v7237
    %v7300 = vpack.c.b16 %v7242, %v7240
    %v7301 = vpack.c.b16 %v7243, %v7241
    %v7302 = vpack.c.b16 %v7246, %v7244
    %v7303 = vpack.c.b16 %v7247, %v7245
    %v7304 = vpack.c.b16 %v7250, %v7248
    %v7305 = vpack.c.b16 %v7251, %v7249
    %v7306 = vpack.c.b16 %v7254, %v7252
    %v7307 = vpack.c.b16 %v7255, %v7253
    %v7308 = vpack.c.b16 %v7258, %v7256
    %v7309 = vpack.c.b16 %v7259, %v7257
    %v7310 = vpack.c.b16 %v7262, %v7260
    %v7311 = vpack.c.b16 %v7263, %v7261
    %v7312 = vpack.c.b16 %v7266, %v7264
    %v7313 = vpack.c.b16 %v7267, %v7265
    %v7314 = vpack.c.b16 %v7270, %v7268
    %v7315 = vpack.c.b16 %v7271, %v7269
    %v7316 = vpack.c.b16 %v7274, %v7272
    %v7317 = vpack.c.b16 %v7275, %v7273
    %v7318 = vpack.c.b16 %v7278, %v7276
    %v7319 = vpack.c.b16 %v7279, %v7277
    %v7320 = vpack.c.b16 %v7282, %v7280
    %v7321 = vpack.c.b16 %v7283, %v7281
    %v7322 = vpack.c.b16 %v7286, %v7284
    %v7323 = vpack.c.b16 %v7287, %v7285
    %v7324 = vpack.c.b16 %v7290, %v7288
    %v7325 = vpack.c.b16 %v7291, %v7289
    %v7326 = vpack.c.b16 %v7294, %v7292
    %v7327 = vpack.c.b16 %v7295, %v7293
    %7360 = vmatprep.subr.bf16.mxu0 %v7311
    %7361 = vmatpush1.bf16.msra.mxu0 %v7310
    %7362 = vmatprep.subr.bf16.mxu0 %v7309
    %7363 = vmatpush1.bf16.msra.mxu0 %v7308
    %7364 = vmatprep.subr.bf16.mxu0 %v7307
    %7365 = vmatpush1.bf16.msra.mxu0 %v7306
    %7366 = vmatprep.subr.bf16.mxu0 %v7305
    %7367 = vmatpush1.bf16.msra.mxu0 %v7304
    %7368 = vmatprep.subr.bf16.mxu0 %v7303
    %7369 = vmatpush1.bf16.msra.mxu0 %v7302
    %7370 = vmatprep.subr.bf16.mxu0 %v7301
    %7371 = vmatpush1.bf16.msra.mxu0 %v7300
    %7372 = vmatprep.subr.bf16.mxu0 %v7299
    %7373 = vmatpush1.bf16.msra.mxu0 %v7298
    %7374 = vmatprep.subr.bf16.mxu0 %v7297
    %7375 = vmatpush1.bf16.msra.mxu0 %v7296
    %7376 = vmatprep.subr.bf16.mxu0 %v7327
    %7377 = vmatpush2.bf16.msra.mxu0 %v7326
    %7378 = vmatprep.subr.bf16.mxu0 %v7325
    %7379 = vmatpush2.bf16.msra.mxu0 %v7324
    %7380 = vmatprep.subr.bf16.mxu0 %v7323
    %7381 = vmatpush2.bf16.msra.mxu0 %v7322
    %7382 = vmatprep.subr.bf16.mxu0 %v7321
    %7383 = vmatpush2.bf16.msra.mxu0 %v7320
    %7384 = vmatprep.subr.bf16.mxu0 %v7319
    %7385 = vmatpush2.bf16.msra.mxu0 %v7318
    %7386 = vmatprep.subr.bf16.mxu0 %v7317
    %7387 = vmatpush2.bf16.msra.mxu0 %v7316
    %7388 = vmatprep.subr.bf16.mxu0 %v7315
    %7389 = vmatpush2.bf16.msra.mxu0 %v7314
    %7390 = vmatprep.subr.bf16.mxu0 %v7313
    %7391 = vmatpush2.bf16.msra.mxu0 %v7312
    %7392 = vmatprep.mubr.bf16.mxu0 %v7152
    %7393 = vmatmul.mubr.bf16.gmra.mxu0 %v7151
    %v7394 = vpop.f32.mrf.mxu0
    %v7395 = vadd.f32 0.0, %v7394
    %v7396 = vpop.f32.mrf.mxu0
    %v7397 = vadd.f32 0.0, %v7396
    %v7398 = vpop.f32.mrf.mxu0
    %v7399 = vadd.f32 0.0, %v7398
    %v7400 = vpop.f32.mrf.mxu0
    %v7401 = vadd.f32 0.0, %v7400
    %7402 = vmatprep.mubr.bf16.mxu0 %v7154
    %7403 = vmatmul.mubr.bf16.gmra.mxu0 %v7153
    %v7404 = vpop.f32.mrf.mxu0
    %v7405 = vadd.f32 0.0, %v7404
    %v7406 = vpop.f32.mrf.mxu0
    %v7407 = vadd.f32 0.0, %v7406
    %v7408 = vpop.f32.mrf.mxu0
    %v7409 = vadd.f32 0.0, %v7408
    %v7410 = vpop.f32.mrf.mxu0
    %v7411 = vadd.f32 0.0, %v7410
    %7412 = vmatprep.mubr.bf16.mxu0 %v7156
    %7413 = vmatmul.mubr.bf16.gmra.mxu0 %v7155
    %v7414 = vpop.f32.mrf.mxu0
    %v7415 = vadd.f32 0.0, %v7414
    %v7416 = vpop.f32.mrf.mxu0
    %v7417 = vadd.f32 0.0, %v7416
    %v7418 = vpop.f32.mrf.mxu0
    %v7419 = vadd.f32 0.0, %v7418
    %v7420 = vpop.f32.mrf.mxu0
    %v7421 = vadd.f32 0.0, %v7420
    %7422 = vmatprep.mubr.bf16.mxu0 %v7158
    %7423 = vmatmul.mubr.bf16.gmra.mxu0 %v7157
    %v7424 = vpop.f32.mrf.mxu0
    %v7425 = vadd.f32 0.0, %v7424
    %v7426 = vpop.f32.mrf.mxu0
    %v7427 = vadd.f32 0.0, %v7426
    %v7428 = vpop.f32.mrf.mxu0
    %v7429 = vadd.f32 0.0, %v7428
    %v7430 = vpop.f32.mrf.mxu0
    %v7431 = vadd.f32 0.0, %v7430
    %7432 = vmatprep.mubr.bf16.mxu0 %v7160
    %7433 = vmatmul.mubr.bf16.gmra.mxu0 %v7159
    %v7434 = vpop.f32.mrf.mxu0
    %v7435 = vadd.f32 0.0, %v7434
    %v7436 = vpop.f32.mrf.mxu0
    %v7437 = vadd.f32 0.0, %v7436
    %v7438 = vpop.f32.mrf.mxu0
    %v7439 = vadd.f32 0.0, %v7438
    %v7440 = vpop.f32.mrf.mxu0
    %v7441 = vadd.f32 0.0, %v7440
    %7442 = vmatprep.mubr.bf16.mxu0 %v7162
    %7443 = vmatmul.mubr.bf16.gmra.mxu0 %v7161
    %v7444 = vpop.f32.mrf.mxu0
    %v7445 = vadd.f32 0.0, %v7444
    %v7446 = vpop.f32.mrf.mxu0
    %v7447 = vadd.f32 0.0, %v7446
    %v7448 = vpop.f32.mrf.mxu0
    %v7449 = vadd.f32 0.0, %v7448
    %v7450 = vpop.f32.mrf.mxu0
    %v7451 = vadd.f32 0.0, %v7450
    %7452 = vmatprep.mubr.bf16.mxu0 %v7164
    %7453 = vmatmul.mubr.bf16.gmra.mxu0 %v7163
    %v7454 = vpop.f32.mrf.mxu0
    %v7455 = vadd.f32 0.0, %v7454
    %v7456 = vpop.f32.mrf.mxu0
    %v7457 = vadd.f32 0.0, %v7456
    %v7458 = vpop.f32.mrf.mxu0
    %v7459 = vadd.f32 0.0, %v7458
    %v7460 = vpop.f32.mrf.mxu0
    %v7461 = vadd.f32 0.0, %v7460
    %7462 = vmatprep.mubr.bf16.mxu0 %v7166
    %7463 = vmatmul.mubr.bf16.gmra.mxu0 %v7165
    %v7464 = vpop.f32.mrf.mxu0
    %v7465 = vadd.f32 0.0, %v7464
    %v7466 = vpop.f32.mrf.mxu0
    %v7467 = vadd.f32 0.0, %v7466
    %v7468 = vpop.f32.mrf.mxu0
    %v7469 = vadd.f32 0.0, %v7468
    %v7470 = vpop.f32.mrf.mxu0
    %v7471 = vadd.f32 0.0, %v7470
    %7472 = vdwg.mxu0
    %v7473 = vadd.f32 %v7087, %v7395
    %v7474 = vadd.f32 %v7088, %v7397
    %v7475 = vadd.f32 %v7089, %v7399
    %v7476 = vadd.f32 %v7090, %v7401
    %v7477 = vadd.f32 %v7091, %v7405
    %v7478 = vadd.f32 %v7092, %v7407
    %v7479 = vadd.f32 %v7093, %v7409
    %v7480 = vadd.f32 %v7094, %v7411
    %v7481 = vadd.f32 %v7095, %v7415
    %v7482 = vadd.f32 %v7096, %v7417
    %v7483 = vadd.f32 %v7097, %v7419
    %v7484 = vadd.f32 %v7098, %v7421
    %v7485 = vadd.f32 %v7099, %v7425
    %v7486 = vadd.f32 %v7100, %v7427
    %v7487 = vadd.f32 %v7101, %v7429
    %v7488 = vadd.f32 %v7102, %v7431
    %v7489 = vadd.f32 %v7103, %v7435
    %v7490 = vadd.f32 %v7104, %v7437
    %v7491 = vadd.f32 %v7105, %v7439
    %v7492 = vadd.f32 %v7106, %v7441
    %v7493 = vadd.f32 %v7107, %v7445
    %v7494 = vadd.f32 %v7108, %v7447
    %v7495 = vadd.f32 %v7109, %v7449
    %v7496 = vadd.f32 %v7110, %v7451
    %v7497 = vadd.f32 %v7111, %v7455
    %v7498 = vadd.f32 %v7112, %v7457
    %v7499 = vadd.f32 %v7113, %v7459
    %v7500 = vadd.f32 %v7114, %v7461
    %v7501 = vadd.f32 %v7115, %v7465
    %v7502 = vadd.f32 %v7116, %v7467
    %v7503 = vadd.f32 %v7117, %v7469
    %v7504 = vadd.f32 %v7118, %v7471
    %v7505 = vmul.f32 %v4742, %v3767
    %v7506 = vmul.f32 %v4743, %v3767
    %v7507 = vmul.f32 %v4744, %v3772
    %v7508 = vmul.f32 %v4745, %v3772
    %v7509 = vmul.f32 %v4746, %v3777
    %v7510 = vmul.f32 %v4747, %v3777
    %v7511 = vmul.f32 %v4748, %v3782
    %v7512 = vmul.f32 %v4749, %v3782
    %v7513 = vmul.f32 %v4750, %v3787
    %v7514 = vmul.f32 %v4751, %v3787
    %v7515 = vmul.f32 %v4752, %v3792
    %v7516 = vmul.f32 %v4753, %v3792
    %v7517 = vmul.f32 %v4754, %v3797
    %v7518 = vmul.f32 %v4755, %v3797
    %v7519 = vmul.f32 %v4756, %v3802
    %v7520 = vmul.f32 %v4757, %v3802
    %v7521 = vmul.f32 %v4758, %v3807
    %v7522 = vmul.f32 %v4759, %v3807
    %v7523 = vmul.f32 %v4760, %v3812
    %v7524 = vmul.f32 %v4761, %v3812
    %v7525 = vmul.f32 %v4762, %v3817
    %v7526 = vmul.f32 %v4763, %v3817
    %v7527 = vmul.f32 %v4764, %v3822
    %v7528 = vmul.f32 %v4765, %v3822
    %v7529 = vmul.f32 %v4766, %v3827
    %v7530 = vmul.f32 %v4767, %v3827
    %v7531 = vmul.f32 %v4768, %v3832
    %v7532 = vmul.f32 %v4769, %v3832
    %v7533 = vmul.f32 %v4770, %v3837
    %v7534 = vmul.f32 %v4771, %v3837
    %v7535 = vmul.f32 %v4740, %v3842
    %v7536 = vmul.f32 %v4741, %v3842
    %v7537 = vpack.c.bf16 %v7507, %v7505
    %v7538 = vpack.c.bf16 %v7508, %v7506
    %v7539 = vpack.c.bf16 %v7511, %v7509
    %v7540 = vpack.c.bf16 %v7512, %v7510
    %v7541 = vpack.c.bf16 %v7515, %v7513
    %v7542 = vpack.c.bf16 %v7516, %v7514
    %v7543 = vpack.c.bf16 %v7519, %v7517
    %v7544 = vpack.c.bf16 %v7520, %v7518
    %v7545 = vpack.c.bf16 %v7523, %v7521
    %v7546 = vpack.c.bf16 %v7524, %v7522
    %v7547 = vpack.c.bf16 %v7527, %v7525
    %v7548 = vpack.c.bf16 %v7528, %v7526
    %v7549 = vpack.c.bf16 %v7531, %v7529
    %v7550 = vpack.c.bf16 %v7532, %v7530
    %v7551 = vpack.c.bf16 %v7535, %v7533
    %v7552 = vpack.c.bf16 %v7536, %v7534
    %s7553 = scalar_lea.vmem [#allocation10], 1792
    %v7554 = vld [vmem:[%s7553] sm:$0xff]
    %v7555 = vld [vmem:[%s7553 + $0x8] sm:$0xff]
    %v7556 = vld [vmem:[%s7553 + $0x10] sm:$0xff]
    %v7557 = vld [vmem:[%s7553 + $0x18] sm:$0xff]
    %v7558 = vld [vmem:[%s7553 + $0x20] sm:$0xff]
    %v7559 = vld [vmem:[%s7553 + $0x28] sm:$0xff]
    %v7560 = vld [vmem:[%s7553 + $0x30] sm:$0xff]
    %v7561 = vld [vmem:[%s7553 + $0x38] sm:$0xff]
    %v7562 = vld [vmem:[%s7553 + $0x40] sm:$0xff]
    %v7563 = vld [vmem:[%s7553 + $0x48] sm:$0xff]
    %v7564 = vld [vmem:[%s7553 + $0x50] sm:$0xff]
    %v7565 = vld [vmem:[%s7553 + $0x58] sm:$0xff]
    %v7566 = vld [vmem:[%s7553 + $0x60] sm:$0xff]
    %v7567 = vld [vmem:[%s7553 + $0x68] sm:$0xff]
    %v7568 = vld [vmem:[%s7553 + $0x70] sm:$0xff]
    %v7569 = vld [vmem:[%s7553 + $0x78] sm:$0xff]
    %v7570 = vld [vmem:[%s7553 + $0x80] sm:$0xff]
    %v7571 = vld [vmem:[%s7553 + $0x88] sm:$0xff]
    %v7572 = vld [vmem:[%s7553 + $0x90] sm:$0xff]
    %v7573 = vld [vmem:[%s7553 + $0x98] sm:$0xff]
    %v7574 = vld [vmem:[%s7553 + $0xa0] sm:$0xff]
    %v7575 = vld [vmem:[%s7553 + $0xa8] sm:$0xff]
    %v7576 = vld [vmem:[%s7553 + $0xb0] sm:$0xff]
    %v7577 = vld [vmem:[%s7553 + $0xb8] sm:$0xff]
    %v7578 = vld [vmem:[%s7553 + $0xc0] sm:$0xff]
    %v7579 = vld [vmem:[%s7553 + $0xc8] sm:$0xff]
    %v7580 = vld [vmem:[%s7553 + $0xd0] sm:$0xff]
    %v7581 = vld [vmem:[%s7553 + $0xd8] sm:$0xff]
    %v7582 = vld [vmem:[%s7553 + $0xe0] sm:$0xff]
    %v7583 = vld [vmem:[%s7553 + $0xe8] sm:$0xff]
    %v7584 = vld [vmem:[%s7553 + $0xf0] sm:$0xff]
    %v7585 = vld [vmem:[%s7553 + $0xf8] sm:$0xff]
    %v7618 = vunpack.c.l.b16 %v7554
    %v7619 = vunpack.c.h.b16 %v7554
    %v7620 = vunpack.c.l.b16 %v7555
    %v7621 = vunpack.c.h.b16 %v7555
    %v7622 = vunpack.c.l.b16 %v7556
    %v7623 = vunpack.c.h.b16 %v7556
    %v7624 = vunpack.c.l.b16 %v7557
    %v7625 = vunpack.c.h.b16 %v7557
    %v7626 = vunpack.c.l.b16 %v7558
    %v7627 = vunpack.c.h.b16 %v7558
    %v7628 = vunpack.c.l.b16 %v7559
    %v7629 = vunpack.c.h.b16 %v7559
    %v7630 = vunpack.c.l.b16 %v7560
    %v7631 = vunpack.c.h.b16 %v7560
    %v7632 = vunpack.c.l.b16 %v7561
    %v7633 = vunpack.c.h.b16 %v7561
    %v7634 = vunpack.c.l.b16 %v7562
    %v7635 = vunpack.c.h.b16 %v7562
    %v7636 = vunpack.c.l.b16 %v7563
    %v7637 = vunpack.c.h.b16 %v7563
    %v7638 = vunpack.c.l.b16 %v7564
    %v7639 = vunpack.c.h.b16 %v7564
    %v7640 = vunpack.c.l.b16 %v7565
    %v7641 = vunpack.c.h.b16 %v7565
    %v7642 = vunpack.c.l.b16 %v7566
    %v7643 = vunpack.c.h.b16 %v7566
    %v7644 = vunpack.c.l.b16 %v7567
    %v7645 = vunpack.c.h.b16 %v7567
    %v7646 = vunpack.c.l.b16 %v7568
    %v7647 = vunpack.c.h.b16 %v7568
    %v7648 = vunpack.c.l.b16 %v7569
    %v7649 = vunpack.c.h.b16 %v7569
    %v7650 = vunpack.c.l.b16 %v7570
    %v7651 = vunpack.c.h.b16 %v7570
    %v7652 = vunpack.c.l.b16 %v7571
    %v7653 = vunpack.c.h.b16 %v7571
    %v7654 = vunpack.c.l.b16 %v7572
    %v7655 = vunpack.c.h.b16 %v7572
    %v7656 = vunpack.c.l.b16 %v7573
    %v7657 = vunpack.c.h.b16 %v7573
    %v7658 = vunpack.c.l.b16 %v7574
    %v7659 = vunpack.c.h.b16 %v7574
    %v7660 = vunpack.c.l.b16 %v7575
    %v7661 = vunpack.c.h.b16 %v7575
    %v7662 = vunpack.c.l.b16 %v7576
    %v7663 = vunpack.c.h.b16 %v7576
    %v7664 = vunpack.c.l.b16 %v7577
    %v7665 = vunpack.c.h.b16 %v7577
    %v7666 = vunpack.c.l.b16 %v7578
    %v7667 = vunpack.c.h.b16 %v7578
    %v7668 = vunpack.c.l.b16 %v7579
    %v7669 = vunpack.c.h.b16 %v7579
    %v7670 = vunpack.c.l.b16 %v7580
    %v7671 = vunpack.c.h.b16 %v7580
    %v7672 = vunpack.c.l.b16 %v7581
    %v7673 = vunpack.c.h.b16 %v7581
    %v7674 = vunpack.c.l.b16 %v7582
    %v7675 = vunpack.c.h.b16 %v7582
    %v7676 = vunpack.c.l.b16 %v7583
    %v7677 = vunpack.c.h.b16 %v7583
    %v7678 = vunpack.c.l.b16 %v7584
    %v7679 = vunpack.c.h.b16 %v7584
    %v7680 = vunpack.c.l.b16 %v7585
    %v7681 = vunpack.c.h.b16 %v7585
    %v7682 = vpack.c.b16 %v7620, %v7618
    %v7683 = vpack.c.b16 %v7621, %v7619
    %v7684 = vpack.c.b16 %v7624, %v7622
    %v7685 = vpack.c.b16 %v7625, %v7623
    %v7686 = vpack.c.b16 %v7628, %v7626
    %v7687 = vpack.c.b16 %v7629, %v7627
    %v7688 = vpack.c.b16 %v7632, %v7630
    %v7689 = vpack.c.b16 %v7633, %v7631
    %v7690 = vpack.c.b16 %v7636, %v7634
    %v7691 = vpack.c.b16 %v7637, %v7635
    %v7692 = vpack.c.b16 %v7640, %v7638
    %v7693 = vpack.c.b16 %v7641, %v7639
    %v7694 = vpack.c.b16 %v7644, %v7642
    %v7695 = vpack.c.b16 %v7645, %v7643
    %v7696 = vpack.c.b16 %v7648, %v7646
    %v7697 = vpack.c.b16 %v7649, %v7647
    %v7698 = vpack.c.b16 %v7652, %v7650
    %v7699 = vpack.c.b16 %v7653, %v7651
    %v7700 = vpack.c.b16 %v7656, %v7654
    %v7701 = vpack.c.b16 %v7657, %v7655
    %v7702 = vpack.c.b16 %v7660, %v7658
    %v7703 = vpack.c.b16 %v7661, %v7659
    %v7704 = vpack.c.b16 %v7664, %v7662
    %v7705 = vpack.c.b16 %v7665, %v7663
    %v7706 = vpack.c.b16 %v7668, %v7666
    %v7707 = vpack.c.b16 %v7669, %v7667
    %v7708 = vpack.c.b16 %v7672, %v7670
    %v7709 = vpack.c.b16 %v7673, %v7671
    %v7710 = vpack.c.b16 %v7676, %v7674
    %v7711 = vpack.c.b16 %v7677, %v7675
    %v7712 = vpack.c.b16 %v7680, %v7678
    %v7713 = vpack.c.b16 %v7681, %v7679
    %7746 = vmatprep.subr.bf16.mxu0 %v7697
    %7747 = vmatpush1.bf16.msra.mxu0 %v7696
    %7748 = vmatprep.subr.bf16.mxu0 %v7695
    %7749 = vmatpush1.bf16.msra.mxu0 %v7694
    %7750 = vmatprep.subr.bf16.mxu0 %v7693
    %7751 = vmatpush1.bf16.msra.mxu0 %v7692
    %7752 = vmatprep.subr.bf16.mxu0 %v7691
    %7753 = vmatpush1.bf16.msra.mxu0 %v7690
    %7754 = vmatprep.subr.bf16.mxu0 %v7689
    %7755 = vmatpush1.bf16.msra.mxu0 %v7688
    %7756 = vmatprep.subr.bf16.mxu0 %v7687
    %7757 = vmatpush1.bf16.msra.mxu0 %v7686
    %7758 = vmatprep.subr.bf16.mxu0 %v7685
    %7759 = vmatpush1.bf16.msra.mxu0 %v7684
    %7760 = vmatprep.subr.bf16.mxu0 %v7683
    %7761 = vmatpush1.bf16.msra.mxu0 %v7682
    %7762 = vmatprep.subr.bf16.mxu0 %v7713
    %7763 = vmatpush2.bf16.msra.mxu0 %v7712
    %7764 = vmatprep.subr.bf16.mxu0 %v7711
    %7765 = vmatpush2.bf16.msra.mxu0 %v7710
    %7766 = vmatprep.subr.bf16.mxu0 %v7709
    %7767 = vmatpush2.bf16.msra.mxu0 %v7708
    %7768 = vmatprep.subr.bf16.mxu0 %v7707
    %7769 = vmatpush2.bf16.msra.mxu0 %v7706
    %7770 = vmatprep.subr.bf16.mxu0 %v7705
    %7771 = vmatpush2.bf16.msra.mxu0 %v7704
    %7772 = vmatprep.subr.bf16.mxu0 %v7703
    %7773 = vmatpush2.bf16.msra.mxu0 %v7702
    %7774 = vmatprep.subr.bf16.mxu0 %v7701
    %7775 = vmatpush2.bf16.msra.mxu0 %v7700
    %7776 = vmatprep.subr.bf16.mxu0 %v7699
    %7777 = vmatpush2.bf16.msra.mxu0 %v7698
    %7778 = vmatprep.mubr.bf16.mxu0 %v7538
    %7779 = vmatmul.mubr.bf16.gmra.mxu0 %v7537
    %v7780 = vpop.f32.mrf.mxu0
    %v7781 = vadd.f32 0.0, %v7780
    %v7782 = vpop.f32.mrf.mxu0
    %v7783 = vadd.f32 0.0, %v7782
    %v7784 = vpop.f32.mrf.mxu0
    %v7785 = vadd.f32 0.0, %v7784
    %v7786 = vpop.f32.mrf.mxu0
    %v7787 = vadd.f32 0.0, %v7786
    %7788 = vmatprep.mubr.bf16.mxu0 %v7540
    %7789 = vmatmul.mubr.bf16.gmra.mxu0 %v7539
    %v7790 = vpop.f32.mrf.mxu0
    %v7791 = vadd.f32 0.0, %v7790
    %v7792 = vpop.f32.mrf.mxu0
    %v7793 = vadd.f32 0.0, %v7792
    %v7794 = vpop.f32.mrf.mxu0
    %v7795 = vadd.f32 0.0, %v7794
    %v7796 = vpop.f32.mrf.mxu0
    %v7797 = vadd.f32 0.0, %v7796
    %7798 = vmatprep.mubr.bf16.mxu0 %v7542
    %7799 = vmatmul.mubr.bf16.gmra.mxu0 %v7541
    %v7800 = vpop.f32.mrf.mxu0
    %v7801 = vadd.f32 0.0, %v7800
    %v7802 = vpop.f32.mrf.mxu0
    %v7803 = vadd.f32 0.0, %v7802
    %v7804 = vpop.f32.mrf.mxu0
    %v7805 = vadd.f32 0.0, %v7804
    %v7806 = vpop.f32.mrf.mxu0
    %v7807 = vadd.f32 0.0, %v7806
    %7808 = vmatprep.mubr.bf16.mxu0 %v7544
    %7809 = vmatmul.mubr.bf16.gmra.mxu0 %v7543
    %v7810 = vpop.f32.mrf.mxu0
    %v7811 = vadd.f32 0.0, %v7810
    %v7812 = vpop.f32.mrf.mxu0
    %v7813 = vadd.f32 0.0, %v7812
    %v7814 = vpop.f32.mrf.mxu0
    %v7815 = vadd.f32 0.0, %v7814
    %v7816 = vpop.f32.mrf.mxu0
    %v7817 = vadd.f32 0.0, %v7816
    %7818 = vmatprep.mubr.bf16.mxu0 %v7546
    %7819 = vmatmul.mubr.bf16.gmra.mxu0 %v7545
    %v7820 = vpop.f32.mrf.mxu0
    %v7821 = vadd.f32 0.0, %v7820
    %v7822 = vpop.f32.mrf.mxu0
    %v7823 = vadd.f32 0.0, %v7822
    %v7824 = vpop.f32.mrf.mxu0
    %v7825 = vadd.f32 0.0, %v7824
    %v7826 = vpop.f32.mrf.mxu0
    %v7827 = vadd.f32 0.0, %v7826
    %7828 = vmatprep.mubr.bf16.mxu0 %v7548
    %7829 = vmatmul.mubr.bf16.gmra.mxu0 %v7547
    %v7830 = vpop.f32.mrf.mxu0
    %v7831 = vadd.f32 0.0, %v7830
    %v7832 = vpop.f32.mrf.mxu0
    %v7833 = vadd.f32 0.0, %v7832
    %v7834 = vpop.f32.mrf.mxu0
    %v7835 = vadd.f32 0.0, %v7834
    %v7836 = vpop.f32.mrf.mxu0
    %v7837 = vadd.f32 0.0, %v7836
    %7838 = vmatprep.mubr.bf16.mxu0 %v7550
    %7839 = vmatmul.mubr.bf16.gmra.mxu0 %v7549
    %v7840 = vpop.f32.mrf.mxu0
    %v7841 = vadd.f32 0.0, %v7840
    %v7842 = vpop.f32.mrf.mxu0
    %v7843 = vadd.f32 0.0, %v7842
    %v7844 = vpop.f32.mrf.mxu0
    %v7845 = vadd.f32 0.0, %v7844
    %v7846 = vpop.f32.mrf.mxu0
    %v7847 = vadd.f32 0.0, %v7846
    %7848 = vmatprep.mubr.bf16.mxu0 %v7552
    %7849 = vmatmul.mubr.bf16.gmra.mxu0 %v7551
    %v7850 = vpop.f32.mrf.mxu0
    %v7851 = vadd.f32 0.0, %v7850
    %v7852 = vpop.f32.mrf.mxu0
    %v7853 = vadd.f32 0.0, %v7852
    %v7854 = vpop.f32.mrf.mxu0
    %v7855 = vadd.f32 0.0, %v7854
    %v7856 = vpop.f32.mrf.mxu0
    %v7857 = vadd.f32 0.0, %v7856
    %7858 = vdwg.mxu0
    %v7859 = vadd.f32 %v7473, %v7781
    %v7860 = vadd.f32 %v7474, %v7783
    %v7861 = vadd.f32 %v7475, %v7785
    %v7862 = vadd.f32 %v7476, %v7787
    %v7863 = vadd.f32 %v7477, %v7791
    %v7864 = vadd.f32 %v7478, %v7793
    %v7865 = vadd.f32 %v7479, %v7795
    %v7866 = vadd.f32 %v7480, %v7797
    %v7867 = vadd.f32 %v7481, %v7801
    %v7868 = vadd.f32 %v7482, %v7803
    %v7869 = vadd.f32 %v7483, %v7805
    %v7870 = vadd.f32 %v7484, %v7807
    %v7871 = vadd.f32 %v7485, %v7811
    %v7872 = vadd.f32 %v7486, %v7813
    %v7873 = vadd.f32 %v7487, %v7815
    %v7874 = vadd.f32 %v7488, %v7817
    %v7875 = vadd.f32 %v7489, %v7821
    %v7876 = vadd.f32 %v7490, %v7823
    %v7877 = vadd.f32 %v7491, %v7825
    %v7878 = vadd.f32 %v7492, %v7827
    %v7879 = vadd.f32 %v7493, %v7831
    %v7880 = vadd.f32 %v7494, %v7833
    %v7881 = vadd.f32 %v7495, %v7835
    %v7882 = vadd.f32 %v7496, %v7837
    %v7883 = vadd.f32 %v7497, %v7841
    %v7884 = vadd.f32 %v7498, %v7843
    %v7885 = vadd.f32 %v7499, %v7845
    %v7886 = vadd.f32 %v7500, %v7847
    %v7887 = vadd.f32 %v7501, %v7851
    %v7888 = vadd.f32 %v7502, %v7853
    %v7889 = vadd.f32 %v7503, %v7855
    %v7890 = vadd.f32 %v7504, %v7857
    %v7891 = vmul.f32 %v5601, %v4233
    %v7892 = vmul.f32 %v5602, %v4233
    %v7893 = vmul.f32 %v5599, %v4238
    %v7894 = vmul.f32 %v5600, %v4238
    %v7895 = vmul.f32 %v5597, %v4243
    %v7896 = vmul.f32 %v5598, %v4243
    %v7897 = vmul.f32 %v5595, %v4248
    %v7898 = vmul.f32 %v5596, %v4248
    %v7899 = vmul.f32 %v5593, %v4253
    %v7900 = vmul.f32 %v5594, %v4253
    %v7901 = vmul.f32 %v5591, %v4258
    %v7902 = vmul.f32 %v5592, %v4258
    %v7903 = vmul.f32 %v5589, %v4263
    %v7904 = vmul.f32 %v5590, %v4263
    %v7905 = vmul.f32 %v5587, %v4268
    %v7906 = vmul.f32 %v5588, %v4268
    %v7907 = vmul.f32 %v5585, %v4273
    %v7908 = vmul.f32 %v5586, %v4273
    %v7909 = vmul.f32 %v5583, %v4278
    %v7910 = vmul.f32 %v5584, %v4278
    %v7911 = vmul.f32 %v5581, %v4283
    %v7912 = vmul.f32 %v5582, %v4283
    %v7913 = vmul.f32 %v5579, %v4288
    %v7914 = vmul.f32 %v5580, %v4288
    %v7915 = vmul.f32 %v5577, %v4293
    %v7916 = vmul.f32 %v5578, %v4293
    %v7917 = vmul.f32 %v5575, %v4298
    %v7918 = vmul.f32 %v5576, %v4298
    %v7919 = vmul.f32 %v5605, %v4303
    %v7920 = vmul.f32 %v5606, %v4303
    %v7921 = vmul.f32 %v5603, %v4308
    %v7922 = vmul.f32 %v5604, %v4308
    %v7923 = vpack.c.bf16 %v7893, %v7891
    %v7924 = vpack.c.bf16 %v7894, %v7892
    %v7925 = vpack.c.bf16 %v7897, %v7895
    %v7926 = vpack.c.bf16 %v7898, %v7896
    %v7927 = vpack.c.bf16 %v7901, %v7899
    %v7928 = vpack.c.bf16 %v7902, %v7900
    %v7929 = vpack.c.bf16 %v7905, %v7903
    %v7930 = vpack.c.bf16 %v7906, %v7904
    %v7931 = vpack.c.bf16 %v7909, %v7907
    %v7932 = vpack.c.bf16 %v7910, %v7908
    %v7933 = vpack.c.bf16 %v7913, %v7911
    %v7934 = vpack.c.bf16 %v7914, %v7912
    %v7935 = vpack.c.bf16 %v7917, %v7915
    %v7936 = vpack.c.bf16 %v7918, %v7916
    %v7937 = vpack.c.bf16 %v7921, %v7919
    %v7938 = vpack.c.bf16 %v7922, %v7920
    %s7939 = scalar_lea.vmem [#allocation10], 2048
    %v7940 = vld [vmem:[%s7939] sm:$0xff]
    %v7941 = vld [vmem:[%s7939 + $0x8] sm:$0xff]
    %v7942 = vld [vmem:[%s7939 + $0x10] sm:$0xff]
    %v7943 = vld [vmem:[%s7939 + $0x18] sm:$0xff]
    %v7944 = vld [vmem:[%s7939 + $0x20] sm:$0xff]
    %v7945 = vld [vmem:[%s7939 + $0x28] sm:$0xff]
    %v7946 = vld [vmem:[%s7939 + $0x30] sm:$0xff]
    %v7947 = vld [vmem:[%s7939 + $0x38] sm:$0xff]
    %v7948 = vld [vmem:[%s7939 + $0x40] sm:$0xff]
    %v7949 = vld [vmem:[%s7939 + $0x48] sm:$0xff]
    %v7950 = vld [vmem:[%s7939 + $0x50] sm:$0xff]
    %v7951 = vld [vmem:[%s7939 + $0x58] sm:$0xff]
    %v7952 = vld [vmem:[%s7939 + $0x60] sm:$0xff]
    %v7953 = vld [vmem:[%s7939 + $0x68] sm:$0xff]
    %v7954 = vld [vmem:[%s7939 + $0x70] sm:$0xff]
    %v7955 = vld [vmem:[%s7939 + $0x78] sm:$0xff]
    %v7956 = vld [vmem:[%s7939 + $0x80] sm:$0xff]
    %v7957 = vld [vmem:[%s7939 + $0x88] sm:$0xff]
    %v7958 = vld [vmem:[%s7939 + $0x90] sm:$0xff]
    %v7959 = vld [vmem:[%s7939 + $0x98] sm:$0xff]
    %v7960 = vld [vmem:[%s7939 + $0xa0] sm:$0xff]
    %v7961 = vld [vmem:[%s7939 + $0xa8] sm:$0xff]
    %v7962 = vld [vmem:[%s7939 + $0xb0] sm:$0xff]
    %v7963 = vld [vmem:[%s7939 + $0xb8] sm:$0xff]
    %v7964 = vld [vmem:[%s7939 + $0xc0] sm:$0xff]
    %v7965 = vld [vmem:[%s7939 + $0xc8] sm:$0xff]
    %v7966 = vld [vmem:[%s7939 + $0xd0] sm:$0xff]
    %v7967 = vld [vmem:[%s7939 + $0xd8] sm:$0xff]
    %v7968 = vld [vmem:[%s7939 + $0xe0] sm:$0xff]
    %v7969 = vld [vmem:[%s7939 + $0xe8] sm:$0xff]
    %v7970 = vld [vmem:[%s7939 + $0xf0] sm:$0xff]
    %v7971 = vld [vmem:[%s7939 + $0xf8] sm:$0xff]
    %v8004 = vunpack.c.l.b16 %v7940
    %v8005 = vunpack.c.h.b16 %v7940
    %v8006 = vunpack.c.l.b16 %v7941
    %v8007 = vunpack.c.h.b16 %v7941
    %v8008 = vunpack.c.l.b16 %v7942
    %v8009 = vunpack.c.h.b16 %v7942
    %v8010 = vunpack.c.l.b16 %v7943
    %v8011 = vunpack.c.h.b16 %v7943
    %v8012 = vunpack.c.l.b16 %v7944
    %v8013 = vunpack.c.h.b16 %v7944
    %v8014 = vunpack.c.l.b16 %v7945
    %v8015 = vunpack.c.h.b16 %v7945
    %v8016 = vunpack.c.l.b16 %v7946
    %v8017 = vunpack.c.h.b16 %v7946
    %v8018 = vunpack.c.l.b16 %v7947
    %v8019 = vunpack.c.h.b16 %v7947
    %v8020 = vunpack.c.l.b16 %v7948
    %v8021 = vunpack.c.h.b16 %v7948
    %v8022 = vunpack.c.l.b16 %v7949
    %v8023 = vunpack.c.h.b16 %v7949
    %v8024 = vunpack.c.l.b16 %v7950
    %v8025 = vunpack.c.h.b16 %v7950
    %v8026 = vunpack.c.l.b16 %v7951
    %v8027 = vunpack.c.h.b16 %v7951
    %v8028 = vunpack.c.l.b16 %v7952
    %v8029 = vunpack.c.h.b16 %v7952
    %v8030 = vunpack.c.l.b16 %v7953
    %v8031 = vunpack.c.h.b16 %v7953
    %v8032 = vunpack.c.l.b16 %v7954
    %v8033 = vunpack.c.h.b16 %v7954
    %v8034 = vunpack.c.l.b16 %v7955
    %v8035 = vunpack.c.h.b16 %v7955
    %v8036 = vunpack.c.l.b16 %v7956
    %v8037 = vunpack.c.h.b16 %v7956
    %v8038 = vunpack.c.l.b16 %v7957
    %v8039 = vunpack.c.h.b16 %v7957
    %v8040 = vunpack.c.l.b16 %v7958
    %v8041 = vunpack.c.h.b16 %v7958
    %v8042 = vunpack.c.l.b16 %v7959
    %v8043 = vunpack.c.h.b16 %v7959
    %v8044 = vunpack.c.l.b16 %v7960
    %v8045 = vunpack.c.h.b16 %v7960
    %v8046 = vunpack.c.l.b16 %v7961
    %v8047 = vunpack.c.h.b16 %v7961
    %v8048 = vunpack.c.l.b16 %v7962
    %v8049 = vunpack.c.h.b16 %v7962
    %v8050 = vunpack.c.l.b16 %v7963
    %v8051 = vunpack.c.h.b16 %v7963
    %v8052 = vunpack.c.l.b16 %v7964
    %v8053 = vunpack.c.h.b16 %v7964
    %v8054 = vunpack.c.l.b16 %v7965
    %v8055 = vunpack.c.h.b16 %v7965
    %v8056 = vunpack.c.l.b16 %v7966
    %v8057 = vunpack.c.h.b16 %v7966
    %v8058 = vunpack.c.l.b16 %v7967
    %v8059 = vunpack.c.h.b16 %v7967
    %v8060 = vunpack.c.l.b16 %v7968
    %v8061 = vunpack.c.h.b16 %v7968
    %v8062 = vunpack.c.l.b16 %v7969
    %v8063 = vunpack.c.h.b16 %v7969
    %v8064 = vunpack.c.l.b16 %v7970
    %v8065 = vunpack.c.h.b16 %v7970
    %v8066 = vunpack.c.l.b16 %v7971
    %v8067 = vunpack.c.h.b16 %v7971
    %v8068 = vpack.c.b16 %v8006, %v8004
    %v8069 = vpack.c.b16 %v8007, %v8005
    %v8070 = vpack.c.b16 %v8010, %v8008
    %v8071 = vpack.c.b16 %v8011, %v8009
    %v8072 = vpack.c.b16 %v8014, %v8012
    %v8073 = vpack.c.b16 %v8015, %v8013
    %v8074 = vpack.c.b16 %v8018, %v8016
    %v8075 = vpack.c.b16 %v8019, %v8017
    %v8076 = vpack.c.b16 %v8022, %v8020
    %v8077 = vpack.c.b16 %v8023, %v8021
    %v8078 = vpack.c.b16 %v8026, %v8024
    %v8079 = vpack.c.b16 %v8027, %v8025
    %v8080 = vpack.c.b16 %v8030, %v8028
    %v8081 = vpack.c.b16 %v8031, %v8029
    %v8082 = vpack.c.b16 %v8034, %v8032
    %v8083 = vpack.c.b16 %v8035, %v8033
    %v8084 = vpack.c.b16 %v8038, %v8036
    %v8085 = vpack.c.b16 %v8039, %v8037
    %v8086 = vpack.c.b16 %v8042, %v8040
    %v8087 = vpack.c.b16 %v8043, %v8041
    %v8088 = vpack.c.b16 %v8046, %v8044
    %v8089 = vpack.c.b16 %v8047, %v8045
    %v8090 = vpack.c.b16 %v8050, %v8048
    %v8091 = vpack.c.b16 %v8051, %v8049
    %v8092 = vpack.c.b16 %v8054, %v8052
    %v8093 = vpack.c.b16 %v8055, %v8053
    %v8094 = vpack.c.b16 %v8058, %v8056
    %v8095 = vpack.c.b16 %v8059, %v8057
    %v8096 = vpack.c.b16 %v8062, %v8060
    %v8097 = vpack.c.b16 %v8063, %v8061
    %v8098 = vpack.c.b16 %v8066, %v8064
    %v8099 = vpack.c.b16 %v8067, %v8065
    %8132 = vmatprep.subr.bf16.mxu0 %v8083
    %8133 = vmatpush1.bf16.msra.mxu0 %v8082
    %8134 = vmatprep.subr.bf16.mxu0 %v8081
    %8135 = vmatpush1.bf16.msra.mxu0 %v8080
    %8136 = vmatprep.subr.bf16.mxu0 %v8079
    %8137 = vmatpush1.bf16.msra.mxu0 %v8078
    %8138 = vmatprep.subr.bf16.mxu0 %v8077
    %8139 = vmatpush1.bf16.msra.mxu0 %v8076
    %8140 = vmatprep.subr.bf16.mxu0 %v8075
    %8141 = vmatpush1.bf16.msra.mxu0 %v8074
    %8142 = vmatprep.subr.bf16.mxu0 %v8073
    %8143 = vmatpush1.bf16.msra.mxu0 %v8072
    %8144 = vmatprep.subr.bf16.mxu0 %v8071
    %8145 = vmatpush1.bf16.msra.mxu0 %v8070
    %8146 = vmatprep.subr.bf16.mxu0 %v8069
    %8147 = vmatpush1.bf16.msra.mxu0 %v8068
    %8148 = vmatprep.subr.bf16.mxu0 %v8099
    %8149 = vmatpush2.bf16.msra.mxu0 %v8098
    %8150 = vmatprep.subr.bf16.mxu0 %v8097
    %8151 = vmatpush2.bf16.msra.mxu0 %v8096
    %8152 = vmatprep.subr.bf16.mxu0 %v8095
    %8153 = vmatpush2.bf16.msra.mxu0 %v8094
    %8154 = vmatprep.subr.bf16.mxu0 %v8093
    %8155 = vmatpush2.bf16.msra.mxu0 %v8092
    %8156 = vmatprep.subr.bf16.mxu0 %v8091
    %8157 = vmatpush2.bf16.msra.mxu0 %v8090
    %8158 = vmatprep.subr.bf16.mxu0 %v8089
    %8159 = vmatpush2.bf16.msra.mxu0 %v8088
    %8160 = vmatprep.subr.bf16.mxu0 %v8087
    %8161 = vmatpush2.bf16.msra.mxu0 %v8086
    %8162 = vmatprep.subr.bf16.mxu0 %v8085
    %8163 = vmatpush2.bf16.msra.mxu0 %v8084
    %8164 = vmatprep.mubr.bf16.mxu0 %v7924
    %8165 = vmatmul.mubr.bf16.gmra.mxu0 %v7923
    %v8166 = vpop.f32.mrf.mxu0
    %v8167 = vadd.f32 0.0, %v8166
    %v8168 = vpop.f32.mrf.mxu0
    %v8169 = vadd.f32 0.0, %v8168
    %v8170 = vpop.f32.mrf.mxu0
    %v8171 = vadd.f32 0.0, %v8170
    %v8172 = vpop.f32.mrf.mxu0
    %v8173 = vadd.f32 0.0, %v8172
    %8174 = vmatprep.mubr.bf16.mxu0 %v7926
    %8175 = vmatmul.mubr.bf16.gmra.mxu0 %v7925
    %v8176 = vpop.f32.mrf.mxu0
    %v8177 = vadd.f32 0.0, %v8176
    %v8178 = vpop.f32.mrf.mxu0
    %v8179 = vadd.f32 0.0, %v8178
    %v8180 = vpop.f32.mrf.mxu0
    %v8181 = vadd.f32 0.0, %v8180
    %v8182 = vpop.f32.mrf.mxu0
    %v8183 = vadd.f32 0.0, %v8182
    %8184 = vmatprep.mubr.bf16.mxu0 %v7928
    %8185 = vmatmul.mubr.bf16.gmra.mxu0 %v7927
    %v8186 = vpop.f32.mrf.mxu0
    %v8187 = vadd.f32 0.0, %v8186
    %v8188 = vpop.f32.mrf.mxu0
    %v8189 = vadd.f32 0.0, %v8188
    %v8190 = vpop.f32.mrf.mxu0
    %v8191 = vadd.f32 0.0, %v8190
    %v8192 = vpop.f32.mrf.mxu0
    %v8193 = vadd.f32 0.0, %v8192
    %8194 = vmatprep.mubr.bf16.mxu0 %v7930
    %8195 = vmatmul.mubr.bf16.gmra.mxu0 %v7929
    %v8196 = vpop.f32.mrf.mxu0
    %v8197 = vadd.f32 0.0, %v8196
    %v8198 = vpop.f32.mrf.mxu0
    %v8199 = vadd.f32 0.0, %v8198
    %v8200 = vpop.f32.mrf.mxu0
    %v8201 = vadd.f32 0.0, %v8200
    %v8202 = vpop.f32.mrf.mxu0
    %v8203 = vadd.f32 0.0, %v8202
    %8204 = vmatprep.mubr.bf16.mxu0 %v7932
    %8205 = vmatmul.mubr.bf16.gmra.mxu0 %v7931
    %v8206 = vpop.f32.mrf.mxu0
    %v8207 = vadd.f32 0.0, %v8206
    %v8208 = vpop.f32.mrf.mxu0
    %v8209 = vadd.f32 0.0, %v8208
    %v8210 = vpop.f32.mrf.mxu0
    %v8211 = vadd.f32 0.0, %v8210
    %v8212 = vpop.f32.mrf.mxu0
    %v8213 = vadd.f32 0.0, %v8212
    %8214 = vmatprep.mubr.bf16.mxu0 %v7934
    %8215 = vmatmul.mubr.bf16.gmra.mxu0 %v7933
    %v8216 = vpop.f32.mrf.mxu0
    %v8217 = vadd.f32 0.0, %v8216
    %v8218 = vpop.f32.mrf.mxu0
    %v8219 = vadd.f32 0.0, %v8218
    %v8220 = vpop.f32.mrf.mxu0
    %v8221 = vadd.f32 0.0, %v8220
    %v8222 = vpop.f32.mrf.mxu0
    %v8223 = vadd.f32 0.0, %v8222
    %8224 = vmatprep.mubr.bf16.mxu0 %v7936
    %8225 = vmatmul.mubr.bf16.gmra.mxu0 %v7935
    %v8226 = vpop.f32.mrf.mxu0
    %v8227 = vadd.f32 0.0, %v8226
    %v8228 = vpop.f32.mrf.mxu0
    %v8229 = vadd.f32 0.0, %v8228
    %v8230 = vpop.f32.mrf.mxu0
    %v8231 = vadd.f32 0.0, %v8230
    %v8232 = vpop.f32.mrf.mxu0
    %v8233 = vadd.f32 0.0, %v8232
    %8234 = vmatprep.mubr.bf16.mxu0 %v7938
    %8235 = vmatmul.mubr.bf16.gmra.mxu0 %v7937
    %v8236 = vpop.f32.mrf.mxu0
    %v8237 = vadd.f32 0.0, %v8236
    %v8238 = vpop.f32.mrf.mxu0
    %v8239 = vadd.f32 0.0, %v8238
    %v8240 = vpop.f32.mrf.mxu0
    %v8241 = vadd.f32 0.0, %v8240
    %v8242 = vpop.f32.mrf.mxu0
    %v8243 = vadd.f32 0.0, %v8242
    %8244 = vdwg.mxu0
    %v8245 = vadd.f32 %v7859, %v8167
    %v8246 = vadd.f32 %v7860, %v8169
    %v8247 = vadd.f32 %v7861, %v8171
    %v8248 = vadd.f32 %v7862, %v8173
    %v8249 = vadd.f32 %v7863, %v8177
    %v8250 = vadd.f32 %v7864, %v8179
    %v8251 = vadd.f32 %v7865, %v8181
    %v8252 = vadd.f32 %v7866, %v8183
    %v8253 = vadd.f32 %v7867, %v8187
    %v8254 = vadd.f32 %v7868, %v8189
    %v8255 = vadd.f32 %v7869, %v8191
    %v8256 = vadd.f32 %v7870, %v8193
    %v8257 = vadd.f32 %v7871, %v8197
    %v8258 = vadd.f32 %v7872, %v8199
    %v8259 = vadd.f32 %v7873, %v8201
    %v8260 = vadd.f32 %v7874, %v8203
    %v8261 = vadd.f32 %v7875, %v8207
    %v8262 = vadd.f32 %v7876, %v8209
    %v8263 = vadd.f32 %v7877, %v8211
    %v8264 = vadd.f32 %v7878, %v8213
    %v8265 = vadd.f32 %v7879, %v8217
    %v8266 = vadd.f32 %v7880, %v8219
    %v8267 = vadd.f32 %v7881, %v8221
    %v8268 = vadd.f32 %v7882, %v8223
    %v8269 = vadd.f32 %v7883, %v8227
    %v8270 = vadd.f32 %v7884, %v8229
    %v8271 = vadd.f32 %v7885, %v8231
    %v8272 = vadd.f32 %v7886, %v8233
    %v8273 = vadd.f32 %v7887, %v8237
    %v8274 = vadd.f32 %v7888, %v8239
    %v8275 = vadd.f32 %v7889, %v8241
    %v8276 = vadd.f32 %v7890, %v8243
    %v8277 = vld [vmem:[#allocation11] sm:$0x3]
    %v8279 = vlaneseq
    %v8280 = vshrl.u32 %v8279, 7
    %v8281 = vsub.s32 0, %v8280
    %v8282 = vrot.slane %v8277, %v8281
    %v8283 = vlaneseq
    %v8284 = vshrl.u32 %v8283, 7
    %v8285 = vsub.s32 1, %v8284
    %v8286 = vrot.slane %v8277, %v8285
    %v8289 = vadd.f32 %v8245, %v8282
    %v8290 = vadd.f32 %v8246, %v8286
    %v8291 = vadd.f32 %v8247, %v8282
    %v8292 = vadd.f32 %v8248, %v8286
    %v8293 = vadd.f32 %v8249, %v8282
    %v8294 = vadd.f32 %v8250, %v8286
    %v8295 = vadd.f32 %v8251, %v8282
    %v8296 = vadd.f32 %v8252, %v8286
    %v8297 = vadd.f32 %v8253, %v8282
    %v8298 = vadd.f32 %v8254, %v8286
    %v8299 = vadd.f32 %v8255, %v8282
    %v8300 = vadd.f32 %v8256, %v8286
    %v8301 = vadd.f32 %v8257, %v8282
    %v8302 = vadd.f32 %v8258, %v8286
    %v8303 = vadd.f32 %v8259, %v8282
    %v8304 = vadd.f32 %v8260, %v8286
    %v8305 = vadd.f32 %v8261, %v8282
    %v8306 = vadd.f32 %v8262, %v8286
    %v8307 = vadd.f32 %v8263, %v8282
    %v8308 = vadd.f32 %v8264, %v8286
    %v8309 = vadd.f32 %v8265, %v8282
    %v8310 = vadd.f32 %v8266, %v8286
    %v8311 = vadd.f32 %v8267, %v8282
    %v8312 = vadd.f32 %v8268, %v8286
    %v8313 = vadd.f32 %v8269, %v8282
    %v8314 = vadd.f32 %v8270, %v8286
    %v8315 = vadd.f32 %v8271, %v8282
    %v8316 = vadd.f32 %v8272, %v8286
    %v8317 = vadd.f32 %v8273, %v8282
    %v8318 = vadd.f32 %v8274, %v8286
    %v8319 = vadd.f32 %v8275, %v8282
    %v8320 = vadd.f32 %v8276, %v8286
    %v8321 = vmax.f32 %v8289, 0.0
    %v8322 = vmax.f32 %v8290, 0.0
    %v8323 = vmax.f32 %v8291, 0.0
    %v8324 = vmax.f32 %v8292, 0.0
    %v8325 = vmax.f32 %v8293, 0.0
    %v8326 = vmax.f32 %v8294, 0.0
    %v8327 = vmax.f32 %v8295, 0.0
    %v8328 = vmax.f32 %v8296, 0.0
    %v8329 = vmax.f32 %v8297, 0.0
    %v8330 = vmax.f32 %v8298, 0.0
    %v8331 = vmax.f32 %v8299, 0.0
    %v8332 = vmax.f32 %v8300, 0.0
    %v8333 = vmax.f32 %v8301, 0.0
    %v8334 = vmax.f32 %v8302, 0.0
    %v8335 = vmax.f32 %v8303, 0.0
    %v8336 = vmax.f32 %v8304, 0.0
    %v8337 = vmax.f32 %v8305, 0.0
    %v8338 = vmax.f32 %v8306, 0.0
    %v8339 = vmax.f32 %v8307, 0.0
    %v8340 = vmax.f32 %v8308, 0.0
    %v8341 = vmax.f32 %v8309, 0.0
    %v8342 = vmax.f32 %v8310, 0.0
    %v8343 = vmax.f32 %v8311, 0.0
    %v8344 = vmax.f32 %v8312, 0.0
    %v8345 = vmax.f32 %v8313, 0.0
    %v8346 = vmax.f32 %v8314, 0.0
    %v8347 = vmax.f32 %v8315, 0.0
    %v8348 = vmax.f32 %v8316, 0.0
    %v8349 = vmax.f32 %v8317, 0.0
    %v8350 = vmax.f32 %v8318, 0.0
    %v8351 = vmax.f32 %v8319, 0.0
    %v8352 = vmax.f32 %v8320, 0.0
    %v8353 = vadd.f32 %v8321, %v8323
    %v8354 = vadd.f32 %v8353, %v8325
    %v8355 = vadd.f32 %v8354, %v8327
    %v8356 = vadd.f32 %v8355, %v8329
    %v8357 = vadd.f32 %v8356, %v8331
    %v8358 = vadd.f32 %v8357, %v8333
    %v8359 = vadd.f32 %v8358, %v8335
    %v8360 = vrot.slane %v8359, 4
    %v8361 = vadd.f32 %v8359, %v8360
    %v8362 = vrot.slane %v8361, 2
    %v8363 = vadd.f32 %v8361, %v8362
    %v8364 = vrot.slane %v8363, 1
    %v8365 = vadd.f32 %v8363, %v8364
    %v8366 = vadd.f32 %v8322, %v8324
    %v8367 = vadd.f32 %v8366, %v8326
    %v8368 = vadd.f32 %v8367, %v8328
    %v8369 = vadd.f32 %v8368, %v8330
    %v8370 = vadd.f32 %v8369, %v8332
    %v8371 = vadd.f32 %v8370, %v8334
    %v8372 = vadd.f32 %v8371, %v8336
    %v8373 = vrot.slane %v8372, 4
    %v8374 = vadd.f32 %v8372, %v8373
    %v8375 = vrot.slane %v8374, 2
    %v8376 = vadd.f32 %v8374, %v8375
    %v8377 = vrot.slane %v8376, 1
    %v8378 = vadd.f32 %v8376, %v8377
    %v8379 = vrcp.pop 64.0
    %v8380 = vmul.f32 %v8365, %v8379
    %v8381 = vmul.f32 %v8378, %v8379
    %v8382 = vadd.f32 %v8337, %v8339
    %v8383 = vadd.f32 %v8382, %v8341
    %v8384 = vadd.f32 %v8383, %v8343
    %v8385 = vadd.f32 %v8384, %v8345
    %v8386 = vadd.f32 %v8385, %v8347
    %v8387 = vadd.f32 %v8386, %v8349
    %v8388 = vadd.f32 %v8387, %v8351
    %v8389 = vrot.slane %v8388, 4
    %v8390 = vadd.f32 %v8388, %v8389
    %v8391 = vrot.slane %v8390, 2
    %v8392 = vadd.f32 %v8390, %v8391
    %v8393 = vrot.slane %v8392, 1
    %v8394 = vadd.f32 %v8392, %v8393
    %v8395 = vadd.f32 %v8338, %v8340
    %v8396 = vadd.f32 %v8395, %v8342
    %v8397 = vadd.f32 %v8396, %v8344
    %v8398 = vadd.f32 %v8397, %v8346
    %v8399 = vadd.f32 %v8398, %v8348
    %v8400 = vadd.f32 %v8399, %v8350
    %v8401 = vadd.f32 %v8400, %v8352
    %v8402 = vrot.slane %v8401, 4
    %v8403 = vadd.f32 %v8401, %v8402
    %v8404 = vrot.slane %v8403, 2
    %v8405 = vadd.f32 %v8403, %v8404
    %v8406 = vrot.slane %v8405, 1
    %v8407 = vadd.f32 %v8405, %v8406
    %v8408 = vmul.f32 %v8394, %v8379
    %v8409 = vmul.f32 %v8407, %v8379
    %vm8410 = vcmask 1040384
    %v8411 = vsel %vm8410, %v8380, %v8408
    %v8412 = vsel %vm8410, %v8381, %v8409
    %v8413 = vpack.c.bf16 %v8411, %v8411
    %v8414 = vpack.c.bf16 %v8412, %v8412
    %v8415 = vld [vmem:[%s11] sm:$0xf]
    %v8416 = vld [vmem:[%s11 + $0x4] sm:$0xf]
    %v8417 = vld [vmem:[%s11 + $0x8] sm:$0xf]
    %v8418 = vld [vmem:[%s11 + $0xc] sm:$0xf]
    %v8419 = vld [vmem:[%s11 + $0x10] sm:$0xf]
    %v8420 = vld [vmem:[%s11 + $0x14] sm:$0xf]
    %v8421 = vld [vmem:[%s11 + $0x18] sm:$0xf]
    %v8422 = vld [vmem:[%s11 + $0x1c] sm:$0xf]
    %v8423 = vld [vmem:[%s11 + $0x20] sm:$0xf]
    %v8424 = vld [vmem:[%s11 + $0x24] sm:$0xf]
    %v8425 = vld [vmem:[%s11 + $0x28] sm:$0xf]
    %v8426 = vld [vmem:[%s11 + $0x2c] sm:$0xf]
    %v8427 = vld [vmem:[%s11 + $0x30] sm:$0xf]
    %v8428 = vld [vmem:[%s11 + $0x34] sm:$0xf]
    %v8429 = vld [vmem:[%s11 + $0x38] sm:$0xf]
    %v8430 = vld [vmem:[%s11 + $0x3c] sm:$0xf]
    %v8431 = vld [vmem:[%s11 + $0x40] sm:$0xf]
    %v8432 = vld [vmem:[%s11 + $0x44] sm:$0xf]
    %v8433 = vld [vmem:[%s11 + $0x48] sm:$0xf]
    %v8434 = vld [vmem:[%s11 + $0x4c] sm:$0xf]
    %v8435 = vld [vmem:[%s11 + $0x50] sm:$0xf]
    %v8436 = vld [vmem:[%s11 + $0x54] sm:$0xf]
    %v8437 = vld [vmem:[%s11 + $0x58] sm:$0xf]
    %v8438 = vld [vmem:[%s11 + $0x5c] sm:$0xf]
    %v8439 = vld [vmem:[%s11 + $0x60] sm:$0xf]
    %v8440 = vld [vmem:[%s11 + $0x64] sm:$0xf]
    %v8441 = vld [vmem:[%s11 + $0x68] sm:$0xf]
    %v8442 = vld [vmem:[%s11 + $0x6c] sm:$0xf]
    %v8443 = vld [vmem:[%s11 + $0x70] sm:$0xf]
    %v8444 = vld [vmem:[%s11 + $0x74] sm:$0xf]
    %v8445 = vld [vmem:[%s11 + $0x78] sm:$0xf]
    %v8446 = vld [vmem:[%s11 + $0x7c] sm:$0xf]
    %v8447 = vld [vmem:[#allocation13] sm:$0x1]
    %v8449 = vlaneseq
    %v8450 = vshrl.u32 %v8449, 7
    %v8451 = vsub.s32 0, %v8450
    %v8452 = vrot.slane %v8447, %v8451
    %v8486 = vunpack.c.l.b16 %v8415
    %v8487 = vunpack.c.l.b16 %v8416
    %v8488 = vunpack.c.l.b16 %v8417
    %v8489 = vunpack.c.l.b16 %v8418
    %v8490 = vunpack.c.l.b16 %v8419
    %v8491 = vunpack.c.l.b16 %v8420
    %v8492 = vunpack.c.l.b16 %v8421
    %v8493 = vunpack.c.l.b16 %v8422
    %v8494 = vunpack.c.l.b16 %v8423
    %v8495 = vunpack.c.l.b16 %v8424
    %v8496 = vunpack.c.l.b16 %v8425
    %v8497 = vunpack.c.l.b16 %v8426
    %v8498 = vunpack.c.l.b16 %v8427
    %v8499 = vunpack.c.l.b16 %v8428
    %v8500 = vunpack.c.l.b16 %v8429
    %v8501 = vunpack.c.l.b16 %v8430
    %v8502 = vunpack.c.l.b16 %v8431
    %v8503 = vunpack.c.l.b16 %v8432
    %v8504 = vunpack.c.l.b16 %v8433
    %v8505 = vunpack.c.l.b16 %v8434
    %v8506 = vunpack.c.l.b16 %v8435
    %v8507 = vunpack.c.l.b16 %v8436
    %v8508 = vunpack.c.l.b16 %v8437
    %v8509 = vunpack.c.l.b16 %v8438
    %v8510 = vunpack.c.l.b16 %v8439
    %v8511 = vunpack.c.l.b16 %v8440
    %v8512 = vunpack.c.l.b16 %v8441
    %v8513 = vunpack.c.l.b16 %v8442
    %v8514 = vunpack.c.l.b16 %v8443
    %v8515 = vunpack.c.l.b16 %v8444
    %v8516 = vunpack.c.l.b16 %v8445
    %v8517 = vunpack.c.l.b16 %v8446
    %v8518 = vpack.c.b16 %v8487, %v8486
    %v8519 = vpack.c.b16 %v8489, %v8488
    %v8520 = vpack.c.b16 %v8491, %v8490
    %v8521 = vpack.c.b16 %v8493, %v8492
    %v8522 = vpack.c.b16 %v8495, %v8494
    %v8523 = vpack.c.b16 %v8497, %v8496
    %v8524 = vpack.c.b16 %v8499, %v8498
    %v8525 = vpack.c.b16 %v8501, %v8500
    %v8526 = vpack.c.b16 %v8503, %v8502
    %v8527 = vpack.c.b16 %v8505, %v8504
    %v8528 = vpack.c.b16 %v8507, %v8506
    %v8529 = vpack.c.b16 %v8509, %v8508
    %v8530 = vpack.c.b16 %v8511, %v8510
    %v8531 = vpack.c.b16 %v8513, %v8512
    %v8532 = vpack.c.b16 %v8515, %v8514
    %v8533 = vpack.c.b16 %v8517, %v8516
    %8550 = vmatprep.subr.bf16.mxu0 0
    %8551 = vmatpush1.bf16.msra.mxu0 %v8525
    %8552 = vmatprep.subr.bf16.mxu0 0
    %8553 = vmatpush1.bf16.msra.mxu0 %v8524
    %8554 = vmatprep.subr.bf16.mxu0 0
    %8555 = vmatpush1.bf16.msra.mxu0 %v8523
    %8556 = vmatprep.subr.bf16.mxu0 0
    %8557 = vmatpush1.bf16.msra.mxu0 %v8522
    %8558 = vmatprep.subr.bf16.mxu0 0
    %8559 = vmatpush1.bf16.msra.mxu0 %v8521
    %8560 = vmatprep.subr.bf16.mxu0 0
    %8561 = vmatpush1.bf16.msra.mxu0 %v8520
    %8562 = vmatprep.subr.bf16.mxu0 0
    %8563 = vmatpush1.bf16.msra.mxu0 %v8519
    %8564 = vmatprep.subr.bf16.mxu0 0
    %8565 = vmatpush1.bf16.msra.mxu0 %v8518
    %8566 = vmatprep.subr.bf16.mxu0 0
    %8567 = vmatpush2.bf16.msra.mxu0 %v8533
    %8568 = vmatprep.subr.bf16.mxu0 0
    %8569 = vmatpush2.bf16.msra.mxu0 %v8532
    %8570 = vmatprep.subr.bf16.mxu0 0
    %8571 = vmatpush2.bf16.msra.mxu0 %v8531
    %8572 = vmatprep.subr.bf16.mxu0 0
    %8573 = vmatpush2.bf16.msra.mxu0 %v8530
    %8574 = vmatprep.subr.bf16.mxu0 0
    %8575 = vmatpush2.bf16.msra.mxu0 %v8529
    %8576 = vmatprep.subr.bf16.mxu0 0
    %8577 = vmatpush2.bf16.msra.mxu0 %v8528
    %8578 = vmatprep.subr.bf16.mxu0 0
    %8579 = vmatpush2.bf16.msra.mxu0 %v8527
    %8580 = vmatprep.subr.bf16.mxu0 0
    %8581 = vmatpush2.bf16.msra.mxu0 %v8526
    %8582 = vmatprep.mubr.bf16.mxu0 %v8414
    %8583 = vmatmul.mubr.bf16.gmra.mxu0 %v8413
    %v8584 = vpop.f32.mrf.mxu0
    %v8585 = vadd.f32 %v8452, %v8584
    %v8586 = vpop.f32.mrf.mxu0
    %v8587 = vpop.f32.mrf.mxu0
    %v8588 = vpop.f32.mrf.mxu0
    %8589 = vdwg.mxu0
    %v8590 = vmul.f32 %v8585, 0.01
    %vm8591 = vcmask 91136
    %8592 = vst.msk [vmem:[#allocation14] sm:$0x3] %vm8591, %v8590
    // Predicated region
    $region82: #{tpu_custom_call.1} parent=1 // pred_check
      _
    $region83: #{tpu_custom_call.1} parent=1 // pred_check_branch
      %8594 = sbr.rel (0) target = $region85
    $region84: #{tpu_custom_call.1} parent=1 // pred_region
      %s8596 = ssub.s32 32, 32
      %8597 = vsyncadd [#allocation4], %s8596
      %s8599 = sshll.u32 [#allocation14], 4
      %s8600 = int_to_ptr.vmem [resolvable:$true] %s8599
      %8602 = dma.vmem_to_hbm [thread:$0]  %s8600, 32, %s13, [#allocation4]
    $region85: #{tpu_custom_call.1} parent=1 // pred_fallthru
      _
    // Predicated region
    $region86: #{tpu_custom_call.1} parent=1 // pred_check
      _
    $region87: #{tpu_custom_call.1} parent=1 // pred_check_branch
      %8604 = sbr.rel (0) target = $region89
    $region88: #{tpu_custom_call.1} parent=1 // pred_region
      %8605 = dma.done [#allocation4], 32
    $region89: #{tpu_custom_call.1} parent=1 // pred_fallthru
      _
    %8606 = vsyncpa [#allocation3], 1
    %8607 = vsyncpa [#allocation6], 1
    %8608 = vsyncpa [#allocation9], 1
    %8609 = vsyncpa [#allocation12], 1
    %8610 = vsyncpa [#allocation4], 1

</llo_original>
